<compile_context>
chip_gen: v6e
topology: v6e:2x2x1
jax: 0.10.0
libtpu: 0.0.40
codegen_flags: <defaults>
</compile_context>

<pallas_src>
import jax
import jax.numpy as jnp
from jax.experimental import pallas as pl
from jax.experimental.pallas import tpu as pltpu


def _scores_kernel(hidden_ref, enc_ref, wh_ref, we_ref, b_ref, v_ref, out_ref):
    """Pre-softmax attention scores for one (B_t, S_t) tile.

    hidden_ref : (B_t, H)       f32  decoder hidden state tile
    enc_ref    : (S_t, B_t, H)  f32  encoder outputs tile (native (S,B,H) layout)
    wh_ref     : (H, H)         matmul dtype, acts on hidden
    we_ref     : (H, H)         matmul dtype, acts on encoder outputs
    b_ref      : (1, H)         f32  attn bias
    v_ref      : (1, H)         f32  v weight row
    out_ref    : (B_t, S_t)     f32  score tile
    """
    s_t, b_t, h = enc_ref.shape
    mm_dtype = wh_ref.dtype

    # Hidden projection with the bias folded in once: (B_t, H).
    hb = jnp.dot(hidden_ref[...].astype(mm_dtype), wh_ref[...],
                 preferred_element_type=jnp.float32) + b_ref[...]

    # Encoder projection on the MXU: (S_t*B_t, H) @ (H, H), f32 accumulation.
    enc2d = enc_ref[...].reshape(s_t * b_t, h).astype(mm_dtype)
    eproj = jnp.dot(enc2d, we_ref[...],
                    preferred_element_type=jnp.float32).reshape(s_t, b_t, h)

    energy = jnp.tanh(eproj + hb[None, :, :])                     # (S_t, B_t, H)

    # v projection: VPU multiply + cross-lane reduction (not an N=1 matmul).
    scores = jnp.sum(energy * v_ref[...][None, :, :], axis=-1)    # (S_t, B_t)

    out_ref[...] = scores.T.astype(out_ref.dtype)                 # (B_t, S_t)


def _masked_softmax_kernel(scores_ref, addmask_ref, out_ref):
    """Masked softmax over the source-length axis (axis=1) of a (B, S) slab."""
    s = scores_ref[...] + addmask_ref[...]            # additive mask: 0 or -1e10
    m = jnp.max(s, axis=1, keepdims=True)
    e = jnp.exp(s - m)
    denom = jnp.sum(e, axis=1, keepdims=True)
    out_ref[...] = (e * pl.reciprocal(denom, approx=True)).astype(out_ref.dtype)


def _pick_tile(n, cap, align):
    """Largest tile <= cap that divides n and is a multiple of `align`;
    falls back to the full extent (always a legal block)."""
    if n <= cap:
        return n
    start = cap - (cap % align)
    for t in range(start, 0, -align):
        if n % t == 0:
            return t
    return n


def attention_forward(hidden, encoder_outputs, mask, params, *,
                      matmul_dtype=jnp.bfloat16, s_tile_cap=256, b_tile_cap=8):
    """hidden: (1, B, H), encoder_outputs: (S, B, H), mask: (B, S) -> (B, S)."""
    S, B, H = encoder_outputs.shape
    hid = hidden[0]                                   # (B, H); leading-dim squeeze only

    w_attn, b_attn, w_v = params["attn_w"], params["attn_b"], params["v_w"]
    # PyTorch Linear applies x @ W^T; pre-transpose and split the concat weight.
    wh = w_attn[:, :H].T.astype(matmul_dtype)         # (H, H) acts on hidden
    we = w_attn[:, H:].T.astype(matmul_dtype)         # (H, H) acts on encoder outputs
    b = b_attn.reshape(1, H).astype(jnp.float32)
    v = w_v.reshape(1, H).astype(jnp.float32)

    # Tile sizes: sublane-aligned batch tile, lane-dense (128-multiple) S tile.
    # Caps keep the double-buffered working set well under v7x's 64 MiB VMEM.
    b_t = _pick_tile(B, b_tile_cap, 8)
    s_t = _pick_tile(S, s_tile_cap, 128)
    grid = (B // b_t, S // s_t)

    scores = pl.pallas_call(
        _scores_kernel,
        out_shape=jax.ShapeDtypeStruct((B, S), jnp.float32),
        grid_spec=pltpu.PrefetchScalarGridSpec(
            num_scalar_prefetch=0,
            grid=grid,
            in_specs=[
                pl.BlockSpec((b_t, H), lambda bi, si: (bi, 0)),           # hidden
                pl.BlockSpec((s_t, b_t, H), lambda bi, si: (si, bi, 0)),  # enc (S,B,H)
                pl.BlockSpec((H, H), lambda bi, si: (0, 0)),              # Wh (resident)
                pl.BlockSpec((H, H), lambda bi, si: (0, 0)),              # We (resident)
                pl.BlockSpec((1, H), lambda bi, si: (0, 0)),              # bias
                pl.BlockSpec((1, H), lambda bi, si: (0, 0)),              # v row
            ],
            out_specs=pl.BlockSpec((b_t, s_t), lambda bi, si: (bi, si)),
        ),
        compiler_params=pltpu.CompilerParams(
            dimension_semantics=("parallel", "parallel"),
            vmem_limit_bytes=32 * 1024 * 1024,
        ),
    )(hid, encoder_outputs, wh, we, b, v)

    # Additive mask (0 where valid, -1e10 where padded); tiny (B, S) slab.
    addmask = jnp.where(mask == 0, jnp.float32(-10000000000.0), jnp.float32(0.0))

    vmem = pl.BlockSpec(memory_space=pltpu.MemorySpace.VMEM)
    return pl.pallas_call(
        _masked_softmax_kernel,
        out_shape=jax.ShapeDtypeStruct((B, S), jnp.float32),
        in_specs=[vmem, vmem],
        out_specs=vmem,
    )(scores, addmask)


def init_params(key, hidden_dim):
    """Deterministic init mimicking nn.Linear's uniform(-1/sqrt(fan_in), ...)."""
    k1, k2, k3 = jax.random.split(key, 3)
    bound_attn = 1.0 / jnp.sqrt(2.0 * hidden_dim)
    bound_v = 1.0 / jnp.sqrt(1.0 * hidden_dim)
    return {
        "attn_w": jax.random.uniform(k1, (hidden_dim, 2 * hidden_dim),
                                     jnp.float32, -bound_attn, bound_attn),
        "attn_b": jax.random.uniform(k2, (hidden_dim,),
                                     jnp.float32, -bound_attn, bound_attn),
        "v_w": jax.random.uniform(k3, (1, hidden_dim),
                                  jnp.float32, -bound_v, bound_v),
    }


def reference_forward(hidden, encoder_outputs, mask, params):
    """Pure-JAX reference mirroring the PyTorch forward exactly."""
    hid = hidden[0]                                            # (B, H)
    S = encoder_outputs.shape[0]
    enc = jnp.transpose(encoder_outputs, (1, 0, 2))            # (B, S, H)
    hid_rep = jnp.repeat(hid[:, None, :], S, axis=1)           # (B, S, H)
    cat = jnp.concatenate([hid_rep, enc], axis=2)              # (B, S, 2H)
    energy = jnp.tanh(cat @ params["attn_w"].T + params["attn_b"])
    attention = (energy @ params["v_w"].T)[..., 0]             # (B, S)
    attention = jnp.where(mask == 0, -10000000000.0, attention)
    return jax.nn.softmax(attention, axis=1)


if __name__ == "__main__":
    # Small, but large enough to exercise a real 2x2 grid (B tiles x S tiles).
    B, S, H = 16, 512, 32
    key = jax.random.PRNGKey(0)
    k_h, k_e, k_p, k_l = jax.random.split(key, 4)

    hidden = jax.random.normal(k_h, (1, B, H), jnp.float32)
    encoder_outputs = jax.random.normal(k_e, (S, B, H), jnp.float32)
    lengths = jax.random.randint(k_l, (B,), 1, S + 1)                 # valid lengths
    mask = (jnp.arange(S)[None, :] < lengths[:, None]).astype(jnp.int32)  # (B, S)

    params = init_params(k_p, H)
    ref = reference_forward(hidden, encoder_outputs, mask, params)

    # Structural check with full f32 matmul operands.
    out_f32 = attention_forward(hidden, encoder_outputs, mask, params,
                                matmul_dtype=jnp.float32)
    out_f32 = jax.block_until_ready(out_f32)
    assert out_f32.shape == (B, S)
    assert jnp.allclose(out_f32, ref, atol=5e-3, rtol=5e-3), "f32 kernel mismatch"

    # Default path: bf16 MXU operands, f32 accumulation / elementwise math.
    out = attention_forward(hidden, encoder_outputs, mask, params)
    out = jax.block_until_ready(out)
    assert out.shape == (B, S)
    assert jnp.allclose(out, ref, atol=2e-2, rtol=2e-2), "bf16 kernel mismatch"
    assert jnp.allclose(jnp.sum(out, axis=1), 1.0, atol=5e-3)

    print("KERNEL_OK")
</pallas_src>

<mosaic_0001>
module attributes {stable_mosaic.version = 11 : i64} {
  func.func @_scores_kernel(%arg0: i32, %arg1: i32, %arg2: memref<8x32xf32, #tpu.memory_space<vmem>>, %arg3: memref<256x8x32xf32, #tpu.memory_space<vmem>>, %arg4: memref<32x32xf32, #tpu.memory_space<vmem>>, %arg5: memref<32x32xf32, #tpu.memory_space<vmem>>, %arg6: memref<1x32xf32, #tpu.memory_space<vmem>>, %arg7: memref<1x32xf32, #tpu.memory_space<vmem>>, %arg8: memref<8x256xf32, #tpu.memory_space<vmem>>) attributes {dimension_semantics = [#tpu.dimension_semantics<parallel>, #tpu.dimension_semantics<parallel>], iteration_bounds = array<i64: 2, 2>, scalar_prefetch = 0 : i64, scratch_operands = 0 : i64, tpu.core_type = #tpu.core_type<tc>, window_params = [{transform_indices = @transform_0, window_bounds = array<i64: 8, 32>}, {transform_indices = @transform_1, window_bounds = array<i64: 256, 8, 32>}, {pipeline_mode = #tpu.pipeline_mode<synchronous>, transform_indices = @transform_2, window_bounds = array<i64: 32, 32>}, {pipeline_mode = #tpu.pipeline_mode<synchronous>, transform_indices = @transform_3, window_bounds = array<i64: 32, 32>}, {pipeline_mode = #tpu.pipeline_mode<synchronous>, transform_indices = @transform_4, window_bounds = array<i64: 1, 32>}, {pipeline_mode = #tpu.pipeline_mode<synchronous>, transform_indices = @transform_5, window_bounds = array<i64: 1, 32>}, {transform_indices = @transform_6, window_bounds = array<i64: 8, 256>}]} {
    %c0 = arith.constant 0 : index
    %c0_0 = arith.constant 0 : index
    %0 = vector.load %arg2[%c0, %c0_0] : memref<8x32xf32, #tpu.memory_space<vmem>>, vector<8x32xf32>
    %c0_1 = arith.constant 0 : index
    %c0_2 = arith.constant 0 : index
    %1 = vector.load %arg4[%c0_1, %c0_2] : memref<32x32xf32, #tpu.memory_space<vmem>>, vector<32x32xf32>
    %cst = arith.constant dense<0.000000e+00> : vector<8x32xf32>
    %2 = tpu.matmul %0, %1, %cst {dimension_numbers = #tpu.dot_dimension_numbers<[1], [0], [0], [1], [0, 0, 1, 1], [], []>} : vector<8x32xf32>, vector<32x32xf32>, vector<8x32xf32> -> vector<8x32xf32>
    %c0_3 = arith.constant 0 : index
    %c0_4 = arith.constant 0 : index
    %3 = vector.load %arg6[%c0_3, %c0_4] : memref<1x32xf32, #tpu.memory_space<vmem>>, vector<1x32xf32>
    %4 = vector.broadcast %3 : vector<1x32xf32> to vector<8x32xf32>
    %5 = arith.addf %2, %4 : vector<8x32xf32>
    %c0_5 = arith.constant 0 : index
    %c0_6 = arith.constant 0 : index
    %c0_7 = arith.constant 0 : index
    %6 = vector.load %arg3[%c0_5, %c0_6, %c0_7] : memref<256x8x32xf32, #tpu.memory_space<vmem>>, vector<256x8x32xf32>
    %7 = vector.shape_cast %6 : vector<256x8x32xf32> to vector<2048x32xf32>
    %c0_8 = arith.constant 0 : index
    %c0_9 = arith.constant 0 : index
    %8 = vector.load %arg5[%c0_8, %c0_9] : memref<32x32xf32, #tpu.memory_space<vmem>>, vector<32x32xf32>
    %cst_10 = arith.constant dense<0.000000e+00> : vector<2048x32xf32>
    %9 = tpu.matmul %7, %8, %cst_10 {dimension_numbers = #tpu.dot_dimension_numbers<[1], [0], [0], [1], [0, 0, 1, 1], [], []>} : vector<2048x32xf32>, vector<32x32xf32>, vector<2048x32xf32> -> vector<2048x32xf32>
    %10 = vector.shape_cast %9 : vector<2048x32xf32> to vector<256x8x32xf32>
    %11 = vector.shape_cast %5 : vector<8x32xf32> to vector<1x8x32xf32>
    %12 = vector.broadcast %11 : vector<1x8x32xf32> to vector<256x8x32xf32>
    %13 = arith.addf %10, %12 : vector<256x8x32xf32>
    %14 = math.tanh %13 : vector<256x8x32xf32>
    %c0_11 = arith.constant 0 : index
    %c0_12 = arith.constant 0 : index
    %15 = vector.load %arg7[%c0_11, %c0_12] : memref<1x32xf32, #tpu.memory_space<vmem>>, vector<1x32xf32>
    %16 = vector.shape_cast %15 : vector<1x32xf32> to vector<1x1x32xf32>
    %17 = vector.broadcast %16 : vector<1x1x32xf32> to vector<256x8x32xf32>
    %18 = arith.mulf %14, %17 : vector<256x8x32xf32>
    %cst_13 = arith.constant dense<0.000000e+00> : vector<256x8xf32>
    %19 = vector.multi_reduction <add>, %18, %cst_13 [2] : vector<256x8x32xf32> to vector<256x8xf32>
    %20 = tpu.transpose %19, [1, 0] : vector<256x8xf32> -> vector<8x256xf32>
    %c0_14 = arith.constant 0 : index
    %c0_15 = arith.constant 0 : index
    %21 = vector.load %arg8[%c0_14, %c0_15] : memref<8x256xf32, #tpu.memory_space<vmem>>, vector<8x256xf32>
    tpu.vector_store %arg8[%c0_14, %c0_15], %20 {strides = array<i32>} : memref<8x256xf32, #tpu.memory_space<vmem>>, vector<8x256xf32>,
    return
  }
  func.func @transform_0(%arg0: i32, %arg1: i32) -> (i32, i32) {
    %c0_i32 = arith.constant 0 : i32
    %c0_i32_0 = arith.constant 0 : i32
    return %arg0, %c0_i32 : i32, i32
  }
  func.func @transform_1(%arg0: i32, %arg1: i32) -> (i32, i32, i32) {
    %c0_i32 = arith.constant 0 : i32
    %c0_i32_0 = arith.constant 0 : i32
    return %arg1, %arg0, %c0_i32 : i32, i32, i32
  }
  func.func @transform_2(%arg0: i32, %arg1: i32) -> (i32, i32) {
    %c0_i32 = arith.constant 0 : i32
    %c0_i32_0 = arith.constant 0 : i32
    %c0_i32_1 = arith.constant 0 : i32
    return %c0_i32, %c0_i32_0 : i32, i32
  }
  func.func @transform_3(%arg0: i32, %arg1: i32) -> (i32, i32) {
    %c0_i32 = arith.constant 0 : i32
    %c0_i32_0 = arith.constant 0 : i32
    %c0_i32_1 = arith.constant 0 : i32
    return %c0_i32, %c0_i32_0 : i32, i32
  }
  func.func @transform_4(%arg0: i32, %arg1: i32) -> (i32, i32) {
    %c0_i32 = arith.constant 0 : i32
    %c0_i32_0 = arith.constant 0 : i32
    %c0_i32_1 = arith.constant 0 : i32
    return %c0_i32, %c0_i32_0 : i32, i32
  }
  func.func @transform_5(%arg0: i32, %arg1: i32) -> (i32, i32) {
    %c0_i32 = arith.constant 0 : i32
    %c0_i32_0 = arith.constant 0 : i32
    %c0_i32_1 = arith.constant 0 : i32
    return %c0_i32, %c0_i32_0 : i32, i32
  }
  func.func @transform_6(%arg0: i32, %arg1: i32) -> (i32, i32) {
    %c0_i32 = arith.constant 0 : i32
    return %arg0, %arg1 : i32, i32
  }
}

</mosaic_0001>

<llo_original>
// kernel: tpu_custom_call.1
$region0: #{tpu_custom_call.1}
  #allocation0 [shape = 'u32[]', space=smem, size = 0x4, offset = 0x4, fixed_abs, tag = 'smem constant byte address 0x4 - core index']
  #allocation1 [shape = 'u32[144,128]{1,0:T(1,128)}', space=vmem, size = 0x12000, scoped, tag = 'internal scratch']
  %s0 = inlined_call_operand.vmem [shape: f32[16,32], index: 0, kind: input, shape index: {}]
  %s1 = inlined_call_operand.vmem [shape: f32[512,16,32], index: 1, kind: input, shape index: {}]
  %s2 = inlined_call_operand.vmem [shape: f32[32,32], index: 2, kind: input, shape index: {}]
  %s3 = inlined_call_operand.vmem [shape: f32[32,32], index: 3, kind: input, shape index: {}]
  %s4 = inlined_call_operand.vmem [shape: f32[1,32], index: 4, kind: input, shape index: {}]
  %s5 = inlined_call_operand.vmem [shape: f32[1,32], index: 5, kind: input, shape index: {}]
  %s6 = inlined_call_operand.hbm [shape: f32[16,512], index: 6, kind: output, shape index: {}]
  %s7 = sld [smem:[#allocation0]]
  $region95: #{tpu_custom_call.1} parent=0
    _
  %s9 = ssub.s32 1, %s7
  %s10 = scalar_select 0, %s9, %s7
  $region1: #{tpu_custom_call.1} parent=0
    #allocation2 [shape = 'u8[2097152]{0}', space=vmem, size = 0x200000, scoped, tag = 'input window, operand 1']
    #allocation3 [shape = 'u8[16384]{0}', space=vmem, size = 0x4000, scoped, tag = 'output window, operand 0']
    #allocation4 [shape = 's32[2]{0}', space=sflag, size = 0x8, scoped, tag = 'scoped memory for tpu_custom_call.1']
    %11 = vsyncpa [#allocation4], 0
    %s12 = scalar_lea.sflag [#allocation4], 1
    %13 = vsyncpa %s12, 0
    loop: start=0, step=1, limit=6
    $region2: #{tpu_custom_call.1} parent=1 // loop_pre_header
      _
    $region3: #{tpu_custom_call.1} parent=1 // loop_header
      %s15 = sphi 0, %s19
      %p16 = scmp.ge.s32.totalorder %s15, 6
      %s22 = sphi 0, %s34
      %s23 = sphi 0, %s30
      %s24 = sphi 0, %s22
      %s25 = sphi 0, %s23
      %s26 = sphi 0, %s24
      %s27 = sphi 0, %s25
      %s37 = sphi 0, %s39
      %s40 = sphi 0, %s37
      %s41 = sphi 0, %s40
      %s57 = sphi 0, %s41
      %s65 = sphi 0, %s67
      %s68 = sphi 0, %s65
      %s69 = sphi 0, %s68
      %s85 = sphi 0, %s69
      %s89 = sphi 0, %s89
      %s91 = sphi 0, %s89
      %s92 = sphi 0, %s91
      %s106 = sphi 0, %s92
      %s110 = sphi 0, %s110
      %s112 = sphi 0, %s110
      %s113 = sphi 0, %s112
      %s127 = sphi 0, %s113
      %s131 = sphi 0, %s131
      %s133 = sphi 0, %s131
      %s134 = sphi 0, %s133
      %s148 = sphi 0, %s134
      %s152 = sphi 0, %s152
      %s154 = sphi 0, %s152
      %s155 = sphi 0, %s154
      %s169 = sphi 0, %s155
      %s177 = sphi 0, %s179
      %s180 = sphi 0, %s177
      %s181 = sphi 0, %s180
      %s197 = sphi 0, %s181
    $region4: #{tpu_custom_call.1} parent=1 // loop_header_branch
      %18 = sbr.rel (%p16) target = $region8
    $region5: #{tpu_custom_call.1} parent=1 // loop_body
      %s20 = ssub.s32 %s15, 1
      %s21 = ssub.s32 %s15, 2
      %s28 = sadd.s32 1, %s23
      %p29 = scmp.ge.s32.totalorder %s28, 2
      %s30 = scalar_select %p29, 0, %s28
      %s31 = sadd.s32 1, %s22
      %s32 = scalar_select %p29, %s31, %s22
      %p33 = scmp.ge.s32.totalorder %s32, 2
      %s34 = scalar_select %p33, 0, %s32
      %s35 = ssub.s32 %s22, %s34
      %p36 = scmp.eq.s32.totalorder %s35, 0
      %s38 = sadd.s32 %s37, 1
      %s39 = scalar_select %p36, %s37, %s38
      %p42 = pneg %p36
      %p43 = scmp.eq.s32.totalorder %s15, 3
      %p44 = por %p42, %p43
      %p45 = scmp.ne.s32.totalorder %s37, %s40
      %p46 = scmp.eq.s32.totalorder %s15, 0
      %p47 = por %p45, %p46
      %p48 = scmp.ne.s32.totalorder %s37, %s40
      %p49 = scmp.eq.s32.totalorder %s20, 3
      %p50 = por %p48, %p49
      %p51 = scmp.ne.s32.totalorder %s40, %s41
      %p52 = scmp.eq.s32.totalorder %s20, 0
      %p53 = por %p51, %p52
      %p54 = scmp.ne.s32.totalorder %s40, %s41
      %p55 = scmp.eq.s32.totalorder %s21, 3
      %p56 = por %p54, %p55
      %p58 = scmp.ne.s32.totalorder %s41, %s57
      %p59 = scmp.eq.s32.totalorder %s21, 0
      %p60 = por %p58, %p59
      %s61 = ssub.s32 %s23, %s30
      %s62 = ssub.s32 %s22, %s34
      %s63 = sor.u32 %s61, %s62
      %p64 = scmp.eq.s32.totalorder %s63, 0
      %s66 = sadd.s32 %s65, 1
      %s67 = scalar_select %p64, %s65, %s66
      %p70 = pneg %p64
      %p71 = scmp.eq.s32.totalorder %s15, 3
      %p72 = por %p70, %p71
      %p73 = scmp.ne.s32.totalorder %s65, %s68
      %p74 = scmp.eq.s32.totalorder %s15, 0
      %p75 = por %p73, %p74
      %p76 = scmp.ne.s32.totalorder %s65, %s68
      %p77 = scmp.eq.s32.totalorder %s20, 3
      %p78 = por %p76, %p77
      %p79 = scmp.ne.s32.totalorder %s68, %s69
      %p80 = scmp.eq.s32.totalorder %s20, 0
      %p81 = por %p79, %p80
      %p82 = scmp.ne.s32.totalorder %s68, %s69
      %p83 = scmp.eq.s32.totalorder %s21, 3
      %p84 = por %p82, %p83
      %p86 = scmp.ne.s32.totalorder %s69, %s85
      %p87 = scmp.eq.s32.totalorder %s21, 0
      %p88 = por %p86, %p87
      %s90 = sadd.s32 %s89, 1
      %p93 = scmp.eq.s32.totalorder %s15, 3
      %p94 = scmp.ne.s32.totalorder %s89, %s91
      %p95 = scmp.eq.s32.totalorder %s15, 0
      %p96 = por %p94, %p95
      %p97 = scmp.ne.s32.totalorder %s89, %s91
      %p98 = scmp.eq.s32.totalorder %s20, 3
      %p99 = por %p97, %p98
      %p100 = scmp.ne.s32.totalorder %s91, %s92
      %p101 = scmp.eq.s32.totalorder %s20, 0
      %p102 = por %p100, %p101
      %p103 = scmp.ne.s32.totalorder %s91, %s92
      %p104 = scmp.eq.s32.totalorder %s21, 3
      %p105 = por %p103, %p104
      %p107 = scmp.ne.s32.totalorder %s92, %s106
      %p108 = scmp.eq.s32.totalorder %s21, 0
      %p109 = por %p107, %p108
      %s111 = sadd.s32 %s110, 1
      %p114 = scmp.eq.s32.totalorder %s15, 3
      %p115 = scmp.ne.s32.totalorder %s110, %s112
      %p116 = scmp.eq.s32.totalorder %s15, 0
      %p117 = por %p115, %p116
      %p118 = scmp.ne.s32.totalorder %s110, %s112
      %p119 = scmp.eq.s32.totalorder %s20, 3
      %p120 = por %p118, %p119
      %p121 = scmp.ne.s32.totalorder %s112, %s113
      %p122 = scmp.eq.s32.totalorder %s20, 0
      %p123 = por %p121, %p122
      %p124 = scmp.ne.s32.totalorder %s112, %s113
      %p125 = scmp.eq.s32.totalorder %s21, 3
      %p126 = por %p124, %p125
      %p128 = scmp.ne.s32.totalorder %s113, %s127
      %p129 = scmp.eq.s32.totalorder %s21, 0
      %p130 = por %p128, %p129
      %s132 = sadd.s32 %s131, 1
      %p135 = scmp.eq.s32.totalorder %s15, 3
      %p136 = scmp.ne.s32.totalorder %s131, %s133
      %p137 = scmp.eq.s32.totalorder %s15, 0
      %p138 = por %p136, %p137
      %p139 = scmp.ne.s32.totalorder %s131, %s133
      %p140 = scmp.eq.s32.totalorder %s20, 3
      %p141 = por %p139, %p140
      %p142 = scmp.ne.s32.totalorder %s133, %s134
      %p143 = scmp.eq.s32.totalorder %s20, 0
      %p144 = por %p142, %p143
      %p145 = scmp.ne.s32.totalorder %s133, %s134
      %p146 = scmp.eq.s32.totalorder %s21, 3
      %p147 = por %p145, %p146
      %p149 = scmp.ne.s32.totalorder %s134, %s148
      %p150 = scmp.eq.s32.totalorder %s21, 0
      %p151 = por %p149, %p150
      %s153 = sadd.s32 %s152, 1
      %p156 = scmp.eq.s32.totalorder %s15, 3
      %p157 = scmp.ne.s32.totalorder %s152, %s154
      %p158 = scmp.eq.s32.totalorder %s15, 0
      %p159 = por %p157, %p158
      %p160 = scmp.ne.s32.totalorder %s152, %s154
      %p161 = scmp.eq.s32.totalorder %s20, 3
      %p162 = por %p160, %p161
      %p163 = scmp.ne.s32.totalorder %s154, %s155
      %p164 = scmp.eq.s32.totalorder %s20, 0
      %p165 = por %p163, %p164
      %p166 = scmp.ne.s32.totalorder %s154, %s155
      %p167 = scmp.eq.s32.totalorder %s21, 3
      %p168 = por %p166, %p167
      %p170 = scmp.ne.s32.totalorder %s155, %s169
      %p171 = scmp.eq.s32.totalorder %s21, 0
      %p172 = por %p170, %p171
      %s173 = ssub.s32 %s22, %s34
      %s174 = ssub.s32 %s23, %s30
      %s175 = sor.u32 %s173, %s174
      %p176 = scmp.eq.s32.totalorder %s175, 0
      %s178 = sadd.s32 %s177, 1
      %s179 = scalar_select %p176, %s177, %s178
      %p182 = pneg %p176
      %p183 = scmp.eq.s32.totalorder %s15, 3
      %p184 = por %p182, %p183
      %p185 = scmp.ne.s32.totalorder %s177, %s180
      %p186 = scmp.eq.s32.totalorder %s15, 0
      %p187 = por %p185, %p186
      %p188 = scmp.ne.s32.totalorder %s177, %s180
      %p189 = scmp.eq.s32.totalorder %s20, 3
      %p190 = por %p188, %p189
      %p191 = scmp.ne.s32.totalorder %s180, %s181
      %p192 = scmp.eq.s32.totalorder %s20, 0
      %p193 = por %p191, %p192
      %p194 = scmp.ne.s32.totalorder %s180, %s181
      %p195 = scmp.eq.s32.totalorder %s21, 3
      %p196 = por %p194, %p195
      %p198 = scmp.ne.s32.totalorder %s181, %s197
      %p199 = scmp.eq.s32.totalorder %s21, 0
      %p200 = por %p198, %p199
      %p201 = scmp.le.s32.totalorder 1, %s15
      %p202 = scmp.lt.s32.totalorder %s15, 5
      %p203 = pnand %p201, %p202
      %p204 = pneg %p203
      // Predicated region
      $region9: #{tpu_custom_call.1} parent=5 // pred_check
        _
      $region10: #{tpu_custom_call.1} parent=5 // pred_check_branch
        %206 = sbr.rel (%p203) target = $region12
      $region11: #{tpu_custom_call.1} parent=5 // pred_region
        %s207 = ssub.s32 %s15, 1
        // Predicated region
        $region13: #{tpu_custom_call.1} parent=11 // pred_check
          %p208 = pneg %p102
        $region14: #{tpu_custom_call.1} parent=11 // pred_check_branch
          %210 = sbr.rel (%p208) target = $region16
        $region15: #{tpu_custom_call.1} parent=11 // pred_region
          _
        $region16: #{tpu_custom_call.1} parent=11 // pred_fallthru
          _
        // Predicated region
        $region17: #{tpu_custom_call.1} parent=11 // pred_check
          %p211 = pneg %p123
        $region18: #{tpu_custom_call.1} parent=11 // pred_check_branch
          %213 = sbr.rel (%p211) target = $region20
        $region19: #{tpu_custom_call.1} parent=11 // pred_region
          _
        $region20: #{tpu_custom_call.1} parent=11 // pred_fallthru
          _
        // Predicated region
        $region21: #{tpu_custom_call.1} parent=11 // pred_check
          %p214 = pneg %p144
        $region22: #{tpu_custom_call.1} parent=11 // pred_check_branch
          %216 = sbr.rel (%p214) target = $region24
        $region23: #{tpu_custom_call.1} parent=11 // pred_region
          _
        $region24: #{tpu_custom_call.1} parent=11 // pred_fallthru
          _
        // Predicated region
        $region25: #{tpu_custom_call.1} parent=11 // pred_check
          %p217 = pneg %p165
        $region26: #{tpu_custom_call.1} parent=11 // pred_check_branch
          %219 = sbr.rel (%p217) target = $region28
        $region27: #{tpu_custom_call.1} parent=11 // pred_region
          _
        $region28: #{tpu_custom_call.1} parent=11 // pred_fallthru
          _
      $region12: #{tpu_custom_call.1} parent=5 // pred_fallthru
        _
      %p220 = scmp.lt.s32.totalorder %s15, 4
      // Predicated region
      $region29: #{tpu_custom_call.1} parent=5 // pred_check
        %p221 = pneg %p220
      $region30: #{tpu_custom_call.1} parent=5 // pred_check_branch
        %223 = sbr.rel (%p221) target = $region32
      $region31: #{tpu_custom_call.1} parent=5 // pred_region
        // Predicated region
        $region33: #{tpu_custom_call.1} parent=31 // pred_check
          %p224 = pneg %p47
        $region34: #{tpu_custom_call.1} parent=31 // pred_check_branch
          %226 = sbr.rel (%p224) target = $region36
        $region35: #{tpu_custom_call.1} parent=31 // pred_region
          %p227 = scmp.lt.s32.totalorder %s22, 1
          %s228 = scalar_select %p227, %s22, 1
          %s229 = smul.addr %s228, 8
          %s230 = scalar_lea.vmem %s0, %s229
        $region36: #{tpu_custom_call.1} parent=31 // pred_fallthru
          _
        // Predicated region
        $region37: #{tpu_custom_call.1} parent=31 // pred_check
          %p231 = pneg %p75
        $region38: #{tpu_custom_call.1} parent=31 // pred_check_branch
          %233 = sbr.rel (%p231) target = $region40
        $region39: #{tpu_custom_call.1} parent=31 // pred_region
          %s234 = sand.u32 %s65, 1
          %s235 = sand.u32 %s65, 1
          %s236 = smul.addr %s235, 2048
          %s237 = scalar_lea.vmem [#allocation2], %s236
          %s238 = smul.u32 256, %s23
          %s239 = smul.addr %s238, 2
          %s240 = sadd.s32 %s22, %s239
          %s241 = smul.addr %s240, 8
          %s242 = scalar_lea.vmem %s1, %s241
          // Predicated region
          $region41: #{tpu_custom_call.1} parent=39 // pred_check
            _
          $region42: #{tpu_custom_call.1} parent=39 // pred_check_branch
            %244 = sbr.rel (0) target = $region44
          $region43: #{tpu_custom_call.1} parent=39 // pred_region
            // Predicated region
            $region45: #{tpu_custom_call.1} parent=43 // pred_check
              _
            $region46: #{tpu_custom_call.1} parent=43 // pred_check_branch
              %246 = sbr.rel (0) target = $region48
            $region47: #{tpu_custom_call.1} parent=43 // pred_region
              // Predicated region
              $region60: #{tpu_custom_call.1} parent=47 // pred_check
                _
              $region61: #{tpu_custom_call.1} parent=47 // pred_check_branch
                %772 = sbr.rel (0) target = $region63
              $region62: #{tpu_custom_call.1} parent=47 // pred_region
                loop: start=0, step=1, limit=1
                $region64: #{tpu_custom_call.1} parent=62 // loop_pre_header
                  _
                $region65: #{tpu_custom_call.1} parent=62 // loop_header
                  %s774 = sphi 0, %s778
                  %p775 = scmp.ge.s32.totalorder %s774, 1
                  %s779 = sphi %s242, %s242
                  %s780 = sphi %s237, %s237
                $region66: #{tpu_custom_call.1} parent=62 // loop_header_branch
                  %777 = sbr.rel (%p775) target = $region70
                $region67: #{tpu_custom_call.1} parent=62 // loop_body
                  %v781 = vld [vmem:[%s779] sm:$0xff]
                  %782 = vst [vmem:[%s780] sm:$0xff] %v781
                  %v783 = vld [vmem:[%s779 + $0x10] sm:$0xff]
                  %784 = vst [vmem:[%s780 + $0x8] sm:$0xff] %v783
                  %v785 = vld [vmem:[%s779 + $0x20] sm:$0xff]
                  %786 = vst [vmem:[%s780 + $0x10] sm:$0xff] %v785
                  %v787 = vld [vmem:[%s779 + $0x30] sm:$0xff]
                  %788 = vst [vmem:[%s780 + $0x18] sm:$0xff] %v787
                  %v789 = vld [vmem:[%s779 + $0x40] sm:$0xff]
                  %790 = vst [vmem:[%s780 + $0x20] sm:$0xff] %v789
                  %v791 = vld [vmem:[%s779 + $0x50] sm:$0xff]
                  %792 = vst [vmem:[%s780 + $0x28] sm:$0xff] %v791
                  %v793 = vld [vmem:[%s779 + $0x60] sm:$0xff]
                  %794 = vst [vmem:[%s780 + $0x30] sm:$0xff] %v793
                  %v795 = vld [vmem:[%s779 + $0x70] sm:$0xff]
                  %796 = vst [vmem:[%s780 + $0x38] sm:$0xff] %v795
                  %v797 = vld [vmem:[%s779 + $0x80] sm:$0xff]
                  %798 = vst [vmem:[%s780 + $0x40] sm:$0xff] %v797
                  %v799 = vld [vmem:[%s779 + $0x90] sm:$0xff]
                  %800 = vst [vmem:[%s780 + $0x48] sm:$0xff] %v799
                  %v801 = vld [vmem:[%s779 + $0xa0] sm:$0xff]
                  %802 = vst [vmem:[%s780 + $0x50] sm:$0xff] %v801
                  %v803 = vld [vmem:[%s779 + $0xb0] sm:$0xff]
                  %804 = vst [vmem:[%s780 + $0x58] sm:$0xff] %v803
                  %v805 = vld [vmem:[%s779 + $0xc0] sm:$0xff]
                  %806 = vst [vmem:[%s780 + $0x60] sm:$0xff] %v805
                  %v807 = vld [vmem:[%s779 + $0xd0] sm:$0xff]
                  %808 = vst [vmem:[%s780 + $0x68] sm:$0xff] %v807
                  %v809 = vld [vmem:[%s779 + $0xe0] sm:$0xff]
                  %810 = vst [vmem:[%s780 + $0x70] sm:$0xff] %v809
                  %v811 = vld [vmem:[%s779 + $0xf0] sm:$0xff]
                  %812 = vst [vmem:[%s780 + $0x78] sm:$0xff] %v811
                  %v813 = vld [vmem:[%s779 + $0x100] sm:$0xff]
                  %814 = vst [vmem:[%s780 + $0x80] sm:$0xff] %v813
                  %v815 = vld [vmem:[%s779 + $0x110] sm:$0xff]
                  %816 = vst [vmem:[%s780 + $0x88] sm:$0xff] %v815
                  %v817 = vld [vmem:[%s779 + $0x120] sm:$0xff]
                  %818 = vst [vmem:[%s780 + $0x90] sm:$0xff] %v817
                  %v819 = vld [vmem:[%s779 + $0x130] sm:$0xff]
                  %820 = vst [vmem:[%s780 + $0x98] sm:$0xff] %v819
                  %v821 = vld [vmem:[%s779 + $0x140] sm:$0xff]
                  %822 = vst [vmem:[%s780 + $0xa0] sm:$0xff] %v821
                  %v823 = vld [vmem:[%s779 + $0x150] sm:$0xff]
                  %824 = vst [vmem:[%s780 + $0xa8] sm:$0xff] %v823
                  %v825 = vld [vmem:[%s779 + $0x160] sm:$0xff]
                  %826 = vst [vmem:[%s780 + $0xb0] sm:$0xff] %v825
                  %v827 = vld [vmem:[%s779 + $0x170] sm:$0xff]
                  %828 = vst [vmem:[%s780 + $0xb8] sm:$0xff] %v827
                  %v829 = vld [vmem:[%s779 + $0x180] sm:$0xff]
                  %830 = vst [vmem:[%s780 + $0xc0] sm:$0xff] %v829
                  %v831 = vld [vmem:[%s779 + $0x190] sm:$0xff]
                  %832 = vst [vmem:[%s780 + $0xc8] sm:$0xff] %v831
                  %v833 = vld [vmem:[%s779 + $0x1a0] sm:$0xff]
                  %834 = vst [vmem:[%s780 + $0xd0] sm:$0xff] %v833
                  %v835 = vld [vmem:[%s779 + $0x1b0] sm:$0xff]
                  %836 = vst [vmem:[%s780 + $0xd8] sm:$0xff] %v835
                  %v837 = vld [vmem:[%s779 + $0x1c0] sm:$0xff]
                  %838 = vst [vmem:[%s780 + $0xe0] sm:$0xff] %v837
                  %v839 = vld [vmem:[%s779 + $0x1d0] sm:$0xff]
                  %840 = vst [vmem:[%s780 + $0xe8] sm:$0xff] %v839
                  %v841 = vld [vmem:[%s779 + $0x1e0] sm:$0xff]
                  %842 = vst [vmem:[%s780 + $0xf0] sm:$0xff] %v841
                  %v843 = vld [vmem:[%s779 + $0x1f0] sm:$0xff]
                  %844 = vst [vmem:[%s780 + $0xf8] sm:$0xff] %v843
                  %v845 = vld [vmem:[%s779 + $0x200] sm:$0xff]
                  %846 = vst [vmem:[%s780 + $0x100] sm:$0xff] %v845
                  %v847 = vld [vmem:[%s779 + $0x210] sm:$0xff]
                  %848 = vst [vmem:[%s780 + $0x108] sm:$0xff] %v847
                  %v849 = vld [vmem:[%s779 + $0x220] sm:$0xff]
                  %850 = vst [vmem:[%s780 + $0x110] sm:$0xff] %v849
                  %v851 = vld [vmem:[%s779 + $0x230] sm:$0xff]
                  %852 = vst [vmem:[%s780 + $0x118] sm:$0xff] %v851
                  %v853 = vld [vmem:[%s779 + $0x240] sm:$0xff]
                  %854 = vst [vmem:[%s780 + $0x120] sm:$0xff] %v853
                  %v855 = vld [vmem:[%s779 + $0x250] sm:$0xff]
                  %856 = vst [vmem:[%s780 + $0x128] sm:$0xff] %v855
                  %v857 = vld [vmem:[%s779 + $0x260] sm:$0xff]
                  %858 = vst [vmem:[%s780 + $0x130] sm:$0xff] %v857
                  %v859 = vld [vmem:[%s779 + $0x270] sm:$0xff]
                  %860 = vst [vmem:[%s780 + $0x138] sm:$0xff] %v859
                  %v861 = vld [vmem:[%s779 + $0x280] sm:$0xff]
                  %862 = vst [vmem:[%s780 + $0x140] sm:$0xff] %v861
                  %v863 = vld [vmem:[%s779 + $0x290] sm:$0xff]
                  %864 = vst [vmem:[%s780 + $0x148] sm:$0xff] %v863
                  %v865 = vld [vmem:[%s779 + $0x2a0] sm:$0xff]
                  %866 = vst [vmem:[%s780 + $0x150] sm:$0xff] %v865
                  %v867 = vld [vmem:[%s779 + $0x2b0] sm:$0xff]
                  %868 = vst [vmem:[%s780 + $0x158] sm:$0xff] %v867
                  %v869 = vld [vmem:[%s779 + $0x2c0] sm:$0xff]
                  %870 = vst [vmem:[%s780 + $0x160] sm:$0xff] %v869
                  %v871 = vld [vmem:[%s779 + $0x2d0] sm:$0xff]
                  %872 = vst [vmem:[%s780 + $0x168] sm:$0xff] %v871
                  %v873 = vld [vmem:[%s779 + $0x2e0] sm:$0xff]
                  %874 = vst [vmem:[%s780 + $0x170] sm:$0xff] %v873
                  %v875 = vld [vmem:[%s779 + $0x2f0] sm:$0xff]
                  %876 = vst [vmem:[%s780 + $0x178] sm:$0xff] %v875
                  %v877 = vld [vmem:[%s779 + $0x300] sm:$0xff]
                  %878 = vst [vmem:[%s780 + $0x180] sm:$0xff] %v877
                  %v879 = vld [vmem:[%s779 + $0x310] sm:$0xff]
                  %880 = vst [vmem:[%s780 + $0x188] sm:$0xff] %v879
                  %v881 = vld [vmem:[%s779 + $0x320] sm:$0xff]
                  %882 = vst [vmem:[%s780 + $0x190] sm:$0xff] %v881
                  %v883 = vld [vmem:[%s779 + $0x330] sm:$0xff]
                  %884 = vst [vmem:[%s780 + $0x198] sm:$0xff] %v883
                  %v885 = vld [vmem:[%s779 + $0x340] sm:$0xff]
                  %886 = vst [vmem:[%s780 + $0x1a0] sm:$0xff] %v885
                  %v887 = vld [vmem:[%s779 + $0x350] sm:$0xff]
                  %888 = vst [vmem:[%s780 + $0x1a8] sm:$0xff] %v887
                  %v889 = vld [vmem:[%s779 + $0x360] sm:$0xff]
                  %890 = vst [vmem:[%s780 + $0x1b0] sm:$0xff] %v889
                  %v891 = vld [vmem:[%s779 + $0x370] sm:$0xff]
                  %892 = vst [vmem:[%s780 + $0x1b8] sm:$0xff] %v891
                  %v893 = vld [vmem:[%s779 + $0x380] sm:$0xff]
                  %894 = vst [vmem:[%s780 + $0x1c0] sm:$0xff] %v893
                  %v895 = vld [vmem:[%s779 + $0x390] sm:$0xff]
                  %896 = vst [vmem:[%s780 + $0x1c8] sm:$0xff] %v895
                  %v897 = vld [vmem:[%s779 + $0x3a0] sm:$0xff]
                  %898 = vst [vmem:[%s780 + $0x1d0] sm:$0xff] %v897
                  %v899 = vld [vmem:[%s779 + $0x3b0] sm:$0xff]
                  %900 = vst [vmem:[%s780 + $0x1d8] sm:$0xff] %v899
                  %v901 = vld [vmem:[%s779 + $0x3c0] sm:$0xff]
                  %902 = vst [vmem:[%s780 + $0x1e0] sm:$0xff] %v901
                  %v903 = vld [vmem:[%s779 + $0x3d0] sm:$0xff]
                  %904 = vst [vmem:[%s780 + $0x1e8] sm:$0xff] %v903
                  %v905 = vld [vmem:[%s779 + $0x3e0] sm:$0xff]
                  %906 = vst [vmem:[%s780 + $0x1f0] sm:$0xff] %v905
                  %v907 = vld [vmem:[%s779 + $0x3f0] sm:$0xff]
                  %908 = vst [vmem:[%s780 + $0x1f8] sm:$0xff] %v907
                  %v909 = vld [vmem:[%s779 + $0x400] sm:$0xff]
                  %910 = vst [vmem:[%s780 + $0x200] sm:$0xff] %v909
                  %v911 = vld [vmem:[%s779 + $0x410] sm:$0xff]
                  %912 = vst [vmem:[%s780 + $0x208] sm:$0xff] %v911
                  %v913 = vld [vmem:[%s779 + $0x420] sm:$0xff]
                  %914 = vst [vmem:[%s780 + $0x210] sm:$0xff] %v913
                  %v915 = vld [vmem:[%s779 + $0x430] sm:$0xff]
                  %916 = vst [vmem:[%s780 + $0x218] sm:$0xff] %v915
                  %v917 = vld [vmem:[%s779 + $0x440] sm:$0xff]
                  %918 = vst [vmem:[%s780 + $0x220] sm:$0xff] %v917
                  %v919 = vld [vmem:[%s779 + $0x450] sm:$0xff]
                  %920 = vst [vmem:[%s780 + $0x228] sm:$0xff] %v919
                  %v921 = vld [vmem:[%s779 + $0x460] sm:$0xff]
                  %922 = vst [vmem:[%s780 + $0x230] sm:$0xff] %v921
                  %v923 = vld [vmem:[%s779 + $0x470] sm:$0xff]
                  %924 = vst [vmem:[%s780 + $0x238] sm:$0xff] %v923
                  %v925 = vld [vmem:[%s779 + $0x480] sm:$0xff]
                  %926 = vst [vmem:[%s780 + $0x240] sm:$0xff] %v925
                  %v927 = vld [vmem:[%s779 + $0x490] sm:$0xff]
                  %928 = vst [vmem:[%s780 + $0x248] sm:$0xff] %v927
                  %v929 = vld [vmem:[%s779 + $0x4a0] sm:$0xff]
                  %930 = vst [vmem:[%s780 + $0x250] sm:$0xff] %v929
                  %v931 = vld [vmem:[%s779 + $0x4b0] sm:$0xff]
                  %932 = vst [vmem:[%s780 + $0x258] sm:$0xff] %v931
                  %v933 = vld [vmem:[%s779 + $0x4c0] sm:$0xff]
                  %934 = vst [vmem:[%s780 + $0x260] sm:$0xff] %v933
                  %v935 = vld [vmem:[%s779 + $0x4d0] sm:$0xff]
                  %936 = vst [vmem:[%s780 + $0x268] sm:$0xff] %v935
                  %v937 = vld [vmem:[%s779 + $0x4e0] sm:$0xff]
                  %938 = vst [vmem:[%s780 + $0x270] sm:$0xff] %v937
                  %v939 = vld [vmem:[%s779 + $0x4f0] sm:$0xff]
                  %940 = vst [vmem:[%s780 + $0x278] sm:$0xff] %v939
                  %v941 = vld [vmem:[%s779 + $0x500] sm:$0xff]
                  %942 = vst [vmem:[%s780 + $0x280] sm:$0xff] %v941
                  %v943 = vld [vmem:[%s779 + $0x510] sm:$0xff]
                  %944 = vst [vmem:[%s780 + $0x288] sm:$0xff] %v943
                  %v945 = vld [vmem:[%s779 + $0x520] sm:$0xff]
                  %946 = vst [vmem:[%s780 + $0x290] sm:$0xff] %v945
                  %v947 = vld [vmem:[%s779 + $0x530] sm:$0xff]
                  %948 = vst [vmem:[%s780 + $0x298] sm:$0xff] %v947
                  %v949 = vld [vmem:[%s779 + $0x540] sm:$0xff]
                  %950 = vst [vmem:[%s780 + $0x2a0] sm:$0xff] %v949
                  %v951 = vld [vmem:[%s779 + $0x550] sm:$0xff]
                  %952 = vst [vmem:[%s780 + $0x2a8] sm:$0xff] %v951
                  %v953 = vld [vmem:[%s779 + $0x560] sm:$0xff]
                  %954 = vst [vmem:[%s780 + $0x2b0] sm:$0xff] %v953
                  %v955 = vld [vmem:[%s779 + $0x570] sm:$0xff]
                  %956 = vst [vmem:[%s780 + $0x2b8] sm:$0xff] %v955
                  %v957 = vld [vmem:[%s779 + $0x580] sm:$0xff]
                  %958 = vst [vmem:[%s780 + $0x2c0] sm:$0xff] %v957
                  %v959 = vld [vmem:[%s779 + $0x590] sm:$0xff]
                  %960 = vst [vmem:[%s780 + $0x2c8] sm:$0xff] %v959
                  %v961 = vld [vmem:[%s779 + $0x5a0] sm:$0xff]
                  %962 = vst [vmem:[%s780 + $0x2d0] sm:$0xff] %v961
                  %v963 = vld [vmem:[%s779 + $0x5b0] sm:$0xff]
                  %964 = vst [vmem:[%s780 + $0x2d8] sm:$0xff] %v963
                  %v965 = vld [vmem:[%s779 + $0x5c0] sm:$0xff]
                  %966 = vst [vmem:[%s780 + $0x2e0] sm:$0xff] %v965
                  %v967 = vld [vmem:[%s779 + $0x5d0] sm:$0xff]
                  %968 = vst [vmem:[%s780 + $0x2e8] sm:$0xff] %v967
                  %v969 = vld [vmem:[%s779 + $0x5e0] sm:$0xff]
                  %970 = vst [vmem:[%s780 + $0x2f0] sm:$0xff] %v969
                  %v971 = vld [vmem:[%s779 + $0x5f0] sm:$0xff]
                  %972 = vst [vmem:[%s780 + $0x2f8] sm:$0xff] %v971
                  %v973 = vld [vmem:[%s779 + $0x600] sm:$0xff]
                  %974 = vst [vmem:[%s780 + $0x300] sm:$0xff] %v973
                  %v975 = vld [vmem:[%s779 + $0x610] sm:$0xff]
                  %976 = vst [vmem:[%s780 + $0x308] sm:$0xff] %v975
                  %v977 = vld [vmem:[%s779 + $0x620] sm:$0xff]
                  %978 = vst [vmem:[%s780 + $0x310] sm:$0xff] %v977
                  %v979 = vld [vmem:[%s779 + $0x630] sm:$0xff]
                  %980 = vst [vmem:[%s780 + $0x318] sm:$0xff] %v979
                  %v981 = vld [vmem:[%s779 + $0x640] sm:$0xff]
                  %982 = vst [vmem:[%s780 + $0x320] sm:$0xff] %v981
                  %v983 = vld [vmem:[%s779 + $0x650] sm:$0xff]
                  %984 = vst [vmem:[%s780 + $0x328] sm:$0xff] %v983
                  %v985 = vld [vmem:[%s779 + $0x660] sm:$0xff]
                  %986 = vst [vmem:[%s780 + $0x330] sm:$0xff] %v985
                  %v987 = vld [vmem:[%s779 + $0x670] sm:$0xff]
                  %988 = vst [vmem:[%s780 + $0x338] sm:$0xff] %v987
                  %v989 = vld [vmem:[%s779 + $0x680] sm:$0xff]
                  %990 = vst [vmem:[%s780 + $0x340] sm:$0xff] %v989
                  %v991 = vld [vmem:[%s779 + $0x690] sm:$0xff]
                  %992 = vst [vmem:[%s780 + $0x348] sm:$0xff] %v991
                  %v993 = vld [vmem:[%s779 + $0x6a0] sm:$0xff]
                  %994 = vst [vmem:[%s780 + $0x350] sm:$0xff] %v993
                  %v995 = vld [vmem:[%s779 + $0x6b0] sm:$0xff]
                  %996 = vst [vmem:[%s780 + $0x358] sm:$0xff] %v995
                  %v997 = vld [vmem:[%s779 + $0x6c0] sm:$0xff]
                  %998 = vst [vmem:[%s780 + $0x360] sm:$0xff] %v997
                  %v999 = vld [vmem:[%s779 + $0x6d0] sm:$0xff]
                  %1000 = vst [vmem:[%s780 + $0x368] sm:$0xff] %v999
                  %v1001 = vld [vmem:[%s779 + $0x6e0] sm:$0xff]
                  %1002 = vst [vmem:[%s780 + $0x370] sm:$0xff] %v1001
                  %v1003 = vld [vmem:[%s779 + $0x6f0] sm:$0xff]
                  %1004 = vst [vmem:[%s780 + $0x378] sm:$0xff] %v1003
                  %v1005 = vld [vmem:[%s779 + $0x700] sm:$0xff]
                  %1006 = vst [vmem:[%s780 + $0x380] sm:$0xff] %v1005
                  %v1007 = vld [vmem:[%s779 + $0x710] sm:$0xff]
                  %1008 = vst [vmem:[%s780 + $0x388] sm:$0xff] %v1007
                  %v1009 = vld [vmem:[%s779 + $0x720] sm:$0xff]
                  %1010 = vst [vmem:[%s780 + $0x390] sm:$0xff] %v1009
                  %v1011 = vld [vmem:[%s779 + $0x730] sm:$0xff]
                  %1012 = vst [vmem:[%s780 + $0x398] sm:$0xff] %v1011
                  %v1013 = vld [vmem:[%s779 + $0x740] sm:$0xff]
                  %1014 = vst [vmem:[%s780 + $0x3a0] sm:$0xff] %v1013
                  %v1015 = vld [vmem:[%s779 + $0x750] sm:$0xff]
                  %1016 = vst [vmem:[%s780 + $0x3a8] sm:$0xff] %v1015
                  %v1017 = vld [vmem:[%s779 + $0x760] sm:$0xff]
                  %1018 = vst [vmem:[%s780 + $0x3b0] sm:$0xff] %v1017
                  %v1019 = vld [vmem:[%s779 + $0x770] sm:$0xff]
                  %1020 = vst [vmem:[%s780 + $0x3b8] sm:$0xff] %v1019
                  %v1021 = vld [vmem:[%s779 + $0x780] sm:$0xff]
                  %1022 = vst [vmem:[%s780 + $0x3c0] sm:$0xff] %v1021
                  %v1023 = vld [vmem:[%s779 + $0x790] sm:$0xff]
                  %1024 = vst [vmem:[%s780 + $0x3c8] sm:$0xff] %v1023
                  %v1025 = vld [vmem:[%s779 + $0x7a0] sm:$0xff]
                  %1026 = vst [vmem:[%s780 + $0x3d0] sm:$0xff] %v1025
                  %v1027 = vld [vmem:[%s779 + $0x7b0] sm:$0xff]
                  %1028 = vst [vmem:[%s780 + $0x3d8] sm:$0xff] %v1027
                  %v1029 = vld [vmem:[%s779 + $0x7c0] sm:$0xff]
                  %1030 = vst [vmem:[%s780 + $0x3e0] sm:$0xff] %v1029
                  %v1031 = vld [vmem:[%s779 + $0x7d0] sm:$0xff]
                  %1032 = vst [vmem:[%s780 + $0x3e8] sm:$0xff] %v1031
                  %v1033 = vld [vmem:[%s779 + $0x7e0] sm:$0xff]
                  %1034 = vst [vmem:[%s780 + $0x3f0] sm:$0xff] %v1033
                  %v1035 = vld [vmem:[%s779 + $0x7f0] sm:$0xff]
                  %1036 = vst [vmem:[%s780 + $0x3f8] sm:$0xff] %v1035
                  %v1037 = vld [vmem:[%s779 + $0x800] sm:$0xff]
                  %1038 = vst [vmem:[%s780 + $0x400] sm:$0xff] %v1037
                  %v1039 = vld [vmem:[%s779 + $0x810] sm:$0xff]
                  %1040 = vst [vmem:[%s780 + $0x408] sm:$0xff] %v1039
                  %v1041 = vld [vmem:[%s779 + $0x820] sm:$0xff]
                  %1042 = vst [vmem:[%s780 + $0x410] sm:$0xff] %v1041
                  %v1043 = vld [vmem:[%s779 + $0x830] sm:$0xff]
                  %1044 = vst [vmem:[%s780 + $0x418] sm:$0xff] %v1043
                  %v1045 = vld [vmem:[%s779 + $0x840] sm:$0xff]
                  %1046 = vst [vmem:[%s780 + $0x420] sm:$0xff] %v1045
                  %v1047 = vld [vmem:[%s779 + $0x850] sm:$0xff]
                  %1048 = vst [vmem:[%s780 + $0x428] sm:$0xff] %v1047
                  %v1049 = vld [vmem:[%s779 + $0x860] sm:$0xff]
                  %1050 = vst [vmem:[%s780 + $0x430] sm:$0xff] %v1049
                  %v1051 = vld [vmem:[%s779 + $0x870] sm:$0xff]
                  %1052 = vst [vmem:[%s780 + $0x438] sm:$0xff] %v1051
                  %v1053 = vld [vmem:[%s779 + $0x880] sm:$0xff]
                  %1054 = vst [vmem:[%s780 + $0x440] sm:$0xff] %v1053
                  %v1055 = vld [vmem:[%s779 + $0x890] sm:$0xff]
                  %1056 = vst [vmem:[%s780 + $0x448] sm:$0xff] %v1055
                  %v1057 = vld [vmem:[%s779 + $0x8a0] sm:$0xff]
                  %1058 = vst [vmem:[%s780 + $0x450] sm:$0xff] %v1057
                  %v1059 = vld [vmem:[%s779 + $0x8b0] sm:$0xff]
                  %1060 = vst [vmem:[%s780 + $0x458] sm:$0xff] %v1059
                  %v1061 = vld [vmem:[%s779 + $0x8c0] sm:$0xff]
                  %1062 = vst [vmem:[%s780 + $0x460] sm:$0xff] %v1061
                  %v1063 = vld [vmem:[%s779 + $0x8d0] sm:$0xff]
                  %1064 = vst [vmem:[%s780 + $0x468] sm:$0xff] %v1063
                  %v1065 = vld [vmem:[%s779 + $0x8e0] sm:$0xff]
                  %1066 = vst [vmem:[%s780 + $0x470] sm:$0xff] %v1065
                  %v1067 = vld [vmem:[%s779 + $0x8f0] sm:$0xff]
                  %1068 = vst [vmem:[%s780 + $0x478] sm:$0xff] %v1067
                  %v1069 = vld [vmem:[%s779 + $0x900] sm:$0xff]
                  %1070 = vst [vmem:[%s780 + $0x480] sm:$0xff] %v1069
                  %v1071 = vld [vmem:[%s779 + $0x910] sm:$0xff]
                  %1072 = vst [vmem:[%s780 + $0x488] sm:$0xff] %v1071
                  %v1073 = vld [vmem:[%s779 + $0x920] sm:$0xff]
                  %1074 = vst [vmem:[%s780 + $0x490] sm:$0xff] %v1073
                  %v1075 = vld [vmem:[%s779 + $0x930] sm:$0xff]
                  %1076 = vst [vmem:[%s780 + $0x498] sm:$0xff] %v1075
                  %v1077 = vld [vmem:[%s779 + $0x940] sm:$0xff]
                  %1078 = vst [vmem:[%s780 + $0x4a0] sm:$0xff] %v1077
                  %v1079 = vld [vmem:[%s779 + $0x950] sm:$0xff]
                  %1080 = vst [vmem:[%s780 + $0x4a8] sm:$0xff] %v1079
                  %v1081 = vld [vmem:[%s779 + $0x960] sm:$0xff]
                  %1082 = vst [vmem:[%s780 + $0x4b0] sm:$0xff] %v1081
                  %v1083 = vld [vmem:[%s779 + $0x970] sm:$0xff]
                  %1084 = vst [vmem:[%s780 + $0x4b8] sm:$0xff] %v1083
                  %v1085 = vld [vmem:[%s779 + $0x980] sm:$0xff]
                  %1086 = vst [vmem:[%s780 + $0x4c0] sm:$0xff] %v1085
                  %v1087 = vld [vmem:[%s779 + $0x990] sm:$0xff]
                  %1088 = vst [vmem:[%s780 + $0x4c8] sm:$0xff] %v1087
                  %v1089 = vld [vmem:[%s779 + $0x9a0] sm:$0xff]
                  %1090 = vst [vmem:[%s780 + $0x4d0] sm:$0xff] %v1089
                  %v1091 = vld [vmem:[%s779 + $0x9b0] sm:$0xff]
                  %1092 = vst [vmem:[%s780 + $0x4d8] sm:$0xff] %v1091
                  %v1093 = vld [vmem:[%s779 + $0x9c0] sm:$0xff]
                  %1094 = vst [vmem:[%s780 + $0x4e0] sm:$0xff] %v1093
                  %v1095 = vld [vmem:[%s779 + $0x9d0] sm:$0xff]
                  %1096 = vst [vmem:[%s780 + $0x4e8] sm:$0xff] %v1095
                  %v1097 = vld [vmem:[%s779 + $0x9e0] sm:$0xff]
                  %1098 = vst [vmem:[%s780 + $0x4f0] sm:$0xff] %v1097
                  %v1099 = vld [vmem:[%s779 + $0x9f0] sm:$0xff]
                  %1100 = vst [vmem:[%s780 + $0x4f8] sm:$0xff] %v1099
                  %v1101 = vld [vmem:[%s779 + $0xa00] sm:$0xff]
                  %1102 = vst [vmem:[%s780 + $0x500] sm:$0xff] %v1101
                  %v1103 = vld [vmem:[%s779 + $0xa10] sm:$0xff]
                  %1104 = vst [vmem:[%s780 + $0x508] sm:$0xff] %v1103
                  %v1105 = vld [vmem:[%s779 + $0xa20] sm:$0xff]
                  %1106 = vst [vmem:[%s780 + $0x510] sm:$0xff] %v1105
                  %v1107 = vld [vmem:[%s779 + $0xa30] sm:$0xff]
                  %1108 = vst [vmem:[%s780 + $0x518] sm:$0xff] %v1107
                  %v1109 = vld [vmem:[%s779 + $0xa40] sm:$0xff]
                  %1110 = vst [vmem:[%s780 + $0x520] sm:$0xff] %v1109
                  %v1111 = vld [vmem:[%s779 + $0xa50] sm:$0xff]
                  %1112 = vst [vmem:[%s780 + $0x528] sm:$0xff] %v1111
                  %v1113 = vld [vmem:[%s779 + $0xa60] sm:$0xff]
                  %1114 = vst [vmem:[%s780 + $0x530] sm:$0xff] %v1113
                  %v1115 = vld [vmem:[%s779 + $0xa70] sm:$0xff]
                  %1116 = vst [vmem:[%s780 + $0x538] sm:$0xff] %v1115
                  %v1117 = vld [vmem:[%s779 + $0xa80] sm:$0xff]
                  %1118 = vst [vmem:[%s780 + $0x540] sm:$0xff] %v1117
                  %v1119 = vld [vmem:[%s779 + $0xa90] sm:$0xff]
                  %1120 = vst [vmem:[%s780 + $0x548] sm:$0xff] %v1119
                  %v1121 = vld [vmem:[%s779 + $0xaa0] sm:$0xff]
                  %1122 = vst [vmem:[%s780 + $0x550] sm:$0xff] %v1121
                  %v1123 = vld [vmem:[%s779 + $0xab0] sm:$0xff]
                  %1124 = vst [vmem:[%s780 + $0x558] sm:$0xff] %v1123
                  %v1125 = vld [vmem:[%s779 + $0xac0] sm:$0xff]
                  %1126 = vst [vmem:[%s780 + $0x560] sm:$0xff] %v1125
                  %v1127 = vld [vmem:[%s779 + $0xad0] sm:$0xff]
                  %1128 = vst [vmem:[%s780 + $0x568] sm:$0xff] %v1127
                  %v1129 = vld [vmem:[%s779 + $0xae0] sm:$0xff]
                  %1130 = vst [vmem:[%s780 + $0x570] sm:$0xff] %v1129
                  %v1131 = vld [vmem:[%s779 + $0xaf0] sm:$0xff]
                  %1132 = vst [vmem:[%s780 + $0x578] sm:$0xff] %v1131
                  %v1133 = vld [vmem:[%s779 + $0xb00] sm:$0xff]
                  %1134 = vst [vmem:[%s780 + $0x580] sm:$0xff] %v1133
                  %v1135 = vld [vmem:[%s779 + $0xb10] sm:$0xff]
                  %1136 = vst [vmem:[%s780 + $0x588] sm:$0xff] %v1135
                  %v1137 = vld [vmem:[%s779 + $0xb20] sm:$0xff]
                  %1138 = vst [vmem:[%s780 + $0x590] sm:$0xff] %v1137
                  %v1139 = vld [vmem:[%s779 + $0xb30] sm:$0xff]
                  %1140 = vst [vmem:[%s780 + $0x598] sm:$0xff] %v1139
                  %v1141 = vld [vmem:[%s779 + $0xb40] sm:$0xff]
                  %1142 = vst [vmem:[%s780 + $0x5a0] sm:$0xff] %v1141
                  %v1143 = vld [vmem:[%s779 + $0xb50] sm:$0xff]
                  %1144 = vst [vmem:[%s780 + $0x5a8] sm:$0xff] %v1143
                  %v1145 = vld [vmem:[%s779 + $0xb60] sm:$0xff]
                  %1146 = vst [vmem:[%s780 + $0x5b0] sm:$0xff] %v1145
                  %v1147 = vld [vmem:[%s779 + $0xb70] sm:$0xff]
                  %1148 = vst [vmem:[%s780 + $0x5b8] sm:$0xff] %v1147
                  %v1149 = vld [vmem:[%s779 + $0xb80] sm:$0xff]
                  %1150 = vst [vmem:[%s780 + $0x5c0] sm:$0xff] %v1149
                  %v1151 = vld [vmem:[%s779 + $0xb90] sm:$0xff]
                  %1152 = vst [vmem:[%s780 + $0x5c8] sm:$0xff] %v1151
                  %v1153 = vld [vmem:[%s779 + $0xba0] sm:$0xff]
                  %1154 = vst [vmem:[%s780 + $0x5d0] sm:$0xff] %v1153
                  %v1155 = vld [vmem:[%s779 + $0xbb0] sm:$0xff]
                  %1156 = vst [vmem:[%s780 + $0x5d8] sm:$0xff] %v1155
                  %v1157 = vld [vmem:[%s779 + $0xbc0] sm:$0xff]
                  %1158 = vst [vmem:[%s780 + $0x5e0] sm:$0xff] %v1157
                  %v1159 = vld [vmem:[%s779 + $0xbd0] sm:$0xff]
                  %1160 = vst [vmem:[%s780 + $0x5e8] sm:$0xff] %v1159
                  %v1161 = vld [vmem:[%s779 + $0xbe0] sm:$0xff]
                  %1162 = vst [vmem:[%s780 + $0x5f0] sm:$0xff] %v1161
                  %v1163 = vld [vmem:[%s779 + $0xbf0] sm:$0xff]
                  %1164 = vst [vmem:[%s780 + $0x5f8] sm:$0xff] %v1163
                  %v1165 = vld [vmem:[%s779 + $0xc00] sm:$0xff]
                  %1166 = vst [vmem:[%s780 + $0x600] sm:$0xff] %v1165
                  %v1167 = vld [vmem:[%s779 + $0xc10] sm:$0xff]
                  %1168 = vst [vmem:[%s780 + $0x608] sm:$0xff] %v1167
                  %v1169 = vld [vmem:[%s779 + $0xc20] sm:$0xff]
                  %1170 = vst [vmem:[%s780 + $0x610] sm:$0xff] %v1169
                  %v1171 = vld [vmem:[%s779 + $0xc30] sm:$0xff]
                  %1172 = vst [vmem:[%s780 + $0x618] sm:$0xff] %v1171
                  %v1173 = vld [vmem:[%s779 + $0xc40] sm:$0xff]
                  %1174 = vst [vmem:[%s780 + $0x620] sm:$0xff] %v1173
                  %v1175 = vld [vmem:[%s779 + $0xc50] sm:$0xff]
                  %1176 = vst [vmem:[%s780 + $0x628] sm:$0xff] %v1175
                  %v1177 = vld [vmem:[%s779 + $0xc60] sm:$0xff]
                  %1178 = vst [vmem:[%s780 + $0x630] sm:$0xff] %v1177
                  %v1179 = vld [vmem:[%s779 + $0xc70] sm:$0xff]
                  %1180 = vst [vmem:[%s780 + $0x638] sm:$0xff] %v1179
                  %v1181 = vld [vmem:[%s779 + $0xc80] sm:$0xff]
                  %1182 = vst [vmem:[%s780 + $0x640] sm:$0xff] %v1181
                  %v1183 = vld [vmem:[%s779 + $0xc90] sm:$0xff]
                  %1184 = vst [vmem:[%s780 + $0x648] sm:$0xff] %v1183
                  %v1185 = vld [vmem:[%s779 + $0xca0] sm:$0xff]
                  %1186 = vst [vmem:[%s780 + $0x650] sm:$0xff] %v1185
                  %v1187 = vld [vmem:[%s779 + $0xcb0] sm:$0xff]
                  %1188 = vst [vmem:[%s780 + $0x658] sm:$0xff] %v1187
                  %v1189 = vld [vmem:[%s779 + $0xcc0] sm:$0xff]
                  %1190 = vst [vmem:[%s780 + $0x660] sm:$0xff] %v1189
                  %v1191 = vld [vmem:[%s779 + $0xcd0] sm:$0xff]
                  %1192 = vst [vmem:[%s780 + $0x668] sm:$0xff] %v1191
                  %v1193 = vld [vmem:[%s779 + $0xce0] sm:$0xff]
                  %1194 = vst [vmem:[%s780 + $0x670] sm:$0xff] %v1193
                  %v1195 = vld [vmem:[%s779 + $0xcf0] sm:$0xff]
                  %1196 = vst [vmem:[%s780 + $0x678] sm:$0xff] %v1195
                  %v1197 = vld [vmem:[%s779 + $0xd00] sm:$0xff]
                  %1198 = vst [vmem:[%s780 + $0x680] sm:$0xff] %v1197
                  %v1199 = vld [vmem:[%s779 + $0xd10] sm:$0xff]
                  %1200 = vst [vmem:[%s780 + $0x688] sm:$0xff] %v1199
                  %v1201 = vld [vmem:[%s779 + $0xd20] sm:$0xff]
                  %1202 = vst [vmem:[%s780 + $0x690] sm:$0xff] %v1201
                  %v1203 = vld [vmem:[%s779 + $0xd30] sm:$0xff]
                  %1204 = vst [vmem:[%s780 + $0x698] sm:$0xff] %v1203
                  %v1205 = vld [vmem:[%s779 + $0xd40] sm:$0xff]
                  %1206 = vst [vmem:[%s780 + $0x6a0] sm:$0xff] %v1205
                  %v1207 = vld [vmem:[%s779 + $0xd50] sm:$0xff]
                  %1208 = vst [vmem:[%s780 + $0x6a8] sm:$0xff] %v1207
                  %v1209 = vld [vmem:[%s779 + $0xd60] sm:$0xff]
                  %1210 = vst [vmem:[%s780 + $0x6b0] sm:$0xff] %v1209
                  %v1211 = vld [vmem:[%s779 + $0xd70] sm:$0xff]
                  %1212 = vst [vmem:[%s780 + $0x6b8] sm:$0xff] %v1211
                  %v1213 = vld [vmem:[%s779 + $0xd80] sm:$0xff]
                  %1214 = vst [vmem:[%s780 + $0x6c0] sm:$0xff] %v1213
                  %v1215 = vld [vmem:[%s779 + $0xd90] sm:$0xff]
                  %1216 = vst [vmem:[%s780 + $0x6c8] sm:$0xff] %v1215
                  %v1217 = vld [vmem:[%s779 + $0xda0] sm:$0xff]
                  %1218 = vst [vmem:[%s780 + $0x6d0] sm:$0xff] %v1217
                  %v1219 = vld [vmem:[%s779 + $0xdb0] sm:$0xff]
                  %1220 = vst [vmem:[%s780 + $0x6d8] sm:$0xff] %v1219
                  %v1221 = vld [vmem:[%s779 + $0xdc0] sm:$0xff]
                  %1222 = vst [vmem:[%s780 + $0x6e0] sm:$0xff] %v1221
                  %v1223 = vld [vmem:[%s779 + $0xdd0] sm:$0xff]
                  %1224 = vst [vmem:[%s780 + $0x6e8] sm:$0xff] %v1223
                  %v1225 = vld [vmem:[%s779 + $0xde0] sm:$0xff]
                  %1226 = vst [vmem:[%s780 + $0x6f0] sm:$0xff] %v1225
                  %v1227 = vld [vmem:[%s779 + $0xdf0] sm:$0xff]
                  %1228 = vst [vmem:[%s780 + $0x6f8] sm:$0xff] %v1227
                  %v1229 = vld [vmem:[%s779 + $0xe00] sm:$0xff]
                  %1230 = vst [vmem:[%s780 + $0x700] sm:$0xff] %v1229
                  %v1231 = vld [vmem:[%s779 + $0xe10] sm:$0xff]
                  %1232 = vst [vmem:[%s780 + $0x708] sm:$0xff] %v1231
                  %v1233 = vld [vmem:[%s779 + $0xe20] sm:$0xff]
                  %1234 = vst [vmem:[%s780 + $0x710] sm:$0xff] %v1233
                  %v1235 = vld [vmem:[%s779 + $0xe30] sm:$0xff]
                  %1236 = vst [vmem:[%s780 + $0x718] sm:$0xff] %v1235
                  %v1237 = vld [vmem:[%s779 + $0xe40] sm:$0xff]
                  %1238 = vst [vmem:[%s780 + $0x720] sm:$0xff] %v1237
                  %v1239 = vld [vmem:[%s779 + $0xe50] sm:$0xff]
                  %1240 = vst [vmem:[%s780 + $0x728] sm:$0xff] %v1239
                  %v1241 = vld [vmem:[%s779 + $0xe60] sm:$0xff]
                  %1242 = vst [vmem:[%s780 + $0x730] sm:$0xff] %v1241
                  %v1243 = vld [vmem:[%s779 + $0xe70] sm:$0xff]
                  %1244 = vst [vmem:[%s780 + $0x738] sm:$0xff] %v1243
                  %v1245 = vld [vmem:[%s779 + $0xe80] sm:$0xff]
                  %1246 = vst [vmem:[%s780 + $0x740] sm:$0xff] %v1245
                  %v1247 = vld [vmem:[%s779 + $0xe90] sm:$0xff]
                  %1248 = vst [vmem:[%s780 + $0x748] sm:$0xff] %v1247
                  %v1249 = vld [vmem:[%s779 + $0xea0] sm:$0xff]
                  %1250 = vst [vmem:[%s780 + $0x750] sm:$0xff] %v1249
                  %v1251 = vld [vmem:[%s779 + $0xeb0] sm:$0xff]
                  %1252 = vst [vmem:[%s780 + $0x758] sm:$0xff] %v1251
                  %v1253 = vld [vmem:[%s779 + $0xec0] sm:$0xff]
                  %1254 = vst [vmem:[%s780 + $0x760] sm:$0xff] %v1253
                  %v1255 = vld [vmem:[%s779 + $0xed0] sm:$0xff]
                  %1256 = vst [vmem:[%s780 + $0x768] sm:$0xff] %v1255
                  %v1257 = vld [vmem:[%s779 + $0xee0] sm:$0xff]
                  %1258 = vst [vmem:[%s780 + $0x770] sm:$0xff] %v1257
                  %v1259 = vld [vmem:[%s779 + $0xef0] sm:$0xff]
                  %1260 = vst [vmem:[%s780 + $0x778] sm:$0xff] %v1259
                  %v1261 = vld [vmem:[%s779 + $0xf00] sm:$0xff]
                  %1262 = vst [vmem:[%s780 + $0x780] sm:$0xff] %v1261
                  %v1263 = vld [vmem:[%s779 + $0xf10] sm:$0xff]
                  %1264 = vst [vmem:[%s780 + $0x788] sm:$0xff] %v1263
                  %v1265 = vld [vmem:[%s779 + $0xf20] sm:$0xff]
                  %1266 = vst [vmem:[%s780 + $0x790] sm:$0xff] %v1265
                  %v1267 = vld [vmem:[%s779 + $0xf30] sm:$0xff]
                  %1268 = vst [vmem:[%s780 + $0x798] sm:$0xff] %v1267
                  %v1269 = vld [vmem:[%s779 + $0xf40] sm:$0xff]
                  %1270 = vst [vmem:[%s780 + $0x7a0] sm:$0xff] %v1269
                  %v1271 = vld [vmem:[%s779 + $0xf50] sm:$0xff]
                  %1272 = vst [vmem:[%s780 + $0x7a8] sm:$0xff] %v1271
                  %v1273 = vld [vmem:[%s779 + $0xf60] sm:$0xff]
                  %1274 = vst [vmem:[%s780 + $0x7b0] sm:$0xff] %v1273
                  %v1275 = vld [vmem:[%s779 + $0xf70] sm:$0xff]
                  %1276 = vst [vmem:[%s780 + $0x7b8] sm:$0xff] %v1275
                  %v1277 = vld [vmem:[%s779 + $0xf80] sm:$0xff]
                  %1278 = vst [vmem:[%s780 + $0x7c0] sm:$0xff] %v1277
                  %v1279 = vld [vmem:[%s779 + $0xf90] sm:$0xff]
                  %1280 = vst [vmem:[%s780 + $0x7c8] sm:$0xff] %v1279
                  %v1281 = vld [vmem:[%s779 + $0xfa0] sm:$0xff]
                  %1282 = vst [vmem:[%s780 + $0x7d0] sm:$0xff] %v1281
                  %v1283 = vld [vmem:[%s779 + $0xfb0] sm:$0xff]
                  %1284 = vst [vmem:[%s780 + $0x7d8] sm:$0xff] %v1283
                  %v1285 = vld [vmem:[%s779 + $0xfc0] sm:$0xff]
                  %1286 = vst [vmem:[%s780 + $0x7e0] sm:$0xff] %v1285
                  %v1287 = vld [vmem:[%s779 + $0xfd0] sm:$0xff]
                  %1288 = vst [vmem:[%s780 + $0x7e8] sm:$0xff] %v1287
                  %v1289 = vld [vmem:[%s779 + $0xfe0] sm:$0xff]
                  %1290 = vst [vmem:[%s780 + $0x7f0] sm:$0xff] %v1289
                  %v1291 = vld [vmem:[%s779 + $0xff0] sm:$0xff]
                  %1292 = vst [vmem:[%s780 + $0x7f8] sm:$0xff] %v1291
                $region68: #{tpu_custom_call.1} parent=62 // loop_footer
                  %s778 = sadd.s32 1, %s774
                $region69: #{tpu_custom_call.1} parent=62 // loop_footer_branch
                  %773 = sbr.rel target = $region65
                $region70: #{tpu_custom_call.1} parent=62 // loop_exit
                  _
              $region63: #{tpu_custom_call.1} parent=47 // pred_fallthru
                _
              // Predicated region
              $region71: #{tpu_custom_call.1} parent=47 // pred_check
                _
              $region72: #{tpu_custom_call.1} parent=47 // pred_check_branch
                %1294 = sbr.rel target = $region74
              $region73: #{tpu_custom_call.1} parent=47 // pred_region
                _
              $region74: #{tpu_custom_call.1} parent=47 // pred_fallthru
                _
            $region48: #{tpu_custom_call.1} parent=43 // pred_fallthru
              _
            // Predicated region
            $region49: #{tpu_custom_call.1} parent=43 // pred_check
              _
            $region50: #{tpu_custom_call.1} parent=43 // pred_check_branch
              %248 = sbr.rel target = $region52
            $region51: #{tpu_custom_call.1} parent=43 // pred_region
              %s250 = ssub.s32 256, 1
              loop: start=0, step=1, limit=1
              $region53: #{tpu_custom_call.1} parent=51 // loop_pre_header
                _
              $region54: #{tpu_custom_call.1} parent=51 // loop_header
                %s252 = sphi 0, %s256
                %p253 = scmp.ge.s32.totalorder %s252, 1
                %s257 = sphi %s242, %s242
                %s258 = sphi %s237, %s237
              $region55: #{tpu_custom_call.1} parent=51 // loop_header_branch
                %255 = sbr.rel (%p253) target = $region59
              $region56: #{tpu_custom_call.1} parent=51 // loop_body
                %v259 = vld [vmem:[%s257] sm:%s250]
                %260 = vst [vmem:[%s258] sm:%s250] %v259
                %v261 = vld [vmem:[%s257 + $0x10] sm:%s250]
                %262 = vst [vmem:[%s258 + $0x8] sm:%s250] %v261
                %v263 = vld [vmem:[%s257 + $0x20] sm:%s250]
                %264 = vst [vmem:[%s258 + $0x10] sm:%s250] %v263
                %v265 = vld [vmem:[%s257 + $0x30] sm:%s250]
                %266 = vst [vmem:[%s258 + $0x18] sm:%s250] %v265
                %v267 = vld [vmem:[%s257 + $0x40] sm:%s250]
                %268 = vst [vmem:[%s258 + $0x20] sm:%s250] %v267
                %v269 = vld [vmem:[%s257 + $0x50] sm:%s250]
                %270 = vst [vmem:[%s258 + $0x28] sm:%s250] %v269
                %v271 = vld [vmem:[%s257 + $0x60] sm:%s250]
                %272 = vst [vmem:[%s258 + $0x30] sm:%s250] %v271
                %v273 = vld [vmem:[%s257 + $0x70] sm:%s250]
                %274 = vst [vmem:[%s258 + $0x38] sm:%s250] %v273
                %v275 = vld [vmem:[%s257 + $0x80] sm:%s250]
                %276 = vst [vmem:[%s258 + $0x40] sm:%s250] %v275
                %v277 = vld [vmem:[%s257 + $0x90] sm:%s250]
                %278 = vst [vmem:[%s258 + $0x48] sm:%s250] %v277
                %v279 = vld [vmem:[%s257 + $0xa0] sm:%s250]
                %280 = vst [vmem:[%s258 + $0x50] sm:%s250] %v279
                %v281 = vld [vmem:[%s257 + $0xb0] sm:%s250]
                %282 = vst [vmem:[%s258 + $0x58] sm:%s250] %v281
                %v283 = vld [vmem:[%s257 + $0xc0] sm:%s250]
                %284 = vst [vmem:[%s258 + $0x60] sm:%s250] %v283
                %v285 = vld [vmem:[%s257 + $0xd0] sm:%s250]
                %286 = vst [vmem:[%s258 + $0x68] sm:%s250] %v285
                %v287 = vld [vmem:[%s257 + $0xe0] sm:%s250]
                %288 = vst [vmem:[%s258 + $0x70] sm:%s250] %v287
                %v289 = vld [vmem:[%s257 + $0xf0] sm:%s250]
                %290 = vst [vmem:[%s258 + $0x78] sm:%s250] %v289
                %v291 = vld [vmem:[%s257 + $0x100] sm:%s250]
                %292 = vst [vmem:[%s258 + $0x80] sm:%s250] %v291
                %v293 = vld [vmem:[%s257 + $0x110] sm:%s250]
                %294 = vst [vmem:[%s258 + $0x88] sm:%s250] %v293
                %v295 = vld [vmem:[%s257 + $0x120] sm:%s250]
                %296 = vst [vmem:[%s258 + $0x90] sm:%s250] %v295
                %v297 = vld [vmem:[%s257 + $0x130] sm:%s250]
                %298 = vst [vmem:[%s258 + $0x98] sm:%s250] %v297
                %v299 = vld [vmem:[%s257 + $0x140] sm:%s250]
                %300 = vst [vmem:[%s258 + $0xa0] sm:%s250] %v299
                %v301 = vld [vmem:[%s257 + $0x150] sm:%s250]
                %302 = vst [vmem:[%s258 + $0xa8] sm:%s250] %v301
                %v303 = vld [vmem:[%s257 + $0x160] sm:%s250]
                %304 = vst [vmem:[%s258 + $0xb0] sm:%s250] %v303
                %v305 = vld [vmem:[%s257 + $0x170] sm:%s250]
                %306 = vst [vmem:[%s258 + $0xb8] sm:%s250] %v305
                %v307 = vld [vmem:[%s257 + $0x180] sm:%s250]
                %308 = vst [vmem:[%s258 + $0xc0] sm:%s250] %v307
                %v309 = vld [vmem:[%s257 + $0x190] sm:%s250]
                %310 = vst [vmem:[%s258 + $0xc8] sm:%s250] %v309
                %v311 = vld [vmem:[%s257 + $0x1a0] sm:%s250]
                %312 = vst [vmem:[%s258 + $0xd0] sm:%s250] %v311
                %v313 = vld [vmem:[%s257 + $0x1b0] sm:%s250]
                %314 = vst [vmem:[%s258 + $0xd8] sm:%s250] %v313
                %v315 = vld [vmem:[%s257 + $0x1c0] sm:%s250]
                %316 = vst [vmem:[%s258 + $0xe0] sm:%s250] %v315
                %v317 = vld [vmem:[%s257 + $0x1d0] sm:%s250]
                %318 = vst [vmem:[%s258 + $0xe8] sm:%s250] %v317
                %v319 = vld [vmem:[%s257 + $0x1e0] sm:%s250]
                %320 = vst [vmem:[%s258 + $0xf0] sm:%s250] %v319
                %v321 = vld [vmem:[%s257 + $0x1f0] sm:%s250]
                %322 = vst [vmem:[%s258 + $0xf8] sm:%s250] %v321
                %v323 = vld [vmem:[%s257 + $0x200] sm:%s250]
                %324 = vst [vmem:[%s258 + $0x100] sm:%s250] %v323
                %v325 = vld [vmem:[%s257 + $0x210] sm:%s250]
                %326 = vst [vmem:[%s258 + $0x108] sm:%s250] %v325
                %v327 = vld [vmem:[%s257 + $0x220] sm:%s250]
                %328 = vst [vmem:[%s258 + $0x110] sm:%s250] %v327
                %v329 = vld [vmem:[%s257 + $0x230] sm:%s250]
                %330 = vst [vmem:[%s258 + $0x118] sm:%s250] %v329
                %v331 = vld [vmem:[%s257 + $0x240] sm:%s250]
                %332 = vst [vmem:[%s258 + $0x120] sm:%s250] %v331
                %v333 = vld [vmem:[%s257 + $0x250] sm:%s250]
                %334 = vst [vmem:[%s258 + $0x128] sm:%s250] %v333
                %v335 = vld [vmem:[%s257 + $0x260] sm:%s250]
                %336 = vst [vmem:[%s258 + $0x130] sm:%s250] %v335
                %v337 = vld [vmem:[%s257 + $0x270] sm:%s250]
                %338 = vst [vmem:[%s258 + $0x138] sm:%s250] %v337
                %v339 = vld [vmem:[%s257 + $0x280] sm:%s250]
                %340 = vst [vmem:[%s258 + $0x140] sm:%s250] %v339
                %v341 = vld [vmem:[%s257 + $0x290] sm:%s250]
                %342 = vst [vmem:[%s258 + $0x148] sm:%s250] %v341
                %v343 = vld [vmem:[%s257 + $0x2a0] sm:%s250]
                %344 = vst [vmem:[%s258 + $0x150] sm:%s250] %v343
                %v345 = vld [vmem:[%s257 + $0x2b0] sm:%s250]
                %346 = vst [vmem:[%s258 + $0x158] sm:%s250] %v345
                %v347 = vld [vmem:[%s257 + $0x2c0] sm:%s250]
                %348 = vst [vmem:[%s258 + $0x160] sm:%s250] %v347
                %v349 = vld [vmem:[%s257 + $0x2d0] sm:%s250]
                %350 = vst [vmem:[%s258 + $0x168] sm:%s250] %v349
                %v351 = vld [vmem:[%s257 + $0x2e0] sm:%s250]
                %352 = vst [vmem:[%s258 + $0x170] sm:%s250] %v351
                %v353 = vld [vmem:[%s257 + $0x2f0] sm:%s250]
                %354 = vst [vmem:[%s258 + $0x178] sm:%s250] %v353
                %v355 = vld [vmem:[%s257 + $0x300] sm:%s250]
                %356 = vst [vmem:[%s258 + $0x180] sm:%s250] %v355
                %v357 = vld [vmem:[%s257 + $0x310] sm:%s250]
                %358 = vst [vmem:[%s258 + $0x188] sm:%s250] %v357
                %v359 = vld [vmem:[%s257 + $0x320] sm:%s250]
                %360 = vst [vmem:[%s258 + $0x190] sm:%s250] %v359
                %v361 = vld [vmem:[%s257 + $0x330] sm:%s250]
                %362 = vst [vmem:[%s258 + $0x198] sm:%s250] %v361
                %v363 = vld [vmem:[%s257 + $0x340] sm:%s250]
                %364 = vst [vmem:[%s258 + $0x1a0] sm:%s250] %v363
                %v365 = vld [vmem:[%s257 + $0x350] sm:%s250]
                %366 = vst [vmem:[%s258 + $0x1a8] sm:%s250] %v365
                %v367 = vld [vmem:[%s257 + $0x360] sm:%s250]
                %368 = vst [vmem:[%s258 + $0x1b0] sm:%s250] %v367
                %v369 = vld [vmem:[%s257 + $0x370] sm:%s250]
                %370 = vst [vmem:[%s258 + $0x1b8] sm:%s250] %v369
                %v371 = vld [vmem:[%s257 + $0x380] sm:%s250]
                %372 = vst [vmem:[%s258 + $0x1c0] sm:%s250] %v371
                %v373 = vld [vmem:[%s257 + $0x390] sm:%s250]
                %374 = vst [vmem:[%s258 + $0x1c8] sm:%s250] %v373
                %v375 = vld [vmem:[%s257 + $0x3a0] sm:%s250]
                %376 = vst [vmem:[%s258 + $0x1d0] sm:%s250] %v375
                %v377 = vld [vmem:[%s257 + $0x3b0] sm:%s250]
                %378 = vst [vmem:[%s258 + $0x1d8] sm:%s250] %v377
                %v379 = vld [vmem:[%s257 + $0x3c0] sm:%s250]
                %380 = vst [vmem:[%s258 + $0x1e0] sm:%s250] %v379
                %v381 = vld [vmem:[%s257 + $0x3d0] sm:%s250]
                %382 = vst [vmem:[%s258 + $0x1e8] sm:%s250] %v381
                %v383 = vld [vmem:[%s257 + $0x3e0] sm:%s250]
                %384 = vst [vmem:[%s258 + $0x1f0] sm:%s250] %v383
                %v385 = vld [vmem:[%s257 + $0x3f0] sm:%s250]
                %386 = vst [vmem:[%s258 + $0x1f8] sm:%s250] %v385
                %v387 = vld [vmem:[%s257 + $0x400] sm:%s250]
                %388 = vst [vmem:[%s258 + $0x200] sm:%s250] %v387
                %v389 = vld [vmem:[%s257 + $0x410] sm:%s250]
                %390 = vst [vmem:[%s258 + $0x208] sm:%s250] %v389
                %v391 = vld [vmem:[%s257 + $0x420] sm:%s250]
                %392 = vst [vmem:[%s258 + $0x210] sm:%s250] %v391
                %v393 = vld [vmem:[%s257 + $0x430] sm:%s250]
                %394 = vst [vmem:[%s258 + $0x218] sm:%s250] %v393
                %v395 = vld [vmem:[%s257 + $0x440] sm:%s250]
                %396 = vst [vmem:[%s258 + $0x220] sm:%s250] %v395
                %v397 = vld [vmem:[%s257 + $0x450] sm:%s250]
                %398 = vst [vmem:[%s258 + $0x228] sm:%s250] %v397
                %v399 = vld [vmem:[%s257 + $0x460] sm:%s250]
                %400 = vst [vmem:[%s258 + $0x230] sm:%s250] %v399
                %v401 = vld [vmem:[%s257 + $0x470] sm:%s250]
                %402 = vst [vmem:[%s258 + $0x238] sm:%s250] %v401
                %v403 = vld [vmem:[%s257 + $0x480] sm:%s250]
                %404 = vst [vmem:[%s258 + $0x240] sm:%s250] %v403
                %v405 = vld [vmem:[%s257 + $0x490] sm:%s250]
                %406 = vst [vmem:[%s258 + $0x248] sm:%s250] %v405
                %v407 = vld [vmem:[%s257 + $0x4a0] sm:%s250]
                %408 = vst [vmem:[%s258 + $0x250] sm:%s250] %v407
                %v409 = vld [vmem:[%s257 + $0x4b0] sm:%s250]
                %410 = vst [vmem:[%s258 + $0x258] sm:%s250] %v409
                %v411 = vld [vmem:[%s257 + $0x4c0] sm:%s250]
                %412 = vst [vmem:[%s258 + $0x260] sm:%s250] %v411
                %v413 = vld [vmem:[%s257 + $0x4d0] sm:%s250]
                %414 = vst [vmem:[%s258 + $0x268] sm:%s250] %v413
                %v415 = vld [vmem:[%s257 + $0x4e0] sm:%s250]
                %416 = vst [vmem:[%s258 + $0x270] sm:%s250] %v415
                %v417 = vld [vmem:[%s257 + $0x4f0] sm:%s250]
                %418 = vst [vmem:[%s258 + $0x278] sm:%s250] %v417
                %v419 = vld [vmem:[%s257 + $0x500] sm:%s250]
                %420 = vst [vmem:[%s258 + $0x280] sm:%s250] %v419
                %v421 = vld [vmem:[%s257 + $0x510] sm:%s250]
                %422 = vst [vmem:[%s258 + $0x288] sm:%s250] %v421
                %v423 = vld [vmem:[%s257 + $0x520] sm:%s250]
                %424 = vst [vmem:[%s258 + $0x290] sm:%s250] %v423
                %v425 = vld [vmem:[%s257 + $0x530] sm:%s250]
                %426 = vst [vmem:[%s258 + $0x298] sm:%s250] %v425
                %v427 = vld [vmem:[%s257 + $0x540] sm:%s250]
                %428 = vst [vmem:[%s258 + $0x2a0] sm:%s250] %v427
                %v429 = vld [vmem:[%s257 + $0x550] sm:%s250]
                %430 = vst [vmem:[%s258 + $0x2a8] sm:%s250] %v429
                %v431 = vld [vmem:[%s257 + $0x560] sm:%s250]
                %432 = vst [vmem:[%s258 + $0x2b0] sm:%s250] %v431
                %v433 = vld [vmem:[%s257 + $0x570] sm:%s250]
                %434 = vst [vmem:[%s258 + $0x2b8] sm:%s250] %v433
                %v435 = vld [vmem:[%s257 + $0x580] sm:%s250]
                %436 = vst [vmem:[%s258 + $0x2c0] sm:%s250] %v435
                %v437 = vld [vmem:[%s257 + $0x590] sm:%s250]
                %438 = vst [vmem:[%s258 + $0x2c8] sm:%s250] %v437
                %v439 = vld [vmem:[%s257 + $0x5a0] sm:%s250]
                %440 = vst [vmem:[%s258 + $0x2d0] sm:%s250] %v439
                %v441 = vld [vmem:[%s257 + $0x5b0] sm:%s250]
                %442 = vst [vmem:[%s258 + $0x2d8] sm:%s250] %v441
                %v443 = vld [vmem:[%s257 + $0x5c0] sm:%s250]
                %444 = vst [vmem:[%s258 + $0x2e0] sm:%s250] %v443
                %v445 = vld [vmem:[%s257 + $0x5d0] sm:%s250]
                %446 = vst [vmem:[%s258 + $0x2e8] sm:%s250] %v445
                %v447 = vld [vmem:[%s257 + $0x5e0] sm:%s250]
                %448 = vst [vmem:[%s258 + $0x2f0] sm:%s250] %v447
                %v449 = vld [vmem:[%s257 + $0x5f0] sm:%s250]
                %450 = vst [vmem:[%s258 + $0x2f8] sm:%s250] %v449
                %v451 = vld [vmem:[%s257 + $0x600] sm:%s250]
                %452 = vst [vmem:[%s258 + $0x300] sm:%s250] %v451
                %v453 = vld [vmem:[%s257 + $0x610] sm:%s250]
                %454 = vst [vmem:[%s258 + $0x308] sm:%s250] %v453
                %v455 = vld [vmem:[%s257 + $0x620] sm:%s250]
                %456 = vst [vmem:[%s258 + $0x310] sm:%s250] %v455
                %v457 = vld [vmem:[%s257 + $0x630] sm:%s250]
                %458 = vst [vmem:[%s258 + $0x318] sm:%s250] %v457
                %v459 = vld [vmem:[%s257 + $0x640] sm:%s250]
                %460 = vst [vmem:[%s258 + $0x320] sm:%s250] %v459
                %v461 = vld [vmem:[%s257 + $0x650] sm:%s250]
                %462 = vst [vmem:[%s258 + $0x328] sm:%s250] %v461
                %v463 = vld [vmem:[%s257 + $0x660] sm:%s250]
                %464 = vst [vmem:[%s258 + $0x330] sm:%s250] %v463
                %v465 = vld [vmem:[%s257 + $0x670] sm:%s250]
                %466 = vst [vmem:[%s258 + $0x338] sm:%s250] %v465
                %v467 = vld [vmem:[%s257 + $0x680] sm:%s250]
                %468 = vst [vmem:[%s258 + $0x340] sm:%s250] %v467
                %v469 = vld [vmem:[%s257 + $0x690] sm:%s250]
                %470 = vst [vmem:[%s258 + $0x348] sm:%s250] %v469
                %v471 = vld [vmem:[%s257 + $0x6a0] sm:%s250]
                %472 = vst [vmem:[%s258 + $0x350] sm:%s250] %v471
                %v473 = vld [vmem:[%s257 + $0x6b0] sm:%s250]
                %474 = vst [vmem:[%s258 + $0x358] sm:%s250] %v473
                %v475 = vld [vmem:[%s257 + $0x6c0] sm:%s250]
                %476 = vst [vmem:[%s258 + $0x360] sm:%s250] %v475
                %v477 = vld [vmem:[%s257 + $0x6d0] sm:%s250]
                %478 = vst [vmem:[%s258 + $0x368] sm:%s250] %v477
                %v479 = vld [vmem:[%s257 + $0x6e0] sm:%s250]
                %480 = vst [vmem:[%s258 + $0x370] sm:%s250] %v479
                %v481 = vld [vmem:[%s257 + $0x6f0] sm:%s250]
                %482 = vst [vmem:[%s258 + $0x378] sm:%s250] %v481
                %v483 = vld [vmem:[%s257 + $0x700] sm:%s250]
                %484 = vst [vmem:[%s258 + $0x380] sm:%s250] %v483
                %v485 = vld [vmem:[%s257 + $0x710] sm:%s250]
                %486 = vst [vmem:[%s258 + $0x388] sm:%s250] %v485
                %v487 = vld [vmem:[%s257 + $0x720] sm:%s250]
                %488 = vst [vmem:[%s258 + $0x390] sm:%s250] %v487
                %v489 = vld [vmem:[%s257 + $0x730] sm:%s250]
                %490 = vst [vmem:[%s258 + $0x398] sm:%s250] %v489
                %v491 = vld [vmem:[%s257 + $0x740] sm:%s250]
                %492 = vst [vmem:[%s258 + $0x3a0] sm:%s250] %v491
                %v493 = vld [vmem:[%s257 + $0x750] sm:%s250]
                %494 = vst [vmem:[%s258 + $0x3a8] sm:%s250] %v493
                %v495 = vld [vmem:[%s257 + $0x760] sm:%s250]
                %496 = vst [vmem:[%s258 + $0x3b0] sm:%s250] %v495
                %v497 = vld [vmem:[%s257 + $0x770] sm:%s250]
                %498 = vst [vmem:[%s258 + $0x3b8] sm:%s250] %v497
                %v499 = vld [vmem:[%s257 + $0x780] sm:%s250]
                %500 = vst [vmem:[%s258 + $0x3c0] sm:%s250] %v499
                %v501 = vld [vmem:[%s257 + $0x790] sm:%s250]
                %502 = vst [vmem:[%s258 + $0x3c8] sm:%s250] %v501
                %v503 = vld [vmem:[%s257 + $0x7a0] sm:%s250]
                %504 = vst [vmem:[%s258 + $0x3d0] sm:%s250] %v503
                %v505 = vld [vmem:[%s257 + $0x7b0] sm:%s250]
                %506 = vst [vmem:[%s258 + $0x3d8] sm:%s250] %v505
                %v507 = vld [vmem:[%s257 + $0x7c0] sm:%s250]
                %508 = vst [vmem:[%s258 + $0x3e0] sm:%s250] %v507
                %v509 = vld [vmem:[%s257 + $0x7d0] sm:%s250]
                %510 = vst [vmem:[%s258 + $0x3e8] sm:%s250] %v509
                %v511 = vld [vmem:[%s257 + $0x7e0] sm:%s250]
                %512 = vst [vmem:[%s258 + $0x3f0] sm:%s250] %v511
                %v513 = vld [vmem:[%s257 + $0x7f0] sm:%s250]
                %514 = vst [vmem:[%s258 + $0x3f8] sm:%s250] %v513
                %v515 = vld [vmem:[%s257 + $0x800] sm:%s250]
                %516 = vst [vmem:[%s258 + $0x400] sm:%s250] %v515
                %v517 = vld [vmem:[%s257 + $0x810] sm:%s250]
                %518 = vst [vmem:[%s258 + $0x408] sm:%s250] %v517
                %v519 = vld [vmem:[%s257 + $0x820] sm:%s250]
                %520 = vst [vmem:[%s258 + $0x410] sm:%s250] %v519
                %v521 = vld [vmem:[%s257 + $0x830] sm:%s250]
                %522 = vst [vmem:[%s258 + $0x418] sm:%s250] %v521
                %v523 = vld [vmem:[%s257 + $0x840] sm:%s250]
                %524 = vst [vmem:[%s258 + $0x420] sm:%s250] %v523
                %v525 = vld [vmem:[%s257 + $0x850] sm:%s250]
                %526 = vst [vmem:[%s258 + $0x428] sm:%s250] %v525
                %v527 = vld [vmem:[%s257 + $0x860] sm:%s250]
                %528 = vst [vmem:[%s258 + $0x430] sm:%s250] %v527
                %v529 = vld [vmem:[%s257 + $0x870] sm:%s250]
                %530 = vst [vmem:[%s258 + $0x438] sm:%s250] %v529
                %v531 = vld [vmem:[%s257 + $0x880] sm:%s250]
                %532 = vst [vmem:[%s258 + $0x440] sm:%s250] %v531
                %v533 = vld [vmem:[%s257 + $0x890] sm:%s250]
                %534 = vst [vmem:[%s258 + $0x448] sm:%s250] %v533
                %v535 = vld [vmem:[%s257 + $0x8a0] sm:%s250]
                %536 = vst [vmem:[%s258 + $0x450] sm:%s250] %v535
                %v537 = vld [vmem:[%s257 + $0x8b0] sm:%s250]
                %538 = vst [vmem:[%s258 + $0x458] sm:%s250] %v537
                %v539 = vld [vmem:[%s257 + $0x8c0] sm:%s250]
                %540 = vst [vmem:[%s258 + $0x460] sm:%s250] %v539
                %v541 = vld [vmem:[%s257 + $0x8d0] sm:%s250]
                %542 = vst [vmem:[%s258 + $0x468] sm:%s250] %v541
                %v543 = vld [vmem:[%s257 + $0x8e0] sm:%s250]
                %544 = vst [vmem:[%s258 + $0x470] sm:%s250] %v543
                %v545 = vld [vmem:[%s257 + $0x8f0] sm:%s250]
                %546 = vst [vmem:[%s258 + $0x478] sm:%s250] %v545
                %v547 = vld [vmem:[%s257 + $0x900] sm:%s250]
                %548 = vst [vmem:[%s258 + $0x480] sm:%s250] %v547
                %v549 = vld [vmem:[%s257 + $0x910] sm:%s250]
                %550 = vst [vmem:[%s258 + $0x488] sm:%s250] %v549
                %v551 = vld [vmem:[%s257 + $0x920] sm:%s250]
                %552 = vst [vmem:[%s258 + $0x490] sm:%s250] %v551
                %v553 = vld [vmem:[%s257 + $0x930] sm:%s250]
                %554 = vst [vmem:[%s258 + $0x498] sm:%s250] %v553
                %v555 = vld [vmem:[%s257 + $0x940] sm:%s250]
                %556 = vst [vmem:[%s258 + $0x4a0] sm:%s250] %v555
                %v557 = vld [vmem:[%s257 + $0x950] sm:%s250]
                %558 = vst [vmem:[%s258 + $0x4a8] sm:%s250] %v557
                %v559 = vld [vmem:[%s257 + $0x960] sm:%s250]
                %560 = vst [vmem:[%s258 + $0x4b0] sm:%s250] %v559
                %v561 = vld [vmem:[%s257 + $0x970] sm:%s250]
                %562 = vst [vmem:[%s258 + $0x4b8] sm:%s250] %v561
                %v563 = vld [vmem:[%s257 + $0x980] sm:%s250]
                %564 = vst [vmem:[%s258 + $0x4c0] sm:%s250] %v563
                %v565 = vld [vmem:[%s257 + $0x990] sm:%s250]
                %566 = vst [vmem:[%s258 + $0x4c8] sm:%s250] %v565
                %v567 = vld [vmem:[%s257 + $0x9a0] sm:%s250]
                %568 = vst [vmem:[%s258 + $0x4d0] sm:%s250] %v567
                %v569 = vld [vmem:[%s257 + $0x9b0] sm:%s250]
                %570 = vst [vmem:[%s258 + $0x4d8] sm:%s250] %v569
                %v571 = vld [vmem:[%s257 + $0x9c0] sm:%s250]
                %572 = vst [vmem:[%s258 + $0x4e0] sm:%s250] %v571
                %v573 = vld [vmem:[%s257 + $0x9d0] sm:%s250]
                %574 = vst [vmem:[%s258 + $0x4e8] sm:%s250] %v573
                %v575 = vld [vmem:[%s257 + $0x9e0] sm:%s250]
                %576 = vst [vmem:[%s258 + $0x4f0] sm:%s250] %v575
                %v577 = vld [vmem:[%s257 + $0x9f0] sm:%s250]
                %578 = vst [vmem:[%s258 + $0x4f8] sm:%s250] %v577
                %v579 = vld [vmem:[%s257 + $0xa00] sm:%s250]
                %580 = vst [vmem:[%s258 + $0x500] sm:%s250] %v579
                %v581 = vld [vmem:[%s257 + $0xa10] sm:%s250]
                %582 = vst [vmem:[%s258 + $0x508] sm:%s250] %v581
                %v583 = vld [vmem:[%s257 + $0xa20] sm:%s250]
                %584 = vst [vmem:[%s258 + $0x510] sm:%s250] %v583
                %v585 = vld [vmem:[%s257 + $0xa30] sm:%s250]
                %586 = vst [vmem:[%s258 + $0x518] sm:%s250] %v585
                %v587 = vld [vmem:[%s257 + $0xa40] sm:%s250]
                %588 = vst [vmem:[%s258 + $0x520] sm:%s250] %v587
                %v589 = vld [vmem:[%s257 + $0xa50] sm:%s250]
                %590 = vst [vmem:[%s258 + $0x528] sm:%s250] %v589
                %v591 = vld [vmem:[%s257 + $0xa60] sm:%s250]
                %592 = vst [vmem:[%s258 + $0x530] sm:%s250] %v591
                %v593 = vld [vmem:[%s257 + $0xa70] sm:%s250]
                %594 = vst [vmem:[%s258 + $0x538] sm:%s250] %v593
                %v595 = vld [vmem:[%s257 + $0xa80] sm:%s250]
                %596 = vst [vmem:[%s258 + $0x540] sm:%s250] %v595
                %v597 = vld [vmem:[%s257 + $0xa90] sm:%s250]
                %598 = vst [vmem:[%s258 + $0x548] sm:%s250] %v597
                %v599 = vld [vmem:[%s257 + $0xaa0] sm:%s250]
                %600 = vst [vmem:[%s258 + $0x550] sm:%s250] %v599
                %v601 = vld [vmem:[%s257 + $0xab0] sm:%s250]
                %602 = vst [vmem:[%s258 + $0x558] sm:%s250] %v601
                %v603 = vld [vmem:[%s257 + $0xac0] sm:%s250]
                %604 = vst [vmem:[%s258 + $0x560] sm:%s250] %v603
                %v605 = vld [vmem:[%s257 + $0xad0] sm:%s250]
                %606 = vst [vmem:[%s258 + $0x568] sm:%s250] %v605
                %v607 = vld [vmem:[%s257 + $0xae0] sm:%s250]
                %608 = vst [vmem:[%s258 + $0x570] sm:%s250] %v607
                %v609 = vld [vmem:[%s257 + $0xaf0] sm:%s250]
                %610 = vst [vmem:[%s258 + $0x578] sm:%s250] %v609
                %v611 = vld [vmem:[%s257 + $0xb00] sm:%s250]
                %612 = vst [vmem:[%s258 + $0x580] sm:%s250] %v611
                %v613 = vld [vmem:[%s257 + $0xb10] sm:%s250]
                %614 = vst [vmem:[%s258 + $0x588] sm:%s250] %v613
                %v615 = vld [vmem:[%s257 + $0xb20] sm:%s250]
                %616 = vst [vmem:[%s258 + $0x590] sm:%s250] %v615
                %v617 = vld [vmem:[%s257 + $0xb30] sm:%s250]
                %618 = vst [vmem:[%s258 + $0x598] sm:%s250] %v617
                %v619 = vld [vmem:[%s257 + $0xb40] sm:%s250]
                %620 = vst [vmem:[%s258 + $0x5a0] sm:%s250] %v619
                %v621 = vld [vmem:[%s257 + $0xb50] sm:%s250]
                %622 = vst [vmem:[%s258 + $0x5a8] sm:%s250] %v621
                %v623 = vld [vmem:[%s257 + $0xb60] sm:%s250]
                %624 = vst [vmem:[%s258 + $0x5b0] sm:%s250] %v623
                %v625 = vld [vmem:[%s257 + $0xb70] sm:%s250]
                %626 = vst [vmem:[%s258 + $0x5b8] sm:%s250] %v625
                %v627 = vld [vmem:[%s257 + $0xb80] sm:%s250]
                %628 = vst [vmem:[%s258 + $0x5c0] sm:%s250] %v627
                %v629 = vld [vmem:[%s257 + $0xb90] sm:%s250]
                %630 = vst [vmem:[%s258 + $0x5c8] sm:%s250] %v629
                %v631 = vld [vmem:[%s257 + $0xba0] sm:%s250]
                %632 = vst [vmem:[%s258 + $0x5d0] sm:%s250] %v631
                %v633 = vld [vmem:[%s257 + $0xbb0] sm:%s250]
                %634 = vst [vmem:[%s258 + $0x5d8] sm:%s250] %v633
                %v635 = vld [vmem:[%s257 + $0xbc0] sm:%s250]
                %636 = vst [vmem:[%s258 + $0x5e0] sm:%s250] %v635
                %v637 = vld [vmem:[%s257 + $0xbd0] sm:%s250]
                %638 = vst [vmem:[%s258 + $0x5e8] sm:%s250] %v637
                %v639 = vld [vmem:[%s257 + $0xbe0] sm:%s250]
                %640 = vst [vmem:[%s258 + $0x5f0] sm:%s250] %v639
                %v641 = vld [vmem:[%s257 + $0xbf0] sm:%s250]
                %642 = vst [vmem:[%s258 + $0x5f8] sm:%s250] %v641
                %v643 = vld [vmem:[%s257 + $0xc00] sm:%s250]
                %644 = vst [vmem:[%s258 + $0x600] sm:%s250] %v643
                %v645 = vld [vmem:[%s257 + $0xc10] sm:%s250]
                %646 = vst [vmem:[%s258 + $0x608] sm:%s250] %v645
                %v647 = vld [vmem:[%s257 + $0xc20] sm:%s250]
                %648 = vst [vmem:[%s258 + $0x610] sm:%s250] %v647
                %v649 = vld [vmem:[%s257 + $0xc30] sm:%s250]
                %650 = vst [vmem:[%s258 + $0x618] sm:%s250] %v649
                %v651 = vld [vmem:[%s257 + $0xc40] sm:%s250]
                %652 = vst [vmem:[%s258 + $0x620] sm:%s250] %v651
                %v653 = vld [vmem:[%s257 + $0xc50] sm:%s250]
                %654 = vst [vmem:[%s258 + $0x628] sm:%s250] %v653
                %v655 = vld [vmem:[%s257 + $0xc60] sm:%s250]
                %656 = vst [vmem:[%s258 + $0x630] sm:%s250] %v655
                %v657 = vld [vmem:[%s257 + $0xc70] sm:%s250]
                %658 = vst [vmem:[%s258 + $0x638] sm:%s250] %v657
                %v659 = vld [vmem:[%s257 + $0xc80] sm:%s250]
                %660 = vst [vmem:[%s258 + $0x640] sm:%s250] %v659
                %v661 = vld [vmem:[%s257 + $0xc90] sm:%s250]
                %662 = vst [vmem:[%s258 + $0x648] sm:%s250] %v661
                %v663 = vld [vmem:[%s257 + $0xca0] sm:%s250]
                %664 = vst [vmem:[%s258 + $0x650] sm:%s250] %v663
                %v665 = vld [vmem:[%s257 + $0xcb0] sm:%s250]
                %666 = vst [vmem:[%s258 + $0x658] sm:%s250] %v665
                %v667 = vld [vmem:[%s257 + $0xcc0] sm:%s250]
                %668 = vst [vmem:[%s258 + $0x660] sm:%s250] %v667
                %v669 = vld [vmem:[%s257 + $0xcd0] sm:%s250]
                %670 = vst [vmem:[%s258 + $0x668] sm:%s250] %v669
                %v671 = vld [vmem:[%s257 + $0xce0] sm:%s250]
                %672 = vst [vmem:[%s258 + $0x670] sm:%s250] %v671
                %v673 = vld [vmem:[%s257 + $0xcf0] sm:%s250]
                %674 = vst [vmem:[%s258 + $0x678] sm:%s250] %v673
                %v675 = vld [vmem:[%s257 + $0xd00] sm:%s250]
                %676 = vst [vmem:[%s258 + $0x680] sm:%s250] %v675
                %v677 = vld [vmem:[%s257 + $0xd10] sm:%s250]
                %678 = vst [vmem:[%s258 + $0x688] sm:%s250] %v677
                %v679 = vld [vmem:[%s257 + $0xd20] sm:%s250]
                %680 = vst [vmem:[%s258 + $0x690] sm:%s250] %v679
                %v681 = vld [vmem:[%s257 + $0xd30] sm:%s250]
                %682 = vst [vmem:[%s258 + $0x698] sm:%s250] %v681
                %v683 = vld [vmem:[%s257 + $0xd40] sm:%s250]
                %684 = vst [vmem:[%s258 + $0x6a0] sm:%s250] %v683
                %v685 = vld [vmem:[%s257 + $0xd50] sm:%s250]
                %686 = vst [vmem:[%s258 + $0x6a8] sm:%s250] %v685
                %v687 = vld [vmem:[%s257 + $0xd60] sm:%s250]
                %688 = vst [vmem:[%s258 + $0x6b0] sm:%s250] %v687
                %v689 = vld [vmem:[%s257 + $0xd70] sm:%s250]
                %690 = vst [vmem:[%s258 + $0x6b8] sm:%s250] %v689
                %v691 = vld [vmem:[%s257 + $0xd80] sm:%s250]
                %692 = vst [vmem:[%s258 + $0x6c0] sm:%s250] %v691
                %v693 = vld [vmem:[%s257 + $0xd90] sm:%s250]
                %694 = vst [vmem:[%s258 + $0x6c8] sm:%s250] %v693
                %v695 = vld [vmem:[%s257 + $0xda0] sm:%s250]
                %696 = vst [vmem:[%s258 + $0x6d0] sm:%s250] %v695
                %v697 = vld [vmem:[%s257 + $0xdb0] sm:%s250]
                %698 = vst [vmem:[%s258 + $0x6d8] sm:%s250] %v697
                %v699 = vld [vmem:[%s257 + $0xdc0] sm:%s250]
                %700 = vst [vmem:[%s258 + $0x6e0] sm:%s250] %v699
                %v701 = vld [vmem:[%s257 + $0xdd0] sm:%s250]
                %702 = vst [vmem:[%s258 + $0x6e8] sm:%s250] %v701
                %v703 = vld [vmem:[%s257 + $0xde0] sm:%s250]
                %704 = vst [vmem:[%s258 + $0x6f0] sm:%s250] %v703
                %v705 = vld [vmem:[%s257 + $0xdf0] sm:%s250]
                %706 = vst [vmem:[%s258 + $0x6f8] sm:%s250] %v705
                %v707 = vld [vmem:[%s257 + $0xe00] sm:%s250]
                %708 = vst [vmem:[%s258 + $0x700] sm:%s250] %v707
                %v709 = vld [vmem:[%s257 + $0xe10] sm:%s250]
                %710 = vst [vmem:[%s258 + $0x708] sm:%s250] %v709
                %v711 = vld [vmem:[%s257 + $0xe20] sm:%s250]
                %712 = vst [vmem:[%s258 + $0x710] sm:%s250] %v711
                %v713 = vld [vmem:[%s257 + $0xe30] sm:%s250]
                %714 = vst [vmem:[%s258 + $0x718] sm:%s250] %v713
                %v715 = vld [vmem:[%s257 + $0xe40] sm:%s250]
                %716 = vst [vmem:[%s258 + $0x720] sm:%s250] %v715
                %v717 = vld [vmem:[%s257 + $0xe50] sm:%s250]
                %718 = vst [vmem:[%s258 + $0x728] sm:%s250] %v717
                %v719 = vld [vmem:[%s257 + $0xe60] sm:%s250]
                %720 = vst [vmem:[%s258 + $0x730] sm:%s250] %v719
                %v721 = vld [vmem:[%s257 + $0xe70] sm:%s250]
                %722 = vst [vmem:[%s258 + $0x738] sm:%s250] %v721
                %v723 = vld [vmem:[%s257 + $0xe80] sm:%s250]
                %724 = vst [vmem:[%s258 + $0x740] sm:%s250] %v723
                %v725 = vld [vmem:[%s257 + $0xe90] sm:%s250]
                %726 = vst [vmem:[%s258 + $0x748] sm:%s250] %v725
                %v727 = vld [vmem:[%s257 + $0xea0] sm:%s250]
                %728 = vst [vmem:[%s258 + $0x750] sm:%s250] %v727
                %v729 = vld [vmem:[%s257 + $0xeb0] sm:%s250]
                %730 = vst [vmem:[%s258 + $0x758] sm:%s250] %v729
                %v731 = vld [vmem:[%s257 + $0xec0] sm:%s250]
                %732 = vst [vmem:[%s258 + $0x760] sm:%s250] %v731
                %v733 = vld [vmem:[%s257 + $0xed0] sm:%s250]
                %734 = vst [vmem:[%s258 + $0x768] sm:%s250] %v733
                %v735 = vld [vmem:[%s257 + $0xee0] sm:%s250]
                %736 = vst [vmem:[%s258 + $0x770] sm:%s250] %v735
                %v737 = vld [vmem:[%s257 + $0xef0] sm:%s250]
                %738 = vst [vmem:[%s258 + $0x778] sm:%s250] %v737
                %v739 = vld [vmem:[%s257 + $0xf00] sm:%s250]
                %740 = vst [vmem:[%s258 + $0x780] sm:%s250] %v739
                %v741 = vld [vmem:[%s257 + $0xf10] sm:%s250]
                %742 = vst [vmem:[%s258 + $0x788] sm:%s250] %v741
                %v743 = vld [vmem:[%s257 + $0xf20] sm:%s250]
                %744 = vst [vmem:[%s258 + $0x790] sm:%s250] %v743
                %v745 = vld [vmem:[%s257 + $0xf30] sm:%s250]
                %746 = vst [vmem:[%s258 + $0x798] sm:%s250] %v745
                %v747 = vld [vmem:[%s257 + $0xf40] sm:%s250]
                %748 = vst [vmem:[%s258 + $0x7a0] sm:%s250] %v747
                %v749 = vld [vmem:[%s257 + $0xf50] sm:%s250]
                %750 = vst [vmem:[%s258 + $0x7a8] sm:%s250] %v749
                %v751 = vld [vmem:[%s257 + $0xf60] sm:%s250]
                %752 = vst [vmem:[%s258 + $0x7b0] sm:%s250] %v751
                %v753 = vld [vmem:[%s257 + $0xf70] sm:%s250]
                %754 = vst [vmem:[%s258 + $0x7b8] sm:%s250] %v753
                %v755 = vld [vmem:[%s257 + $0xf80] sm:%s250]
                %756 = vst [vmem:[%s258 + $0x7c0] sm:%s250] %v755
                %v757 = vld [vmem:[%s257 + $0xf90] sm:%s250]
                %758 = vst [vmem:[%s258 + $0x7c8] sm:%s250] %v757
                %v759 = vld [vmem:[%s257 + $0xfa0] sm:%s250]
                %760 = vst [vmem:[%s258 + $0x7d0] sm:%s250] %v759
                %v761 = vld [vmem:[%s257 + $0xfb0] sm:%s250]
                %762 = vst [vmem:[%s258 + $0x7d8] sm:%s250] %v761
                %v763 = vld [vmem:[%s257 + $0xfc0] sm:%s250]
                %764 = vst [vmem:[%s258 + $0x7e0] sm:%s250] %v763
                %v765 = vld [vmem:[%s257 + $0xfd0] sm:%s250]
                %766 = vst [vmem:[%s258 + $0x7e8] sm:%s250] %v765
                %v767 = vld [vmem:[%s257 + $0xfe0] sm:%s250]
                %768 = vst [vmem:[%s258 + $0x7f0] sm:%s250] %v767
                %v769 = vld [vmem:[%s257 + $0xff0] sm:%s250]
                %770 = vst [vmem:[%s258 + $0x7f8] sm:%s250] %v769
              $region57: #{tpu_custom_call.1} parent=51 // loop_footer
                %s256 = sadd.s32 1, %s252
              $region58: #{tpu_custom_call.1} parent=51 // loop_footer_branch
                %251 = sbr.rel target = $region54
              $region59: #{tpu_custom_call.1} parent=51 // loop_exit
                _
            $region52: #{tpu_custom_call.1} parent=43 // pred_fallthru
              _
          $region44: #{tpu_custom_call.1} parent=39 // pred_fallthru
            _
          %1295 = vnop
        $region40: #{tpu_custom_call.1} parent=31 // pred_fallthru
          _
      $region32: #{tpu_custom_call.1} parent=5 // pred_fallthru
        _
      %p1296 = scmp.le.s32.totalorder 1, %s15
      %p1297 = scmp.lt.s32.totalorder %s15, 5
      %p1298 = pnand %p1296, %p1297
      %p1299 = pneg %p1298
      // Predicated region
      $region75: #{tpu_custom_call.1} parent=5 // pred_check
        _
      $region76: #{tpu_custom_call.1} parent=5 // pred_check_branch
        %1301 = sbr.rel (%p1298) target = $region78
      $region77: #{tpu_custom_call.1} parent=5 // pred_region
        %s1302 = ssub.s32 %s15, 1
        %s1303 = sand.u32 %s68, 1
        %s1304 = sand.u32 %s68, 1
        %s1305 = smul.addr %s1304, 2048
        %s1306 = scalar_lea.vmem [#allocation2], %s1305
        // Predicated region
        $region79: #{tpu_custom_call.1} parent=77 // pred_check
          %p1307 = pneg %p81
        $region80: #{tpu_custom_call.1} parent=77 // pred_check_branch
          %1309 = sbr.rel (%p1307) target = $region82
        $region81: #{tpu_custom_call.1} parent=77 // pred_region
          _
        $region82: #{tpu_custom_call.1} parent=77 // pred_fallthru
          _
        %p1310 = scmp.lt.s32.totalorder %s24, 1
        %s1311 = scalar_select %p1310, %s24, 1
        %s1312 = smul.addr %s1311, 8
        %s1313 = scalar_lea.vmem %s0, %s1312
        %p1314 = pneg %p53
        %p1315 = pneg %p50
        %s1316 = sand.u32 %s68, 1
        %s1317 = sand.u32 %s68, 1
        %s1318 = smul.addr %s1317, 2048
        %s1319 = scalar_lea.vmem [#allocation2], %s1318
        %p1320 = pneg %p81
        %p1321 = pneg %p78
        %p1322 = pneg %p102
        %p1323 = pneg %p99
        %p1324 = pneg %p123
        %p1325 = pneg %p120
        %p1326 = pneg %p144
        %p1327 = pneg %p141
        %p1328 = pneg %p165
        %p1329 = pneg %p162
        %p1330 = pneg %p193
        %p1331 = pneg %p190
        %s1332 = sand.u32 %s180, 1
        %s1333 = scalar_lea.sflag [#allocation4], %s1332
        %s1334 = sand.u32 %s180, 1
        %s1335 = smul.addr %s1334, 16
        %s1336 = scalar_lea.vmem [#allocation3], %s1335
        %p1337 = scmp.lt.s32.totalorder %s24, 1
        %s1338 = scalar_select %p1337, %s24, 1
        %s1339 = smul.addr %s1338, 8
        %s1340 = scalar_lea.vmem %s0, %s1339
        %s1341 = smul.u32 256, %s25
        %s1342 = smul.u32 2, %s25
        %v1343 = vld [vmem:[%s1340] sm:$0xff]
        %v1344 = vld [vmem:[%s2] sm:$0xff]
        %v1345 = vld [vmem:[%s2 + $0x8] sm:$0xff]
        %v1346 = vld [vmem:[%s2 + $0x10] sm:$0xff]
        %v1347 = vld [vmem:[%s2 + $0x18] sm:$0xff]
        %v1348 = vld [vmem:[%s4] sm:$0x1]
        %v1350 = vlaneseq
        %v1351 = vshrl.u32 %v1350, 7
        %v1352 = vsub.s32 0, %v1351
        %v1353 = vrot.slane %v1348, %v1352
        %vm1355 = vcmask 261120
        %v1357 = vsel %vm1355, %v1343, 0
        %1359 = vmatprep.subr.mxu0 0.0
        %1360 = vmatpush1.msra.mxu0 0.0
        %1361 = vmatprep.subr.mxu0 0.0
        %1362 = vmatpush1.msra.mxu0 0.0
        %1363 = vmatprep.subr.mxu0 0.0
        %1364 = vmatpush1.msra.mxu0 0.0
        %1365 = vmatprep.subr.mxu0 0.0
        %1366 = vmatpush1.msra.mxu0 0.0
        %1367 = vmatprep.subr.mxu0 0.0
        %1368 = vmatpush1.msra.mxu0 0.0
        %1369 = vmatprep.subr.mxu0 0.0
        %1370 = vmatpush1.msra.mxu0 0.0
        %1371 = vmatprep.subr.mxu0 0.0
        %1372 = vmatpush1.msra.mxu0 0.0
        %1373 = vmatprep.subr.mxu0 0.0
        %1374 = vmatpush1.msra.mxu0 0.0
        %1375 = vmatprep.subr.mxu0 0.0
        %1376 = vmatpush1.msra.mxu0 0.0
        %1377 = vmatprep.subr.mxu0 0.0
        %1378 = vmatpush1.msra.mxu0 0.0
        %1379 = vmatprep.subr.mxu0 0.0
        %1380 = vmatpush1.msra.mxu0 0.0
        %1381 = vmatprep.subr.mxu0 0.0
        %1382 = vmatpush1.msra.mxu0 0.0
        %1383 = vmatprep.subr.mxu0 0.0
        %1384 = vmatpush1.msra.mxu0 %v1347
        %1385 = vmatprep.subr.mxu0 0.0
        %1386 = vmatpush1.msra.mxu0 %v1346
        %1387 = vmatprep.subr.mxu0 0.0
        %1388 = vmatpush1.msra.mxu0 %v1345
        %1389 = vmatprep.subr.mxu0 0.0
        %1390 = vmatpush1.msra.mxu0 %v1344
        %1391 = vmatprep.subr.mxu0 0.0
        %1392 = vmatpush2.msra.mxu0 0.0
        %1393 = vmatprep.subr.mxu0 0.0
        %1394 = vmatpush2.msra.mxu0 0.0
        %1395 = vmatprep.subr.mxu0 0.0
        %1396 = vmatpush2.msra.mxu0 0.0
        %1397 = vmatprep.subr.mxu0 0.0
        %1398 = vmatpush2.msra.mxu0 0.0
        %1399 = vmatprep.subr.mxu0 0.0
        %1400 = vmatpush2.msra.mxu0 0.0
        %1401 = vmatprep.subr.mxu0 0.0
        %1402 = vmatpush2.msra.mxu0 0.0
        %1403 = vmatprep.subr.mxu0 0.0
        %1404 = vmatpush2.msra.mxu0 0.0
        %1405 = vmatprep.subr.mxu0 0.0
        %1406 = vmatpush2.msra.mxu0 0.0
        %1407 = vmatprep.subr.mxu0 0.0
        %1408 = vmatpush2.msra.mxu0 0.0
        %1409 = vmatprep.subr.mxu0 0.0
        %1410 = vmatpush2.msra.mxu0 0.0
        %1411 = vmatprep.subr.mxu0 0.0
        %1412 = vmatpush2.msra.mxu0 0.0
        %1413 = vmatprep.subr.mxu0 0.0
        %1414 = vmatpush2.msra.mxu0 0.0
        %1415 = vmatprep.subr.mxu0 0.0
        %1416 = vmatpush2.msra.mxu0 0.0
        %1417 = vmatprep.subr.mxu0 0.0
        %1418 = vmatpush2.msra.mxu0 0.0
        %1419 = vmatprep.subr.mxu0 0.0
        %1420 = vmatpush2.msra.mxu0 0.0
        %1421 = vmatprep.subr.mxu0 0.0
        %1422 = vmatpush2.msra.mxu0 0.0
        %1423 = vmatprep.mubr.f32.mxu0 0.0
        %1424 = vmatmul.mubr.f32.gmra.mxu0 %v1357
        %v1425 = vpop.f32.mrf.mxu0
        %v1426 = vadd.f32 %v1353, %v1425
        %v1427 = vpop.f32.mrf.mxu0
        %1428 = vdwg.mxu0
        %v1429 = vld [vmem:[%s1306] sm:$0xff]
        %v1430 = vld [vmem:[%s1306 + $0x8] sm:$0xff]
        %v1431 = vld [vmem:[%s1306 + $0x10] sm:$0xff]
        %v1432 = vld [vmem:[%s1306 + $0x18] sm:$0xff]
        %v1433 = vld [vmem:[%s1306 + $0x20] sm:$0xff]
        %v1434 = vld [vmem:[%s1306 + $0x28] sm:$0xff]
        %v1435 = vld [vmem:[%s1306 + $0x30] sm:$0xff]
        %v1436 = vld [vmem:[%s1306 + $0x38] sm:$0xff]
        %v1437 = vld [vmem:[%s1306 + $0x40] sm:$0xff]
        %v1438 = vld [vmem:[%s1306 + $0x48] sm:$0xff]
        %v1439 = vld [vmem:[%s1306 + $0x50] sm:$0xff]
        %v1440 = vld [vmem:[%s1306 + $0x58] sm:$0xff]
        %v1441 = vld [vmem:[%s1306 + $0x60] sm:$0xff]
        %v1442 = vld [vmem:[%s1306 + $0x68] sm:$0xff]
        %v1443 = vld [vmem:[%s1306 + $0x70] sm:$0xff]
        %v1444 = vld [vmem:[%s1306 + $0x78] sm:$0xff]
        %v1445 = vld [vmem:[%s1306 + $0x80] sm:$0xff]
        %v1446 = vld [vmem:[%s1306 + $0x88] sm:$0xff]
        %v1447 = vld [vmem:[%s1306 + $0x90] sm:$0xff]
        %v1448 = vld [vmem:[%s1306 + $0x98] sm:$0xff]
        %v1449 = vld [vmem:[%s1306 + $0xa0] sm:$0xff]
        %v1450 = vld [vmem:[%s1306 + $0xa8] sm:$0xff]
        %v1451 = vld [vmem:[%s1306 + $0xb0] sm:$0xff]
        %v1452 = vld [vmem:[%s1306 + $0xb8] sm:$0xff]
        %v1453 = vld [vmem:[%s1306 + $0xc0] sm:$0xff]
        %v1454 = vld [vmem:[%s1306 + $0xc8] sm:$0xff]
        %v1455 = vld [vmem:[%s1306 + $0xd0] sm:$0xff]
        %v1456 = vld [vmem:[%s1306 + $0xd8] sm:$0xff]
        %v1457 = vld [vmem:[%s1306 + $0xe0] sm:$0xff]
        %v1458 = vld [vmem:[%s1306 + $0xe8] sm:$0xff]
        %v1459 = vld [vmem:[%s1306 + $0xf0] sm:$0xff]
        %v1460 = vld [vmem:[%s1306 + $0xf8] sm:$0xff]
        %v1461 = vld [vmem:[%s1306 + $0x100] sm:$0xff]
        %v1462 = vld [vmem:[%s1306 + $0x108] sm:$0xff]
        %v1463 = vld [vmem:[%s1306 + $0x110] sm:$0xff]
        %v1464 = vld [vmem:[%s1306 + $0x118] sm:$0xff]
        %v1465 = vld [vmem:[%s1306 + $0x120] sm:$0xff]
        %v1466 = vld [vmem:[%s1306 + $0x128] sm:$0xff]
        %v1467 = vld [vmem:[%s1306 + $0x130] sm:$0xff]
        %v1468 = vld [vmem:[%s1306 + $0x138] sm:$0xff]
        %v1469 = vld [vmem:[%s1306 + $0x140] sm:$0xff]
        %v1470 = vld [vmem:[%s1306 + $0x148] sm:$0xff]
        %v1471 = vld [vmem:[%s1306 + $0x150] sm:$0xff]
        %v1472 = vld [vmem:[%s1306 + $0x158] sm:$0xff]
        %v1473 = vld [vmem:[%s1306 + $0x160] sm:$0xff]
        %v1474 = vld [vmem:[%s1306 + $0x168] sm:$0xff]
        %v1475 = vld [vmem:[%s1306 + $0x170] sm:$0xff]
        %v1476 = vld [vmem:[%s1306 + $0x178] sm:$0xff]
        %v1477 = vld [vmem:[%s1306 + $0x180] sm:$0xff]
        %v1478 = vld [vmem:[%s1306 + $0x188] sm:$0xff]
        %v1479 = vld [vmem:[%s1306 + $0x190] sm:$0xff]
        %v1480 = vld [vmem:[%s1306 + $0x198] sm:$0xff]
        %v1481 = vld [vmem:[%s1306 + $0x1a0] sm:$0xff]
        %v1482 = vld [vmem:[%s1306 + $0x1a8] sm:$0xff]
        %v1483 = vld [vmem:[%s1306 + $0x1b0] sm:$0xff]
        %v1484 = vld [vmem:[%s1306 + $0x1b8] sm:$0xff]
        %v1485 = vld [vmem:[%s1306 + $0x1c0] sm:$0xff]
        %v1486 = vld [vmem:[%s1306 + $0x1c8] sm:$0xff]
        %v1487 = vld [vmem:[%s1306 + $0x1d0] sm:$0xff]
        %v1488 = vld [vmem:[%s1306 + $0x1d8] sm:$0xff]
        %v1489 = vld [vmem:[%s1306 + $0x1e0] sm:$0xff]
        %v1490 = vld [vmem:[%s1306 + $0x1e8] sm:$0xff]
        %v1491 = vld [vmem:[%s1306 + $0x1f0] sm:$0xff]
        %v1492 = vld [vmem:[%s1306 + $0x1f8] sm:$0xff]
        %v1493 = vld [vmem:[%s1306 + $0x200] sm:$0xff]
        %v1494 = vld [vmem:[%s1306 + $0x208] sm:$0xff]
        %v1495 = vld [vmem:[%s1306 + $0x210] sm:$0xff]
        %v1496 = vld [vmem:[%s1306 + $0x218] sm:$0xff]
        %v1497 = vld [vmem:[%s1306 + $0x220] sm:$0xff]
        %v1498 = vld [vmem:[%s1306 + $0x228] sm:$0xff]
        %v1499 = vld [vmem:[%s1306 + $0x230] sm:$0xff]
        %v1500 = vld [vmem:[%s1306 + $0x238] sm:$0xff]
        %v1501 = vld [vmem:[%s1306 + $0x240] sm:$0xff]
        %v1502 = vld [vmem:[%s1306 + $0x248] sm:$0xff]
        %v1503 = vld [vmem:[%s1306 + $0x250] sm:$0xff]
        %v1504 = vld [vmem:[%s1306 + $0x258] sm:$0xff]
        %v1505 = vld [vmem:[%s1306 + $0x260] sm:$0xff]
        %v1506 = vld [vmem:[%s1306 + $0x268] sm:$0xff]
        %v1507 = vld [vmem:[%s1306 + $0x270] sm:$0xff]
        %v1508 = vld [vmem:[%s1306 + $0x278] sm:$0xff]
        %v1509 = vld [vmem:[%s1306 + $0x280] sm:$0xff]
        %v1510 = vld [vmem:[%s1306 + $0x288] sm:$0xff]
        %v1511 = vld [vmem:[%s1306 + $0x290] sm:$0xff]
        %v1512 = vld [vmem:[%s1306 + $0x298] sm:$0xff]
        %v1513 = vld [vmem:[%s1306 + $0x2a0] sm:$0xff]
        %v1514 = vld [vmem:[%s1306 + $0x2a8] sm:$0xff]
        %v1515 = vld [vmem:[%s1306 + $0x2b0] sm:$0xff]
        %v1516 = vld [vmem:[%s1306 + $0x2b8] sm:$0xff]
        %v1517 = vld [vmem:[%s1306 + $0x2c0] sm:$0xff]
        %v1518 = vld [vmem:[%s1306 + $0x2c8] sm:$0xff]
        %v1519 = vld [vmem:[%s1306 + $0x2d0] sm:$0xff]
        %v1520 = vld [vmem:[%s1306 + $0x2d8] sm:$0xff]
        %v1521 = vld [vmem:[%s1306 + $0x2e0] sm:$0xff]
        %v1522 = vld [vmem:[%s1306 + $0x2e8] sm:$0xff]
        %v1523 = vld [vmem:[%s1306 + $0x2f0] sm:$0xff]
        %v1524 = vld [vmem:[%s1306 + $0x2f8] sm:$0xff]
        %v1525 = vld [vmem:[%s1306 + $0x300] sm:$0xff]
        %v1526 = vld [vmem:[%s1306 + $0x308] sm:$0xff]
        %v1527 = vld [vmem:[%s1306 + $0x310] sm:$0xff]
        %v1528 = vld [vmem:[%s1306 + $0x318] sm:$0xff]
        %v1529 = vld [vmem:[%s1306 + $0x320] sm:$0xff]
        %v1530 = vld [vmem:[%s1306 + $0x328] sm:$0xff]
        %v1531 = vld [vmem:[%s1306 + $0x330] sm:$0xff]
        %v1532 = vld [vmem:[%s1306 + $0x338] sm:$0xff]
        %v1533 = vld [vmem:[%s1306 + $0x340] sm:$0xff]
        %v1534 = vld [vmem:[%s1306 + $0x348] sm:$0xff]
        %v1535 = vld [vmem:[%s1306 + $0x350] sm:$0xff]
        %v1536 = vld [vmem:[%s1306 + $0x358] sm:$0xff]
        %v1537 = vld [vmem:[%s1306 + $0x360] sm:$0xff]
        %v1538 = vld [vmem:[%s1306 + $0x368] sm:$0xff]
        %v1539 = vld [vmem:[%s1306 + $0x370] sm:$0xff]
        %v1540 = vld [vmem:[%s1306 + $0x378] sm:$0xff]
        %v1541 = vld [vmem:[%s1306 + $0x380] sm:$0xff]
        %v1542 = vld [vmem:[%s1306 + $0x388] sm:$0xff]
        %v1543 = vld [vmem:[%s1306 + $0x390] sm:$0xff]
        %v1544 = vld [vmem:[%s1306 + $0x398] sm:$0xff]
        %v1545 = vld [vmem:[%s1306 + $0x3a0] sm:$0xff]
        %v1546 = vld [vmem:[%s1306 + $0x3a8] sm:$0xff]
        %v1547 = vld [vmem:[%s1306 + $0x3b0] sm:$0xff]
        %v1548 = vld [vmem:[%s1306 + $0x3b8] sm:$0xff]
        %v1549 = vld [vmem:[%s1306 + $0x3c0] sm:$0xff]
        %v1550 = vld [vmem:[%s1306 + $0x3c8] sm:$0xff]
        %v1551 = vld [vmem:[%s1306 + $0x3d0] sm:$0xff]
        %v1552 = vld [vmem:[%s1306 + $0x3d8] sm:$0xff]
        %v1553 = vld [vmem:[%s1306 + $0x3e0] sm:$0xff]
        %v1554 = vld [vmem:[%s1306 + $0x3e8] sm:$0xff]
        %v1555 = vld [vmem:[%s1306 + $0x3f0] sm:$0xff]
        %v1556 = vld [vmem:[%s1306 + $0x3f8] sm:$0xff]
        %v1557 = vld [vmem:[%s1306 + $0x400] sm:$0xff]
        %v1558 = vld [vmem:[%s1306 + $0x408] sm:$0xff]
        %v1559 = vld [vmem:[%s1306 + $0x410] sm:$0xff]
        %v1560 = vld [vmem:[%s1306 + $0x418] sm:$0xff]
        %v1561 = vld [vmem:[%s1306 + $0x420] sm:$0xff]
        %v1562 = vld [vmem:[%s1306 + $0x428] sm:$0xff]
        %v1563 = vld [vmem:[%s1306 + $0x430] sm:$0xff]
        %v1564 = vld [vmem:[%s1306 + $0x438] sm:$0xff]
        %v1565 = vld [vmem:[%s1306 + $0x440] sm:$0xff]
        %v1566 = vld [vmem:[%s1306 + $0x448] sm:$0xff]
        %v1567 = vld [vmem:[%s1306 + $0x450] sm:$0xff]
        %v1568 = vld [vmem:[%s1306 + $0x458] sm:$0xff]
        %v1569 = vld [vmem:[%s1306 + $0x460] sm:$0xff]
        %v1570 = vld [vmem:[%s1306 + $0x468] sm:$0xff]
        %v1571 = vld [vmem:[%s1306 + $0x470] sm:$0xff]
        %v1572 = vld [vmem:[%s1306 + $0x478] sm:$0xff]
        %v1573 = vld [vmem:[%s1306 + $0x480] sm:$0xff]
        %v1574 = vld [vmem:[%s1306 + $0x488] sm:$0xff]
        %v1575 = vld [vmem:[%s1306 + $0x490] sm:$0xff]
        %v1576 = vld [vmem:[%s1306 + $0x498] sm:$0xff]
        %v1577 = vld [vmem:[%s1306 + $0x4a0] sm:$0xff]
        %v1578 = vld [vmem:[%s1306 + $0x4a8] sm:$0xff]
        %v1579 = vld [vmem:[%s1306 + $0x4b0] sm:$0xff]
        %v1580 = vld [vmem:[%s1306 + $0x4b8] sm:$0xff]
        %v1581 = vld [vmem:[%s1306 + $0x4c0] sm:$0xff]
        %v1582 = vld [vmem:[%s1306 + $0x4c8] sm:$0xff]
        %v1583 = vld [vmem:[%s1306 + $0x4d0] sm:$0xff]
        %v1584 = vld [vmem:[%s1306 + $0x4d8] sm:$0xff]
        %v1585 = vld [vmem:[%s1306 + $0x4e0] sm:$0xff]
        %v1586 = vld [vmem:[%s1306 + $0x4e8] sm:$0xff]
        %v1587 = vld [vmem:[%s1306 + $0x4f0] sm:$0xff]
        %v1588 = vld [vmem:[%s1306 + $0x4f8] sm:$0xff]
        %v1589 = vld [vmem:[%s1306 + $0x500] sm:$0xff]
        %v1590 = vld [vmem:[%s1306 + $0x508] sm:$0xff]
        %v1591 = vld [vmem:[%s1306 + $0x510] sm:$0xff]
        %v1592 = vld [vmem:[%s1306 + $0x518] sm:$0xff]
        %v1593 = vld [vmem:[%s1306 + $0x520] sm:$0xff]
        %v1594 = vld [vmem:[%s1306 + $0x528] sm:$0xff]
        %v1595 = vld [vmem:[%s1306 + $0x530] sm:$0xff]
        %v1596 = vld [vmem:[%s1306 + $0x538] sm:$0xff]
        %v1597 = vld [vmem:[%s1306 + $0x540] sm:$0xff]
        %v1598 = vld [vmem:[%s1306 + $0x548] sm:$0xff]
        %v1599 = vld [vmem:[%s1306 + $0x550] sm:$0xff]
        %v1600 = vld [vmem:[%s1306 + $0x558] sm:$0xff]
        %v1601 = vld [vmem:[%s1306 + $0x560] sm:$0xff]
        %v1602 = vld [vmem:[%s1306 + $0x568] sm:$0xff]
        %v1603 = vld [vmem:[%s1306 + $0x570] sm:$0xff]
        %v1604 = vld [vmem:[%s1306 + $0x578] sm:$0xff]
        %v1605 = vld [vmem:[%s1306 + $0x580] sm:$0xff]
        %v1606 = vld [vmem:[%s1306 + $0x588] sm:$0xff]
        %v1607 = vld [vmem:[%s1306 + $0x590] sm:$0xff]
        %v1608 = vld [vmem:[%s1306 + $0x598] sm:$0xff]
        %v1609 = vld [vmem:[%s1306 + $0x5a0] sm:$0xff]
        %v1610 = vld [vmem:[%s1306 + $0x5a8] sm:$0xff]
        %v1611 = vld [vmem:[%s1306 + $0x5b0] sm:$0xff]
        %v1612 = vld [vmem:[%s1306 + $0x5b8] sm:$0xff]
        %v1613 = vld [vmem:[%s1306 + $0x5c0] sm:$0xff]
        %v1614 = vld [vmem:[%s1306 + $0x5c8] sm:$0xff]
        %v1615 = vld [vmem:[%s1306 + $0x5d0] sm:$0xff]
        %v1616 = vld [vmem:[%s1306 + $0x5d8] sm:$0xff]
        %v1617 = vld [vmem:[%s1306 + $0x5e0] sm:$0xff]
        %v1618 = vld [vmem:[%s1306 + $0x5e8] sm:$0xff]
        %v1619 = vld [vmem:[%s1306 + $0x5f0] sm:$0xff]
        %v1620 = vld [vmem:[%s1306 + $0x5f8] sm:$0xff]
        %v1621 = vld [vmem:[%s1306 + $0x600] sm:$0xff]
        %v1622 = vld [vmem:[%s1306 + $0x608] sm:$0xff]
        %v1623 = vld [vmem:[%s1306 + $0x610] sm:$0xff]
        %v1624 = vld [vmem:[%s1306 + $0x618] sm:$0xff]
        %v1625 = vld [vmem:[%s1306 + $0x620] sm:$0xff]
        %v1626 = vld [vmem:[%s1306 + $0x628] sm:$0xff]
        %v1627 = vld [vmem:[%s1306 + $0x630] sm:$0xff]
        %v1628 = vld [vmem:[%s1306 + $0x638] sm:$0xff]
        %v1629 = vld [vmem:[%s1306 + $0x640] sm:$0xff]
        %v1630 = vld [vmem:[%s1306 + $0x648] sm:$0xff]
        %v1631 = vld [vmem:[%s1306 + $0x650] sm:$0xff]
        %v1632 = vld [vmem:[%s1306 + $0x658] sm:$0xff]
        %v1633 = vld [vmem:[%s1306 + $0x660] sm:$0xff]
        %v1634 = vld [vmem:[%s1306 + $0x668] sm:$0xff]
        %v1635 = vld [vmem:[%s1306 + $0x670] sm:$0xff]
        %v1636 = vld [vmem:[%s1306 + $0x678] sm:$0xff]
        %v1637 = vld [vmem:[%s1306 + $0x680] sm:$0xff]
        %v1638 = vld [vmem:[%s1306 + $0x688] sm:$0xff]
        %v1639 = vld [vmem:[%s1306 + $0x690] sm:$0xff]
        %v1640 = vld [vmem:[%s1306 + $0x698] sm:$0xff]
        %v1641 = vld [vmem:[%s1306 + $0x6a0] sm:$0xff]
        %v1642 = vld [vmem:[%s1306 + $0x6a8] sm:$0xff]
        %v1643 = vld [vmem:[%s1306 + $0x6b0] sm:$0xff]
        %v1644 = vld [vmem:[%s1306 + $0x6b8] sm:$0xff]
        %v1645 = vld [vmem:[%s1306 + $0x6c0] sm:$0xff]
        %v1646 = vld [vmem:[%s1306 + $0x6c8] sm:$0xff]
        %v1647 = vld [vmem:[%s1306 + $0x6d0] sm:$0xff]
        %v1648 = vld [vmem:[%s1306 + $0x6d8] sm:$0xff]
        %v1649 = vld [vmem:[%s1306 + $0x6e0] sm:$0xff]
        %v1650 = vld [vmem:[%s1306 + $0x6e8] sm:$0xff]
        %v1651 = vld [vmem:[%s1306 + $0x6f0] sm:$0xff]
        %v1652 = vld [vmem:[%s1306 + $0x6f8] sm:$0xff]
        %v1653 = vld [vmem:[%s1306 + $0x700] sm:$0xff]
        %v1654 = vld [vmem:[%s1306 + $0x708] sm:$0xff]
        %v1655 = vld [vmem:[%s1306 + $0x710] sm:$0xff]
        %v1656 = vld [vmem:[%s1306 + $0x718] sm:$0xff]
        %v1657 = vld [vmem:[%s1306 + $0x720] sm:$0xff]
        %v1658 = vld [vmem:[%s1306 + $0x728] sm:$0xff]
        %v1659 = vld [vmem:[%s1306 + $0x730] sm:$0xff]
        %v1660 = vld [vmem:[%s1306 + $0x738] sm:$0xff]
        %v1661 = vld [vmem:[%s1306 + $0x740] sm:$0xff]
        %v1662 = vld [vmem:[%s1306 + $0x748] sm:$0xff]
        %v1663 = vld [vmem:[%s1306 + $0x750] sm:$0xff]
        %v1664 = vld [vmem:[%s1306 + $0x758] sm:$0xff]
        %v1665 = vld [vmem:[%s1306 + $0x760] sm:$0xff]
        %v1666 = vld [vmem:[%s1306 + $0x768] sm:$0xff]
        %v1667 = vld [vmem:[%s1306 + $0x770] sm:$0xff]
        %v1668 = vld [vmem:[%s1306 + $0x778] sm:$0xff]
        %v1669 = vld [vmem:[%s1306 + $0x780] sm:$0xff]
        %v1670 = vld [vmem:[%s1306 + $0x788] sm:$0xff]
        %v1671 = vld [vmem:[%s1306 + $0x790] sm:$0xff]
        %v1672 = vld [vmem:[%s1306 + $0x798] sm:$0xff]
        %v1673 = vld [vmem:[%s1306 + $0x7a0] sm:$0xff]
        %v1674 = vld [vmem:[%s1306 + $0x7a8] sm:$0xff]
        %v1675 = vld [vmem:[%s1306 + $0x7b0] sm:$0xff]
        %v1676 = vld [vmem:[%s1306 + $0x7b8] sm:$0xff]
        %v1677 = vld [vmem:[%s1306 + $0x7c0] sm:$0xff]
        %v1678 = vld [vmem:[%s1306 + $0x7c8] sm:$0xff]
        %v1679 = vld [vmem:[%s1306 + $0x7d0] sm:$0xff]
        %v1680 = vld [vmem:[%s1306 + $0x7d8] sm:$0xff]
        %v1681 = vld [vmem:[%s1306 + $0x7e0] sm:$0xff]
        %v1682 = vld [vmem:[%s1306 + $0x7e8] sm:$0xff]
        %v1683 = vld [vmem:[%s1306 + $0x7f0] sm:$0xff]
        %v1684 = vld [vmem:[%s1306 + $0x7f8] sm:$0xff]
        %v1685 = vld [vmem:[%s3] sm:$0xff]
        %v1686 = vld [vmem:[%s3 + $0x8] sm:$0xff]
        %v1687 = vld [vmem:[%s3 + $0x10] sm:$0xff]
        %v1688 = vld [vmem:[%s3 + $0x18] sm:$0xff]
        %v1690 = vsel %vm1355, %v1429, 0
        %v1693 = vsel %vm1355, %v1430, 0
        %v1696 = vsel %vm1355, %v1431, 0
        %v1699 = vsel %vm1355, %v1432, 0
        %v1702 = vsel %vm1355, %v1433, 0
        %v1705 = vsel %vm1355, %v1434, 0
        %v1708 = vsel %vm1355, %v1435, 0
        %v1711 = vsel %vm1355, %v1436, 0
        %v1714 = vsel %vm1355, %v1437, 0
        %v1717 = vsel %vm1355, %v1438, 0
        %v1720 = vsel %vm1355, %v1439, 0
        %v1723 = vsel %vm1355, %v1440, 0
        %v1726 = vsel %vm1355, %v1441, 0
        %v1729 = vsel %vm1355, %v1442, 0
        %v1732 = vsel %vm1355, %v1443, 0
        %v1735 = vsel %vm1355, %v1444, 0
        %v1738 = vsel %vm1355, %v1445, 0
        %v1741 = vsel %vm1355, %v1446, 0
        %v1744 = vsel %vm1355, %v1447, 0
        %v1747 = vsel %vm1355, %v1448, 0
        %v1750 = vsel %vm1355, %v1449, 0
        %v1753 = vsel %vm1355, %v1450, 0
        %v1756 = vsel %vm1355, %v1451, 0
        %v1759 = vsel %vm1355, %v1452, 0
        %v1762 = vsel %vm1355, %v1453, 0
        %v1765 = vsel %vm1355, %v1454, 0
        %v1768 = vsel %vm1355, %v1455, 0
        %v1771 = vsel %vm1355, %v1456, 0
        %v1774 = vsel %vm1355, %v1457, 0
        %v1777 = vsel %vm1355, %v1458, 0
        %v1780 = vsel %vm1355, %v1459, 0
        %v1783 = vsel %vm1355, %v1460, 0
        %v1786 = vsel %vm1355, %v1461, 0
        %v1789 = vsel %vm1355, %v1462, 0
        %v1792 = vsel %vm1355, %v1463, 0
        %v1795 = vsel %vm1355, %v1464, 0
        %v1798 = vsel %vm1355, %v1465, 0
        %v1801 = vsel %vm1355, %v1466, 0
        %v1804 = vsel %vm1355, %v1467, 0
        %v1807 = vsel %vm1355, %v1468, 0
        %v1810 = vsel %vm1355, %v1469, 0
        %v1813 = vsel %vm1355, %v1470, 0
        %v1816 = vsel %vm1355, %v1471, 0
        %v1819 = vsel %vm1355, %v1472, 0
        %v1822 = vsel %vm1355, %v1473, 0
        %v1825 = vsel %vm1355, %v1474, 0
        %v1828 = vsel %vm1355, %v1475, 0
        %v1831 = vsel %vm1355, %v1476, 0
        %v1834 = vsel %vm1355, %v1477, 0
        %v1837 = vsel %vm1355, %v1478, 0
        %v1840 = vsel %vm1355, %v1479, 0
        %v1843 = vsel %vm1355, %v1480, 0
        %v1846 = vsel %vm1355, %v1481, 0
        %v1849 = vsel %vm1355, %v1482, 0
        %v1852 = vsel %vm1355, %v1483, 0
        %v1855 = vsel %vm1355, %v1484, 0
        %v1858 = vsel %vm1355, %v1485, 0
        %v1861 = vsel %vm1355, %v1486, 0
        %v1864 = vsel %vm1355, %v1487, 0
        %v1867 = vsel %vm1355, %v1488, 0
        %v1870 = vsel %vm1355, %v1489, 0
        %v1873 = vsel %vm1355, %v1490, 0
        %v1876 = vsel %vm1355, %v1491, 0
        %v1879 = vsel %vm1355, %v1492, 0
        %v1882 = vsel %vm1355, %v1493, 0
        %v1885 = vsel %vm1355, %v1494, 0
        %v1888 = vsel %vm1355, %v1495, 0
        %v1891 = vsel %vm1355, %v1496, 0
        %v1894 = vsel %vm1355, %v1497, 0
        %v1897 = vsel %vm1355, %v1498, 0
        %v1900 = vsel %vm1355, %v1499, 0
        %v1903 = vsel %vm1355, %v1500, 0
        %v1906 = vsel %vm1355, %v1501, 0
        %v1909 = vsel %vm1355, %v1502, 0
        %v1912 = vsel %vm1355, %v1503, 0
        %v1915 = vsel %vm1355, %v1504, 0
        %v1918 = vsel %vm1355, %v1505, 0
        %v1921 = vsel %vm1355, %v1506, 0
        %v1924 = vsel %vm1355, %v1507, 0
        %v1927 = vsel %vm1355, %v1508, 0
        %v1930 = vsel %vm1355, %v1509, 0
        %v1933 = vsel %vm1355, %v1510, 0
        %v1936 = vsel %vm1355, %v1511, 0
        %v1939 = vsel %vm1355, %v1512, 0
        %v1942 = vsel %vm1355, %v1513, 0
        %v1945 = vsel %vm1355, %v1514, 0
        %v1948 = vsel %vm1355, %v1515, 0
        %v1951 = vsel %vm1355, %v1516, 0
        %v1954 = vsel %vm1355, %v1517, 0
        %v1957 = vsel %vm1355, %v1518, 0
        %v1960 = vsel %vm1355, %v1519, 0
        %v1963 = vsel %vm1355, %v1520, 0
        %v1966 = vsel %vm1355, %v1521, 0
        %v1969 = vsel %vm1355, %v1522, 0
        %v1972 = vsel %vm1355, %v1523, 0
        %v1975 = vsel %vm1355, %v1524, 0
        %v1978 = vsel %vm1355, %v1525, 0
        %v1981 = vsel %vm1355, %v1526, 0
        %v1984 = vsel %vm1355, %v1527, 0
        %v1987 = vsel %vm1355, %v1528, 0
        %v1990 = vsel %vm1355, %v1529, 0
        %v1993 = vsel %vm1355, %v1530, 0
        %v1996 = vsel %vm1355, %v1531, 0
        %v1999 = vsel %vm1355, %v1532, 0
        %v2002 = vsel %vm1355, %v1533, 0
        %v2005 = vsel %vm1355, %v1534, 0
        %v2008 = vsel %vm1355, %v1535, 0
        %v2011 = vsel %vm1355, %v1536, 0
        %v2014 = vsel %vm1355, %v1537, 0
        %v2017 = vsel %vm1355, %v1538, 0
        %v2020 = vsel %vm1355, %v1539, 0
        %v2023 = vsel %vm1355, %v1540, 0
        %v2026 = vsel %vm1355, %v1541, 0
        %v2029 = vsel %vm1355, %v1542, 0
        %v2032 = vsel %vm1355, %v1543, 0
        %v2035 = vsel %vm1355, %v1544, 0
        %v2038 = vsel %vm1355, %v1545, 0
        %v2041 = vsel %vm1355, %v1546, 0
        %v2044 = vsel %vm1355, %v1547, 0
        %v2047 = vsel %vm1355, %v1548, 0
        %v2050 = vsel %vm1355, %v1549, 0
        %v2053 = vsel %vm1355, %v1550, 0
        %v2056 = vsel %vm1355, %v1551, 0
        %v2059 = vsel %vm1355, %v1552, 0
        %v2062 = vsel %vm1355, %v1553, 0
        %v2065 = vsel %vm1355, %v1554, 0
        %v2068 = vsel %vm1355, %v1555, 0
        %v2071 = vsel %vm1355, %v1556, 0
        %v2074 = vsel %vm1355, %v1557, 0
        %v2077 = vsel %vm1355, %v1558, 0
        %v2080 = vsel %vm1355, %v1559, 0
        %v2083 = vsel %vm1355, %v1560, 0
        %v2086 = vsel %vm1355, %v1561, 0
        %v2089 = vsel %vm1355, %v1562, 0
        %v2092 = vsel %vm1355, %v1563, 0
        %v2095 = vsel %vm1355, %v1564, 0
        %v2098 = vsel %vm1355, %v1565, 0
        %v2101 = vsel %vm1355, %v1566, 0
        %v2104 = vsel %vm1355, %v1567, 0
        %v2107 = vsel %vm1355, %v1568, 0
        %v2110 = vsel %vm1355, %v1569, 0
        %v2113 = vsel %vm1355, %v1570, 0
        %v2116 = vsel %vm1355, %v1571, 0
        %v2119 = vsel %vm1355, %v1572, 0
        %v2122 = vsel %vm1355, %v1573, 0
        %v2125 = vsel %vm1355, %v1574, 0
        %v2128 = vsel %vm1355, %v1575, 0
        %v2131 = vsel %vm1355, %v1576, 0
        %v2134 = vsel %vm1355, %v1577, 0
        %v2137 = vsel %vm1355, %v1578, 0
        %v2140 = vsel %vm1355, %v1579, 0
        %v2143 = vsel %vm1355, %v1580, 0
        %v2146 = vsel %vm1355, %v1581, 0
        %v2149 = vsel %vm1355, %v1582, 0
        %v2152 = vsel %vm1355, %v1583, 0
        %v2155 = vsel %vm1355, %v1584, 0
        %v2158 = vsel %vm1355, %v1585, 0
        %v2161 = vsel %vm1355, %v1586, 0
        %v2164 = vsel %vm1355, %v1587, 0
        %v2167 = vsel %vm1355, %v1588, 0
        %v2170 = vsel %vm1355, %v1589, 0
        %v2173 = vsel %vm1355, %v1590, 0
        %v2176 = vsel %vm1355, %v1591, 0
        %v2179 = vsel %vm1355, %v1592, 0
        %v2182 = vsel %vm1355, %v1593, 0
        %v2185 = vsel %vm1355, %v1594, 0
        %v2188 = vsel %vm1355, %v1595, 0
        %v2191 = vsel %vm1355, %v1596, 0
        %v2194 = vsel %vm1355, %v1597, 0
        %v2197 = vsel %vm1355, %v1598, 0
        %v2200 = vsel %vm1355, %v1599, 0
        %v2203 = vsel %vm1355, %v1600, 0
        %v2206 = vsel %vm1355, %v1601, 0
        %v2209 = vsel %vm1355, %v1602, 0
        %v2212 = vsel %vm1355, %v1603, 0
        %v2215 = vsel %vm1355, %v1604, 0
        %v2218 = vsel %vm1355, %v1605, 0
        %v2221 = vsel %vm1355, %v1606, 0
        %v2224 = vsel %vm1355, %v1607, 0
        %v2227 = vsel %vm1355, %v1608, 0
        %v2230 = vsel %vm1355, %v1609, 0
        %v2233 = vsel %vm1355, %v1610, 0
        %v2236 = vsel %vm1355, %v1611, 0
        %v2239 = vsel %vm1355, %v1612, 0
        %v2242 = vsel %vm1355, %v1613, 0
        %v2245 = vsel %vm1355, %v1614, 0
        %v2248 = vsel %vm1355, %v1615, 0
        %v2251 = vsel %vm1355, %v1616, 0
        %v2254 = vsel %vm1355, %v1617, 0
        %v2257 = vsel %vm1355, %v1618, 0
        %v2260 = vsel %vm1355, %v1619, 0
        %v2263 = vsel %vm1355, %v1620, 0
        %v2266 = vsel %vm1355, %v1621, 0
        %v2269 = vsel %vm1355, %v1622, 0
        %v2272 = vsel %vm1355, %v1623, 0
        %v2275 = vsel %vm1355, %v1624, 0
        %v2278 = vsel %vm1355, %v1625, 0
        %v2281 = vsel %vm1355, %v1626, 0
        %v2284 = vsel %vm1355, %v1627, 0
        %v2287 = vsel %vm1355, %v1628, 0
        %v2290 = vsel %vm1355, %v1629, 0
        %v2293 = vsel %vm1355, %v1630, 0
        %v2296 = vsel %vm1355, %v1631, 0
        %v2299 = vsel %vm1355, %v1632, 0
        %v2302 = vsel %vm1355, %v1633, 0
        %v2305 = vsel %vm1355, %v1634, 0
        %v2308 = vsel %vm1355, %v1635, 0
        %v2311 = vsel %vm1355, %v1636, 0
        %v2314 = vsel %vm1355, %v1637, 0
        %v2317 = vsel %vm1355, %v1638, 0
        %v2320 = vsel %vm1355, %v1639, 0
        %v2323 = vsel %vm1355, %v1640, 0
        %v2326 = vsel %vm1355, %v1641, 0
        %v2329 = vsel %vm1355, %v1642, 0
        %v2332 = vsel %vm1355, %v1643, 0
        %v2335 = vsel %vm1355, %v1644, 0
        %v2338 = vsel %vm1355, %v1645, 0
        %v2341 = vsel %vm1355, %v1646, 0
        %v2344 = vsel %vm1355, %v1647, 0
        %v2347 = vsel %vm1355, %v1648, 0
        %v2350 = vsel %vm1355, %v1649, 0
        %v2353 = vsel %vm1355, %v1650, 0
        %v2356 = vsel %vm1355, %v1651, 0
        %v2359 = vsel %vm1355, %v1652, 0
        %v2362 = vsel %vm1355, %v1653, 0
        %v2365 = vsel %vm1355, %v1654, 0
        %v2368 = vsel %vm1355, %v1655, 0
        %v2371 = vsel %vm1355, %v1656, 0
        %v2374 = vsel %vm1355, %v1657, 0
        %v2377 = vsel %vm1355, %v1658, 0
        %v2380 = vsel %vm1355, %v1659, 0
        %v2383 = vsel %vm1355, %v1660, 0
        %v2386 = vsel %vm1355, %v1661, 0
        %v2389 = vsel %vm1355, %v1662, 0
        %v2392 = vsel %vm1355, %v1663, 0
        %v2395 = vsel %vm1355, %v1664, 0
        %v2398 = vsel %vm1355, %v1665, 0
        %v2401 = vsel %vm1355, %v1666, 0
        %v2404 = vsel %vm1355, %v1667, 0
        %v2407 = vsel %vm1355, %v1668, 0
        %v2410 = vsel %vm1355, %v1669, 0
        %v2413 = vsel %vm1355, %v1670, 0
        %v2416 = vsel %vm1355, %v1671, 0
        %v2419 = vsel %vm1355, %v1672, 0
        %v2422 = vsel %vm1355, %v1673, 0
        %v2425 = vsel %vm1355, %v1674, 0
        %v2428 = vsel %vm1355, %v1675, 0
        %v2431 = vsel %vm1355, %v1676, 0
        %v2434 = vsel %vm1355, %v1677, 0
        %v2437 = vsel %vm1355, %v1678, 0
        %v2440 = vsel %vm1355, %v1679, 0
        %v2443 = vsel %vm1355, %v1680, 0
        %v2446 = vsel %vm1355, %v1681, 0
        %v2449 = vsel %vm1355, %v1682, 0
        %v2452 = vsel %vm1355, %v1683, 0
        %v2455 = vsel %vm1355, %v1684, 0
        %2457 = vmatprep.subr.mxu0 0.0
        %2458 = vmatpush1.msra.mxu0 0.0
        %2459 = vmatprep.subr.mxu0 0.0
        %2460 = vmatpush1.msra.mxu0 0.0
        %2461 = vmatprep.subr.mxu0 0.0
        %2462 = vmatpush1.msra.mxu0 0.0
        %2463 = vmatprep.subr.mxu0 0.0
        %2464 = vmatpush1.msra.mxu0 0.0
        %2465 = vmatprep.subr.mxu0 0.0
        %2466 = vmatpush1.msra.mxu0 0.0
        %2467 = vmatprep.subr.mxu0 0.0
        %2468 = vmatpush1.msra.mxu0 0.0
        %2469 = vmatprep.subr.mxu0 0.0
        %2470 = vmatpush1.msra.mxu0 0.0
        %2471 = vmatprep.subr.mxu0 0.0
        %2472 = vmatpush1.msra.mxu0 0.0
        %2473 = vmatprep.subr.mxu0 0.0
        %2474 = vmatpush1.msra.mxu0 0.0
        %2475 = vmatprep.subr.mxu0 0.0
        %2476 = vmatpush1.msra.mxu0 0.0
        %2477 = vmatprep.subr.mxu0 0.0
        %2478 = vmatpush1.msra.mxu0 0.0
        %2479 = vmatprep.subr.mxu0 0.0
        %2480 = vmatpush1.msra.mxu0 0.0
        %2481 = vmatprep.subr.mxu0 0.0
        %2482 = vmatpush1.msra.mxu0 %v1688
        %2483 = vmatprep.subr.mxu0 0.0
        %2484 = vmatpush1.msra.mxu0 %v1687
        %2485 = vmatprep.subr.mxu0 0.0
        %2486 = vmatpush1.msra.mxu0 %v1686
        %2487 = vmatprep.subr.mxu0 0.0
        %2488 = vmatpush1.msra.mxu0 %v1685
        %2489 = vmatprep.subr.mxu0 0.0
        %2490 = vmatpush2.msra.mxu0 0.0
        %2491 = vmatprep.subr.mxu0 0.0
        %2492 = vmatpush2.msra.mxu0 0.0
        %2493 = vmatprep.subr.mxu0 0.0
        %2494 = vmatpush2.msra.mxu0 0.0
        %2495 = vmatprep.subr.mxu0 0.0
        %2496 = vmatpush2.msra.mxu0 0.0
        %2497 = vmatprep.subr.mxu0 0.0
        %2498 = vmatpush2.msra.mxu0 0.0
        %2499 = vmatprep.subr.mxu0 0.0
        %2500 = vmatpush2.msra.mxu0 0.0
        %2501 = vmatprep.subr.mxu0 0.0
        %2502 = vmatpush2.msra.mxu0 0.0
        %2503 = vmatprep.subr.mxu0 0.0
        %2504 = vmatpush2.msra.mxu0 0.0
        %2505 = vmatprep.subr.mxu0 0.0
        %2506 = vmatpush2.msra.mxu0 0.0
        %2507 = vmatprep.subr.mxu0 0.0
        %2508 = vmatpush2.msra.mxu0 0.0
        %2509 = vmatprep.subr.mxu0 0.0
        %2510 = vmatpush2.msra.mxu0 0.0
        %2511 = vmatprep.subr.mxu0 0.0
        %2512 = vmatpush2.msra.mxu0 0.0
        %2513 = vmatprep.subr.mxu0 0.0
        %2514 = vmatpush2.msra.mxu0 0.0
        %2515 = vmatprep.subr.mxu0 0.0
        %2516 = vmatpush2.msra.mxu0 0.0
        %2517 = vmatprep.subr.mxu0 0.0
        %2518 = vmatpush2.msra.mxu0 0.0
        %2519 = vmatprep.subr.mxu0 0.0
        %2520 = vmatpush2.msra.mxu0 0.0
        %2521 = vmatprep.mubr.f32.mxu0 0.0
        %2522 = vmatmul.mubr.f32.gmra.mxu0 %v1690
        %v2523 = vpop.f32.mrf.mxu0
        %v2524 = vadd.f32 0.0, %v2523
        %v2525 = vpop.f32.mrf.mxu0
        %2526 = vmatprep.mubr.f32.mxu0 0.0
        %2527 = vmatmul.mubr.f32.gmra.mxu0 %v1693
        %v2528 = vpop.f32.mrf.mxu0
        %v2529 = vadd.f32 0.0, %v2528
        %v2530 = vpop.f32.mrf.mxu0
        %2531 = vmatprep.mubr.f32.mxu0 0.0
        %2532 = vmatmul.mubr.f32.gmra.mxu0 %v1696
        %v2533 = vpop.f32.mrf.mxu0
        %v2534 = vadd.f32 0.0, %v2533
        %v2535 = vpop.f32.mrf.mxu0
        %2536 = vmatprep.mubr.f32.mxu0 0.0
        %2537 = vmatmul.mubr.f32.gmra.mxu0 %v1699
        %v2538 = vpop.f32.mrf.mxu0
        %v2539 = vadd.f32 0.0, %v2538
        %v2540 = vpop.f32.mrf.mxu0
        %2541 = vmatprep.mubr.f32.mxu0 0.0
        %2542 = vmatmul.mubr.f32.gmra.mxu0 %v1702
        %v2543 = vpop.f32.mrf.mxu0
        %v2544 = vadd.f32 0.0, %v2543
        %v2545 = vpop.f32.mrf.mxu0
        %2546 = vmatprep.mubr.f32.mxu0 0.0
        %2547 = vmatmul.mubr.f32.gmra.mxu0 %v1705
        %v2548 = vpop.f32.mrf.mxu0
        %v2549 = vadd.f32 0.0, %v2548
        %v2550 = vpop.f32.mrf.mxu0
        %2551 = vmatprep.mubr.f32.mxu0 0.0
        %2552 = vmatmul.mubr.f32.gmra.mxu0 %v1708
        %v2553 = vpop.f32.mrf.mxu0
        %v2554 = vadd.f32 0.0, %v2553
        %v2555 = vpop.f32.mrf.mxu0
        %2556 = vmatprep.mubr.f32.mxu0 0.0
        %2557 = vmatmul.mubr.f32.gmra.mxu0 %v1711
        %v2558 = vpop.f32.mrf.mxu0
        %v2559 = vadd.f32 0.0, %v2558
        %v2560 = vpop.f32.mrf.mxu0
        %2561 = vmatprep.mubr.f32.mxu0 0.0
        %2562 = vmatmul.mubr.f32.gmra.mxu0 %v1714
        %v2563 = vpop.f32.mrf.mxu0
        %v2564 = vadd.f32 0.0, %v2563
        %v2565 = vpop.f32.mrf.mxu0
        %2566 = vmatprep.mubr.f32.mxu0 0.0
        %2567 = vmatmul.mubr.f32.gmra.mxu0 %v1717
        %v2568 = vpop.f32.mrf.mxu0
        %v2569 = vadd.f32 0.0, %v2568
        %v2570 = vpop.f32.mrf.mxu0
        %2571 = vmatprep.mubr.f32.mxu0 0.0
        %2572 = vmatmul.mubr.f32.gmra.mxu0 %v1720
        %v2573 = vpop.f32.mrf.mxu0
        %v2574 = vadd.f32 0.0, %v2573
        %v2575 = vpop.f32.mrf.mxu0
        %2576 = vmatprep.mubr.f32.mxu0 0.0
        %2577 = vmatmul.mubr.f32.gmra.mxu0 %v1723
        %v2578 = vpop.f32.mrf.mxu0
        %v2579 = vadd.f32 0.0, %v2578
        %v2580 = vpop.f32.mrf.mxu0
        %2581 = vmatprep.mubr.f32.mxu0 0.0
        %2582 = vmatmul.mubr.f32.gmra.mxu0 %v1726
        %v2583 = vpop.f32.mrf.mxu0
        %v2584 = vadd.f32 0.0, %v2583
        %v2585 = vpop.f32.mrf.mxu0
        %2586 = vmatprep.mubr.f32.mxu0 0.0
        %2587 = vmatmul.mubr.f32.gmra.mxu0 %v1729
        %v2588 = vpop.f32.mrf.mxu0
        %v2589 = vadd.f32 0.0, %v2588
        %v2590 = vpop.f32.mrf.mxu0
        %2591 = vmatprep.mubr.f32.mxu0 0.0
        %2592 = vmatmul.mubr.f32.gmra.mxu0 %v1732
        %v2593 = vpop.f32.mrf.mxu0
        %v2594 = vadd.f32 0.0, %v2593
        %v2595 = vpop.f32.mrf.mxu0
        %2596 = vmatprep.mubr.f32.mxu0 0.0
        %2597 = vmatmul.mubr.f32.gmra.mxu0 %v1735
        %v2598 = vpop.f32.mrf.mxu0
        %v2599 = vadd.f32 0.0, %v2598
        %v2600 = vpop.f32.mrf.mxu0
        %2601 = vmatprep.mubr.f32.mxu0 0.0
        %2602 = vmatmul.mubr.f32.gmra.mxu0 %v1738
        %v2603 = vpop.f32.mrf.mxu0
        %v2604 = vadd.f32 0.0, %v2603
        %v2605 = vpop.f32.mrf.mxu0
        %2606 = vmatprep.mubr.f32.mxu0 0.0
        %2607 = vmatmul.mubr.f32.gmra.mxu0 %v1741
        %v2608 = vpop.f32.mrf.mxu0
        %v2609 = vadd.f32 0.0, %v2608
        %v2610 = vpop.f32.mrf.mxu0
        %2611 = vmatprep.mubr.f32.mxu0 0.0
        %2612 = vmatmul.mubr.f32.gmra.mxu0 %v1744
        %v2613 = vpop.f32.mrf.mxu0
        %v2614 = vadd.f32 0.0, %v2613
        %v2615 = vpop.f32.mrf.mxu0
        %2616 = vmatprep.mubr.f32.mxu0 0.0
        %2617 = vmatmul.mubr.f32.gmra.mxu0 %v1747
        %v2618 = vpop.f32.mrf.mxu0
        %v2619 = vadd.f32 0.0, %v2618
        %v2620 = vpop.f32.mrf.mxu0
        %2621 = vmatprep.mubr.f32.mxu0 0.0
        %2622 = vmatmul.mubr.f32.gmra.mxu0 %v1750
        %v2623 = vpop.f32.mrf.mxu0
        %v2624 = vadd.f32 0.0, %v2623
        %v2625 = vpop.f32.mrf.mxu0
        %2626 = vmatprep.mubr.f32.mxu0 0.0
        %2627 = vmatmul.mubr.f32.gmra.mxu0 %v1753
        %v2628 = vpop.f32.mrf.mxu0
        %v2629 = vadd.f32 0.0, %v2628
        %v2630 = vpop.f32.mrf.mxu0
        %2631 = vmatprep.mubr.f32.mxu0 0.0
        %2632 = vmatmul.mubr.f32.gmra.mxu0 %v1756
        %v2633 = vpop.f32.mrf.mxu0
        %v2634 = vadd.f32 0.0, %v2633
        %v2635 = vpop.f32.mrf.mxu0
        %2636 = vmatprep.mubr.f32.mxu0 0.0
        %2637 = vmatmul.mubr.f32.gmra.mxu0 %v1759
        %v2638 = vpop.f32.mrf.mxu0
        %v2639 = vadd.f32 0.0, %v2638
        %v2640 = vpop.f32.mrf.mxu0
        %2641 = vmatprep.mubr.f32.mxu0 0.0
        %2642 = vmatmul.mubr.f32.gmra.mxu0 %v1762
        %v2643 = vpop.f32.mrf.mxu0
        %v2644 = vadd.f32 0.0, %v2643
        %v2645 = vpop.f32.mrf.mxu0
        %2646 = vmatprep.mubr.f32.mxu0 0.0
        %2647 = vmatmul.mubr.f32.gmra.mxu0 %v1765
        %v2648 = vpop.f32.mrf.mxu0
        %v2649 = vadd.f32 0.0, %v2648
        %v2650 = vpop.f32.mrf.mxu0
        %2651 = vmatprep.mubr.f32.mxu0 0.0
        %2652 = vmatmul.mubr.f32.gmra.mxu0 %v1768
        %v2653 = vpop.f32.mrf.mxu0
        %v2654 = vadd.f32 0.0, %v2653
        %v2655 = vpop.f32.mrf.mxu0
        %2656 = vmatprep.mubr.f32.mxu0 0.0
        %2657 = vmatmul.mubr.f32.gmra.mxu0 %v1771
        %v2658 = vpop.f32.mrf.mxu0
        %v2659 = vadd.f32 0.0, %v2658
        %v2660 = vpop.f32.mrf.mxu0
        %2661 = vmatprep.mubr.f32.mxu0 0.0
        %2662 = vmatmul.mubr.f32.gmra.mxu0 %v1774
        %v2663 = vpop.f32.mrf.mxu0
        %v2664 = vadd.f32 0.0, %v2663
        %v2665 = vpop.f32.mrf.mxu0
        %2666 = vmatprep.mubr.f32.mxu0 0.0
        %2667 = vmatmul.mubr.f32.gmra.mxu0 %v1777
        %v2668 = vpop.f32.mrf.mxu0
        %v2669 = vadd.f32 0.0, %v2668
        %v2670 = vpop.f32.mrf.mxu0
        %2671 = vmatprep.mubr.f32.mxu0 0.0
        %2672 = vmatmul.mubr.f32.gmra.mxu0 %v1780
        %v2673 = vpop.f32.mrf.mxu0
        %v2674 = vadd.f32 0.0, %v2673
        %v2675 = vpop.f32.mrf.mxu0
        %2676 = vmatprep.mubr.f32.mxu0 0.0
        %2677 = vmatmul.mubr.f32.gmra.mxu0 %v1783
        %v2678 = vpop.f32.mrf.mxu0
        %v2679 = vadd.f32 0.0, %v2678
        %v2680 = vpop.f32.mrf.mxu0
        %2681 = vmatprep.mubr.f32.mxu0 0.0
        %2682 = vmatmul.mubr.f32.gmra.mxu0 %v1786
        %v2683 = vpop.f32.mrf.mxu0
        %v2684 = vadd.f32 0.0, %v2683
        %v2685 = vpop.f32.mrf.mxu0
        %2686 = vmatprep.mubr.f32.mxu0 0.0
        %2687 = vmatmul.mubr.f32.gmra.mxu0 %v1789
        %v2688 = vpop.f32.mrf.mxu0
        %v2689 = vadd.f32 0.0, %v2688
        %v2690 = vpop.f32.mrf.mxu0
        %2691 = vmatprep.mubr.f32.mxu0 0.0
        %2692 = vmatmul.mubr.f32.gmra.mxu0 %v1792
        %v2693 = vpop.f32.mrf.mxu0
        %v2694 = vadd.f32 0.0, %v2693
        %v2695 = vpop.f32.mrf.mxu0
        %2696 = vmatprep.mubr.f32.mxu0 0.0
        %2697 = vmatmul.mubr.f32.gmra.mxu0 %v1795
        %v2698 = vpop.f32.mrf.mxu0
        %v2699 = vadd.f32 0.0, %v2698
        %v2700 = vpop.f32.mrf.mxu0
        %2701 = vmatprep.mubr.f32.mxu0 0.0
        %2702 = vmatmul.mubr.f32.gmra.mxu0 %v1798
        %v2703 = vpop.f32.mrf.mxu0
        %v2704 = vadd.f32 0.0, %v2703
        %v2705 = vpop.f32.mrf.mxu0
        %2706 = vmatprep.mubr.f32.mxu0 0.0
        %2707 = vmatmul.mubr.f32.gmra.mxu0 %v1801
        %v2708 = vpop.f32.mrf.mxu0
        %v2709 = vadd.f32 0.0, %v2708
        %v2710 = vpop.f32.mrf.mxu0
        %2711 = vmatprep.mubr.f32.mxu0 0.0
        %2712 = vmatmul.mubr.f32.gmra.mxu0 %v1804
        %v2713 = vpop.f32.mrf.mxu0
        %v2714 = vadd.f32 0.0, %v2713
        %v2715 = vpop.f32.mrf.mxu0
        %2716 = vmatprep.mubr.f32.mxu0 0.0
        %2717 = vmatmul.mubr.f32.gmra.mxu0 %v1807
        %v2718 = vpop.f32.mrf.mxu0
        %v2719 = vadd.f32 0.0, %v2718
        %v2720 = vpop.f32.mrf.mxu0
        %2721 = vmatprep.mubr.f32.mxu0 0.0
        %2722 = vmatmul.mubr.f32.gmra.mxu0 %v1810
        %v2723 = vpop.f32.mrf.mxu0
        %v2724 = vadd.f32 0.0, %v2723
        %v2725 = vpop.f32.mrf.mxu0
        %2726 = vmatprep.mubr.f32.mxu0 0.0
        %2727 = vmatmul.mubr.f32.gmra.mxu0 %v1813
        %v2728 = vpop.f32.mrf.mxu0
        %v2729 = vadd.f32 0.0, %v2728
        %v2730 = vpop.f32.mrf.mxu0
        %2731 = vmatprep.mubr.f32.mxu0 0.0
        %2732 = vmatmul.mubr.f32.gmra.mxu0 %v1816
        %v2733 = vpop.f32.mrf.mxu0
        %v2734 = vadd.f32 0.0, %v2733
        %v2735 = vpop.f32.mrf.mxu0
        %2736 = vmatprep.mubr.f32.mxu0 0.0
        %2737 = vmatmul.mubr.f32.gmra.mxu0 %v1819
        %v2738 = vpop.f32.mrf.mxu0
        %v2739 = vadd.f32 0.0, %v2738
        %v2740 = vpop.f32.mrf.mxu0
        %2741 = vmatprep.mubr.f32.mxu0 0.0
        %2742 = vmatmul.mubr.f32.gmra.mxu0 %v1822
        %v2743 = vpop.f32.mrf.mxu0
        %v2744 = vadd.f32 0.0, %v2743
        %v2745 = vpop.f32.mrf.mxu0
        %2746 = vmatprep.mubr.f32.mxu0 0.0
        %2747 = vmatmul.mubr.f32.gmra.mxu0 %v1825
        %v2748 = vpop.f32.mrf.mxu0
        %v2749 = vadd.f32 0.0, %v2748
        %v2750 = vpop.f32.mrf.mxu0
        %2751 = vmatprep.mubr.f32.mxu0 0.0
        %2752 = vmatmul.mubr.f32.gmra.mxu0 %v1828
        %v2753 = vpop.f32.mrf.mxu0
        %v2754 = vadd.f32 0.0, %v2753
        %v2755 = vpop.f32.mrf.mxu0
        %2756 = vmatprep.mubr.f32.mxu0 0.0
        %2757 = vmatmul.mubr.f32.gmra.mxu0 %v1831
        %v2758 = vpop.f32.mrf.mxu0
        %v2759 = vadd.f32 0.0, %v2758
        %v2760 = vpop.f32.mrf.mxu0
        %2761 = vmatprep.mubr.f32.mxu0 0.0
        %2762 = vmatmul.mubr.f32.gmra.mxu0 %v1834
        %v2763 = vpop.f32.mrf.mxu0
        %v2764 = vadd.f32 0.0, %v2763
        %v2765 = vpop.f32.mrf.mxu0
        %2766 = vmatprep.mubr.f32.mxu0 0.0
        %2767 = vmatmul.mubr.f32.gmra.mxu0 %v1837
        %v2768 = vpop.f32.mrf.mxu0
        %v2769 = vadd.f32 0.0, %v2768
        %v2770 = vpop.f32.mrf.mxu0
        %2771 = vmatprep.mubr.f32.mxu0 0.0
        %2772 = vmatmul.mubr.f32.gmra.mxu0 %v1840
        %v2773 = vpop.f32.mrf.mxu0
        %v2774 = vadd.f32 0.0, %v2773
        %v2775 = vpop.f32.mrf.mxu0
        %2776 = vmatprep.mubr.f32.mxu0 0.0
        %2777 = vmatmul.mubr.f32.gmra.mxu0 %v1843
        %v2778 = vpop.f32.mrf.mxu0
        %v2779 = vadd.f32 0.0, %v2778
        %v2780 = vpop.f32.mrf.mxu0
        %2781 = vmatprep.mubr.f32.mxu0 0.0
        %2782 = vmatmul.mubr.f32.gmra.mxu0 %v1846
        %v2783 = vpop.f32.mrf.mxu0
        %v2784 = vadd.f32 0.0, %v2783
        %v2785 = vpop.f32.mrf.mxu0
        %2786 = vmatprep.mubr.f32.mxu0 0.0
        %2787 = vmatmul.mubr.f32.gmra.mxu0 %v1849
        %v2788 = vpop.f32.mrf.mxu0
        %v2789 = vadd.f32 0.0, %v2788
        %v2790 = vpop.f32.mrf.mxu0
        %2791 = vmatprep.mubr.f32.mxu0 0.0
        %2792 = vmatmul.mubr.f32.gmra.mxu0 %v1852
        %v2793 = vpop.f32.mrf.mxu0
        %v2794 = vadd.f32 0.0, %v2793
        %v2795 = vpop.f32.mrf.mxu0
        %2796 = vmatprep.mubr.f32.mxu0 0.0
        %2797 = vmatmul.mubr.f32.gmra.mxu0 %v1855
        %v2798 = vpop.f32.mrf.mxu0
        %v2799 = vadd.f32 0.0, %v2798
        %v2800 = vpop.f32.mrf.mxu0
        %2801 = vmatprep.mubr.f32.mxu0 0.0
        %2802 = vmatmul.mubr.f32.gmra.mxu0 %v1858
        %v2803 = vpop.f32.mrf.mxu0
        %v2804 = vadd.f32 0.0, %v2803
        %v2805 = vpop.f32.mrf.mxu0
        %2806 = vmatprep.mubr.f32.mxu0 0.0
        %2807 = vmatmul.mubr.f32.gmra.mxu0 %v1861
        %v2808 = vpop.f32.mrf.mxu0
        %v2809 = vadd.f32 0.0, %v2808
        %v2810 = vpop.f32.mrf.mxu0
        %2811 = vmatprep.mubr.f32.mxu0 0.0
        %2812 = vmatmul.mubr.f32.gmra.mxu0 %v1864
        %v2813 = vpop.f32.mrf.mxu0
        %v2814 = vadd.f32 0.0, %v2813
        %v2815 = vpop.f32.mrf.mxu0
        %2816 = vmatprep.mubr.f32.mxu0 0.0
        %2817 = vmatmul.mubr.f32.gmra.mxu0 %v1867
        %v2818 = vpop.f32.mrf.mxu0
        %v2819 = vadd.f32 0.0, %v2818
        %v2820 = vpop.f32.mrf.mxu0
        %2821 = vmatprep.mubr.f32.mxu0 0.0
        %2822 = vmatmul.mubr.f32.gmra.mxu0 %v1870
        %v2823 = vpop.f32.mrf.mxu0
        %v2824 = vadd.f32 0.0, %v2823
        %v2825 = vpop.f32.mrf.mxu0
        %2826 = vmatprep.mubr.f32.mxu0 0.0
        %2827 = vmatmul.mubr.f32.gmra.mxu0 %v1873
        %v2828 = vpop.f32.mrf.mxu0
        %v2829 = vadd.f32 0.0, %v2828
        %v2830 = vpop.f32.mrf.mxu0
        %2831 = vmatprep.mubr.f32.mxu0 0.0
        %2832 = vmatmul.mubr.f32.gmra.mxu0 %v1876
        %v2833 = vpop.f32.mrf.mxu0
        %v2834 = vadd.f32 0.0, %v2833
        %v2835 = vpop.f32.mrf.mxu0
        %2836 = vmatprep.mubr.f32.mxu0 0.0
        %2837 = vmatmul.mubr.f32.gmra.mxu0 %v1879
        %v2838 = vpop.f32.mrf.mxu0
        %v2839 = vadd.f32 0.0, %v2838
        %v2840 = vpop.f32.mrf.mxu0
        %2841 = vmatprep.mubr.f32.mxu0 0.0
        %2842 = vmatmul.mubr.f32.gmra.mxu0 %v1882
        %v2843 = vpop.f32.mrf.mxu0
        %v2844 = vadd.f32 0.0, %v2843
        %v2845 = vpop.f32.mrf.mxu0
        %2846 = vmatprep.mubr.f32.mxu0 0.0
        %2847 = vmatmul.mubr.f32.gmra.mxu0 %v1885
        %v2848 = vpop.f32.mrf.mxu0
        %v2849 = vadd.f32 0.0, %v2848
        %v2850 = vpop.f32.mrf.mxu0
        %2851 = vmatprep.mubr.f32.mxu0 0.0
        %2852 = vmatmul.mubr.f32.gmra.mxu0 %v1888
        %v2853 = vpop.f32.mrf.mxu0
        %v2854 = vadd.f32 0.0, %v2853
        %v2855 = vpop.f32.mrf.mxu0
        %2856 = vmatprep.mubr.f32.mxu0 0.0
        %2857 = vmatmul.mubr.f32.gmra.mxu0 %v1891
        %v2858 = vpop.f32.mrf.mxu0
        %v2859 = vadd.f32 0.0, %v2858
        %v2860 = vpop.f32.mrf.mxu0
        %2861 = vmatprep.mubr.f32.mxu0 0.0
        %2862 = vmatmul.mubr.f32.gmra.mxu0 %v1894
        %v2863 = vpop.f32.mrf.mxu0
        %v2864 = vadd.f32 0.0, %v2863
        %v2865 = vpop.f32.mrf.mxu0
        %2866 = vmatprep.mubr.f32.mxu0 0.0
        %2867 = vmatmul.mubr.f32.gmra.mxu0 %v1897
        %v2868 = vpop.f32.mrf.mxu0
        %v2869 = vadd.f32 0.0, %v2868
        %v2870 = vpop.f32.mrf.mxu0
        %2871 = vmatprep.mubr.f32.mxu0 0.0
        %2872 = vmatmul.mubr.f32.gmra.mxu0 %v1900
        %v2873 = vpop.f32.mrf.mxu0
        %v2874 = vadd.f32 0.0, %v2873
        %v2875 = vpop.f32.mrf.mxu0
        %2876 = vmatprep.mubr.f32.mxu0 0.0
        %2877 = vmatmul.mubr.f32.gmra.mxu0 %v1903
        %v2878 = vpop.f32.mrf.mxu0
        %v2879 = vadd.f32 0.0, %v2878
        %v2880 = vpop.f32.mrf.mxu0
        %2881 = vmatprep.mubr.f32.mxu0 0.0
        %2882 = vmatmul.mubr.f32.gmra.mxu0 %v1906
        %v2883 = vpop.f32.mrf.mxu0
        %v2884 = vadd.f32 0.0, %v2883
        %v2885 = vpop.f32.mrf.mxu0
        %2886 = vmatprep.mubr.f32.mxu0 0.0
        %2887 = vmatmul.mubr.f32.gmra.mxu0 %v1909
        %v2888 = vpop.f32.mrf.mxu0
        %v2889 = vadd.f32 0.0, %v2888
        %v2890 = vpop.f32.mrf.mxu0
        %2891 = vmatprep.mubr.f32.mxu0 0.0
        %2892 = vmatmul.mubr.f32.gmra.mxu0 %v1912
        %v2893 = vpop.f32.mrf.mxu0
        %v2894 = vadd.f32 0.0, %v2893
        %v2895 = vpop.f32.mrf.mxu0
        %2896 = vmatprep.mubr.f32.mxu0 0.0
        %2897 = vmatmul.mubr.f32.gmra.mxu0 %v1915
        %v2898 = vpop.f32.mrf.mxu0
        %v2899 = vadd.f32 0.0, %v2898
        %v2900 = vpop.f32.mrf.mxu0
        %2901 = vmatprep.mubr.f32.mxu0 0.0
        %2902 = vmatmul.mubr.f32.gmra.mxu0 %v1918
        %v2903 = vpop.f32.mrf.mxu0
        %v2904 = vadd.f32 0.0, %v2903
        %v2905 = vpop.f32.mrf.mxu0
        %2906 = vmatprep.mubr.f32.mxu0 0.0
        %2907 = vmatmul.mubr.f32.gmra.mxu0 %v1921
        %v2908 = vpop.f32.mrf.mxu0
        %v2909 = vadd.f32 0.0, %v2908
        %v2910 = vpop.f32.mrf.mxu0
        %2911 = vmatprep.mubr.f32.mxu0 0.0
        %2912 = vmatmul.mubr.f32.gmra.mxu0 %v1924
        %v2913 = vpop.f32.mrf.mxu0
        %v2914 = vadd.f32 0.0, %v2913
        %v2915 = vpop.f32.mrf.mxu0
        %2916 = vmatprep.mubr.f32.mxu0 0.0
        %2917 = vmatmul.mubr.f32.gmra.mxu0 %v1927
        %v2918 = vpop.f32.mrf.mxu0
        %v2919 = vadd.f32 0.0, %v2918
        %v2920 = vpop.f32.mrf.mxu0
        %2921 = vmatprep.mubr.f32.mxu0 0.0
        %2922 = vmatmul.mubr.f32.gmra.mxu0 %v1930
        %v2923 = vpop.f32.mrf.mxu0
        %v2924 = vadd.f32 0.0, %v2923
        %v2925 = vpop.f32.mrf.mxu0
        %2926 = vmatprep.mubr.f32.mxu0 0.0
        %2927 = vmatmul.mubr.f32.gmra.mxu0 %v1933
        %v2928 = vpop.f32.mrf.mxu0
        %v2929 = vadd.f32 0.0, %v2928
        %v2930 = vpop.f32.mrf.mxu0
        %2931 = vmatprep.mubr.f32.mxu0 0.0
        %2932 = vmatmul.mubr.f32.gmra.mxu0 %v1936
        %v2933 = vpop.f32.mrf.mxu0
        %v2934 = vadd.f32 0.0, %v2933
        %v2935 = vpop.f32.mrf.mxu0
        %2936 = vmatprep.mubr.f32.mxu0 0.0
        %2937 = vmatmul.mubr.f32.gmra.mxu0 %v1939
        %v2938 = vpop.f32.mrf.mxu0
        %v2939 = vadd.f32 0.0, %v2938
        %v2940 = vpop.f32.mrf.mxu0
        %2941 = vmatprep.mubr.f32.mxu0 0.0
        %2942 = vmatmul.mubr.f32.gmra.mxu0 %v1942
        %v2943 = vpop.f32.mrf.mxu0
        %v2944 = vadd.f32 0.0, %v2943
        %v2945 = vpop.f32.mrf.mxu0
        %2946 = vmatprep.mubr.f32.mxu0 0.0
        %2947 = vmatmul.mubr.f32.gmra.mxu0 %v1945
        %v2948 = vpop.f32.mrf.mxu0
        %v2949 = vadd.f32 0.0, %v2948
        %v2950 = vpop.f32.mrf.mxu0
        %2951 = vmatprep.mubr.f32.mxu0 0.0
        %2952 = vmatmul.mubr.f32.gmra.mxu0 %v1948
        %v2953 = vpop.f32.mrf.mxu0
        %v2954 = vadd.f32 0.0, %v2953
        %v2955 = vpop.f32.mrf.mxu0
        %2956 = vmatprep.mubr.f32.mxu0 0.0
        %2957 = vmatmul.mubr.f32.gmra.mxu0 %v1951
        %v2958 = vpop.f32.mrf.mxu0
        %v2959 = vadd.f32 0.0, %v2958
        %v2960 = vpop.f32.mrf.mxu0
        %2961 = vmatprep.mubr.f32.mxu0 0.0
        %2962 = vmatmul.mubr.f32.gmra.mxu0 %v1954
        %v2963 = vpop.f32.mrf.mxu0
        %v2964 = vadd.f32 0.0, %v2963
        %v2965 = vpop.f32.mrf.mxu0
        %2966 = vmatprep.mubr.f32.mxu0 0.0
        %2967 = vmatmul.mubr.f32.gmra.mxu0 %v1957
        %v2968 = vpop.f32.mrf.mxu0
        %v2969 = vadd.f32 0.0, %v2968
        %v2970 = vpop.f32.mrf.mxu0
        %2971 = vmatprep.mubr.f32.mxu0 0.0
        %2972 = vmatmul.mubr.f32.gmra.mxu0 %v1960
        %v2973 = vpop.f32.mrf.mxu0
        %v2974 = vadd.f32 0.0, %v2973
        %v2975 = vpop.f32.mrf.mxu0
        %2976 = vmatprep.mubr.f32.mxu0 0.0
        %2977 = vmatmul.mubr.f32.gmra.mxu0 %v1963
        %v2978 = vpop.f32.mrf.mxu0
        %v2979 = vadd.f32 0.0, %v2978
        %v2980 = vpop.f32.mrf.mxu0
        %2981 = vmatprep.mubr.f32.mxu0 0.0
        %2982 = vmatmul.mubr.f32.gmra.mxu0 %v1966
        %v2983 = vpop.f32.mrf.mxu0
        %v2984 = vadd.f32 0.0, %v2983
        %v2985 = vpop.f32.mrf.mxu0
        %2986 = vmatprep.mubr.f32.mxu0 0.0
        %2987 = vmatmul.mubr.f32.gmra.mxu0 %v1969
        %v2988 = vpop.f32.mrf.mxu0
        %v2989 = vadd.f32 0.0, %v2988
        %v2990 = vpop.f32.mrf.mxu0
        %2991 = vmatprep.mubr.f32.mxu0 0.0
        %2992 = vmatmul.mubr.f32.gmra.mxu0 %v1972
        %v2993 = vpop.f32.mrf.mxu0
        %v2994 = vadd.f32 0.0, %v2993
        %v2995 = vpop.f32.mrf.mxu0
        %2996 = vmatprep.mubr.f32.mxu0 0.0
        %2997 = vmatmul.mubr.f32.gmra.mxu0 %v1975
        %v2998 = vpop.f32.mrf.mxu0
        %v2999 = vadd.f32 0.0, %v2998
        %v3000 = vpop.f32.mrf.mxu0
        %3001 = vmatprep.mubr.f32.mxu0 0.0
        %3002 = vmatmul.mubr.f32.gmra.mxu0 %v1978
        %v3003 = vpop.f32.mrf.mxu0
        %v3004 = vadd.f32 0.0, %v3003
        %v3005 = vpop.f32.mrf.mxu0
        %3006 = vmatprep.mubr.f32.mxu0 0.0
        %3007 = vmatmul.mubr.f32.gmra.mxu0 %v1981
        %v3008 = vpop.f32.mrf.mxu0
        %v3009 = vadd.f32 0.0, %v3008
        %v3010 = vpop.f32.mrf.mxu0
        %3011 = vmatprep.mubr.f32.mxu0 0.0
        %3012 = vmatmul.mubr.f32.gmra.mxu0 %v1984
        %v3013 = vpop.f32.mrf.mxu0
        %v3014 = vadd.f32 0.0, %v3013
        %v3015 = vpop.f32.mrf.mxu0
        %3016 = vmatprep.mubr.f32.mxu0 0.0
        %3017 = vmatmul.mubr.f32.gmra.mxu0 %v1987
        %v3018 = vpop.f32.mrf.mxu0
        %v3019 = vadd.f32 0.0, %v3018
        %v3020 = vpop.f32.mrf.mxu0
        %3021 = vmatprep.mubr.f32.mxu0 0.0
        %3022 = vmatmul.mubr.f32.gmra.mxu0 %v1990
        %v3023 = vpop.f32.mrf.mxu0
        %v3024 = vadd.f32 0.0, %v3023
        %v3025 = vpop.f32.mrf.mxu0
        %3026 = vmatprep.mubr.f32.mxu0 0.0
        %3027 = vmatmul.mubr.f32.gmra.mxu0 %v1993
        %v3028 = vpop.f32.mrf.mxu0
        %v3029 = vadd.f32 0.0, %v3028
        %v3030 = vpop.f32.mrf.mxu0
        %3031 = vmatprep.mubr.f32.mxu0 0.0
        %3032 = vmatmul.mubr.f32.gmra.mxu0 %v1996
        %v3033 = vpop.f32.mrf.mxu0
        %v3034 = vadd.f32 0.0, %v3033
        %v3035 = vpop.f32.mrf.mxu0
        %3036 = vmatprep.mubr.f32.mxu0 0.0
        %3037 = vmatmul.mubr.f32.gmra.mxu0 %v1999
        %v3038 = vpop.f32.mrf.mxu0
        %v3039 = vadd.f32 0.0, %v3038
        %v3040 = vpop.f32.mrf.mxu0
        %3041 = vmatprep.mubr.f32.mxu0 0.0
        %3042 = vmatmul.mubr.f32.gmra.mxu0 %v2002
        %v3043 = vpop.f32.mrf.mxu0
        %v3044 = vadd.f32 0.0, %v3043
        %v3045 = vpop.f32.mrf.mxu0
        %3046 = vmatprep.mubr.f32.mxu0 0.0
        %3047 = vmatmul.mubr.f32.gmra.mxu0 %v2005
        %v3048 = vpop.f32.mrf.mxu0
        %v3049 = vadd.f32 0.0, %v3048
        %v3050 = vpop.f32.mrf.mxu0
        %3051 = vmatprep.mubr.f32.mxu0 0.0
        %3052 = vmatmul.mubr.f32.gmra.mxu0 %v2008
        %v3053 = vpop.f32.mrf.mxu0
        %v3054 = vadd.f32 0.0, %v3053
        %v3055 = vpop.f32.mrf.mxu0
        %3056 = vmatprep.mubr.f32.mxu0 0.0
        %3057 = vmatmul.mubr.f32.gmra.mxu0 %v2011
        %v3058 = vpop.f32.mrf.mxu0
        %v3059 = vadd.f32 0.0, %v3058
        %v3060 = vpop.f32.mrf.mxu0
        %3061 = vmatprep.mubr.f32.mxu0 0.0
        %3062 = vmatmul.mubr.f32.gmra.mxu0 %v2014
        %v3063 = vpop.f32.mrf.mxu0
        %v3064 = vadd.f32 0.0, %v3063
        %v3065 = vpop.f32.mrf.mxu0
        %3066 = vmatprep.mubr.f32.mxu0 0.0
        %3067 = vmatmul.mubr.f32.gmra.mxu0 %v2017
        %v3068 = vpop.f32.mrf.mxu0
        %v3069 = vadd.f32 0.0, %v3068
        %v3070 = vpop.f32.mrf.mxu0
        %3071 = vmatprep.mubr.f32.mxu0 0.0
        %3072 = vmatmul.mubr.f32.gmra.mxu0 %v2020
        %v3073 = vpop.f32.mrf.mxu0
        %v3074 = vadd.f32 0.0, %v3073
        %v3075 = vpop.f32.mrf.mxu0
        %3076 = vmatprep.mubr.f32.mxu0 0.0
        %3077 = vmatmul.mubr.f32.gmra.mxu0 %v2023
        %v3078 = vpop.f32.mrf.mxu0
        %v3079 = vadd.f32 0.0, %v3078
        %v3080 = vpop.f32.mrf.mxu0
        %3081 = vmatprep.mubr.f32.mxu0 0.0
        %3082 = vmatmul.mubr.f32.gmra.mxu0 %v2026
        %v3083 = vpop.f32.mrf.mxu0
        %v3084 = vadd.f32 0.0, %v3083
        %v3085 = vpop.f32.mrf.mxu0
        %3086 = vmatprep.mubr.f32.mxu0 0.0
        %3087 = vmatmul.mubr.f32.gmra.mxu0 %v2029
        %v3088 = vpop.f32.mrf.mxu0
        %v3089 = vadd.f32 0.0, %v3088
        %v3090 = vpop.f32.mrf.mxu0
        %3091 = vmatprep.mubr.f32.mxu0 0.0
        %3092 = vmatmul.mubr.f32.gmra.mxu0 %v2032
        %v3093 = vpop.f32.mrf.mxu0
        %v3094 = vadd.f32 0.0, %v3093
        %v3095 = vpop.f32.mrf.mxu0
        %3096 = vmatprep.mubr.f32.mxu0 0.0
        %3097 = vmatmul.mubr.f32.gmra.mxu0 %v2035
        %v3098 = vpop.f32.mrf.mxu0
        %v3099 = vadd.f32 0.0, %v3098
        %v3100 = vpop.f32.mrf.mxu0
        %3101 = vmatprep.mubr.f32.mxu0 0.0
        %3102 = vmatmul.mubr.f32.gmra.mxu0 %v2038
        %v3103 = vpop.f32.mrf.mxu0
        %v3104 = vadd.f32 0.0, %v3103
        %v3105 = vpop.f32.mrf.mxu0
        %3106 = vmatprep.mubr.f32.mxu0 0.0
        %3107 = vmatmul.mubr.f32.gmra.mxu0 %v2041
        %v3108 = vpop.f32.mrf.mxu0
        %v3109 = vadd.f32 0.0, %v3108
        %v3110 = vpop.f32.mrf.mxu0
        %3111 = vmatprep.mubr.f32.mxu0 0.0
        %3112 = vmatmul.mubr.f32.gmra.mxu0 %v2044
        %v3113 = vpop.f32.mrf.mxu0
        %v3114 = vadd.f32 0.0, %v3113
        %v3115 = vpop.f32.mrf.mxu0
        %3116 = vmatprep.mubr.f32.mxu0 0.0
        %3117 = vmatmul.mubr.f32.gmra.mxu0 %v2047
        %v3118 = vpop.f32.mrf.mxu0
        %v3119 = vadd.f32 0.0, %v3118
        %v3120 = vpop.f32.mrf.mxu0
        %3121 = vmatprep.mubr.f32.mxu0 0.0
        %3122 = vmatmul.mubr.f32.gmra.mxu0 %v2050
        %v3123 = vpop.f32.mrf.mxu0
        %v3124 = vadd.f32 0.0, %v3123
        %v3125 = vpop.f32.mrf.mxu0
        %3126 = vmatprep.mubr.f32.mxu0 0.0
        %3127 = vmatmul.mubr.f32.gmra.mxu0 %v2053
        %v3128 = vpop.f32.mrf.mxu0
        %v3129 = vadd.f32 0.0, %v3128
        %v3130 = vpop.f32.mrf.mxu0
        %3131 = vmatprep.mubr.f32.mxu0 0.0
        %3132 = vmatmul.mubr.f32.gmra.mxu0 %v2056
        %v3133 = vpop.f32.mrf.mxu0
        %v3134 = vadd.f32 0.0, %v3133
        %v3135 = vpop.f32.mrf.mxu0
        %3136 = vmatprep.mubr.f32.mxu0 0.0
        %3137 = vmatmul.mubr.f32.gmra.mxu0 %v2059
        %v3138 = vpop.f32.mrf.mxu0
        %v3139 = vadd.f32 0.0, %v3138
        %v3140 = vpop.f32.mrf.mxu0
        %3141 = vmatprep.mubr.f32.mxu0 0.0
        %3142 = vmatmul.mubr.f32.gmra.mxu0 %v2062
        %v3143 = vpop.f32.mrf.mxu0
        %v3144 = vadd.f32 0.0, %v3143
        %v3145 = vpop.f32.mrf.mxu0
        %3146 = vmatprep.mubr.f32.mxu0 0.0
        %3147 = vmatmul.mubr.f32.gmra.mxu0 %v2065
        %v3148 = vpop.f32.mrf.mxu0
        %v3149 = vadd.f32 0.0, %v3148
        %v3150 = vpop.f32.mrf.mxu0
        %3151 = vmatprep.mubr.f32.mxu0 0.0
        %3152 = vmatmul.mubr.f32.gmra.mxu0 %v2068
        %v3153 = vpop.f32.mrf.mxu0
        %v3154 = vadd.f32 0.0, %v3153
        %v3155 = vpop.f32.mrf.mxu0
        %3156 = vmatprep.mubr.f32.mxu0 0.0
        %3157 = vmatmul.mubr.f32.gmra.mxu0 %v2071
        %v3158 = vpop.f32.mrf.mxu0
        %v3159 = vadd.f32 0.0, %v3158
        %v3160 = vpop.f32.mrf.mxu0
        %3161 = vmatprep.mubr.f32.mxu0 0.0
        %3162 = vmatmul.mubr.f32.gmra.mxu0 %v2074
        %v3163 = vpop.f32.mrf.mxu0
        %v3164 = vadd.f32 0.0, %v3163
        %v3165 = vpop.f32.mrf.mxu0
        %3166 = vmatprep.mubr.f32.mxu0 0.0
        %3167 = vmatmul.mubr.f32.gmra.mxu0 %v2077
        %v3168 = vpop.f32.mrf.mxu0
        %v3169 = vadd.f32 0.0, %v3168
        %v3170 = vpop.f32.mrf.mxu0
        %3171 = vmatprep.mubr.f32.mxu0 0.0
        %3172 = vmatmul.mubr.f32.gmra.mxu0 %v2080
        %v3173 = vpop.f32.mrf.mxu0
        %v3174 = vadd.f32 0.0, %v3173
        %v3175 = vpop.f32.mrf.mxu0
        %3176 = vmatprep.mubr.f32.mxu0 0.0
        %3177 = vmatmul.mubr.f32.gmra.mxu0 %v2083
        %v3178 = vpop.f32.mrf.mxu0
        %v3179 = vadd.f32 0.0, %v3178
        %v3180 = vpop.f32.mrf.mxu0
        %3181 = vmatprep.mubr.f32.mxu0 0.0
        %3182 = vmatmul.mubr.f32.gmra.mxu0 %v2086
        %v3183 = vpop.f32.mrf.mxu0
        %v3184 = vadd.f32 0.0, %v3183
        %v3185 = vpop.f32.mrf.mxu0
        %3186 = vmatprep.mubr.f32.mxu0 0.0
        %3187 = vmatmul.mubr.f32.gmra.mxu0 %v2089
        %v3188 = vpop.f32.mrf.mxu0
        %v3189 = vadd.f32 0.0, %v3188
        %v3190 = vpop.f32.mrf.mxu0
        %3191 = vmatprep.mubr.f32.mxu0 0.0
        %3192 = vmatmul.mubr.f32.gmra.mxu0 %v2092
        %v3193 = vpop.f32.mrf.mxu0
        %v3194 = vadd.f32 0.0, %v3193
        %v3195 = vpop.f32.mrf.mxu0
        %3196 = vmatprep.mubr.f32.mxu0 0.0
        %3197 = vmatmul.mubr.f32.gmra.mxu0 %v2095
        %v3198 = vpop.f32.mrf.mxu0
        %v3199 = vadd.f32 0.0, %v3198
        %v3200 = vpop.f32.mrf.mxu0
        %3201 = vmatprep.mubr.f32.mxu0 0.0
        %3202 = vmatmul.mubr.f32.gmra.mxu0 %v2098
        %v3203 = vpop.f32.mrf.mxu0
        %v3204 = vadd.f32 0.0, %v3203
        %v3205 = vpop.f32.mrf.mxu0
        %3206 = vmatprep.mubr.f32.mxu0 0.0
        %3207 = vmatmul.mubr.f32.gmra.mxu0 %v2101
        %v3208 = vpop.f32.mrf.mxu0
        %v3209 = vadd.f32 0.0, %v3208
        %v3210 = vpop.f32.mrf.mxu0
        %3211 = vmatprep.mubr.f32.mxu0 0.0
        %3212 = vmatmul.mubr.f32.gmra.mxu0 %v2104
        %v3213 = vpop.f32.mrf.mxu0
        %v3214 = vadd.f32 0.0, %v3213
        %v3215 = vpop.f32.mrf.mxu0
        %3216 = vmatprep.mubr.f32.mxu0 0.0
        %3217 = vmatmul.mubr.f32.gmra.mxu0 %v2107
        %v3218 = vpop.f32.mrf.mxu0
        %v3219 = vadd.f32 0.0, %v3218
        %v3220 = vpop.f32.mrf.mxu0
        %3221 = vmatprep.mubr.f32.mxu0 0.0
        %3222 = vmatmul.mubr.f32.gmra.mxu0 %v2110
        %v3223 = vpop.f32.mrf.mxu0
        %v3224 = vadd.f32 0.0, %v3223
        %v3225 = vpop.f32.mrf.mxu0
        %3226 = vmatprep.mubr.f32.mxu0 0.0
        %3227 = vmatmul.mubr.f32.gmra.mxu0 %v2113
        %v3228 = vpop.f32.mrf.mxu0
        %v3229 = vadd.f32 0.0, %v3228
        %v3230 = vpop.f32.mrf.mxu0
        %3231 = vmatprep.mubr.f32.mxu0 0.0
        %3232 = vmatmul.mubr.f32.gmra.mxu0 %v2116
        %v3233 = vpop.f32.mrf.mxu0
        %v3234 = vadd.f32 0.0, %v3233
        %v3235 = vpop.f32.mrf.mxu0
        %3236 = vmatprep.mubr.f32.mxu0 0.0
        %3237 = vmatmul.mubr.f32.gmra.mxu0 %v2119
        %v3238 = vpop.f32.mrf.mxu0
        %v3239 = vadd.f32 0.0, %v3238
        %v3240 = vpop.f32.mrf.mxu0
        %3241 = vmatprep.mubr.f32.mxu0 0.0
        %3242 = vmatmul.mubr.f32.gmra.mxu0 %v2122
        %v3243 = vpop.f32.mrf.mxu0
        %v3244 = vadd.f32 0.0, %v3243
        %v3245 = vpop.f32.mrf.mxu0
        %3246 = vmatprep.mubr.f32.mxu0 0.0
        %3247 = vmatmul.mubr.f32.gmra.mxu0 %v2125
        %v3248 = vpop.f32.mrf.mxu0
        %v3249 = vadd.f32 0.0, %v3248
        %v3250 = vpop.f32.mrf.mxu0
        %3251 = vmatprep.mubr.f32.mxu0 0.0
        %3252 = vmatmul.mubr.f32.gmra.mxu0 %v2128
        %v3253 = vpop.f32.mrf.mxu0
        %v3254 = vadd.f32 0.0, %v3253
        %v3255 = vpop.f32.mrf.mxu0
        %3256 = vmatprep.mubr.f32.mxu0 0.0
        %3257 = vmatmul.mubr.f32.gmra.mxu0 %v2131
        %v3258 = vpop.f32.mrf.mxu0
        %v3259 = vadd.f32 0.0, %v3258
        %v3260 = vpop.f32.mrf.mxu0
        %3261 = vmatprep.mubr.f32.mxu0 0.0
        %3262 = vmatmul.mubr.f32.gmra.mxu0 %v2134
        %v3263 = vpop.f32.mrf.mxu0
        %v3264 = vadd.f32 0.0, %v3263
        %v3265 = vpop.f32.mrf.mxu0
        %3266 = vmatprep.mubr.f32.mxu0 0.0
        %3267 = vmatmul.mubr.f32.gmra.mxu0 %v2137
        %v3268 = vpop.f32.mrf.mxu0
        %v3269 = vadd.f32 0.0, %v3268
        %v3270 = vpop.f32.mrf.mxu0
        %3271 = vmatprep.mubr.f32.mxu0 0.0
        %3272 = vmatmul.mubr.f32.gmra.mxu0 %v2140
        %v3273 = vpop.f32.mrf.mxu0
        %v3274 = vadd.f32 0.0, %v3273
        %v3275 = vpop.f32.mrf.mxu0
        %3276 = vmatprep.mubr.f32.mxu0 0.0
        %3277 = vmatmul.mubr.f32.gmra.mxu0 %v2143
        %v3278 = vpop.f32.mrf.mxu0
        %v3279 = vadd.f32 0.0, %v3278
        %v3280 = vpop.f32.mrf.mxu0
        %3281 = vmatprep.mubr.f32.mxu0 0.0
        %3282 = vmatmul.mubr.f32.gmra.mxu0 %v2146
        %v3283 = vpop.f32.mrf.mxu0
        %v3284 = vadd.f32 0.0, %v3283
        %v3285 = vpop.f32.mrf.mxu0
        %3286 = vmatprep.mubr.f32.mxu0 0.0
        %3287 = vmatmul.mubr.f32.gmra.mxu0 %v2149
        %v3288 = vpop.f32.mrf.mxu0
        %v3289 = vadd.f32 0.0, %v3288
        %v3290 = vpop.f32.mrf.mxu0
        %3291 = vmatprep.mubr.f32.mxu0 0.0
        %3292 = vmatmul.mubr.f32.gmra.mxu0 %v2152
        %v3293 = vpop.f32.mrf.mxu0
        %v3294 = vadd.f32 0.0, %v3293
        %v3295 = vpop.f32.mrf.mxu0
        %3296 = vmatprep.mubr.f32.mxu0 0.0
        %3297 = vmatmul.mubr.f32.gmra.mxu0 %v2155
        %v3298 = vpop.f32.mrf.mxu0
        %v3299 = vadd.f32 0.0, %v3298
        %v3300 = vpop.f32.mrf.mxu0
        %3301 = vmatprep.mubr.f32.mxu0 0.0
        %3302 = vmatmul.mubr.f32.gmra.mxu0 %v2158
        %v3303 = vpop.f32.mrf.mxu0
        %v3304 = vadd.f32 0.0, %v3303
        %v3305 = vpop.f32.mrf.mxu0
        %3306 = vmatprep.mubr.f32.mxu0 0.0
        %3307 = vmatmul.mubr.f32.gmra.mxu0 %v2161
        %v3308 = vpop.f32.mrf.mxu0
        %v3309 = vadd.f32 0.0, %v3308
        %v3310 = vpop.f32.mrf.mxu0
        %3311 = vmatprep.mubr.f32.mxu0 0.0
        %3312 = vmatmul.mubr.f32.gmra.mxu0 %v2164
        %v3313 = vpop.f32.mrf.mxu0
        %v3314 = vadd.f32 0.0, %v3313
        %v3315 = vpop.f32.mrf.mxu0
        %3316 = vmatprep.mubr.f32.mxu0 0.0
        %3317 = vmatmul.mubr.f32.gmra.mxu0 %v2167
        %v3318 = vpop.f32.mrf.mxu0
        %v3319 = vadd.f32 0.0, %v3318
        %v3320 = vpop.f32.mrf.mxu0
        %3321 = vmatprep.mubr.f32.mxu0 0.0
        %3322 = vmatmul.mubr.f32.gmra.mxu0 %v2170
        %v3323 = vpop.f32.mrf.mxu0
        %v3324 = vadd.f32 0.0, %v3323
        %v3325 = vpop.f32.mrf.mxu0
        %3326 = vmatprep.mubr.f32.mxu0 0.0
        %3327 = vmatmul.mubr.f32.gmra.mxu0 %v2173
        %v3328 = vpop.f32.mrf.mxu0
        %v3329 = vadd.f32 0.0, %v3328
        %v3330 = vpop.f32.mrf.mxu0
        %3331 = vmatprep.mubr.f32.mxu0 0.0
        %3332 = vmatmul.mubr.f32.gmra.mxu0 %v2176
        %v3333 = vpop.f32.mrf.mxu0
        %v3334 = vadd.f32 0.0, %v3333
        %v3335 = vpop.f32.mrf.mxu0
        %3336 = vmatprep.mubr.f32.mxu0 0.0
        %3337 = vmatmul.mubr.f32.gmra.mxu0 %v2179
        %v3338 = vpop.f32.mrf.mxu0
        %v3339 = vadd.f32 0.0, %v3338
        %v3340 = vpop.f32.mrf.mxu0
        %3341 = vmatprep.mubr.f32.mxu0 0.0
        %3342 = vmatmul.mubr.f32.gmra.mxu0 %v2182
        %v3343 = vpop.f32.mrf.mxu0
        %v3344 = vadd.f32 0.0, %v3343
        %v3345 = vpop.f32.mrf.mxu0
        %3346 = vmatprep.mubr.f32.mxu0 0.0
        %3347 = vmatmul.mubr.f32.gmra.mxu0 %v2185
        %v3348 = vpop.f32.mrf.mxu0
        %v3349 = vadd.f32 0.0, %v3348
        %v3350 = vpop.f32.mrf.mxu0
        %3351 = vmatprep.mubr.f32.mxu0 0.0
        %3352 = vmatmul.mubr.f32.gmra.mxu0 %v2188
        %v3353 = vpop.f32.mrf.mxu0
        %v3354 = vadd.f32 0.0, %v3353
        %v3355 = vpop.f32.mrf.mxu0
        %3356 = vmatprep.mubr.f32.mxu0 0.0
        %3357 = vmatmul.mubr.f32.gmra.mxu0 %v2191
        %v3358 = vpop.f32.mrf.mxu0
        %v3359 = vadd.f32 0.0, %v3358
        %v3360 = vpop.f32.mrf.mxu0
        %3361 = vmatprep.mubr.f32.mxu0 0.0
        %3362 = vmatmul.mubr.f32.gmra.mxu0 %v2194
        %v3363 = vpop.f32.mrf.mxu0
        %v3364 = vadd.f32 0.0, %v3363
        %v3365 = vpop.f32.mrf.mxu0
        %3366 = vmatprep.mubr.f32.mxu0 0.0
        %3367 = vmatmul.mubr.f32.gmra.mxu0 %v2197
        %v3368 = vpop.f32.mrf.mxu0
        %v3369 = vadd.f32 0.0, %v3368
        %v3370 = vpop.f32.mrf.mxu0
        %3371 = vmatprep.mubr.f32.mxu0 0.0
        %3372 = vmatmul.mubr.f32.gmra.mxu0 %v2200
        %v3373 = vpop.f32.mrf.mxu0
        %v3374 = vadd.f32 0.0, %v3373
        %v3375 = vpop.f32.mrf.mxu0
        %3376 = vmatprep.mubr.f32.mxu0 0.0
        %3377 = vmatmul.mubr.f32.gmra.mxu0 %v2203
        %v3378 = vpop.f32.mrf.mxu0
        %v3379 = vadd.f32 0.0, %v3378
        %v3380 = vpop.f32.mrf.mxu0
        %3381 = vmatprep.mubr.f32.mxu0 0.0
        %3382 = vmatmul.mubr.f32.gmra.mxu0 %v2206
        %v3383 = vpop.f32.mrf.mxu0
        %v3384 = vadd.f32 0.0, %v3383
        %v3385 = vpop.f32.mrf.mxu0
        %3386 = vmatprep.mubr.f32.mxu0 0.0
        %3387 = vmatmul.mubr.f32.gmra.mxu0 %v2209
        %v3388 = vpop.f32.mrf.mxu0
        %v3389 = vadd.f32 0.0, %v3388
        %v3390 = vpop.f32.mrf.mxu0
        %3391 = vmatprep.mubr.f32.mxu0 0.0
        %3392 = vmatmul.mubr.f32.gmra.mxu0 %v2212
        %v3393 = vpop.f32.mrf.mxu0
        %v3394 = vadd.f32 0.0, %v3393
        %v3395 = vpop.f32.mrf.mxu0
        %3396 = vmatprep.mubr.f32.mxu0 0.0
        %3397 = vmatmul.mubr.f32.gmra.mxu0 %v2215
        %v3398 = vpop.f32.mrf.mxu0
        %v3399 = vadd.f32 0.0, %v3398
        %v3400 = vpop.f32.mrf.mxu0
        %3401 = vmatprep.mubr.f32.mxu0 0.0
        %3402 = vmatmul.mubr.f32.gmra.mxu0 %v2218
        %v3403 = vpop.f32.mrf.mxu0
        %v3404 = vadd.f32 0.0, %v3403
        %v3405 = vpop.f32.mrf.mxu0
        %3406 = vmatprep.mubr.f32.mxu0 0.0
        %3407 = vmatmul.mubr.f32.gmra.mxu0 %v2221
        %v3408 = vpop.f32.mrf.mxu0
        %v3409 = vadd.f32 0.0, %v3408
        %v3410 = vpop.f32.mrf.mxu0
        %3411 = vmatprep.mubr.f32.mxu0 0.0
        %3412 = vmatmul.mubr.f32.gmra.mxu0 %v2224
        %v3413 = vpop.f32.mrf.mxu0
        %v3414 = vadd.f32 0.0, %v3413
        %v3415 = vpop.f32.mrf.mxu0
        %3416 = vmatprep.mubr.f32.mxu0 0.0
        %3417 = vmatmul.mubr.f32.gmra.mxu0 %v2227
        %v3418 = vpop.f32.mrf.mxu0
        %v3419 = vadd.f32 0.0, %v3418
        %v3420 = vpop.f32.mrf.mxu0
        %3421 = vmatprep.mubr.f32.mxu0 0.0
        %3422 = vmatmul.mubr.f32.gmra.mxu0 %v2230
        %v3423 = vpop.f32.mrf.mxu0
        %v3424 = vadd.f32 0.0, %v3423
        %v3425 = vpop.f32.mrf.mxu0
        %3426 = vmatprep.mubr.f32.mxu0 0.0
        %3427 = vmatmul.mubr.f32.gmra.mxu0 %v2233
        %v3428 = vpop.f32.mrf.mxu0
        %v3429 = vadd.f32 0.0, %v3428
        %v3430 = vpop.f32.mrf.mxu0
        %3431 = vmatprep.mubr.f32.mxu0 0.0
        %3432 = vmatmul.mubr.f32.gmra.mxu0 %v2236
        %v3433 = vpop.f32.mrf.mxu0
        %v3434 = vadd.f32 0.0, %v3433
        %v3435 = vpop.f32.mrf.mxu0
        %3436 = vmatprep.mubr.f32.mxu0 0.0
        %3437 = vmatmul.mubr.f32.gmra.mxu0 %v2239
        %v3438 = vpop.f32.mrf.mxu0
        %v3439 = vadd.f32 0.0, %v3438
        %v3440 = vpop.f32.mrf.mxu0
        %3441 = vmatprep.mubr.f32.mxu0 0.0
        %3442 = vmatmul.mubr.f32.gmra.mxu0 %v2242
        %v3443 = vpop.f32.mrf.mxu0
        %v3444 = vadd.f32 0.0, %v3443
        %v3445 = vpop.f32.mrf.mxu0
        %3446 = vmatprep.mubr.f32.mxu0 0.0
        %3447 = vmatmul.mubr.f32.gmra.mxu0 %v2245
        %v3448 = vpop.f32.mrf.mxu0
        %v3449 = vadd.f32 0.0, %v3448
        %v3450 = vpop.f32.mrf.mxu0
        %3451 = vmatprep.mubr.f32.mxu0 0.0
        %3452 = vmatmul.mubr.f32.gmra.mxu0 %v2248
        %v3453 = vpop.f32.mrf.mxu0
        %v3454 = vadd.f32 0.0, %v3453
        %v3455 = vpop.f32.mrf.mxu0
        %3456 = vmatprep.mubr.f32.mxu0 0.0
        %3457 = vmatmul.mubr.f32.gmra.mxu0 %v2251
        %v3458 = vpop.f32.mrf.mxu0
        %v3459 = vadd.f32 0.0, %v3458
        %v3460 = vpop.f32.mrf.mxu0
        %3461 = vmatprep.mubr.f32.mxu0 0.0
        %3462 = vmatmul.mubr.f32.gmra.mxu0 %v2254
        %v3463 = vpop.f32.mrf.mxu0
        %v3464 = vadd.f32 0.0, %v3463
        %v3465 = vpop.f32.mrf.mxu0
        %3466 = vmatprep.mubr.f32.mxu0 0.0
        %3467 = vmatmul.mubr.f32.gmra.mxu0 %v2257
        %v3468 = vpop.f32.mrf.mxu0
        %v3469 = vadd.f32 0.0, %v3468
        %v3470 = vpop.f32.mrf.mxu0
        %3471 = vmatprep.mubr.f32.mxu0 0.0
        %3472 = vmatmul.mubr.f32.gmra.mxu0 %v2260
        %v3473 = vpop.f32.mrf.mxu0
        %v3474 = vadd.f32 0.0, %v3473
        %v3475 = vpop.f32.mrf.mxu0
        %3476 = vmatprep.mubr.f32.mxu0 0.0
        %3477 = vmatmul.mubr.f32.gmra.mxu0 %v2263
        %v3478 = vpop.f32.mrf.mxu0
        %v3479 = vadd.f32 0.0, %v3478
        %v3480 = vpop.f32.mrf.mxu0
        %3481 = vmatprep.mubr.f32.mxu0 0.0
        %3482 = vmatmul.mubr.f32.gmra.mxu0 %v2266
        %v3483 = vpop.f32.mrf.mxu0
        %v3484 = vadd.f32 0.0, %v3483
        %v3485 = vpop.f32.mrf.mxu0
        %3486 = vmatprep.mubr.f32.mxu0 0.0
        %3487 = vmatmul.mubr.f32.gmra.mxu0 %v2269
        %v3488 = vpop.f32.mrf.mxu0
        %v3489 = vadd.f32 0.0, %v3488
        %v3490 = vpop.f32.mrf.mxu0
        %3491 = vmatprep.mubr.f32.mxu0 0.0
        %3492 = vmatmul.mubr.f32.gmra.mxu0 %v2272
        %v3493 = vpop.f32.mrf.mxu0
        %v3494 = vadd.f32 0.0, %v3493
        %v3495 = vpop.f32.mrf.mxu0
        %3496 = vmatprep.mubr.f32.mxu0 0.0
        %3497 = vmatmul.mubr.f32.gmra.mxu0 %v2275
        %v3498 = vpop.f32.mrf.mxu0
        %v3499 = vadd.f32 0.0, %v3498
        %v3500 = vpop.f32.mrf.mxu0
        %3501 = vmatprep.mubr.f32.mxu0 0.0
        %3502 = vmatmul.mubr.f32.gmra.mxu0 %v2278
        %v3503 = vpop.f32.mrf.mxu0
        %v3504 = vadd.f32 0.0, %v3503
        %v3505 = vpop.f32.mrf.mxu0
        %3506 = vmatprep.mubr.f32.mxu0 0.0
        %3507 = vmatmul.mubr.f32.gmra.mxu0 %v2281
        %v3508 = vpop.f32.mrf.mxu0
        %v3509 = vadd.f32 0.0, %v3508
        %v3510 = vpop.f32.mrf.mxu0
        %3511 = vmatprep.mubr.f32.mxu0 0.0
        %3512 = vmatmul.mubr.f32.gmra.mxu0 %v2284
        %v3513 = vpop.f32.mrf.mxu0
        %v3514 = vadd.f32 0.0, %v3513
        %v3515 = vpop.f32.mrf.mxu0
        %3516 = vmatprep.mubr.f32.mxu0 0.0
        %3517 = vmatmul.mubr.f32.gmra.mxu0 %v2287
        %v3518 = vpop.f32.mrf.mxu0
        %v3519 = vadd.f32 0.0, %v3518
        %v3520 = vpop.f32.mrf.mxu0
        %3521 = vmatprep.mubr.f32.mxu0 0.0
        %3522 = vmatmul.mubr.f32.gmra.mxu0 %v2290
        %v3523 = vpop.f32.mrf.mxu0
        %v3524 = vadd.f32 0.0, %v3523
        %v3525 = vpop.f32.mrf.mxu0
        %3526 = vmatprep.mubr.f32.mxu0 0.0
        %3527 = vmatmul.mubr.f32.gmra.mxu0 %v2293
        %v3528 = vpop.f32.mrf.mxu0
        %v3529 = vadd.f32 0.0, %v3528
        %v3530 = vpop.f32.mrf.mxu0
        %3531 = vmatprep.mubr.f32.mxu0 0.0
        %3532 = vmatmul.mubr.f32.gmra.mxu0 %v2296
        %v3533 = vpop.f32.mrf.mxu0
        %v3534 = vadd.f32 0.0, %v3533
        %v3535 = vpop.f32.mrf.mxu0
        %3536 = vmatprep.mubr.f32.mxu0 0.0
        %3537 = vmatmul.mubr.f32.gmra.mxu0 %v2299
        %v3538 = vpop.f32.mrf.mxu0
        %v3539 = vadd.f32 0.0, %v3538
        %v3540 = vpop.f32.mrf.mxu0
        %3541 = vmatprep.mubr.f32.mxu0 0.0
        %3542 = vmatmul.mubr.f32.gmra.mxu0 %v2302
        %v3543 = vpop.f32.mrf.mxu0
        %v3544 = vadd.f32 0.0, %v3543
        %v3545 = vpop.f32.mrf.mxu0
        %3546 = vmatprep.mubr.f32.mxu0 0.0
        %3547 = vmatmul.mubr.f32.gmra.mxu0 %v2305
        %v3548 = vpop.f32.mrf.mxu0
        %v3549 = vadd.f32 0.0, %v3548
        %v3550 = vpop.f32.mrf.mxu0
        %3551 = vmatprep.mubr.f32.mxu0 0.0
        %3552 = vmatmul.mubr.f32.gmra.mxu0 %v2308
        %v3553 = vpop.f32.mrf.mxu0
        %v3554 = vadd.f32 0.0, %v3553
        %v3555 = vpop.f32.mrf.mxu0
        %3556 = vmatprep.mubr.f32.mxu0 0.0
        %3557 = vmatmul.mubr.f32.gmra.mxu0 %v2311
        %v3558 = vpop.f32.mrf.mxu0
        %v3559 = vadd.f32 0.0, %v3558
        %v3560 = vpop.f32.mrf.mxu0
        %3561 = vmatprep.mubr.f32.mxu0 0.0
        %3562 = vmatmul.mubr.f32.gmra.mxu0 %v2314
        %v3563 = vpop.f32.mrf.mxu0
        %v3564 = vadd.f32 0.0, %v3563
        %v3565 = vpop.f32.mrf.mxu0
        %3566 = vmatprep.mubr.f32.mxu0 0.0
        %3567 = vmatmul.mubr.f32.gmra.mxu0 %v2317
        %v3568 = vpop.f32.mrf.mxu0
        %v3569 = vadd.f32 0.0, %v3568
        %v3570 = vpop.f32.mrf.mxu0
        %3571 = vmatprep.mubr.f32.mxu0 0.0
        %3572 = vmatmul.mubr.f32.gmra.mxu0 %v2320
        %v3573 = vpop.f32.mrf.mxu0
        %v3574 = vadd.f32 0.0, %v3573
        %v3575 = vpop.f32.mrf.mxu0
        %3576 = vmatprep.mubr.f32.mxu0 0.0
        %3577 = vmatmul.mubr.f32.gmra.mxu0 %v2323
        %v3578 = vpop.f32.mrf.mxu0
        %v3579 = vadd.f32 0.0, %v3578
        %v3580 = vpop.f32.mrf.mxu0
        %3581 = vmatprep.mubr.f32.mxu0 0.0
        %3582 = vmatmul.mubr.f32.gmra.mxu0 %v2326
        %v3583 = vpop.f32.mrf.mxu0
        %v3584 = vadd.f32 0.0, %v3583
        %v3585 = vpop.f32.mrf.mxu0
        %3586 = vmatprep.mubr.f32.mxu0 0.0
        %3587 = vmatmul.mubr.f32.gmra.mxu0 %v2329
        %v3588 = vpop.f32.mrf.mxu0
        %v3589 = vadd.f32 0.0, %v3588
        %v3590 = vpop.f32.mrf.mxu0
        %3591 = vmatprep.mubr.f32.mxu0 0.0
        %3592 = vmatmul.mubr.f32.gmra.mxu0 %v2332
        %v3593 = vpop.f32.mrf.mxu0
        %v3594 = vadd.f32 0.0, %v3593
        %v3595 = vpop.f32.mrf.mxu0
        %3596 = vmatprep.mubr.f32.mxu0 0.0
        %3597 = vmatmul.mubr.f32.gmra.mxu0 %v2335
        %v3598 = vpop.f32.mrf.mxu0
        %v3599 = vadd.f32 0.0, %v3598
        %v3600 = vpop.f32.mrf.mxu0
        %3601 = vmatprep.mubr.f32.mxu0 0.0
        %3602 = vmatmul.mubr.f32.gmra.mxu0 %v2338
        %v3603 = vpop.f32.mrf.mxu0
        %v3604 = vadd.f32 0.0, %v3603
        %v3605 = vpop.f32.mrf.mxu0
        %3606 = vmatprep.mubr.f32.mxu0 0.0
        %3607 = vmatmul.mubr.f32.gmra.mxu0 %v2341
        %v3608 = vpop.f32.mrf.mxu0
        %v3609 = vadd.f32 0.0, %v3608
        %v3610 = vpop.f32.mrf.mxu0
        %3611 = vmatprep.mubr.f32.mxu0 0.0
        %3612 = vmatmul.mubr.f32.gmra.mxu0 %v2344
        %v3613 = vpop.f32.mrf.mxu0
        %v3614 = vadd.f32 0.0, %v3613
        %v3615 = vpop.f32.mrf.mxu0
        %3616 = vmatprep.mubr.f32.mxu0 0.0
        %3617 = vmatmul.mubr.f32.gmra.mxu0 %v2347
        %v3618 = vpop.f32.mrf.mxu0
        %v3619 = vadd.f32 0.0, %v3618
        %v3620 = vpop.f32.mrf.mxu0
        %3621 = vmatprep.mubr.f32.mxu0 0.0
        %3622 = vmatmul.mubr.f32.gmra.mxu0 %v2350
        %v3623 = vpop.f32.mrf.mxu0
        %v3624 = vadd.f32 0.0, %v3623
        %v3625 = vpop.f32.mrf.mxu0
        %3626 = vmatprep.mubr.f32.mxu0 0.0
        %3627 = vmatmul.mubr.f32.gmra.mxu0 %v2353
        %v3628 = vpop.f32.mrf.mxu0
        %v3629 = vadd.f32 0.0, %v3628
        %v3630 = vpop.f32.mrf.mxu0
        %3631 = vmatprep.mubr.f32.mxu0 0.0
        %3632 = vmatmul.mubr.f32.gmra.mxu0 %v2356
        %v3633 = vpop.f32.mrf.mxu0
        %v3634 = vadd.f32 0.0, %v3633
        %v3635 = vpop.f32.mrf.mxu0
        %3636 = vmatprep.mubr.f32.mxu0 0.0
        %3637 = vmatmul.mubr.f32.gmra.mxu0 %v2359
        %v3638 = vpop.f32.mrf.mxu0
        %v3639 = vadd.f32 0.0, %v3638
        %v3640 = vpop.f32.mrf.mxu0
        %3641 = vmatprep.mubr.f32.mxu0 0.0
        %3642 = vmatmul.mubr.f32.gmra.mxu0 %v2362
        %v3643 = vpop.f32.mrf.mxu0
        %v3644 = vadd.f32 0.0, %v3643
        %v3645 = vpop.f32.mrf.mxu0
        %3646 = vmatprep.mubr.f32.mxu0 0.0
        %3647 = vmatmul.mubr.f32.gmra.mxu0 %v2365
        %v3648 = vpop.f32.mrf.mxu0
        %v3649 = vadd.f32 0.0, %v3648
        %v3650 = vpop.f32.mrf.mxu0
        %3651 = vmatprep.mubr.f32.mxu0 0.0
        %3652 = vmatmul.mubr.f32.gmra.mxu0 %v2368
        %v3653 = vpop.f32.mrf.mxu0
        %v3654 = vadd.f32 0.0, %v3653
        %v3655 = vpop.f32.mrf.mxu0
        %3656 = vmatprep.mubr.f32.mxu0 0.0
        %3657 = vmatmul.mubr.f32.gmra.mxu0 %v2371
        %v3658 = vpop.f32.mrf.mxu0
        %v3659 = vadd.f32 0.0, %v3658
        %v3660 = vpop.f32.mrf.mxu0
        %3661 = vmatprep.mubr.f32.mxu0 0.0
        %3662 = vmatmul.mubr.f32.gmra.mxu0 %v2374
        %v3663 = vpop.f32.mrf.mxu0
        %v3664 = vadd.f32 0.0, %v3663
        %v3665 = vpop.f32.mrf.mxu0
        %3666 = vmatprep.mubr.f32.mxu0 0.0
        %3667 = vmatmul.mubr.f32.gmra.mxu0 %v2377
        %v3668 = vpop.f32.mrf.mxu0
        %v3669 = vadd.f32 0.0, %v3668
        %v3670 = vpop.f32.mrf.mxu0
        %3671 = vmatprep.mubr.f32.mxu0 0.0
        %3672 = vmatmul.mubr.f32.gmra.mxu0 %v2380
        %v3673 = vpop.f32.mrf.mxu0
        %v3674 = vadd.f32 0.0, %v3673
        %v3675 = vpop.f32.mrf.mxu0
        %3676 = vmatprep.mubr.f32.mxu0 0.0
        %3677 = vmatmul.mubr.f32.gmra.mxu0 %v2383
        %v3678 = vpop.f32.mrf.mxu0
        %v3679 = vadd.f32 0.0, %v3678
        %v3680 = vpop.f32.mrf.mxu0
        %3681 = vmatprep.mubr.f32.mxu0 0.0
        %3682 = vmatmul.mubr.f32.gmra.mxu0 %v2386
        %v3683 = vpop.f32.mrf.mxu0
        %v3684 = vadd.f32 0.0, %v3683
        %v3685 = vpop.f32.mrf.mxu0
        %3686 = vmatprep.mubr.f32.mxu0 0.0
        %3687 = vmatmul.mubr.f32.gmra.mxu0 %v2389
        %v3688 = vpop.f32.mrf.mxu0
        %v3689 = vadd.f32 0.0, %v3688
        %v3690 = vpop.f32.mrf.mxu0
        %3691 = vmatprep.mubr.f32.mxu0 0.0
        %3692 = vmatmul.mubr.f32.gmra.mxu0 %v2392
        %v3693 = vpop.f32.mrf.mxu0
        %v3694 = vadd.f32 0.0, %v3693
        %v3695 = vpop.f32.mrf.mxu0
        %3696 = vmatprep.mubr.f32.mxu0 0.0
        %3697 = vmatmul.mubr.f32.gmra.mxu0 %v2395
        %v3698 = vpop.f32.mrf.mxu0
        %v3699 = vadd.f32 0.0, %v3698
        %v3700 = vpop.f32.mrf.mxu0
        %3701 = vmatprep.mubr.f32.mxu0 0.0
        %3702 = vmatmul.mubr.f32.gmra.mxu0 %v2398
        %v3703 = vpop.f32.mrf.mxu0
        %v3704 = vadd.f32 0.0, %v3703
        %v3705 = vpop.f32.mrf.mxu0
        %3706 = vmatprep.mubr.f32.mxu0 0.0
        %3707 = vmatmul.mubr.f32.gmra.mxu0 %v2401
        %v3708 = vpop.f32.mrf.mxu0
        %v3709 = vadd.f32 0.0, %v3708
        %v3710 = vpop.f32.mrf.mxu0
        %3711 = vmatprep.mubr.f32.mxu0 0.0
        %3712 = vmatmul.mubr.f32.gmra.mxu0 %v2404
        %v3713 = vpop.f32.mrf.mxu0
        %v3714 = vadd.f32 0.0, %v3713
        %v3715 = vpop.f32.mrf.mxu0
        %3716 = vmatprep.mubr.f32.mxu0 0.0
        %3717 = vmatmul.mubr.f32.gmra.mxu0 %v2407
        %v3718 = vpop.f32.mrf.mxu0
        %v3719 = vadd.f32 0.0, %v3718
        %v3720 = vpop.f32.mrf.mxu0
        %3721 = vmatprep.mubr.f32.mxu0 0.0
        %3722 = vmatmul.mubr.f32.gmra.mxu0 %v2410
        %v3723 = vpop.f32.mrf.mxu0
        %v3724 = vadd.f32 0.0, %v3723
        %v3725 = vpop.f32.mrf.mxu0
        %3726 = vmatprep.mubr.f32.mxu0 0.0
        %3727 = vmatmul.mubr.f32.gmra.mxu0 %v2413
        %v3728 = vpop.f32.mrf.mxu0
        %v3729 = vadd.f32 0.0, %v3728
        %v3730 = vpop.f32.mrf.mxu0
        %3731 = vmatprep.mubr.f32.mxu0 0.0
        %3732 = vmatmul.mubr.f32.gmra.mxu0 %v2416
        %v3733 = vpop.f32.mrf.mxu0
        %v3734 = vadd.f32 0.0, %v3733
        %v3735 = vpop.f32.mrf.mxu0
        %3736 = vmatprep.mubr.f32.mxu0 0.0
        %3737 = vmatmul.mubr.f32.gmra.mxu0 %v2419
        %v3738 = vpop.f32.mrf.mxu0
        %v3739 = vadd.f32 0.0, %v3738
        %v3740 = vpop.f32.mrf.mxu0
        %3741 = vmatprep.mubr.f32.mxu0 0.0
        %3742 = vmatmul.mubr.f32.gmra.mxu0 %v2422
        %v3743 = vpop.f32.mrf.mxu0
        %v3744 = vadd.f32 0.0, %v3743
        %v3745 = vpop.f32.mrf.mxu0
        %3746 = vmatprep.mubr.f32.mxu0 0.0
        %3747 = vmatmul.mubr.f32.gmra.mxu0 %v2425
        %v3748 = vpop.f32.mrf.mxu0
        %v3749 = vadd.f32 0.0, %v3748
        %v3750 = vpop.f32.mrf.mxu0
        %3751 = vmatprep.mubr.f32.mxu0 0.0
        %3752 = vmatmul.mubr.f32.gmra.mxu0 %v2428
        %v3753 = vpop.f32.mrf.mxu0
        %v3754 = vadd.f32 0.0, %v3753
        %v3755 = vpop.f32.mrf.mxu0
        %3756 = vmatprep.mubr.f32.mxu0 0.0
        %3757 = vmatmul.mubr.f32.gmra.mxu0 %v2431
        %v3758 = vpop.f32.mrf.mxu0
        %v3759 = vadd.f32 0.0, %v3758
        %v3760 = vpop.f32.mrf.mxu0
        %3761 = vmatprep.mubr.f32.mxu0 0.0
        %3762 = vmatmul.mubr.f32.gmra.mxu0 %v2434
        %v3763 = vpop.f32.mrf.mxu0
        %v3764 = vadd.f32 0.0, %v3763
        %v3765 = vpop.f32.mrf.mxu0
        %3766 = vmatprep.mubr.f32.mxu0 0.0
        %3767 = vmatmul.mubr.f32.gmra.mxu0 %v2437
        %v3768 = vpop.f32.mrf.mxu0
        %v3769 = vadd.f32 0.0, %v3768
        %v3770 = vpop.f32.mrf.mxu0
        %3771 = vmatprep.mubr.f32.mxu0 0.0
        %3772 = vmatmul.mubr.f32.gmra.mxu0 %v2440
        %v3773 = vpop.f32.mrf.mxu0
        %v3774 = vadd.f32 0.0, %v3773
        %v3775 = vpop.f32.mrf.mxu0
        %3776 = vmatprep.mubr.f32.mxu0 0.0
        %3777 = vmatmul.mubr.f32.gmra.mxu0 %v2443
        %v3778 = vpop.f32.mrf.mxu0
        %v3779 = vadd.f32 0.0, %v3778
        %v3780 = vpop.f32.mrf.mxu0
        %3781 = vmatprep.mubr.f32.mxu0 0.0
        %3782 = vmatmul.mubr.f32.gmra.mxu0 %v2446
        %v3783 = vpop.f32.mrf.mxu0
        %v3784 = vadd.f32 0.0, %v3783
        %v3785 = vpop.f32.mrf.mxu0
        %3786 = vmatprep.mubr.f32.mxu0 0.0
        %3787 = vmatmul.mubr.f32.gmra.mxu0 %v2449
        %v3788 = vpop.f32.mrf.mxu0
        %v3789 = vadd.f32 0.0, %v3788
        %v3790 = vpop.f32.mrf.mxu0
        %3791 = vmatprep.mubr.f32.mxu0 0.0
        %3792 = vmatmul.mubr.f32.gmra.mxu0 %v2452
        %v3793 = vpop.f32.mrf.mxu0
        %v3794 = vadd.f32 0.0, %v3793
        %v3795 = vpop.f32.mrf.mxu0
        %3796 = vmatprep.mubr.f32.mxu0 0.0
        %3797 = vmatmul.mubr.f32.gmra.mxu0 %v2455
        %v3798 = vpop.f32.mrf.mxu0
        %v3799 = vadd.f32 0.0, %v3798
        %v3800 = vpop.f32.mrf.mxu0
        %3801 = vdwg.mxu0
        %v3802 = vadd.f32 %v2524, %v1426
        %v3803 = vadd.f32 %v2529, %v1426
        %v3804 = vadd.f32 %v2534, %v1426
        %v3805 = vadd.f32 %v2539, %v1426
        %v3806 = vadd.f32 %v2544, %v1426
        %v3807 = vadd.f32 %v2549, %v1426
        %v3808 = vadd.f32 %v2554, %v1426
        %v3809 = vadd.f32 %v2559, %v1426
        %v3810 = vadd.f32 %v2564, %v1426
        %v3811 = vadd.f32 %v2569, %v1426
        %v3812 = vadd.f32 %v2574, %v1426
        %v3813 = vadd.f32 %v2579, %v1426
        %v3814 = vadd.f32 %v2584, %v1426
        %v3815 = vadd.f32 %v2589, %v1426
        %v3816 = vadd.f32 %v2594, %v1426
        %v3817 = vadd.f32 %v2599, %v1426
        %v3818 = vadd.f32 %v2604, %v1426
        %v3819 = vadd.f32 %v2609, %v1426
        %v3820 = vadd.f32 %v2614, %v1426
        %v3821 = vadd.f32 %v2619, %v1426
        %v3822 = vadd.f32 %v2624, %v1426
        %v3823 = vadd.f32 %v2629, %v1426
        %v3824 = vadd.f32 %v2634, %v1426
        %v3825 = vadd.f32 %v2639, %v1426
        %v3826 = vadd.f32 %v2644, %v1426
        %v3827 = vadd.f32 %v2649, %v1426
        %v3828 = vadd.f32 %v2654, %v1426
        %v3829 = vadd.f32 %v2659, %v1426
        %v3830 = vadd.f32 %v2664, %v1426
        %v3831 = vadd.f32 %v2669, %v1426
        %v3832 = vadd.f32 %v2674, %v1426
        %v3833 = vadd.f32 %v2679, %v1426
        %v3834 = vadd.f32 %v2684, %v1426
        %v3835 = vadd.f32 %v2689, %v1426
        %v3836 = vadd.f32 %v2694, %v1426
        %v3837 = vadd.f32 %v2699, %v1426
        %v3838 = vadd.f32 %v2704, %v1426
        %v3839 = vadd.f32 %v2709, %v1426
        %v3840 = vadd.f32 %v2714, %v1426
        %v3841 = vadd.f32 %v2719, %v1426
        %v3842 = vadd.f32 %v2724, %v1426
        %v3843 = vadd.f32 %v2729, %v1426
        %v3844 = vadd.f32 %v2734, %v1426
        %v3845 = vadd.f32 %v2739, %v1426
        %v3846 = vadd.f32 %v2744, %v1426
        %v3847 = vadd.f32 %v2749, %v1426
        %v3848 = vadd.f32 %v2754, %v1426
        %v3849 = vadd.f32 %v2759, %v1426
        %v3850 = vadd.f32 %v2764, %v1426
        %v3851 = vadd.f32 %v2769, %v1426
        %v3852 = vadd.f32 %v2774, %v1426
        %v3853 = vadd.f32 %v2779, %v1426
        %v3854 = vadd.f32 %v2784, %v1426
        %v3855 = vadd.f32 %v2789, %v1426
        %v3856 = vadd.f32 %v2794, %v1426
        %v3857 = vadd.f32 %v2799, %v1426
        %v3858 = vadd.f32 %v2804, %v1426
        %v3859 = vadd.f32 %v2809, %v1426
        %v3860 = vadd.f32 %v2814, %v1426
        %v3861 = vadd.f32 %v2819, %v1426
        %v3862 = vadd.f32 %v2824, %v1426
        %v3863 = vadd.f32 %v2829, %v1426
        %v3864 = vadd.f32 %v2834, %v1426
        %v3865 = vadd.f32 %v2839, %v1426
        %v3866 = vadd.f32 %v2844, %v1426
        %v3867 = vadd.f32 %v2849, %v1426
        %v3868 = vadd.f32 %v2854, %v1426
        %v3869 = vadd.f32 %v2859, %v1426
        %v3870 = vadd.f32 %v2864, %v1426
        %v3871 = vadd.f32 %v2869, %v1426
        %v3872 = vadd.f32 %v2874, %v1426
        %v3873 = vadd.f32 %v2879, %v1426
        %v3874 = vadd.f32 %v2884, %v1426
        %v3875 = vadd.f32 %v2889, %v1426
        %v3876 = vadd.f32 %v2894, %v1426
        %v3877 = vadd.f32 %v2899, %v1426
        %v3878 = vadd.f32 %v2904, %v1426
        %v3879 = vadd.f32 %v2909, %v1426
        %v3880 = vadd.f32 %v2914, %v1426
        %v3881 = vadd.f32 %v2919, %v1426
        %v3882 = vadd.f32 %v2924, %v1426
        %v3883 = vadd.f32 %v2929, %v1426
        %v3884 = vadd.f32 %v2934, %v1426
        %v3885 = vadd.f32 %v2939, %v1426
        %v3886 = vadd.f32 %v2944, %v1426
        %v3887 = vadd.f32 %v2949, %v1426
        %v3888 = vadd.f32 %v2954, %v1426
        %v3889 = vadd.f32 %v2959, %v1426
        %v3890 = vadd.f32 %v2964, %v1426
        %v3891 = vadd.f32 %v2969, %v1426
        %v3892 = vadd.f32 %v2974, %v1426
        %v3893 = vadd.f32 %v2979, %v1426
        %v3894 = vadd.f32 %v2984, %v1426
        %v3895 = vadd.f32 %v2989, %v1426
        %v3896 = vadd.f32 %v2994, %v1426
        %v3897 = vadd.f32 %v2999, %v1426
        %v3898 = vadd.f32 %v3004, %v1426
        %v3899 = vadd.f32 %v3009, %v1426
        %v3900 = vadd.f32 %v3014, %v1426
        %v3901 = vadd.f32 %v3019, %v1426
        %v3902 = vadd.f32 %v3024, %v1426
        %v3903 = vadd.f32 %v3029, %v1426
        %v3904 = vadd.f32 %v3034, %v1426
        %v3905 = vadd.f32 %v3039, %v1426
        %v3906 = vadd.f32 %v3044, %v1426
        %v3907 = vadd.f32 %v3049, %v1426
        %v3908 = vadd.f32 %v3054, %v1426
        %v3909 = vadd.f32 %v3059, %v1426
        %v3910 = vadd.f32 %v3064, %v1426
        %v3911 = vadd.f32 %v3069, %v1426
        %v3912 = vadd.f32 %v3074, %v1426
        %v3913 = vadd.f32 %v3079, %v1426
        %v3914 = vadd.f32 %v3084, %v1426
        %v3915 = vadd.f32 %v3089, %v1426
        %v3916 = vadd.f32 %v3094, %v1426
        %v3917 = vadd.f32 %v3099, %v1426
        %v3918 = vadd.f32 %v3104, %v1426
        %v3919 = vadd.f32 %v3109, %v1426
        %v3920 = vadd.f32 %v3114, %v1426
        %v3921 = vadd.f32 %v3119, %v1426
        %v3922 = vadd.f32 %v3124, %v1426
        %v3923 = vadd.f32 %v3129, %v1426
        %v3924 = vadd.f32 %v3134, %v1426
        %v3925 = vadd.f32 %v3139, %v1426
        %v3926 = vadd.f32 %v3144, %v1426
        %v3927 = vadd.f32 %v3149, %v1426
        %v3928 = vadd.f32 %v3154, %v1426
        %v3929 = vadd.f32 %v3159, %v1426
        %v3930 = vadd.f32 %v3164, %v1426
        %v3931 = vadd.f32 %v3169, %v1426
        %v3932 = vadd.f32 %v3174, %v1426
        %v3933 = vadd.f32 %v3179, %v1426
        %v3934 = vadd.f32 %v3184, %v1426
        %v3935 = vadd.f32 %v3189, %v1426
        %v3936 = vadd.f32 %v3194, %v1426
        %v3937 = vadd.f32 %v3199, %v1426
        %v3938 = vadd.f32 %v3204, %v1426
        %v3939 = vadd.f32 %v3209, %v1426
        %v3940 = vadd.f32 %v3214, %v1426
        %v3941 = vadd.f32 %v3219, %v1426
        %v3942 = vadd.f32 %v3224, %v1426
        %v3943 = vadd.f32 %v3229, %v1426
        %v3944 = vadd.f32 %v3234, %v1426
        %v3945 = vadd.f32 %v3239, %v1426
        %v3946 = vadd.f32 %v3244, %v1426
        %v3947 = vadd.f32 %v3249, %v1426
        %v3948 = vadd.f32 %v3254, %v1426
        %v3949 = vadd.f32 %v3259, %v1426
        %v3950 = vadd.f32 %v3264, %v1426
        %v3951 = vadd.f32 %v3269, %v1426
        %v3952 = vadd.f32 %v3274, %v1426
        %v3953 = vadd.f32 %v3279, %v1426
        %v3954 = vadd.f32 %v3284, %v1426
        %v3955 = vadd.f32 %v3289, %v1426
        %v3956 = vadd.f32 %v3294, %v1426
        %v3957 = vadd.f32 %v3299, %v1426
        %v3958 = vadd.f32 %v3304, %v1426
        %v3959 = vadd.f32 %v3309, %v1426
        %v3960 = vadd.f32 %v3314, %v1426
        %v3961 = vadd.f32 %v3319, %v1426
        %v3962 = vadd.f32 %v3324, %v1426
        %v3963 = vadd.f32 %v3329, %v1426
        %v3964 = vadd.f32 %v3334, %v1426
        %v3965 = vadd.f32 %v3339, %v1426
        %v3966 = vadd.f32 %v3344, %v1426
        %v3967 = vadd.f32 %v3349, %v1426
        %v3968 = vadd.f32 %v3354, %v1426
        %v3969 = vadd.f32 %v3359, %v1426
        %v3970 = vadd.f32 %v3364, %v1426
        %v3971 = vadd.f32 %v3369, %v1426
        %v3972 = vadd.f32 %v3374, %v1426
        %v3973 = vadd.f32 %v3379, %v1426
        %v3974 = vadd.f32 %v3384, %v1426
        %v3975 = vadd.f32 %v3389, %v1426
        %v3976 = vadd.f32 %v3394, %v1426
        %v3977 = vadd.f32 %v3399, %v1426
        %v3978 = vadd.f32 %v3404, %v1426
        %v3979 = vadd.f32 %v3409, %v1426
        %v3980 = vadd.f32 %v3414, %v1426
        %v3981 = vadd.f32 %v3419, %v1426
        %v3982 = vadd.f32 %v3424, %v1426
        %v3983 = vadd.f32 %v3429, %v1426
        %v3984 = vadd.f32 %v3434, %v1426
        %v3985 = vadd.f32 %v3439, %v1426
        %v3986 = vadd.f32 %v3444, %v1426
        %v3987 = vadd.f32 %v3449, %v1426
        %v3988 = vadd.f32 %v3454, %v1426
        %v3989 = vadd.f32 %v3459, %v1426
        %v3990 = vadd.f32 %v3464, %v1426
        %v3991 = vadd.f32 %v3469, %v1426
        %v3992 = vadd.f32 %v3474, %v1426
        %v3993 = vadd.f32 %v3479, %v1426
        %v3994 = vadd.f32 %v3484, %v1426
        %v3995 = vadd.f32 %v3489, %v1426
        %v3996 = vadd.f32 %v3494, %v1426
        %v3997 = vadd.f32 %v3499, %v1426
        %v3998 = vadd.f32 %v3504, %v1426
        %v3999 = vadd.f32 %v3509, %v1426
        %v4000 = vadd.f32 %v3514, %v1426
        %v4001 = vadd.f32 %v3519, %v1426
        %v4002 = vadd.f32 %v3524, %v1426
        %v4003 = vadd.f32 %v3529, %v1426
        %v4004 = vadd.f32 %v3534, %v1426
        %v4005 = vadd.f32 %v3539, %v1426
        %v4006 = vadd.f32 %v3544, %v1426
        %v4007 = vadd.f32 %v3549, %v1426
        %v4008 = vadd.f32 %v3554, %v1426
        %v4009 = vadd.f32 %v3559, %v1426
        %v4010 = vadd.f32 %v3564, %v1426
        %v4011 = vadd.f32 %v3569, %v1426
        %v4012 = vadd.f32 %v3574, %v1426
        %v4013 = vadd.f32 %v3579, %v1426
        %v4014 = vadd.f32 %v3584, %v1426
        %v4015 = vadd.f32 %v3589, %v1426
        %v4016 = vadd.f32 %v3594, %v1426
        %v4017 = vadd.f32 %v3599, %v1426
        %v4018 = vadd.f32 %v3604, %v1426
        %v4019 = vadd.f32 %v3609, %v1426
        %v4020 = vadd.f32 %v3614, %v1426
        %v4021 = vadd.f32 %v3619, %v1426
        %v4022 = vadd.f32 %v3624, %v1426
        %v4023 = vadd.f32 %v3629, %v1426
        %v4024 = vadd.f32 %v3634, %v1426
        %v4025 = vadd.f32 %v3639, %v1426
        %v4026 = vadd.f32 %v3644, %v1426
        %v4027 = vadd.f32 %v3649, %v1426
        %v4028 = vadd.f32 %v3654, %v1426
        %v4029 = vadd.f32 %v3659, %v1426
        %v4030 = vadd.f32 %v3664, %v1426
        %v4031 = vadd.f32 %v3669, %v1426
        %v4032 = vadd.f32 %v3674, %v1426
        %v4033 = vadd.f32 %v3679, %v1426
        %v4034 = vadd.f32 %v3684, %v1426
        %v4035 = vadd.f32 %v3689, %v1426
        %v4036 = vadd.f32 %v3694, %v1426
        %v4037 = vadd.f32 %v3699, %v1426
        %v4038 = vadd.f32 %v3704, %v1426
        %v4039 = vadd.f32 %v3709, %v1426
        %v4040 = vadd.f32 %v3714, %v1426
        %v4041 = vadd.f32 %v3719, %v1426
        %v4042 = vadd.f32 %v3724, %v1426
        %v4043 = vadd.f32 %v3729, %v1426
        %v4044 = vadd.f32 %v3734, %v1426
        %v4045 = vadd.f32 %v3739, %v1426
        %v4046 = vadd.f32 %v3744, %v1426
        %v4047 = vadd.f32 %v3749, %v1426
        %v4048 = vadd.f32 %v3754, %v1426
        %v4049 = vadd.f32 %v3759, %v1426
        %v4050 = vadd.f32 %v3764, %v1426
        %v4051 = vadd.f32 %v3769, %v1426
        %v4052 = vadd.f32 %v3774, %v1426
        %v4053 = vadd.f32 %v3779, %v1426
        %v4054 = vadd.f32 %v3784, %v1426
        %v4055 = vadd.f32 %v3789, %v1426
        %v4056 = vadd.f32 %v3794, %v1426
        %v4057 = vadd.f32 %v3799, %v1426
        %v4058 = vtanh.pop %v3802
        %v4059 = vtanh.pop %v3803
        %v4060 = vtanh.pop %v3804
        %v4061 = vtanh.pop %v3805
        %v4062 = vtanh.pop %v3806
        %v4063 = vtanh.pop %v3807
        %v4064 = vtanh.pop %v3808
        %v4065 = vtanh.pop %v3809
        %v4066 = vtanh.pop %v3810
        %v4067 = vtanh.pop %v3811
        %v4068 = vtanh.pop %v3812
        %v4069 = vtanh.pop %v3813
        %v4070 = vtanh.pop %v3814
        %v4071 = vtanh.pop %v3815
        %v4072 = vtanh.pop %v3816
        %v4073 = vtanh.pop %v3817
        %v4074 = vtanh.pop %v3818
        %v4075 = vtanh.pop %v3819
        %v4076 = vtanh.pop %v3820
        %v4077 = vtanh.pop %v3821
        %v4078 = vtanh.pop %v3822
        %v4079 = vtanh.pop %v3823
        %v4080 = vtanh.pop %v3824
        %v4081 = vtanh.pop %v3825
        %v4082 = vtanh.pop %v3826
        %v4083 = vtanh.pop %v3827
        %v4084 = vtanh.pop %v3828
        %v4085 = vtanh.pop %v3829
        %v4086 = vtanh.pop %v3830
        %v4087 = vtanh.pop %v3831
        %v4088 = vtanh.pop %v3832
        %v4089 = vtanh.pop %v3833
        %v4090 = vtanh.pop %v3834
        %v4091 = vtanh.pop %v3835
        %v4092 = vtanh.pop %v3836
        %v4093 = vtanh.pop %v3837
        %v4094 = vtanh.pop %v3838
        %v4095 = vtanh.pop %v3839
        %v4096 = vtanh.pop %v3840
        %v4097 = vtanh.pop %v3841
        %v4098 = vtanh.pop %v3842
        %v4099 = vtanh.pop %v3843
        %v4100 = vtanh.pop %v3844
        %v4101 = vtanh.pop %v3845
        %v4102 = vtanh.pop %v3846
        %v4103 = vtanh.pop %v3847
        %v4104 = vtanh.pop %v3848
        %v4105 = vtanh.pop %v3849
        %v4106 = vtanh.pop %v3850
        %v4107 = vtanh.pop %v3851
        %v4108 = vtanh.pop %v3852
        %v4109 = vtanh.pop %v3853
        %v4110 = vtanh.pop %v3854
        %v4111 = vtanh.pop %v3855
        %v4112 = vtanh.pop %v3856
        %v4113 = vtanh.pop %v3857
        %v4114 = vtanh.pop %v3858
        %v4115 = vtanh.pop %v3859
        %v4116 = vtanh.pop %v3860
        %v4117 = vtanh.pop %v3861
        %v4118 = vtanh.pop %v3862
        %v4119 = vtanh.pop %v3863
        %v4120 = vtanh.pop %v3864
        %v4121 = vtanh.pop %v3865
        %v4122 = vtanh.pop %v3866
        %v4123 = vtanh.pop %v3867
        %v4124 = vtanh.pop %v3868
        %v4125 = vtanh.pop %v3869
        %v4126 = vtanh.pop %v3870
        %v4127 = vtanh.pop %v3871
        %v4128 = vtanh.pop %v3872
        %v4129 = vtanh.pop %v3873
        %v4130 = vtanh.pop %v3874
        %v4131 = vtanh.pop %v3875
        %v4132 = vtanh.pop %v3876
        %v4133 = vtanh.pop %v3877
        %v4134 = vtanh.pop %v3878
        %v4135 = vtanh.pop %v3879
        %v4136 = vtanh.pop %v3880
        %v4137 = vtanh.pop %v3881
        %v4138 = vtanh.pop %v3882
        %v4139 = vtanh.pop %v3883
        %v4140 = vtanh.pop %v3884
        %v4141 = vtanh.pop %v3885
        %v4142 = vtanh.pop %v3886
        %v4143 = vtanh.pop %v3887
        %v4144 = vtanh.pop %v3888
        %v4145 = vtanh.pop %v3889
        %v4146 = vtanh.pop %v3890
        %v4147 = vtanh.pop %v3891
        %v4148 = vtanh.pop %v3892
        %v4149 = vtanh.pop %v3893
        %v4150 = vtanh.pop %v3894
        %v4151 = vtanh.pop %v3895
        %v4152 = vtanh.pop %v3896
        %v4153 = vtanh.pop %v3897
        %v4154 = vtanh.pop %v3898
        %v4155 = vtanh.pop %v3899
        %v4156 = vtanh.pop %v3900
        %v4157 = vtanh.pop %v3901
        %v4158 = vtanh.pop %v3902
        %v4159 = vtanh.pop %v3903
        %v4160 = vtanh.pop %v3904
        %v4161 = vtanh.pop %v3905
        %v4162 = vtanh.pop %v3906
        %v4163 = vtanh.pop %v3907
        %v4164 = vtanh.pop %v3908
        %v4165 = vtanh.pop %v3909
        %v4166 = vtanh.pop %v3910
        %v4167 = vtanh.pop %v3911
        %v4168 = vtanh.pop %v3912
        %v4169 = vtanh.pop %v3913
        %v4170 = vtanh.pop %v3914
        %v4171 = vtanh.pop %v3915
        %v4172 = vtanh.pop %v3916
        %v4173 = vtanh.pop %v3917
        %v4174 = vtanh.pop %v3918
        %v4175 = vtanh.pop %v3919
        %v4176 = vtanh.pop %v3920
        %v4177 = vtanh.pop %v3921
        %v4178 = vtanh.pop %v3922
        %v4179 = vtanh.pop %v3923
        %v4180 = vtanh.pop %v3924
        %v4181 = vtanh.pop %v3925
        %v4182 = vtanh.pop %v3926
        %v4183 = vtanh.pop %v3927
        %v4184 = vtanh.pop %v3928
        %v4185 = vtanh.pop %v3929
        %v4186 = vtanh.pop %v3930
        %v4187 = vtanh.pop %v3931
        %v4188 = vtanh.pop %v3932
        %v4189 = vtanh.pop %v3933
        %v4190 = vtanh.pop %v3934
        %v4191 = vtanh.pop %v3935
        %v4192 = vtanh.pop %v3936
        %v4193 = vtanh.pop %v3937
        %v4194 = vtanh.pop %v3938
        %v4195 = vtanh.pop %v3939
        %v4196 = vtanh.pop %v3940
        %v4197 = vtanh.pop %v3941
        %v4198 = vtanh.pop %v3942
        %v4199 = vtanh.pop %v3943
        %v4200 = vtanh.pop %v3944
        %v4201 = vtanh.pop %v3945
        %v4202 = vtanh.pop %v3946
        %v4203 = vtanh.pop %v3947
        %v4204 = vtanh.pop %v3948
        %v4205 = vtanh.pop %v3949
        %v4206 = vtanh.pop %v3950
        %v4207 = vtanh.pop %v3951
        %v4208 = vtanh.pop %v3952
        %v4209 = vtanh.pop %v3953
        %v4210 = vtanh.pop %v3954
        %v4211 = vtanh.pop %v3955
        %v4212 = vtanh.pop %v3956
        %v4213 = vtanh.pop %v3957
        %v4214 = vtanh.pop %v3958
        %v4215 = vtanh.pop %v3959
        %v4216 = vtanh.pop %v3960
        %v4217 = vtanh.pop %v3961
        %v4218 = vtanh.pop %v3962
        %v4219 = vtanh.pop %v3963
        %v4220 = vtanh.pop %v3964
        %v4221 = vtanh.pop %v3965
        %v4222 = vtanh.pop %v3966
        %v4223 = vtanh.pop %v3967
        %v4224 = vtanh.pop %v3968
        %v4225 = vtanh.pop %v3969
        %v4226 = vtanh.pop %v3970
        %v4227 = vtanh.pop %v3971
        %v4228 = vtanh.pop %v3972
        %v4229 = vtanh.pop %v3973
        %v4230 = vtanh.pop %v3974
        %v4231 = vtanh.pop %v3975
        %v4232 = vtanh.pop %v3976
        %v4233 = vtanh.pop %v3977
        %v4234 = vtanh.pop %v3978
        %v4235 = vtanh.pop %v3979
        %v4236 = vtanh.pop %v3980
        %v4237 = vtanh.pop %v3981
        %v4238 = vtanh.pop %v3982
        %v4239 = vtanh.pop %v3983
        %v4240 = vtanh.pop %v3984
        %v4241 = vtanh.pop %v3985
        %v4242 = vtanh.pop %v3986
        %v4243 = vtanh.pop %v3987
        %v4244 = vtanh.pop %v3988
        %v4245 = vtanh.pop %v3989
        %v4246 = vtanh.pop %v3990
        %v4247 = vtanh.pop %v3991
        %v4248 = vtanh.pop %v3992
        %v4249 = vtanh.pop %v3993
        %v4250 = vtanh.pop %v3994
        %v4251 = vtanh.pop %v3995
        %v4252 = vtanh.pop %v3996
        %v4253 = vtanh.pop %v3997
        %v4254 = vtanh.pop %v3998
        %v4255 = vtanh.pop %v3999
        %v4256 = vtanh.pop %v4000
        %v4257 = vtanh.pop %v4001
        %v4258 = vtanh.pop %v4002
        %v4259 = vtanh.pop %v4003
        %v4260 = vtanh.pop %v4004
        %v4261 = vtanh.pop %v4005
        %v4262 = vtanh.pop %v4006
        %v4263 = vtanh.pop %v4007
        %v4264 = vtanh.pop %v4008
        %v4265 = vtanh.pop %v4009
        %v4266 = vtanh.pop %v4010
        %v4267 = vtanh.pop %v4011
        %v4268 = vtanh.pop %v4012
        %v4269 = vtanh.pop %v4013
        %v4270 = vtanh.pop %v4014
        %v4271 = vtanh.pop %v4015
        %v4272 = vtanh.pop %v4016
        %v4273 = vtanh.pop %v4017
        %v4274 = vtanh.pop %v4018
        %v4275 = vtanh.pop %v4019
        %v4276 = vtanh.pop %v4020
        %v4277 = vtanh.pop %v4021
        %v4278 = vtanh.pop %v4022
        %v4279 = vtanh.pop %v4023
        %v4280 = vtanh.pop %v4024
        %v4281 = vtanh.pop %v4025
        %v4282 = vtanh.pop %v4026
        %v4283 = vtanh.pop %v4027
        %v4284 = vtanh.pop %v4028
        %v4285 = vtanh.pop %v4029
        %v4286 = vtanh.pop %v4030
        %v4287 = vtanh.pop %v4031
        %v4288 = vtanh.pop %v4032
        %v4289 = vtanh.pop %v4033
        %v4290 = vtanh.pop %v4034
        %v4291 = vtanh.pop %v4035
        %v4292 = vtanh.pop %v4036
        %v4293 = vtanh.pop %v4037
        %v4294 = vtanh.pop %v4038
        %v4295 = vtanh.pop %v4039
        %v4296 = vtanh.pop %v4040
        %v4297 = vtanh.pop %v4041
        %v4298 = vtanh.pop %v4042
        %v4299 = vtanh.pop %v4043
        %v4300 = vtanh.pop %v4044
        %v4301 = vtanh.pop %v4045
        %v4302 = vtanh.pop %v4046
        %v4303 = vtanh.pop %v4047
        %v4304 = vtanh.pop %v4048
        %v4305 = vtanh.pop %v4049
        %v4306 = vtanh.pop %v4050
        %v4307 = vtanh.pop %v4051
        %v4308 = vtanh.pop %v4052
        %v4309 = vtanh.pop %v4053
        %v4310 = vtanh.pop %v4054
        %v4311 = vtanh.pop %v4055
        %v4312 = vtanh.pop %v4056
        %v4313 = vtanh.pop %v4057
        %v4314 = vld [vmem:[%s5] sm:$0x1]
        %v4316 = vlaneseq
        %v4317 = vshrl.u32 %v4316, 7
        %v4318 = vsub.s32 0, %v4317
        %v4319 = vrot.slane %v4314, %v4318
        %v4321 = vmul.f32 %v4058, %v4319
        %v4322 = vmul.f32 %v4059, %v4319
        %v4323 = vmul.f32 %v4060, %v4319
        %v4324 = vmul.f32 %v4061, %v4319
        %v4325 = vmul.f32 %v4062, %v4319
        %v4326 = vmul.f32 %v4063, %v4319
        %v4327 = vmul.f32 %v4064, %v4319
        %v4328 = vmul.f32 %v4065, %v4319
        %v4329 = vmul.f32 %v4066, %v4319
        %v4330 = vmul.f32 %v4067, %v4319
        %v4331 = vmul.f32 %v4068, %v4319
        %v4332 = vmul.f32 %v4069, %v4319
        %v4333 = vmul.f32 %v4070, %v4319
        %v4334 = vmul.f32 %v4071, %v4319
        %v4335 = vmul.f32 %v4072, %v4319
        %v4336 = vmul.f32 %v4073, %v4319
        %v4337 = vmul.f32 %v4074, %v4319
        %v4338 = vmul.f32 %v4075, %v4319
        %v4339 = vmul.f32 %v4076, %v4319
        %v4340 = vmul.f32 %v4077, %v4319
        %v4341 = vmul.f32 %v4078, %v4319
        %v4342 = vmul.f32 %v4079, %v4319
        %v4343 = vmul.f32 %v4080, %v4319
        %v4344 = vmul.f32 %v4081, %v4319
        %v4345 = vmul.f32 %v4082, %v4319
        %v4346 = vmul.f32 %v4083, %v4319
        %v4347 = vmul.f32 %v4084, %v4319
        %v4348 = vmul.f32 %v4085, %v4319
        %v4349 = vmul.f32 %v4086, %v4319
        %v4350 = vmul.f32 %v4087, %v4319
        %v4351 = vmul.f32 %v4088, %v4319
        %v4352 = vmul.f32 %v4089, %v4319
        %v4353 = vmul.f32 %v4090, %v4319
        %v4354 = vmul.f32 %v4091, %v4319
        %v4355 = vmul.f32 %v4092, %v4319
        %v4356 = vmul.f32 %v4093, %v4319
        %v4357 = vmul.f32 %v4094, %v4319
        %v4358 = vmul.f32 %v4095, %v4319
        %v4359 = vmul.f32 %v4096, %v4319
        %v4360 = vmul.f32 %v4097, %v4319
        %v4361 = vmul.f32 %v4098, %v4319
        %v4362 = vmul.f32 %v4099, %v4319
        %v4363 = vmul.f32 %v4100, %v4319
        %v4364 = vmul.f32 %v4101, %v4319
        %v4365 = vmul.f32 %v4102, %v4319
        %v4366 = vmul.f32 %v4103, %v4319
        %v4367 = vmul.f32 %v4104, %v4319
        %v4368 = vmul.f32 %v4105, %v4319
        %v4369 = vmul.f32 %v4106, %v4319
        %v4370 = vmul.f32 %v4107, %v4319
        %v4371 = vmul.f32 %v4108, %v4319
        %v4372 = vmul.f32 %v4109, %v4319
        %v4373 = vmul.f32 %v4110, %v4319
        %v4374 = vmul.f32 %v4111, %v4319
        %v4375 = vmul.f32 %v4112, %v4319
        %v4376 = vmul.f32 %v4113, %v4319
        %v4377 = vmul.f32 %v4114, %v4319
        %v4378 = vmul.f32 %v4115, %v4319
        %v4379 = vmul.f32 %v4116, %v4319
        %v4380 = vmul.f32 %v4117, %v4319
        %v4381 = vmul.f32 %v4118, %v4319
        %v4382 = vmul.f32 %v4119, %v4319
        %v4383 = vmul.f32 %v4120, %v4319
        %v4384 = vmul.f32 %v4121, %v4319
        %v4385 = vmul.f32 %v4122, %v4319
        %v4386 = vmul.f32 %v4123, %v4319
        %v4387 = vmul.f32 %v4124, %v4319
        %v4388 = vmul.f32 %v4125, %v4319
        %v4389 = vmul.f32 %v4126, %v4319
        %v4390 = vmul.f32 %v4127, %v4319
        %v4391 = vmul.f32 %v4128, %v4319
        %v4392 = vmul.f32 %v4129, %v4319
        %v4393 = vmul.f32 %v4130, %v4319
        %v4394 = vmul.f32 %v4131, %v4319
        %v4395 = vmul.f32 %v4132, %v4319
        %v4396 = vmul.f32 %v4133, %v4319
        %v4397 = vmul.f32 %v4134, %v4319
        %v4398 = vmul.f32 %v4135, %v4319
        %v4399 = vmul.f32 %v4136, %v4319
        %v4400 = vmul.f32 %v4137, %v4319
        %v4401 = vmul.f32 %v4138, %v4319
        %v4402 = vmul.f32 %v4139, %v4319
        %v4403 = vmul.f32 %v4140, %v4319
        %v4404 = vmul.f32 %v4141, %v4319
        %v4405 = vmul.f32 %v4142, %v4319
        %v4406 = vmul.f32 %v4143, %v4319
        %v4407 = vmul.f32 %v4144, %v4319
        %v4408 = vmul.f32 %v4145, %v4319
        %v4409 = vmul.f32 %v4146, %v4319
        %v4410 = vmul.f32 %v4147, %v4319
        %v4411 = vmul.f32 %v4148, %v4319
        %v4412 = vmul.f32 %v4149, %v4319
        %v4413 = vmul.f32 %v4150, %v4319
        %v4414 = vmul.f32 %v4151, %v4319
        %v4415 = vmul.f32 %v4152, %v4319
        %v4416 = vmul.f32 %v4153, %v4319
        %v4417 = vmul.f32 %v4154, %v4319
        %v4418 = vmul.f32 %v4155, %v4319
        %v4419 = vmul.f32 %v4156, %v4319
        %v4420 = vmul.f32 %v4157, %v4319
        %v4421 = vmul.f32 %v4158, %v4319
        %v4422 = vmul.f32 %v4159, %v4319
        %v4423 = vmul.f32 %v4160, %v4319
        %v4424 = vmul.f32 %v4161, %v4319
        %v4425 = vmul.f32 %v4162, %v4319
        %v4426 = vmul.f32 %v4163, %v4319
        %v4427 = vmul.f32 %v4164, %v4319
        %v4428 = vmul.f32 %v4165, %v4319
        %v4429 = vmul.f32 %v4166, %v4319
        %v4430 = vmul.f32 %v4167, %v4319
        %v4431 = vmul.f32 %v4168, %v4319
        %v4432 = vmul.f32 %v4169, %v4319
        %v4433 = vmul.f32 %v4170, %v4319
        %v4434 = vmul.f32 %v4171, %v4319
        %v4435 = vmul.f32 %v4172, %v4319
        %v4436 = vmul.f32 %v4173, %v4319
        %v4437 = vmul.f32 %v4174, %v4319
        %v4438 = vmul.f32 %v4175, %v4319
        %v4439 = vmul.f32 %v4176, %v4319
        %v4440 = vmul.f32 %v4177, %v4319
        %v4441 = vmul.f32 %v4178, %v4319
        %v4442 = vmul.f32 %v4179, %v4319
        %v4443 = vmul.f32 %v4180, %v4319
        %v4444 = vmul.f32 %v4181, %v4319
        %v4445 = vmul.f32 %v4182, %v4319
        %v4446 = vmul.f32 %v4183, %v4319
        %v4447 = vmul.f32 %v4184, %v4319
        %v4448 = vmul.f32 %v4185, %v4319
        %v4449 = vmul.f32 %v4186, %v4319
        %v4450 = vmul.f32 %v4187, %v4319
        %v4451 = vmul.f32 %v4188, %v4319
        %v4452 = vmul.f32 %v4189, %v4319
        %v4453 = vmul.f32 %v4190, %v4319
        %v4454 = vmul.f32 %v4191, %v4319
        %v4455 = vmul.f32 %v4192, %v4319
        %v4456 = vmul.f32 %v4193, %v4319
        %v4457 = vmul.f32 %v4194, %v4319
        %v4458 = vmul.f32 %v4195, %v4319
        %v4459 = vmul.f32 %v4196, %v4319
        %v4460 = vmul.f32 %v4197, %v4319
        %v4461 = vmul.f32 %v4198, %v4319
        %v4462 = vmul.f32 %v4199, %v4319
        %v4463 = vmul.f32 %v4200, %v4319
        %v4464 = vmul.f32 %v4201, %v4319
        %v4465 = vmul.f32 %v4202, %v4319
        %v4466 = vmul.f32 %v4203, %v4319
        %v4467 = vmul.f32 %v4204, %v4319
        %v4468 = vmul.f32 %v4205, %v4319
        %v4469 = vmul.f32 %v4206, %v4319
        %v4470 = vmul.f32 %v4207, %v4319
        %v4471 = vmul.f32 %v4208, %v4319
        %v4472 = vmul.f32 %v4209, %v4319
        %v4473 = vmul.f32 %v4210, %v4319
        %v4474 = vmul.f32 %v4211, %v4319
        %v4475 = vmul.f32 %v4212, %v4319
        %v4476 = vmul.f32 %v4213, %v4319
        %v4477 = vmul.f32 %v4214, %v4319
        %v4478 = vmul.f32 %v4215, %v4319
        %v4479 = vmul.f32 %v4216, %v4319
        %v4480 = vmul.f32 %v4217, %v4319
        %v4481 = vmul.f32 %v4218, %v4319
        %v4482 = vmul.f32 %v4219, %v4319
        %v4483 = vmul.f32 %v4220, %v4319
        %v4484 = vmul.f32 %v4221, %v4319
        %v4485 = vmul.f32 %v4222, %v4319
        %v4486 = vmul.f32 %v4223, %v4319
        %v4487 = vmul.f32 %v4224, %v4319
        %v4488 = vmul.f32 %v4225, %v4319
        %v4489 = vmul.f32 %v4226, %v4319
        %v4490 = vmul.f32 %v4227, %v4319
        %v4491 = vmul.f32 %v4228, %v4319
        %v4492 = vmul.f32 %v4229, %v4319
        %v4493 = vmul.f32 %v4230, %v4319
        %v4494 = vmul.f32 %v4231, %v4319
        %v4495 = vmul.f32 %v4232, %v4319
        %v4496 = vmul.f32 %v4233, %v4319
        %v4497 = vmul.f32 %v4234, %v4319
        %v4498 = vmul.f32 %v4235, %v4319
        %v4499 = vmul.f32 %v4236, %v4319
        %v4500 = vmul.f32 %v4237, %v4319
        %v4501 = vmul.f32 %v4238, %v4319
        %v4502 = vmul.f32 %v4239, %v4319
        %v4503 = vmul.f32 %v4240, %v4319
        %v4504 = vmul.f32 %v4241, %v4319
        %v4505 = vmul.f32 %v4242, %v4319
        %v4506 = vmul.f32 %v4243, %v4319
        %v4507 = vmul.f32 %v4244, %v4319
        %v4508 = vmul.f32 %v4245, %v4319
        %v4509 = vmul.f32 %v4246, %v4319
        %v4510 = vmul.f32 %v4247, %v4319
        %v4511 = vmul.f32 %v4248, %v4319
        %v4512 = vmul.f32 %v4249, %v4319
        %v4513 = vmul.f32 %v4250, %v4319
        %v4514 = vmul.f32 %v4251, %v4319
        %v4515 = vmul.f32 %v4252, %v4319
        %v4516 = vmul.f32 %v4253, %v4319
        %v4517 = vmul.f32 %v4254, %v4319
        %v4518 = vmul.f32 %v4255, %v4319
        %v4519 = vmul.f32 %v4256, %v4319
        %v4520 = vmul.f32 %v4257, %v4319
        %v4521 = vmul.f32 %v4258, %v4319
        %v4522 = vmul.f32 %v4259, %v4319
        %v4523 = vmul.f32 %v4260, %v4319
        %v4524 = vmul.f32 %v4261, %v4319
        %v4525 = vmul.f32 %v4262, %v4319
        %v4526 = vmul.f32 %v4263, %v4319
        %v4527 = vmul.f32 %v4264, %v4319
        %v4528 = vmul.f32 %v4265, %v4319
        %v4529 = vmul.f32 %v4266, %v4319
        %v4530 = vmul.f32 %v4267, %v4319
        %v4531 = vmul.f32 %v4268, %v4319
        %v4532 = vmul.f32 %v4269, %v4319
        %v4533 = vmul.f32 %v4270, %v4319
        %v4534 = vmul.f32 %v4271, %v4319
        %v4535 = vmul.f32 %v4272, %v4319
        %v4536 = vmul.f32 %v4273, %v4319
        %v4537 = vmul.f32 %v4274, %v4319
        %v4538 = vmul.f32 %v4275, %v4319
        %v4539 = vmul.f32 %v4276, %v4319
        %v4540 = vmul.f32 %v4277, %v4319
        %v4541 = vmul.f32 %v4278, %v4319
        %v4542 = vmul.f32 %v4279, %v4319
        %v4543 = vmul.f32 %v4280, %v4319
        %v4544 = vmul.f32 %v4281, %v4319
        %v4545 = vmul.f32 %v4282, %v4319
        %v4546 = vmul.f32 %v4283, %v4319
        %v4547 = vmul.f32 %v4284, %v4319
        %v4548 = vmul.f32 %v4285, %v4319
        %v4549 = vmul.f32 %v4286, %v4319
        %v4550 = vmul.f32 %v4287, %v4319
        %v4551 = vmul.f32 %v4288, %v4319
        %v4552 = vmul.f32 %v4289, %v4319
        %v4553 = vmul.f32 %v4290, %v4319
        %v4554 = vmul.f32 %v4291, %v4319
        %v4555 = vmul.f32 %v4292, %v4319
        %v4556 = vmul.f32 %v4293, %v4319
        %v4557 = vmul.f32 %v4294, %v4319
        %v4558 = vmul.f32 %v4295, %v4319
        %v4559 = vmul.f32 %v4296, %v4319
        %v4560 = vmul.f32 %v4297, %v4319
        %v4561 = vmul.f32 %v4298, %v4319
        %v4562 = vmul.f32 %v4299, %v4319
        %v4563 = vmul.f32 %v4300, %v4319
        %v4564 = vmul.f32 %v4301, %v4319
        %v4565 = vmul.f32 %v4302, %v4319
        %v4566 = vmul.f32 %v4303, %v4319
        %v4567 = vmul.f32 %v4304, %v4319
        %v4568 = vmul.f32 %v4305, %v4319
        %v4569 = vmul.f32 %v4306, %v4319
        %v4570 = vmul.f32 %v4307, %v4319
        %v4571 = vmul.f32 %v4308, %v4319
        %v4572 = vmul.f32 %v4309, %v4319
        %v4573 = vmul.f32 %v4310, %v4319
        %v4574 = vmul.f32 %v4311, %v4319
        %v4575 = vmul.f32 %v4312, %v4319
        %v4576 = vmul.f32 %v4313, %v4319
        %v4577 = vsel %vm1355, %v4321, 0.0
        %4578 = vadd.xlane.f32.xlu0 %v4577
        %v4579 = vpop.xlane.xlu0 %4578
        %v4580 = vsel %vm1355, %v4322, 0.0
        %4581 = vadd.xlane.f32.xlu0 %v4580
        %v4582 = vpop.xlane.xlu0 %4581
        %v4583 = vsel %vm1355, %v4323, 0.0
        %4584 = vadd.xlane.f32.xlu0 %v4583
        %v4585 = vpop.xlane.xlu0 %4584
        %v4586 = vsel %vm1355, %v4324, 0.0
        %4587 = vadd.xlane.f32.xlu0 %v4586
        %v4588 = vpop.xlane.xlu0 %4587
        %v4589 = vsel %vm1355, %v4325, 0.0
        %4590 = vadd.xlane.f32.xlu0 %v4589
        %v4591 = vpop.xlane.xlu0 %4590
        %v4592 = vsel %vm1355, %v4326, 0.0
        %4593 = vadd.xlane.f32.xlu0 %v4592
        %v4594 = vpop.xlane.xlu0 %4593
        %v4595 = vsel %vm1355, %v4327, 0.0
        %4596 = vadd.xlane.f32.xlu0 %v4595
        %v4597 = vpop.xlane.xlu0 %4596
        %v4598 = vsel %vm1355, %v4328, 0.0
        %4599 = vadd.xlane.f32.xlu0 %v4598
        %v4600 = vpop.xlane.xlu0 %4599
        %v4601 = vsel %vm1355, %v4329, 0.0
        %4602 = vadd.xlane.f32.xlu0 %v4601
        %v4603 = vpop.xlane.xlu0 %4602
        %v4604 = vsel %vm1355, %v4330, 0.0
        %4605 = vadd.xlane.f32.xlu0 %v4604
        %v4606 = vpop.xlane.xlu0 %4605
        %v4607 = vsel %vm1355, %v4331, 0.0
        %4608 = vadd.xlane.f32.xlu0 %v4607
        %v4609 = vpop.xlane.xlu0 %4608
        %v4610 = vsel %vm1355, %v4332, 0.0
        %4611 = vadd.xlane.f32.xlu0 %v4610
        %v4612 = vpop.xlane.xlu0 %4611
        %v4613 = vsel %vm1355, %v4333, 0.0
        %4614 = vadd.xlane.f32.xlu0 %v4613
        %v4615 = vpop.xlane.xlu0 %4614
        %v4616 = vsel %vm1355, %v4334, 0.0
        %4617 = vadd.xlane.f32.xlu0 %v4616
        %v4618 = vpop.xlane.xlu0 %4617
        %v4619 = vsel %vm1355, %v4335, 0.0
        %4620 = vadd.xlane.f32.xlu0 %v4619
        %v4621 = vpop.xlane.xlu0 %4620
        %v4622 = vsel %vm1355, %v4336, 0.0
        %4623 = vadd.xlane.f32.xlu0 %v4622
        %v4624 = vpop.xlane.xlu0 %4623
        %v4625 = vsel %vm1355, %v4337, 0.0
        %4626 = vadd.xlane.f32.xlu0 %v4625
        %v4627 = vpop.xlane.xlu0 %4626
        %v4628 = vsel %vm1355, %v4338, 0.0
        %4629 = vadd.xlane.f32.xlu0 %v4628
        %v4630 = vpop.xlane.xlu0 %4629
        %v4631 = vsel %vm1355, %v4339, 0.0
        %4632 = vadd.xlane.f32.xlu0 %v4631
        %v4633 = vpop.xlane.xlu0 %4632
        %v4634 = vsel %vm1355, %v4340, 0.0
        %4635 = vadd.xlane.f32.xlu0 %v4634
        %v4636 = vpop.xlane.xlu0 %4635
        %v4637 = vsel %vm1355, %v4341, 0.0
        %4638 = vadd.xlane.f32.xlu0 %v4637
        %v4639 = vpop.xlane.xlu0 %4638
        %v4640 = vsel %vm1355, %v4342, 0.0
        %4641 = vadd.xlane.f32.xlu0 %v4640
        %v4642 = vpop.xlane.xlu0 %4641
        %v4643 = vsel %vm1355, %v4343, 0.0
        %4644 = vadd.xlane.f32.xlu0 %v4643
        %v4645 = vpop.xlane.xlu0 %4644
        %v4646 = vsel %vm1355, %v4344, 0.0
        %4647 = vadd.xlane.f32.xlu0 %v4646
        %v4648 = vpop.xlane.xlu0 %4647
        %v4649 = vsel %vm1355, %v4345, 0.0
        %4650 = vadd.xlane.f32.xlu0 %v4649
        %v4651 = vpop.xlane.xlu0 %4650
        %v4652 = vsel %vm1355, %v4346, 0.0
        %4653 = vadd.xlane.f32.xlu0 %v4652
        %v4654 = vpop.xlane.xlu0 %4653
        %v4655 = vsel %vm1355, %v4347, 0.0
        %4656 = vadd.xlane.f32.xlu0 %v4655
        %v4657 = vpop.xlane.xlu0 %4656
        %v4658 = vsel %vm1355, %v4348, 0.0
        %4659 = vadd.xlane.f32.xlu0 %v4658
        %v4660 = vpop.xlane.xlu0 %4659
        %v4661 = vsel %vm1355, %v4349, 0.0
        %4662 = vadd.xlane.f32.xlu0 %v4661
        %v4663 = vpop.xlane.xlu0 %4662
        %v4664 = vsel %vm1355, %v4350, 0.0
        %4665 = vadd.xlane.f32.xlu0 %v4664
        %v4666 = vpop.xlane.xlu0 %4665
        %v4667 = vsel %vm1355, %v4351, 0.0
        %4668 = vadd.xlane.f32.xlu0 %v4667
        %v4669 = vpop.xlane.xlu0 %4668
        %v4670 = vsel %vm1355, %v4352, 0.0
        %4671 = vadd.xlane.f32.xlu0 %v4670
        %v4672 = vpop.xlane.xlu0 %4671
        %v4673 = vsel %vm1355, %v4353, 0.0
        %4674 = vadd.xlane.f32.xlu0 %v4673
        %v4675 = vpop.xlane.xlu0 %4674
        %v4676 = vsel %vm1355, %v4354, 0.0
        %4677 = vadd.xlane.f32.xlu0 %v4676
        %v4678 = vpop.xlane.xlu0 %4677
        %v4679 = vsel %vm1355, %v4355, 0.0
        %4680 = vadd.xlane.f32.xlu0 %v4679
        %v4681 = vpop.xlane.xlu0 %4680
        %v4682 = vsel %vm1355, %v4356, 0.0
        %4683 = vadd.xlane.f32.xlu0 %v4682
        %v4684 = vpop.xlane.xlu0 %4683
        %v4685 = vsel %vm1355, %v4357, 0.0
        %4686 = vadd.xlane.f32.xlu0 %v4685
        %v4687 = vpop.xlane.xlu0 %4686
        %v4688 = vsel %vm1355, %v4358, 0.0
        %4689 = vadd.xlane.f32.xlu0 %v4688
        %v4690 = vpop.xlane.xlu0 %4689
        %v4691 = vsel %vm1355, %v4359, 0.0
        %4692 = vadd.xlane.f32.xlu0 %v4691
        %v4693 = vpop.xlane.xlu0 %4692
        %v4694 = vsel %vm1355, %v4360, 0.0
        %4695 = vadd.xlane.f32.xlu0 %v4694
        %v4696 = vpop.xlane.xlu0 %4695
        %v4697 = vsel %vm1355, %v4361, 0.0
        %4698 = vadd.xlane.f32.xlu0 %v4697
        %v4699 = vpop.xlane.xlu0 %4698
        %v4700 = vsel %vm1355, %v4362, 0.0
        %4701 = vadd.xlane.f32.xlu0 %v4700
        %v4702 = vpop.xlane.xlu0 %4701
        %v4703 = vsel %vm1355, %v4363, 0.0
        %4704 = vadd.xlane.f32.xlu0 %v4703
        %v4705 = vpop.xlane.xlu0 %4704
        %v4706 = vsel %vm1355, %v4364, 0.0
        %4707 = vadd.xlane.f32.xlu0 %v4706
        %v4708 = vpop.xlane.xlu0 %4707
        %v4709 = vsel %vm1355, %v4365, 0.0
        %4710 = vadd.xlane.f32.xlu0 %v4709
        %v4711 = vpop.xlane.xlu0 %4710
        %v4712 = vsel %vm1355, %v4366, 0.0
        %4713 = vadd.xlane.f32.xlu0 %v4712
        %v4714 = vpop.xlane.xlu0 %4713
        %v4715 = vsel %vm1355, %v4367, 0.0
        %4716 = vadd.xlane.f32.xlu0 %v4715
        %v4717 = vpop.xlane.xlu0 %4716
        %v4718 = vsel %vm1355, %v4368, 0.0
        %4719 = vadd.xlane.f32.xlu0 %v4718
        %v4720 = vpop.xlane.xlu0 %4719
        %v4721 = vsel %vm1355, %v4369, 0.0
        %4722 = vadd.xlane.f32.xlu0 %v4721
        %v4723 = vpop.xlane.xlu0 %4722
        %v4724 = vsel %vm1355, %v4370, 0.0
        %4725 = vadd.xlane.f32.xlu0 %v4724
        %v4726 = vpop.xlane.xlu0 %4725
        %v4727 = vsel %vm1355, %v4371, 0.0
        %4728 = vadd.xlane.f32.xlu0 %v4727
        %v4729 = vpop.xlane.xlu0 %4728
        %v4730 = vsel %vm1355, %v4372, 0.0
        %4731 = vadd.xlane.f32.xlu0 %v4730
        %v4732 = vpop.xlane.xlu0 %4731
        %v4733 = vsel %vm1355, %v4373, 0.0
        %4734 = vadd.xlane.f32.xlu0 %v4733
        %v4735 = vpop.xlane.xlu0 %4734
        %v4736 = vsel %vm1355, %v4374, 0.0
        %4737 = vadd.xlane.f32.xlu0 %v4736
        %v4738 = vpop.xlane.xlu0 %4737
        %v4739 = vsel %vm1355, %v4375, 0.0
        %4740 = vadd.xlane.f32.xlu0 %v4739
        %v4741 = vpop.xlane.xlu0 %4740
        %v4742 = vsel %vm1355, %v4376, 0.0
        %4743 = vadd.xlane.f32.xlu0 %v4742
        %v4744 = vpop.xlane.xlu0 %4743
        %v4745 = vsel %vm1355, %v4377, 0.0
        %4746 = vadd.xlane.f32.xlu0 %v4745
        %v4747 = vpop.xlane.xlu0 %4746
        %v4748 = vsel %vm1355, %v4378, 0.0
        %4749 = vadd.xlane.f32.xlu0 %v4748
        %v4750 = vpop.xlane.xlu0 %4749
        %v4751 = vsel %vm1355, %v4379, 0.0
        %4752 = vadd.xlane.f32.xlu0 %v4751
        %v4753 = vpop.xlane.xlu0 %4752
        %v4754 = vsel %vm1355, %v4380, 0.0
        %4755 = vadd.xlane.f32.xlu0 %v4754
        %v4756 = vpop.xlane.xlu0 %4755
        %v4757 = vsel %vm1355, %v4381, 0.0
        %4758 = vadd.xlane.f32.xlu0 %v4757
        %v4759 = vpop.xlane.xlu0 %4758
        %v4760 = vsel %vm1355, %v4382, 0.0
        %4761 = vadd.xlane.f32.xlu0 %v4760
        %v4762 = vpop.xlane.xlu0 %4761
        %v4763 = vsel %vm1355, %v4383, 0.0
        %4764 = vadd.xlane.f32.xlu0 %v4763
        %v4765 = vpop.xlane.xlu0 %4764
        %v4766 = vsel %vm1355, %v4384, 0.0
        %4767 = vadd.xlane.f32.xlu0 %v4766
        %v4768 = vpop.xlane.xlu0 %4767
        %v4769 = vsel %vm1355, %v4385, 0.0
        %4770 = vadd.xlane.f32.xlu0 %v4769
        %v4771 = vpop.xlane.xlu0 %4770
        %v4772 = vsel %vm1355, %v4386, 0.0
        %4773 = vadd.xlane.f32.xlu0 %v4772
        %v4774 = vpop.xlane.xlu0 %4773
        %v4775 = vsel %vm1355, %v4387, 0.0
        %4776 = vadd.xlane.f32.xlu0 %v4775
        %v4777 = vpop.xlane.xlu0 %4776
        %v4778 = vsel %vm1355, %v4388, 0.0
        %4779 = vadd.xlane.f32.xlu0 %v4778
        %v4780 = vpop.xlane.xlu0 %4779
        %v4781 = vsel %vm1355, %v4389, 0.0
        %4782 = vadd.xlane.f32.xlu0 %v4781
        %v4783 = vpop.xlane.xlu0 %4782
        %v4784 = vsel %vm1355, %v4390, 0.0
        %4785 = vadd.xlane.f32.xlu0 %v4784
        %v4786 = vpop.xlane.xlu0 %4785
        %v4787 = vsel %vm1355, %v4391, 0.0
        %4788 = vadd.xlane.f32.xlu0 %v4787
        %v4789 = vpop.xlane.xlu0 %4788
        %v4790 = vsel %vm1355, %v4392, 0.0
        %4791 = vadd.xlane.f32.xlu0 %v4790
        %v4792 = vpop.xlane.xlu0 %4791
        %v4793 = vsel %vm1355, %v4393, 0.0
        %4794 = vadd.xlane.f32.xlu0 %v4793
        %v4795 = vpop.xlane.xlu0 %4794
        %v4796 = vsel %vm1355, %v4394, 0.0
        %4797 = vadd.xlane.f32.xlu0 %v4796
        %v4798 = vpop.xlane.xlu0 %4797
        %v4799 = vsel %vm1355, %v4395, 0.0
        %4800 = vadd.xlane.f32.xlu0 %v4799
        %v4801 = vpop.xlane.xlu0 %4800
        %v4802 = vsel %vm1355, %v4396, 0.0
        %4803 = vadd.xlane.f32.xlu0 %v4802
        %v4804 = vpop.xlane.xlu0 %4803
        %v4805 = vsel %vm1355, %v4397, 0.0
        %4806 = vadd.xlane.f32.xlu0 %v4805
        %v4807 = vpop.xlane.xlu0 %4806
        %v4808 = vsel %vm1355, %v4398, 0.0
        %4809 = vadd.xlane.f32.xlu0 %v4808
        %v4810 = vpop.xlane.xlu0 %4809
        %v4811 = vsel %vm1355, %v4399, 0.0
        %4812 = vadd.xlane.f32.xlu0 %v4811
        %v4813 = vpop.xlane.xlu0 %4812
        %v4814 = vsel %vm1355, %v4400, 0.0
        %4815 = vadd.xlane.f32.xlu0 %v4814
        %v4816 = vpop.xlane.xlu0 %4815
        %v4817 = vsel %vm1355, %v4401, 0.0
        %4818 = vadd.xlane.f32.xlu0 %v4817
        %v4819 = vpop.xlane.xlu0 %4818
        %v4820 = vsel %vm1355, %v4402, 0.0
        %4821 = vadd.xlane.f32.xlu0 %v4820
        %v4822 = vpop.xlane.xlu0 %4821
        %v4823 = vsel %vm1355, %v4403, 0.0
        %4824 = vadd.xlane.f32.xlu0 %v4823
        %v4825 = vpop.xlane.xlu0 %4824
        %v4826 = vsel %vm1355, %v4404, 0.0
        %4827 = vadd.xlane.f32.xlu0 %v4826
        %v4828 = vpop.xlane.xlu0 %4827
        %v4829 = vsel %vm1355, %v4405, 0.0
        %4830 = vadd.xlane.f32.xlu0 %v4829
        %v4831 = vpop.xlane.xlu0 %4830
        %v4832 = vsel %vm1355, %v4406, 0.0
        %4833 = vadd.xlane.f32.xlu0 %v4832
        %v4834 = vpop.xlane.xlu0 %4833
        %v4835 = vsel %vm1355, %v4407, 0.0
        %4836 = vadd.xlane.f32.xlu0 %v4835
        %v4837 = vpop.xlane.xlu0 %4836
        %v4838 = vsel %vm1355, %v4408, 0.0
        %4839 = vadd.xlane.f32.xlu0 %v4838
        %v4840 = vpop.xlane.xlu0 %4839
        %v4841 = vsel %vm1355, %v4409, 0.0
        %4842 = vadd.xlane.f32.xlu0 %v4841
        %v4843 = vpop.xlane.xlu0 %4842
        %v4844 = vsel %vm1355, %v4410, 0.0
        %4845 = vadd.xlane.f32.xlu0 %v4844
        %v4846 = vpop.xlane.xlu0 %4845
        %v4847 = vsel %vm1355, %v4411, 0.0
        %4848 = vadd.xlane.f32.xlu0 %v4847
        %v4849 = vpop.xlane.xlu0 %4848
        %v4850 = vsel %vm1355, %v4412, 0.0
        %4851 = vadd.xlane.f32.xlu0 %v4850
        %v4852 = vpop.xlane.xlu0 %4851
        %v4853 = vsel %vm1355, %v4413, 0.0
        %4854 = vadd.xlane.f32.xlu0 %v4853
        %v4855 = vpop.xlane.xlu0 %4854
        %v4856 = vsel %vm1355, %v4414, 0.0
        %4857 = vadd.xlane.f32.xlu0 %v4856
        %v4858 = vpop.xlane.xlu0 %4857
        %v4859 = vsel %vm1355, %v4415, 0.0
        %4860 = vadd.xlane.f32.xlu0 %v4859
        %v4861 = vpop.xlane.xlu0 %4860
        %v4862 = vsel %vm1355, %v4416, 0.0
        %4863 = vadd.xlane.f32.xlu0 %v4862
        %v4864 = vpop.xlane.xlu0 %4863
        %v4865 = vsel %vm1355, %v4417, 0.0
        %4866 = vadd.xlane.f32.xlu0 %v4865
        %v4867 = vpop.xlane.xlu0 %4866
        %v4868 = vsel %vm1355, %v4418, 0.0
        %4869 = vadd.xlane.f32.xlu0 %v4868
        %v4870 = vpop.xlane.xlu0 %4869
        %v4871 = vsel %vm1355, %v4419, 0.0
        %4872 = vadd.xlane.f32.xlu0 %v4871
        %v4873 = vpop.xlane.xlu0 %4872
        %v4874 = vsel %vm1355, %v4420, 0.0
        %4875 = vadd.xlane.f32.xlu0 %v4874
        %v4876 = vpop.xlane.xlu0 %4875
        %v4877 = vsel %vm1355, %v4421, 0.0
        %4878 = vadd.xlane.f32.xlu0 %v4877
        %v4879 = vpop.xlane.xlu0 %4878
        %v4880 = vsel %vm1355, %v4422, 0.0
        %4881 = vadd.xlane.f32.xlu0 %v4880
        %v4882 = vpop.xlane.xlu0 %4881
        %v4883 = vsel %vm1355, %v4423, 0.0
        %4884 = vadd.xlane.f32.xlu0 %v4883
        %v4885 = vpop.xlane.xlu0 %4884
        %v4886 = vsel %vm1355, %v4424, 0.0
        %4887 = vadd.xlane.f32.xlu0 %v4886
        %v4888 = vpop.xlane.xlu0 %4887
        %v4889 = vsel %vm1355, %v4425, 0.0
        %4890 = vadd.xlane.f32.xlu0 %v4889
        %v4891 = vpop.xlane.xlu0 %4890
        %v4892 = vsel %vm1355, %v4426, 0.0
        %4893 = vadd.xlane.f32.xlu0 %v4892
        %v4894 = vpop.xlane.xlu0 %4893
        %v4895 = vsel %vm1355, %v4427, 0.0
        %4896 = vadd.xlane.f32.xlu0 %v4895
        %v4897 = vpop.xlane.xlu0 %4896
        %v4898 = vsel %vm1355, %v4428, 0.0
        %4899 = vadd.xlane.f32.xlu0 %v4898
        %v4900 = vpop.xlane.xlu0 %4899
        %v4901 = vsel %vm1355, %v4429, 0.0
        %4902 = vadd.xlane.f32.xlu0 %v4901
        %v4903 = vpop.xlane.xlu0 %4902
        %v4904 = vsel %vm1355, %v4430, 0.0
        %4905 = vadd.xlane.f32.xlu0 %v4904
        %v4906 = vpop.xlane.xlu0 %4905
        %v4907 = vsel %vm1355, %v4431, 0.0
        %4908 = vadd.xlane.f32.xlu0 %v4907
        %v4909 = vpop.xlane.xlu0 %4908
        %v4910 = vsel %vm1355, %v4432, 0.0
        %4911 = vadd.xlane.f32.xlu0 %v4910
        %v4912 = vpop.xlane.xlu0 %4911
        %v4913 = vsel %vm1355, %v4433, 0.0
        %4914 = vadd.xlane.f32.xlu0 %v4913
        %v4915 = vpop.xlane.xlu0 %4914
        %v4916 = vsel %vm1355, %v4434, 0.0
        %4917 = vadd.xlane.f32.xlu0 %v4916
        %v4918 = vpop.xlane.xlu0 %4917
        %v4919 = vsel %vm1355, %v4435, 0.0
        %4920 = vadd.xlane.f32.xlu0 %v4919
        %v4921 = vpop.xlane.xlu0 %4920
        %v4922 = vsel %vm1355, %v4436, 0.0
        %4923 = vadd.xlane.f32.xlu0 %v4922
        %v4924 = vpop.xlane.xlu0 %4923
        %v4925 = vsel %vm1355, %v4437, 0.0
        %4926 = vadd.xlane.f32.xlu0 %v4925
        %v4927 = vpop.xlane.xlu0 %4926
        %v4928 = vsel %vm1355, %v4438, 0.0
        %4929 = vadd.xlane.f32.xlu0 %v4928
        %v4930 = vpop.xlane.xlu0 %4929
        %v4931 = vsel %vm1355, %v4439, 0.0
        %4932 = vadd.xlane.f32.xlu0 %v4931
        %v4933 = vpop.xlane.xlu0 %4932
        %v4934 = vsel %vm1355, %v4440, 0.0
        %4935 = vadd.xlane.f32.xlu0 %v4934
        %v4936 = vpop.xlane.xlu0 %4935
        %v4937 = vsel %vm1355, %v4441, 0.0
        %4938 = vadd.xlane.f32.xlu0 %v4937
        %v4939 = vpop.xlane.xlu0 %4938
        %v4940 = vsel %vm1355, %v4442, 0.0
        %4941 = vadd.xlane.f32.xlu0 %v4940
        %v4942 = vpop.xlane.xlu0 %4941
        %v4943 = vsel %vm1355, %v4443, 0.0
        %4944 = vadd.xlane.f32.xlu0 %v4943
        %v4945 = vpop.xlane.xlu0 %4944
        %v4946 = vsel %vm1355, %v4444, 0.0
        %4947 = vadd.xlane.f32.xlu0 %v4946
        %v4948 = vpop.xlane.xlu0 %4947
        %v4949 = vsel %vm1355, %v4445, 0.0
        %4950 = vadd.xlane.f32.xlu0 %v4949
        %v4951 = vpop.xlane.xlu0 %4950
        %v4952 = vsel %vm1355, %v4446, 0.0
        %4953 = vadd.xlane.f32.xlu0 %v4952
        %v4954 = vpop.xlane.xlu0 %4953
        %v4955 = vsel %vm1355, %v4447, 0.0
        %4956 = vadd.xlane.f32.xlu0 %v4955
        %v4957 = vpop.xlane.xlu0 %4956
        %v4958 = vsel %vm1355, %v4448, 0.0
        %4959 = vadd.xlane.f32.xlu0 %v4958
        %v4960 = vpop.xlane.xlu0 %4959
        %v4961 = vsel %vm1355, %v4449, 0.0
        %4962 = vadd.xlane.f32.xlu0 %v4961
        %v4963 = vpop.xlane.xlu0 %4962
        %v4964 = vsel %vm1355, %v4450, 0.0
        %4965 = vadd.xlane.f32.xlu0 %v4964
        %v4966 = vpop.xlane.xlu0 %4965
        %v4967 = vsel %vm1355, %v4451, 0.0
        %4968 = vadd.xlane.f32.xlu0 %v4967
        %v4969 = vpop.xlane.xlu0 %4968
        %v4970 = vsel %vm1355, %v4452, 0.0
        %4971 = vadd.xlane.f32.xlu0 %v4970
        %v4972 = vpop.xlane.xlu0 %4971
        %v4973 = vsel %vm1355, %v4453, 0.0
        %4974 = vadd.xlane.f32.xlu0 %v4973
        %v4975 = vpop.xlane.xlu0 %4974
        %v4976 = vsel %vm1355, %v4454, 0.0
        %4977 = vadd.xlane.f32.xlu0 %v4976
        %v4978 = vpop.xlane.xlu0 %4977
        %v4979 = vsel %vm1355, %v4455, 0.0
        %4980 = vadd.xlane.f32.xlu0 %v4979
        %v4981 = vpop.xlane.xlu0 %4980
        %v4982 = vsel %vm1355, %v4456, 0.0
        %4983 = vadd.xlane.f32.xlu0 %v4982
        %v4984 = vpop.xlane.xlu0 %4983
        %v4985 = vsel %vm1355, %v4457, 0.0
        %4986 = vadd.xlane.f32.xlu0 %v4985
        %v4987 = vpop.xlane.xlu0 %4986
        %v4988 = vsel %vm1355, %v4458, 0.0
        %4989 = vadd.xlane.f32.xlu0 %v4988
        %v4990 = vpop.xlane.xlu0 %4989
        %v4991 = vsel %vm1355, %v4459, 0.0
        %4992 = vadd.xlane.f32.xlu0 %v4991
        %v4993 = vpop.xlane.xlu0 %4992
        %v4994 = vsel %vm1355, %v4460, 0.0
        %4995 = vadd.xlane.f32.xlu0 %v4994
        %v4996 = vpop.xlane.xlu0 %4995
        %v4997 = vsel %vm1355, %v4461, 0.0
        %4998 = vadd.xlane.f32.xlu0 %v4997
        %v4999 = vpop.xlane.xlu0 %4998
        %v5000 = vsel %vm1355, %v4462, 0.0
        %5001 = vadd.xlane.f32.xlu0 %v5000
        %v5002 = vpop.xlane.xlu0 %5001
        %v5003 = vsel %vm1355, %v4463, 0.0
        %5004 = vadd.xlane.f32.xlu0 %v5003
        %v5005 = vpop.xlane.xlu0 %5004
        %v5006 = vsel %vm1355, %v4464, 0.0
        %5007 = vadd.xlane.f32.xlu0 %v5006
        %v5008 = vpop.xlane.xlu0 %5007
        %v5009 = vsel %vm1355, %v4465, 0.0
        %5010 = vadd.xlane.f32.xlu0 %v5009
        %v5011 = vpop.xlane.xlu0 %5010
        %v5012 = vsel %vm1355, %v4466, 0.0
        %5013 = vadd.xlane.f32.xlu0 %v5012
        %v5014 = vpop.xlane.xlu0 %5013
        %v5015 = vsel %vm1355, %v4467, 0.0
        %5016 = vadd.xlane.f32.xlu0 %v5015
        %v5017 = vpop.xlane.xlu0 %5016
        %v5018 = vsel %vm1355, %v4468, 0.0
        %5019 = vadd.xlane.f32.xlu0 %v5018
        %v5020 = vpop.xlane.xlu0 %5019
        %v5021 = vsel %vm1355, %v4469, 0.0
        %5022 = vadd.xlane.f32.xlu0 %v5021
        %v5023 = vpop.xlane.xlu0 %5022
        %v5024 = vsel %vm1355, %v4470, 0.0
        %5025 = vadd.xlane.f32.xlu0 %v5024
        %v5026 = vpop.xlane.xlu0 %5025
        %v5027 = vsel %vm1355, %v4471, 0.0
        %5028 = vadd.xlane.f32.xlu0 %v5027
        %v5029 = vpop.xlane.xlu0 %5028
        %v5030 = vsel %vm1355, %v4472, 0.0
        %5031 = vadd.xlane.f32.xlu0 %v5030
        %v5032 = vpop.xlane.xlu0 %5031
        %v5033 = vsel %vm1355, %v4473, 0.0
        %5034 = vadd.xlane.f32.xlu0 %v5033
        %v5035 = vpop.xlane.xlu0 %5034
        %v5036 = vsel %vm1355, %v4474, 0.0
        %5037 = vadd.xlane.f32.xlu0 %v5036
        %v5038 = vpop.xlane.xlu0 %5037
        %v5039 = vsel %vm1355, %v4475, 0.0
        %5040 = vadd.xlane.f32.xlu0 %v5039
        %v5041 = vpop.xlane.xlu0 %5040
        %v5042 = vsel %vm1355, %v4476, 0.0
        %5043 = vadd.xlane.f32.xlu0 %v5042
        %v5044 = vpop.xlane.xlu0 %5043
        %v5045 = vsel %vm1355, %v4477, 0.0
        %5046 = vadd.xlane.f32.xlu0 %v5045
        %v5047 = vpop.xlane.xlu0 %5046
        %v5048 = vsel %vm1355, %v4478, 0.0
        %5049 = vadd.xlane.f32.xlu0 %v5048
        %v5050 = vpop.xlane.xlu0 %5049
        %v5051 = vsel %vm1355, %v4479, 0.0
        %5052 = vadd.xlane.f32.xlu0 %v5051
        %v5053 = vpop.xlane.xlu0 %5052
        %v5054 = vsel %vm1355, %v4480, 0.0
        %5055 = vadd.xlane.f32.xlu0 %v5054
        %v5056 = vpop.xlane.xlu0 %5055
        %v5057 = vsel %vm1355, %v4481, 0.0
        %5058 = vadd.xlane.f32.xlu0 %v5057
        %v5059 = vpop.xlane.xlu0 %5058
        %v5060 = vsel %vm1355, %v4482, 0.0
        %5061 = vadd.xlane.f32.xlu0 %v5060
        %v5062 = vpop.xlane.xlu0 %5061
        %v5063 = vsel %vm1355, %v4483, 0.0
        %5064 = vadd.xlane.f32.xlu0 %v5063
        %v5065 = vpop.xlane.xlu0 %5064
        %v5066 = vsel %vm1355, %v4484, 0.0
        %5067 = vadd.xlane.f32.xlu0 %v5066
        %v5068 = vpop.xlane.xlu0 %5067
        %v5069 = vsel %vm1355, %v4485, 0.0
        %5070 = vadd.xlane.f32.xlu0 %v5069
        %v5071 = vpop.xlane.xlu0 %5070
        %v5072 = vsel %vm1355, %v4486, 0.0
        %5073 = vadd.xlane.f32.xlu0 %v5072
        %v5074 = vpop.xlane.xlu0 %5073
        %v5075 = vsel %vm1355, %v4487, 0.0
        %5076 = vadd.xlane.f32.xlu0 %v5075
        %v5077 = vpop.xlane.xlu0 %5076
        %v5078 = vsel %vm1355, %v4488, 0.0
        %5079 = vadd.xlane.f32.xlu0 %v5078
        %v5080 = vpop.xlane.xlu0 %5079
        %v5081 = vsel %vm1355, %v4489, 0.0
        %5082 = vadd.xlane.f32.xlu0 %v5081
        %v5083 = vpop.xlane.xlu0 %5082
        %v5084 = vsel %vm1355, %v4490, 0.0
        %5085 = vadd.xlane.f32.xlu0 %v5084
        %v5086 = vpop.xlane.xlu0 %5085
        %v5087 = vsel %vm1355, %v4491, 0.0
        %5088 = vadd.xlane.f32.xlu0 %v5087
        %v5089 = vpop.xlane.xlu0 %5088
        %v5090 = vsel %vm1355, %v4492, 0.0
        %5091 = vadd.xlane.f32.xlu0 %v5090
        %v5092 = vpop.xlane.xlu0 %5091
        %v5093 = vsel %vm1355, %v4493, 0.0
        %5094 = vadd.xlane.f32.xlu0 %v5093
        %v5095 = vpop.xlane.xlu0 %5094
        %v5096 = vsel %vm1355, %v4494, 0.0
        %5097 = vadd.xlane.f32.xlu0 %v5096
        %v5098 = vpop.xlane.xlu0 %5097
        %v5099 = vsel %vm1355, %v4495, 0.0
        %5100 = vadd.xlane.f32.xlu0 %v5099
        %v5101 = vpop.xlane.xlu0 %5100
        %v5102 = vsel %vm1355, %v4496, 0.0
        %5103 = vadd.xlane.f32.xlu0 %v5102
        %v5104 = vpop.xlane.xlu0 %5103
        %v5105 = vsel %vm1355, %v4497, 0.0
        %5106 = vadd.xlane.f32.xlu0 %v5105
        %v5107 = vpop.xlane.xlu0 %5106
        %v5108 = vsel %vm1355, %v4498, 0.0
        %5109 = vadd.xlane.f32.xlu0 %v5108
        %v5110 = vpop.xlane.xlu0 %5109
        %v5111 = vsel %vm1355, %v4499, 0.0
        %5112 = vadd.xlane.f32.xlu0 %v5111
        %v5113 = vpop.xlane.xlu0 %5112
        %v5114 = vsel %vm1355, %v4500, 0.0
        %5115 = vadd.xlane.f32.xlu0 %v5114
        %v5116 = vpop.xlane.xlu0 %5115
        %v5117 = vsel %vm1355, %v4501, 0.0
        %5118 = vadd.xlane.f32.xlu0 %v5117
        %v5119 = vpop.xlane.xlu0 %5118
        %v5120 = vsel %vm1355, %v4502, 0.0
        %5121 = vadd.xlane.f32.xlu0 %v5120
        %v5122 = vpop.xlane.xlu0 %5121
        %v5123 = vsel %vm1355, %v4503, 0.0
        %5124 = vadd.xlane.f32.xlu0 %v5123
        %v5125 = vpop.xlane.xlu0 %5124
        %v5126 = vsel %vm1355, %v4504, 0.0
        %5127 = vadd.xlane.f32.xlu0 %v5126
        %v5128 = vpop.xlane.xlu0 %5127
        %v5129 = vsel %vm1355, %v4505, 0.0
        %5130 = vadd.xlane.f32.xlu0 %v5129
        %v5131 = vpop.xlane.xlu0 %5130
        %v5132 = vsel %vm1355, %v4506, 0.0
        %5133 = vadd.xlane.f32.xlu0 %v5132
        %v5134 = vpop.xlane.xlu0 %5133
        %v5135 = vsel %vm1355, %v4507, 0.0
        %5136 = vadd.xlane.f32.xlu0 %v5135
        %v5137 = vpop.xlane.xlu0 %5136
        %v5138 = vsel %vm1355, %v4508, 0.0
        %5139 = vadd.xlane.f32.xlu0 %v5138
        %v5140 = vpop.xlane.xlu0 %5139
        %v5141 = vsel %vm1355, %v4509, 0.0
        %5142 = vadd.xlane.f32.xlu0 %v5141
        %v5143 = vpop.xlane.xlu0 %5142
        %v5144 = vsel %vm1355, %v4510, 0.0
        %5145 = vadd.xlane.f32.xlu0 %v5144
        %v5146 = vpop.xlane.xlu0 %5145
        %v5147 = vsel %vm1355, %v4511, 0.0
        %5148 = vadd.xlane.f32.xlu0 %v5147
        %v5149 = vpop.xlane.xlu0 %5148
        %v5150 = vsel %vm1355, %v4512, 0.0
        %5151 = vadd.xlane.f32.xlu0 %v5150
        %v5152 = vpop.xlane.xlu0 %5151
        %v5153 = vsel %vm1355, %v4513, 0.0
        %5154 = vadd.xlane.f32.xlu0 %v5153
        %v5155 = vpop.xlane.xlu0 %5154
        %v5156 = vsel %vm1355, %v4514, 0.0
        %5157 = vadd.xlane.f32.xlu0 %v5156
        %v5158 = vpop.xlane.xlu0 %5157
        %v5159 = vsel %vm1355, %v4515, 0.0
        %5160 = vadd.xlane.f32.xlu0 %v5159
        %v5161 = vpop.xlane.xlu0 %5160
        %v5162 = vsel %vm1355, %v4516, 0.0
        %5163 = vadd.xlane.f32.xlu0 %v5162
        %v5164 = vpop.xlane.xlu0 %5163
        %v5165 = vsel %vm1355, %v4517, 0.0
        %5166 = vadd.xlane.f32.xlu0 %v5165
        %v5167 = vpop.xlane.xlu0 %5166
        %v5168 = vsel %vm1355, %v4518, 0.0
        %5169 = vadd.xlane.f32.xlu0 %v5168
        %v5170 = vpop.xlane.xlu0 %5169
        %v5171 = vsel %vm1355, %v4519, 0.0
        %5172 = vadd.xlane.f32.xlu0 %v5171
        %v5173 = vpop.xlane.xlu0 %5172
        %v5174 = vsel %vm1355, %v4520, 0.0
        %5175 = vadd.xlane.f32.xlu0 %v5174
        %v5176 = vpop.xlane.xlu0 %5175
        %v5177 = vsel %vm1355, %v4521, 0.0
        %5178 = vadd.xlane.f32.xlu0 %v5177
        %v5179 = vpop.xlane.xlu0 %5178
        %v5180 = vsel %vm1355, %v4522, 0.0
        %5181 = vadd.xlane.f32.xlu0 %v5180
        %v5182 = vpop.xlane.xlu0 %5181
        %v5183 = vsel %vm1355, %v4523, 0.0
        %5184 = vadd.xlane.f32.xlu0 %v5183
        %v5185 = vpop.xlane.xlu0 %5184
        %v5186 = vsel %vm1355, %v4524, 0.0
        %5187 = vadd.xlane.f32.xlu0 %v5186
        %v5188 = vpop.xlane.xlu0 %5187
        %v5189 = vsel %vm1355, %v4525, 0.0
        %5190 = vadd.xlane.f32.xlu0 %v5189
        %v5191 = vpop.xlane.xlu0 %5190
        %v5192 = vsel %vm1355, %v4526, 0.0
        %5193 = vadd.xlane.f32.xlu0 %v5192
        %v5194 = vpop.xlane.xlu0 %5193
        %v5195 = vsel %vm1355, %v4527, 0.0
        %5196 = vadd.xlane.f32.xlu0 %v5195
        %v5197 = vpop.xlane.xlu0 %5196
        %v5198 = vsel %vm1355, %v4528, 0.0
        %5199 = vadd.xlane.f32.xlu0 %v5198
        %v5200 = vpop.xlane.xlu0 %5199
        %v5201 = vsel %vm1355, %v4529, 0.0
        %5202 = vadd.xlane.f32.xlu0 %v5201
        %v5203 = vpop.xlane.xlu0 %5202
        %v5204 = vsel %vm1355, %v4530, 0.0
        %5205 = vadd.xlane.f32.xlu0 %v5204
        %v5206 = vpop.xlane.xlu0 %5205
        %v5207 = vsel %vm1355, %v4531, 0.0
        %5208 = vadd.xlane.f32.xlu0 %v5207
        %v5209 = vpop.xlane.xlu0 %5208
        %v5210 = vsel %vm1355, %v4532, 0.0
        %5211 = vadd.xlane.f32.xlu0 %v5210
        %v5212 = vpop.xlane.xlu0 %5211
        %v5213 = vsel %vm1355, %v4533, 0.0
        %5214 = vadd.xlane.f32.xlu0 %v5213
        %v5215 = vpop.xlane.xlu0 %5214
        %v5216 = vsel %vm1355, %v4534, 0.0
        %5217 = vadd.xlane.f32.xlu0 %v5216
        %v5218 = vpop.xlane.xlu0 %5217
        %v5219 = vsel %vm1355, %v4535, 0.0
        %5220 = vadd.xlane.f32.xlu0 %v5219
        %v5221 = vpop.xlane.xlu0 %5220
        %v5222 = vsel %vm1355, %v4536, 0.0
        %5223 = vadd.xlane.f32.xlu0 %v5222
        %v5224 = vpop.xlane.xlu0 %5223
        %v5225 = vsel %vm1355, %v4537, 0.0
        %5226 = vadd.xlane.f32.xlu0 %v5225
        %v5227 = vpop.xlane.xlu0 %5226
        %v5228 = vsel %vm1355, %v4538, 0.0
        %5229 = vadd.xlane.f32.xlu0 %v5228
        %v5230 = vpop.xlane.xlu0 %5229
        %v5231 = vsel %vm1355, %v4539, 0.0
        %5232 = vadd.xlane.f32.xlu0 %v5231
        %v5233 = vpop.xlane.xlu0 %5232
        %v5234 = vsel %vm1355, %v4540, 0.0
        %5235 = vadd.xlane.f32.xlu0 %v5234
        %v5236 = vpop.xlane.xlu0 %5235
        %v5237 = vsel %vm1355, %v4541, 0.0
        %5238 = vadd.xlane.f32.xlu0 %v5237
        %v5239 = vpop.xlane.xlu0 %5238
        %v5240 = vsel %vm1355, %v4542, 0.0
        %5241 = vadd.xlane.f32.xlu0 %v5240
        %v5242 = vpop.xlane.xlu0 %5241
        %v5243 = vsel %vm1355, %v4543, 0.0
        %5244 = vadd.xlane.f32.xlu0 %v5243
        %v5245 = vpop.xlane.xlu0 %5244
        %v5246 = vsel %vm1355, %v4544, 0.0
        %5247 = vadd.xlane.f32.xlu0 %v5246
        %v5248 = vpop.xlane.xlu0 %5247
        %v5249 = vsel %vm1355, %v4545, 0.0
        %5250 = vadd.xlane.f32.xlu0 %v5249
        %v5251 = vpop.xlane.xlu0 %5250
        %v5252 = vsel %vm1355, %v4546, 0.0
        %5253 = vadd.xlane.f32.xlu0 %v5252
        %v5254 = vpop.xlane.xlu0 %5253
        %v5255 = vsel %vm1355, %v4547, 0.0
        %5256 = vadd.xlane.f32.xlu0 %v5255
        %v5257 = vpop.xlane.xlu0 %5256
        %v5258 = vsel %vm1355, %v4548, 0.0
        %5259 = vadd.xlane.f32.xlu0 %v5258
        %v5260 = vpop.xlane.xlu0 %5259
        %v5261 = vsel %vm1355, %v4549, 0.0
        %5262 = vadd.xlane.f32.xlu0 %v5261
        %v5263 = vpop.xlane.xlu0 %5262
        %v5264 = vsel %vm1355, %v4550, 0.0
        %5265 = vadd.xlane.f32.xlu0 %v5264
        %v5266 = vpop.xlane.xlu0 %5265
        %v5267 = vsel %vm1355, %v4551, 0.0
        %5268 = vadd.xlane.f32.xlu0 %v5267
        %v5269 = vpop.xlane.xlu0 %5268
        %v5270 = vsel %vm1355, %v4552, 0.0
        %5271 = vadd.xlane.f32.xlu0 %v5270
        %v5272 = vpop.xlane.xlu0 %5271
        %v5273 = vsel %vm1355, %v4553, 0.0
        %5274 = vadd.xlane.f32.xlu0 %v5273
        %v5275 = vpop.xlane.xlu0 %5274
        %v5276 = vsel %vm1355, %v4554, 0.0
        %5277 = vadd.xlane.f32.xlu0 %v5276
        %v5278 = vpop.xlane.xlu0 %5277
        %v5279 = vsel %vm1355, %v4555, 0.0
        %5280 = vadd.xlane.f32.xlu0 %v5279
        %v5281 = vpop.xlane.xlu0 %5280
        %v5282 = vsel %vm1355, %v4556, 0.0
        %5283 = vadd.xlane.f32.xlu0 %v5282
        %v5284 = vpop.xlane.xlu0 %5283
        %v5285 = vsel %vm1355, %v4557, 0.0
        %5286 = vadd.xlane.f32.xlu0 %v5285
        %v5287 = vpop.xlane.xlu0 %5286
        %v5288 = vsel %vm1355, %v4558, 0.0
        %5289 = vadd.xlane.f32.xlu0 %v5288
        %v5290 = vpop.xlane.xlu0 %5289
        %v5291 = vsel %vm1355, %v4559, 0.0
        %5292 = vadd.xlane.f32.xlu0 %v5291
        %v5293 = vpop.xlane.xlu0 %5292
        %v5294 = vsel %vm1355, %v4560, 0.0
        %5295 = vadd.xlane.f32.xlu0 %v5294
        %v5296 = vpop.xlane.xlu0 %5295
        %v5297 = vsel %vm1355, %v4561, 0.0
        %5298 = vadd.xlane.f32.xlu0 %v5297
        %v5299 = vpop.xlane.xlu0 %5298
        %v5300 = vsel %vm1355, %v4562, 0.0
        %5301 = vadd.xlane.f32.xlu0 %v5300
        %v5302 = vpop.xlane.xlu0 %5301
        %v5303 = vsel %vm1355, %v4563, 0.0
        %5304 = vadd.xlane.f32.xlu0 %v5303
        %v5305 = vpop.xlane.xlu0 %5304
        %v5306 = vsel %vm1355, %v4564, 0.0
        %5307 = vadd.xlane.f32.xlu0 %v5306
        %v5308 = vpop.xlane.xlu0 %5307
        %v5309 = vsel %vm1355, %v4565, 0.0
        %5310 = vadd.xlane.f32.xlu0 %v5309
        %v5311 = vpop.xlane.xlu0 %5310
        %v5312 = vsel %vm1355, %v4566, 0.0
        %5313 = vadd.xlane.f32.xlu0 %v5312
        %v5314 = vpop.xlane.xlu0 %5313
        %v5315 = vsel %vm1355, %v4567, 0.0
        %5316 = vadd.xlane.f32.xlu0 %v5315
        %v5317 = vpop.xlane.xlu0 %5316
        %v5318 = vsel %vm1355, %v4568, 0.0
        %5319 = vadd.xlane.f32.xlu0 %v5318
        %v5320 = vpop.xlane.xlu0 %5319
        %v5321 = vsel %vm1355, %v4569, 0.0
        %5322 = vadd.xlane.f32.xlu0 %v5321
        %v5323 = vpop.xlane.xlu0 %5322
        %v5324 = vsel %vm1355, %v4570, 0.0
        %5325 = vadd.xlane.f32.xlu0 %v5324
        %v5326 = vpop.xlane.xlu0 %5325
        %v5327 = vsel %vm1355, %v4571, 0.0
        %5328 = vadd.xlane.f32.xlu0 %v5327
        %v5329 = vpop.xlane.xlu0 %5328
        %v5330 = vsel %vm1355, %v4572, 0.0
        %5331 = vadd.xlane.f32.xlu0 %v5330
        %v5332 = vpop.xlane.xlu0 %5331
        %v5333 = vsel %vm1355, %v4573, 0.0
        %5334 = vadd.xlane.f32.xlu0 %v5333
        %v5335 = vpop.xlane.xlu0 %5334
        %v5336 = vsel %vm1355, %v4574, 0.0
        %5337 = vadd.xlane.f32.xlu0 %v5336
        %v5338 = vpop.xlane.xlu0 %5337
        %v5339 = vsel %vm1355, %v4575, 0.0
        %5340 = vadd.xlane.f32.xlu0 %v5339
        %v5341 = vpop.xlane.xlu0 %5340
        %v5342 = vsel %vm1355, %v4576, 0.0
        %5343 = vadd.xlane.f32.xlu0 %v5342
        %v5344 = vpop.xlane.xlu0 %5343
        %v5601 = vlaneseq
        %v5602 = vand.u32 %v5601, 127
        %v5603 = vlaneseq
        %v5604 = vshrl.u32 %v5603, 7
        %v5605 = vsub.s32 %v5602, %v5604
        %v5606 = vrot.slane %v4579, %v5605
        %v5607 = vlaneseq
        %v5608 = vshrl.u32 %v5607, 7
        %v5609 = vsub.s32 %v5602, %v5608
        %v5610 = vrot.slane %v4582, %v5609
        %v5611 = vlaneseq
        %v5612 = vshrl.u32 %v5611, 7
        %v5613 = vsub.s32 %v5602, %v5612
        %v5614 = vrot.slane %v4585, %v5613
        %v5615 = vlaneseq
        %v5616 = vshrl.u32 %v5615, 7
        %v5617 = vsub.s32 %v5602, %v5616
        %v5618 = vrot.slane %v4588, %v5617
        %v5619 = vlaneseq
        %v5620 = vshrl.u32 %v5619, 7
        %v5621 = vsub.s32 %v5602, %v5620
        %v5622 = vrot.slane %v4591, %v5621
        %v5623 = vlaneseq
        %v5624 = vshrl.u32 %v5623, 7
        %v5625 = vsub.s32 %v5602, %v5624
        %v5626 = vrot.slane %v4594, %v5625
        %v5627 = vlaneseq
        %v5628 = vshrl.u32 %v5627, 7
        %v5629 = vsub.s32 %v5602, %v5628
        %v5630 = vrot.slane %v4597, %v5629
        %v5631 = vlaneseq
        %v5632 = vshrl.u32 %v5631, 7
        %v5633 = vsub.s32 %v5602, %v5632
        %v5634 = vrot.slane %v4600, %v5633
        %v5635 = vlaneseq
        %v5636 = vshrl.u32 %v5635, 7
        %v5637 = vsub.s32 %v5602, %v5636
        %v5638 = vrot.slane %v4603, %v5637
        %v5639 = vlaneseq
        %v5640 = vshrl.u32 %v5639, 7
        %v5641 = vsub.s32 %v5602, %v5640
        %v5642 = vrot.slane %v4606, %v5641
        %v5643 = vlaneseq
        %v5644 = vshrl.u32 %v5643, 7
        %v5645 = vsub.s32 %v5602, %v5644
        %v5646 = vrot.slane %v4609, %v5645
        %v5647 = vlaneseq
        %v5648 = vshrl.u32 %v5647, 7
        %v5649 = vsub.s32 %v5602, %v5648
        %v5650 = vrot.slane %v4612, %v5649
        %v5651 = vlaneseq
        %v5652 = vshrl.u32 %v5651, 7
        %v5653 = vsub.s32 %v5602, %v5652
        %v5654 = vrot.slane %v4615, %v5653
        %v5655 = vlaneseq
        %v5656 = vshrl.u32 %v5655, 7
        %v5657 = vsub.s32 %v5602, %v5656
        %v5658 = vrot.slane %v4618, %v5657
        %v5659 = vlaneseq
        %v5660 = vshrl.u32 %v5659, 7
        %v5661 = vsub.s32 %v5602, %v5660
        %v5662 = vrot.slane %v4621, %v5661
        %v5663 = vlaneseq
        %v5664 = vshrl.u32 %v5663, 7
        %v5665 = vsub.s32 %v5602, %v5664
        %v5666 = vrot.slane %v4624, %v5665
        %v5667 = vlaneseq
        %v5668 = vshrl.u32 %v5667, 7
        %v5669 = vsub.s32 %v5602, %v5668
        %v5670 = vrot.slane %v4627, %v5669
        %v5671 = vlaneseq
        %v5672 = vshrl.u32 %v5671, 7
        %v5673 = vsub.s32 %v5602, %v5672
        %v5674 = vrot.slane %v4630, %v5673
        %v5675 = vlaneseq
        %v5676 = vshrl.u32 %v5675, 7
        %v5677 = vsub.s32 %v5602, %v5676
        %v5678 = vrot.slane %v4633, %v5677
        %v5679 = vlaneseq
        %v5680 = vshrl.u32 %v5679, 7
        %v5681 = vsub.s32 %v5602, %v5680
        %v5682 = vrot.slane %v4636, %v5681
        %v5683 = vlaneseq
        %v5684 = vshrl.u32 %v5683, 7
        %v5685 = vsub.s32 %v5602, %v5684
        %v5686 = vrot.slane %v4639, %v5685
        %v5687 = vlaneseq
        %v5688 = vshrl.u32 %v5687, 7
        %v5689 = vsub.s32 %v5602, %v5688
        %v5690 = vrot.slane %v4642, %v5689
        %v5691 = vlaneseq
        %v5692 = vshrl.u32 %v5691, 7
        %v5693 = vsub.s32 %v5602, %v5692
        %v5694 = vrot.slane %v4645, %v5693
        %v5695 = vlaneseq
        %v5696 = vshrl.u32 %v5695, 7
        %v5697 = vsub.s32 %v5602, %v5696
        %v5698 = vrot.slane %v4648, %v5697
        %v5699 = vlaneseq
        %v5700 = vshrl.u32 %v5699, 7
        %v5701 = vsub.s32 %v5602, %v5700
        %v5702 = vrot.slane %v4651, %v5701
        %v5703 = vlaneseq
        %v5704 = vshrl.u32 %v5703, 7
        %v5705 = vsub.s32 %v5602, %v5704
        %v5706 = vrot.slane %v4654, %v5705
        %v5707 = vlaneseq
        %v5708 = vshrl.u32 %v5707, 7
        %v5709 = vsub.s32 %v5602, %v5708
        %v5710 = vrot.slane %v4657, %v5709
        %v5711 = vlaneseq
        %v5712 = vshrl.u32 %v5711, 7
        %v5713 = vsub.s32 %v5602, %v5712
        %v5714 = vrot.slane %v4660, %v5713
        %v5715 = vlaneseq
        %v5716 = vshrl.u32 %v5715, 7
        %v5717 = vsub.s32 %v5602, %v5716
        %v5718 = vrot.slane %v4663, %v5717
        %v5719 = vlaneseq
        %v5720 = vshrl.u32 %v5719, 7
        %v5721 = vsub.s32 %v5602, %v5720
        %v5722 = vrot.slane %v4666, %v5721
        %v5723 = vlaneseq
        %v5724 = vshrl.u32 %v5723, 7
        %v5725 = vsub.s32 %v5602, %v5724
        %v5726 = vrot.slane %v4669, %v5725
        %v5727 = vlaneseq
        %v5728 = vshrl.u32 %v5727, 7
        %v5729 = vsub.s32 %v5602, %v5728
        %v5730 = vrot.slane %v4672, %v5729
        %v5731 = vlaneseq
        %v5732 = vshrl.u32 %v5731, 7
        %v5733 = vsub.s32 %v5602, %v5732
        %v5734 = vrot.slane %v4675, %v5733
        %v5735 = vlaneseq
        %v5736 = vshrl.u32 %v5735, 7
        %v5737 = vsub.s32 %v5602, %v5736
        %v5738 = vrot.slane %v4678, %v5737
        %v5739 = vlaneseq
        %v5740 = vshrl.u32 %v5739, 7
        %v5741 = vsub.s32 %v5602, %v5740
        %v5742 = vrot.slane %v4681, %v5741
        %v5743 = vlaneseq
        %v5744 = vshrl.u32 %v5743, 7
        %v5745 = vsub.s32 %v5602, %v5744
        %v5746 = vrot.slane %v4684, %v5745
        %v5747 = vlaneseq
        %v5748 = vshrl.u32 %v5747, 7
        %v5749 = vsub.s32 %v5602, %v5748
        %v5750 = vrot.slane %v4687, %v5749
        %v5751 = vlaneseq
        %v5752 = vshrl.u32 %v5751, 7
        %v5753 = vsub.s32 %v5602, %v5752
        %v5754 = vrot.slane %v4690, %v5753
        %v5755 = vlaneseq
        %v5756 = vshrl.u32 %v5755, 7
        %v5757 = vsub.s32 %v5602, %v5756
        %v5758 = vrot.slane %v4693, %v5757
        %v5759 = vlaneseq
        %v5760 = vshrl.u32 %v5759, 7
        %v5761 = vsub.s32 %v5602, %v5760
        %v5762 = vrot.slane %v4696, %v5761
        %v5763 = vlaneseq
        %v5764 = vshrl.u32 %v5763, 7
        %v5765 = vsub.s32 %v5602, %v5764
        %v5766 = vrot.slane %v4699, %v5765
        %v5767 = vlaneseq
        %v5768 = vshrl.u32 %v5767, 7
        %v5769 = vsub.s32 %v5602, %v5768
        %v5770 = vrot.slane %v4702, %v5769
        %v5771 = vlaneseq
        %v5772 = vshrl.u32 %v5771, 7
        %v5773 = vsub.s32 %v5602, %v5772
        %v5774 = vrot.slane %v4705, %v5773
        %v5775 = vlaneseq
        %v5776 = vshrl.u32 %v5775, 7
        %v5777 = vsub.s32 %v5602, %v5776
        %v5778 = vrot.slane %v4708, %v5777
        %v5779 = vlaneseq
        %v5780 = vshrl.u32 %v5779, 7
        %v5781 = vsub.s32 %v5602, %v5780
        %v5782 = vrot.slane %v4711, %v5781
        %v5783 = vlaneseq
        %v5784 = vshrl.u32 %v5783, 7
        %v5785 = vsub.s32 %v5602, %v5784
        %v5786 = vrot.slane %v4714, %v5785
        %v5787 = vlaneseq
        %v5788 = vshrl.u32 %v5787, 7
        %v5789 = vsub.s32 %v5602, %v5788
        %v5790 = vrot.slane %v4717, %v5789
        %v5791 = vlaneseq
        %v5792 = vshrl.u32 %v5791, 7
        %v5793 = vsub.s32 %v5602, %v5792
        %v5794 = vrot.slane %v4720, %v5793
        %v5795 = vlaneseq
        %v5796 = vshrl.u32 %v5795, 7
        %v5797 = vsub.s32 %v5602, %v5796
        %v5798 = vrot.slane %v4723, %v5797
        %v5799 = vlaneseq
        %v5800 = vshrl.u32 %v5799, 7
        %v5801 = vsub.s32 %v5602, %v5800
        %v5802 = vrot.slane %v4726, %v5801
        %v5803 = vlaneseq
        %v5804 = vshrl.u32 %v5803, 7
        %v5805 = vsub.s32 %v5602, %v5804
        %v5806 = vrot.slane %v4729, %v5805
        %v5807 = vlaneseq
        %v5808 = vshrl.u32 %v5807, 7
        %v5809 = vsub.s32 %v5602, %v5808
        %v5810 = vrot.slane %v4732, %v5809
        %v5811 = vlaneseq
        %v5812 = vshrl.u32 %v5811, 7
        %v5813 = vsub.s32 %v5602, %v5812
        %v5814 = vrot.slane %v4735, %v5813
        %v5815 = vlaneseq
        %v5816 = vshrl.u32 %v5815, 7
        %v5817 = vsub.s32 %v5602, %v5816
        %v5818 = vrot.slane %v4738, %v5817
        %v5819 = vlaneseq
        %v5820 = vshrl.u32 %v5819, 7
        %v5821 = vsub.s32 %v5602, %v5820
        %v5822 = vrot.slane %v4741, %v5821
        %v5823 = vlaneseq
        %v5824 = vshrl.u32 %v5823, 7
        %v5825 = vsub.s32 %v5602, %v5824
        %v5826 = vrot.slane %v4744, %v5825
        %v5827 = vlaneseq
        %v5828 = vshrl.u32 %v5827, 7
        %v5829 = vsub.s32 %v5602, %v5828
        %v5830 = vrot.slane %v4747, %v5829
        %v5831 = vlaneseq
        %v5832 = vshrl.u32 %v5831, 7
        %v5833 = vsub.s32 %v5602, %v5832
        %v5834 = vrot.slane %v4750, %v5833
        %v5835 = vlaneseq
        %v5836 = vshrl.u32 %v5835, 7
        %v5837 = vsub.s32 %v5602, %v5836
        %v5838 = vrot.slane %v4753, %v5837
        %v5839 = vlaneseq
        %v5840 = vshrl.u32 %v5839, 7
        %v5841 = vsub.s32 %v5602, %v5840
        %v5842 = vrot.slane %v4756, %v5841
        %v5843 = vlaneseq
        %v5844 = vshrl.u32 %v5843, 7
        %v5845 = vsub.s32 %v5602, %v5844
        %v5846 = vrot.slane %v4759, %v5845
        %v5847 = vlaneseq
        %v5848 = vshrl.u32 %v5847, 7
        %v5849 = vsub.s32 %v5602, %v5848
        %v5850 = vrot.slane %v4762, %v5849
        %v5851 = vlaneseq
        %v5852 = vshrl.u32 %v5851, 7
        %v5853 = vsub.s32 %v5602, %v5852
        %v5854 = vrot.slane %v4765, %v5853
        %v5855 = vlaneseq
        %v5856 = vshrl.u32 %v5855, 7
        %v5857 = vsub.s32 %v5602, %v5856
        %v5858 = vrot.slane %v4768, %v5857
        %v5859 = vlaneseq
        %v5860 = vshrl.u32 %v5859, 7
        %v5861 = vsub.s32 %v5602, %v5860
        %v5862 = vrot.slane %v4771, %v5861
        %v5863 = vlaneseq
        %v5864 = vshrl.u32 %v5863, 7
        %v5865 = vsub.s32 %v5602, %v5864
        %v5866 = vrot.slane %v4774, %v5865
        %v5867 = vlaneseq
        %v5868 = vshrl.u32 %v5867, 7
        %v5869 = vsub.s32 %v5602, %v5868
        %v5870 = vrot.slane %v4777, %v5869
        %v5871 = vlaneseq
        %v5872 = vshrl.u32 %v5871, 7
        %v5873 = vsub.s32 %v5602, %v5872
        %v5874 = vrot.slane %v4780, %v5873
        %v5875 = vlaneseq
        %v5876 = vshrl.u32 %v5875, 7
        %v5877 = vsub.s32 %v5602, %v5876
        %v5878 = vrot.slane %v4783, %v5877
        %v5879 = vlaneseq
        %v5880 = vshrl.u32 %v5879, 7
        %v5881 = vsub.s32 %v5602, %v5880
        %v5882 = vrot.slane %v4786, %v5881
        %v5883 = vlaneseq
        %v5884 = vshrl.u32 %v5883, 7
        %v5885 = vsub.s32 %v5602, %v5884
        %v5886 = vrot.slane %v4789, %v5885
        %v5887 = vlaneseq
        %v5888 = vshrl.u32 %v5887, 7
        %v5889 = vsub.s32 %v5602, %v5888
        %v5890 = vrot.slane %v4792, %v5889
        %v5891 = vlaneseq
        %v5892 = vshrl.u32 %v5891, 7
        %v5893 = vsub.s32 %v5602, %v5892
        %v5894 = vrot.slane %v4795, %v5893
        %v5895 = vlaneseq
        %v5896 = vshrl.u32 %v5895, 7
        %v5897 = vsub.s32 %v5602, %v5896
        %v5898 = vrot.slane %v4798, %v5897
        %v5899 = vlaneseq
        %v5900 = vshrl.u32 %v5899, 7
        %v5901 = vsub.s32 %v5602, %v5900
        %v5902 = vrot.slane %v4801, %v5901
        %v5903 = vlaneseq
        %v5904 = vshrl.u32 %v5903, 7
        %v5905 = vsub.s32 %v5602, %v5904
        %v5906 = vrot.slane %v4804, %v5905
        %v5907 = vlaneseq
        %v5908 = vshrl.u32 %v5907, 7
        %v5909 = vsub.s32 %v5602, %v5908
        %v5910 = vrot.slane %v4807, %v5909
        %v5911 = vlaneseq
        %v5912 = vshrl.u32 %v5911, 7
        %v5913 = vsub.s32 %v5602, %v5912
        %v5914 = vrot.slane %v4810, %v5913
        %v5915 = vlaneseq
        %v5916 = vshrl.u32 %v5915, 7
        %v5917 = vsub.s32 %v5602, %v5916
        %v5918 = vrot.slane %v4813, %v5917
        %v5919 = vlaneseq
        %v5920 = vshrl.u32 %v5919, 7
        %v5921 = vsub.s32 %v5602, %v5920
        %v5922 = vrot.slane %v4816, %v5921
        %v5923 = vlaneseq
        %v5924 = vshrl.u32 %v5923, 7
        %v5925 = vsub.s32 %v5602, %v5924
        %v5926 = vrot.slane %v4819, %v5925
        %v5927 = vlaneseq
        %v5928 = vshrl.u32 %v5927, 7
        %v5929 = vsub.s32 %v5602, %v5928
        %v5930 = vrot.slane %v4822, %v5929
        %v5931 = vlaneseq
        %v5932 = vshrl.u32 %v5931, 7
        %v5933 = vsub.s32 %v5602, %v5932
        %v5934 = vrot.slane %v4825, %v5933
        %v5935 = vlaneseq
        %v5936 = vshrl.u32 %v5935, 7
        %v5937 = vsub.s32 %v5602, %v5936
        %v5938 = vrot.slane %v4828, %v5937
        %v5939 = vlaneseq
        %v5940 = vshrl.u32 %v5939, 7
        %v5941 = vsub.s32 %v5602, %v5940
        %v5942 = vrot.slane %v4831, %v5941
        %v5943 = vlaneseq
        %v5944 = vshrl.u32 %v5943, 7
        %v5945 = vsub.s32 %v5602, %v5944
        %v5946 = vrot.slane %v4834, %v5945
        %v5947 = vlaneseq
        %v5948 = vshrl.u32 %v5947, 7
        %v5949 = vsub.s32 %v5602, %v5948
        %v5950 = vrot.slane %v4837, %v5949
        %v5951 = vlaneseq
        %v5952 = vshrl.u32 %v5951, 7
        %v5953 = vsub.s32 %v5602, %v5952
        %v5954 = vrot.slane %v4840, %v5953
        %v5955 = vlaneseq
        %v5956 = vshrl.u32 %v5955, 7
        %v5957 = vsub.s32 %v5602, %v5956
        %v5958 = vrot.slane %v4843, %v5957
        %v5959 = vlaneseq
        %v5960 = vshrl.u32 %v5959, 7
        %v5961 = vsub.s32 %v5602, %v5960
        %v5962 = vrot.slane %v4846, %v5961
        %v5963 = vlaneseq
        %v5964 = vshrl.u32 %v5963, 7
        %v5965 = vsub.s32 %v5602, %v5964
        %v5966 = vrot.slane %v4849, %v5965
        %v5967 = vlaneseq
        %v5968 = vshrl.u32 %v5967, 7
        %v5969 = vsub.s32 %v5602, %v5968
        %v5970 = vrot.slane %v4852, %v5969
        %v5971 = vlaneseq
        %v5972 = vshrl.u32 %v5971, 7
        %v5973 = vsub.s32 %v5602, %v5972
        %v5974 = vrot.slane %v4855, %v5973
        %v5975 = vlaneseq
        %v5976 = vshrl.u32 %v5975, 7
        %v5977 = vsub.s32 %v5602, %v5976
        %v5978 = vrot.slane %v4858, %v5977
        %v5979 = vlaneseq
        %v5980 = vshrl.u32 %v5979, 7
        %v5981 = vsub.s32 %v5602, %v5980
        %v5982 = vrot.slane %v4861, %v5981
        %v5983 = vlaneseq
        %v5984 = vshrl.u32 %v5983, 7
        %v5985 = vsub.s32 %v5602, %v5984
        %v5986 = vrot.slane %v4864, %v5985
        %v5987 = vlaneseq
        %v5988 = vshrl.u32 %v5987, 7
        %v5989 = vsub.s32 %v5602, %v5988
        %v5990 = vrot.slane %v4867, %v5989
        %v5991 = vlaneseq
        %v5992 = vshrl.u32 %v5991, 7
        %v5993 = vsub.s32 %v5602, %v5992
        %v5994 = vrot.slane %v4870, %v5993
        %v5995 = vlaneseq
        %v5996 = vshrl.u32 %v5995, 7
        %v5997 = vsub.s32 %v5602, %v5996
        %v5998 = vrot.slane %v4873, %v5997
        %v5999 = vlaneseq
        %v6000 = vshrl.u32 %v5999, 7
        %v6001 = vsub.s32 %v5602, %v6000
        %v6002 = vrot.slane %v4876, %v6001
        %v6003 = vlaneseq
        %v6004 = vshrl.u32 %v6003, 7
        %v6005 = vsub.s32 %v5602, %v6004
        %v6006 = vrot.slane %v4879, %v6005
        %v6007 = vlaneseq
        %v6008 = vshrl.u32 %v6007, 7
        %v6009 = vsub.s32 %v5602, %v6008
        %v6010 = vrot.slane %v4882, %v6009
        %v6011 = vlaneseq
        %v6012 = vshrl.u32 %v6011, 7
        %v6013 = vsub.s32 %v5602, %v6012
        %v6014 = vrot.slane %v4885, %v6013
        %v6015 = vlaneseq
        %v6016 = vshrl.u32 %v6015, 7
        %v6017 = vsub.s32 %v5602, %v6016
        %v6018 = vrot.slane %v4888, %v6017
        %v6019 = vlaneseq
        %v6020 = vshrl.u32 %v6019, 7
        %v6021 = vsub.s32 %v5602, %v6020
        %v6022 = vrot.slane %v4891, %v6021
        %v6023 = vlaneseq
        %v6024 = vshrl.u32 %v6023, 7
        %v6025 = vsub.s32 %v5602, %v6024
        %v6026 = vrot.slane %v4894, %v6025
        %v6027 = vlaneseq
        %v6028 = vshrl.u32 %v6027, 7
        %v6029 = vsub.s32 %v5602, %v6028
        %v6030 = vrot.slane %v4897, %v6029
        %v6031 = vlaneseq
        %v6032 = vshrl.u32 %v6031, 7
        %v6033 = vsub.s32 %v5602, %v6032
        %v6034 = vrot.slane %v4900, %v6033
        %v6035 = vlaneseq
        %v6036 = vshrl.u32 %v6035, 7
        %v6037 = vsub.s32 %v5602, %v6036
        %v6038 = vrot.slane %v4903, %v6037
        %v6039 = vlaneseq
        %v6040 = vshrl.u32 %v6039, 7
        %v6041 = vsub.s32 %v5602, %v6040
        %v6042 = vrot.slane %v4906, %v6041
        %v6043 = vlaneseq
        %v6044 = vshrl.u32 %v6043, 7
        %v6045 = vsub.s32 %v5602, %v6044
        %v6046 = vrot.slane %v4909, %v6045
        %v6047 = vlaneseq
        %v6048 = vshrl.u32 %v6047, 7
        %v6049 = vsub.s32 %v5602, %v6048
        %v6050 = vrot.slane %v4912, %v6049
        %v6051 = vlaneseq
        %v6052 = vshrl.u32 %v6051, 7
        %v6053 = vsub.s32 %v5602, %v6052
        %v6054 = vrot.slane %v4915, %v6053
        %v6055 = vlaneseq
        %v6056 = vshrl.u32 %v6055, 7
        %v6057 = vsub.s32 %v5602, %v6056
        %v6058 = vrot.slane %v4918, %v6057
        %v6059 = vlaneseq
        %v6060 = vshrl.u32 %v6059, 7
        %v6061 = vsub.s32 %v5602, %v6060
        %v6062 = vrot.slane %v4921, %v6061
        %v6063 = vlaneseq
        %v6064 = vshrl.u32 %v6063, 7
        %v6065 = vsub.s32 %v5602, %v6064
        %v6066 = vrot.slane %v4924, %v6065
        %v6067 = vlaneseq
        %v6068 = vshrl.u32 %v6067, 7
        %v6069 = vsub.s32 %v5602, %v6068
        %v6070 = vrot.slane %v4927, %v6069
        %v6071 = vlaneseq
        %v6072 = vshrl.u32 %v6071, 7
        %v6073 = vsub.s32 %v5602, %v6072
        %v6074 = vrot.slane %v4930, %v6073
        %v6075 = vlaneseq
        %v6076 = vshrl.u32 %v6075, 7
        %v6077 = vsub.s32 %v5602, %v6076
        %v6078 = vrot.slane %v4933, %v6077
        %v6079 = vlaneseq
        %v6080 = vshrl.u32 %v6079, 7
        %v6081 = vsub.s32 %v5602, %v6080
        %v6082 = vrot.slane %v4936, %v6081
        %v6083 = vlaneseq
        %v6084 = vshrl.u32 %v6083, 7
        %v6085 = vsub.s32 %v5602, %v6084
        %v6086 = vrot.slane %v4939, %v6085
        %v6087 = vlaneseq
        %v6088 = vshrl.u32 %v6087, 7
        %v6089 = vsub.s32 %v5602, %v6088
        %v6090 = vrot.slane %v4942, %v6089
        %v6091 = vlaneseq
        %v6092 = vshrl.u32 %v6091, 7
        %v6093 = vsub.s32 %v5602, %v6092
        %v6094 = vrot.slane %v4945, %v6093
        %v6095 = vlaneseq
        %v6096 = vshrl.u32 %v6095, 7
        %v6097 = vsub.s32 %v5602, %v6096
        %v6098 = vrot.slane %v4948, %v6097
        %v6099 = vlaneseq
        %v6100 = vshrl.u32 %v6099, 7
        %v6101 = vsub.s32 %v5602, %v6100
        %v6102 = vrot.slane %v4951, %v6101
        %v6103 = vlaneseq
        %v6104 = vshrl.u32 %v6103, 7
        %v6105 = vsub.s32 %v5602, %v6104
        %v6106 = vrot.slane %v4954, %v6105
        %v6107 = vlaneseq
        %v6108 = vshrl.u32 %v6107, 7
        %v6109 = vsub.s32 %v5602, %v6108
        %v6110 = vrot.slane %v4957, %v6109
        %v6111 = vlaneseq
        %v6112 = vshrl.u32 %v6111, 7
        %v6113 = vsub.s32 %v5602, %v6112
        %v6114 = vrot.slane %v4960, %v6113
        %v6115 = vlaneseq
        %v6116 = vshrl.u32 %v6115, 7
        %v6117 = vsub.s32 %v5602, %v6116
        %v6118 = vrot.slane %v4963, %v6117
        %v6119 = vlaneseq
        %v6120 = vshrl.u32 %v6119, 7
        %v6121 = vsub.s32 %v5602, %v6120
        %v6122 = vrot.slane %v4966, %v6121
        %v6123 = vlaneseq
        %v6124 = vshrl.u32 %v6123, 7
        %v6125 = vsub.s32 %v5602, %v6124
        %v6126 = vrot.slane %v4969, %v6125
        %v6127 = vlaneseq
        %v6128 = vshrl.u32 %v6127, 7
        %v6129 = vsub.s32 %v5602, %v6128
        %v6130 = vrot.slane %v4972, %v6129
        %v6131 = vlaneseq
        %v6132 = vshrl.u32 %v6131, 7
        %v6133 = vsub.s32 %v5602, %v6132
        %v6134 = vrot.slane %v4975, %v6133
        %v6135 = vlaneseq
        %v6136 = vshrl.u32 %v6135, 7
        %v6137 = vsub.s32 %v5602, %v6136
        %v6138 = vrot.slane %v4978, %v6137
        %v6139 = vlaneseq
        %v6140 = vshrl.u32 %v6139, 7
        %v6141 = vsub.s32 %v5602, %v6140
        %v6142 = vrot.slane %v4981, %v6141
        %v6143 = vlaneseq
        %v6144 = vshrl.u32 %v6143, 7
        %v6145 = vsub.s32 %v5602, %v6144
        %v6146 = vrot.slane %v4984, %v6145
        %v6147 = vlaneseq
        %v6148 = vshrl.u32 %v6147, 7
        %v6149 = vsub.s32 %v5602, %v6148
        %v6150 = vrot.slane %v4987, %v6149
        %v6151 = vlaneseq
        %v6152 = vshrl.u32 %v6151, 7
        %v6153 = vsub.s32 %v5602, %v6152
        %v6154 = vrot.slane %v4990, %v6153
        %v6155 = vlaneseq
        %v6156 = vshrl.u32 %v6155, 7
        %v6157 = vsub.s32 %v5602, %v6156
        %v6158 = vrot.slane %v4993, %v6157
        %v6159 = vlaneseq
        %v6160 = vshrl.u32 %v6159, 7
        %v6161 = vsub.s32 %v5602, %v6160
        %v6162 = vrot.slane %v4996, %v6161
        %v6163 = vlaneseq
        %v6164 = vshrl.u32 %v6163, 7
        %v6165 = vsub.s32 %v5602, %v6164
        %v6166 = vrot.slane %v4999, %v6165
        %v6167 = vlaneseq
        %v6168 = vshrl.u32 %v6167, 7
        %v6169 = vsub.s32 %v5602, %v6168
        %v6170 = vrot.slane %v5002, %v6169
        %v6171 = vlaneseq
        %v6172 = vshrl.u32 %v6171, 7
        %v6173 = vsub.s32 %v5602, %v6172
        %v6174 = vrot.slane %v5005, %v6173
        %v6175 = vlaneseq
        %v6176 = vshrl.u32 %v6175, 7
        %v6177 = vsub.s32 %v5602, %v6176
        %v6178 = vrot.slane %v5008, %v6177
        %v6179 = vlaneseq
        %v6180 = vshrl.u32 %v6179, 7
        %v6181 = vsub.s32 %v5602, %v6180
        %v6182 = vrot.slane %v5011, %v6181
        %v6183 = vlaneseq
        %v6184 = vshrl.u32 %v6183, 7
        %v6185 = vsub.s32 %v5602, %v6184
        %v6186 = vrot.slane %v5014, %v6185
        %v6187 = vlaneseq
        %v6188 = vshrl.u32 %v6187, 7
        %v6189 = vsub.s32 %v5602, %v6188
        %v6190 = vrot.slane %v5017, %v6189
        %v6191 = vlaneseq
        %v6192 = vshrl.u32 %v6191, 7
        %v6193 = vsub.s32 %v5602, %v6192
        %v6194 = vrot.slane %v5020, %v6193
        %v6195 = vlaneseq
        %v6196 = vshrl.u32 %v6195, 7
        %v6197 = vsub.s32 %v5602, %v6196
        %v6198 = vrot.slane %v5023, %v6197
        %v6199 = vlaneseq
        %v6200 = vshrl.u32 %v6199, 7
        %v6201 = vsub.s32 %v5602, %v6200
        %v6202 = vrot.slane %v5026, %v6201
        %v6203 = vlaneseq
        %v6204 = vshrl.u32 %v6203, 7
        %v6205 = vsub.s32 %v5602, %v6204
        %v6206 = vrot.slane %v5029, %v6205
        %v6207 = vlaneseq
        %v6208 = vshrl.u32 %v6207, 7
        %v6209 = vsub.s32 %v5602, %v6208
        %v6210 = vrot.slane %v5032, %v6209
        %v6211 = vlaneseq
        %v6212 = vshrl.u32 %v6211, 7
        %v6213 = vsub.s32 %v5602, %v6212
        %v6214 = vrot.slane %v5035, %v6213
        %v6215 = vlaneseq
        %v6216 = vshrl.u32 %v6215, 7
        %v6217 = vsub.s32 %v5602, %v6216
        %v6218 = vrot.slane %v5038, %v6217
        %v6219 = vlaneseq
        %v6220 = vshrl.u32 %v6219, 7
        %v6221 = vsub.s32 %v5602, %v6220
        %v6222 = vrot.slane %v5041, %v6221
        %v6223 = vlaneseq
        %v6224 = vshrl.u32 %v6223, 7
        %v6225 = vsub.s32 %v5602, %v6224
        %v6226 = vrot.slane %v5044, %v6225
        %v6227 = vlaneseq
        %v6228 = vshrl.u32 %v6227, 7
        %v6229 = vsub.s32 %v5602, %v6228
        %v6230 = vrot.slane %v5047, %v6229
        %v6231 = vlaneseq
        %v6232 = vshrl.u32 %v6231, 7
        %v6233 = vsub.s32 %v5602, %v6232
        %v6234 = vrot.slane %v5050, %v6233
        %v6235 = vlaneseq
        %v6236 = vshrl.u32 %v6235, 7
        %v6237 = vsub.s32 %v5602, %v6236
        %v6238 = vrot.slane %v5053, %v6237
        %v6239 = vlaneseq
        %v6240 = vshrl.u32 %v6239, 7
        %v6241 = vsub.s32 %v5602, %v6240
        %v6242 = vrot.slane %v5056, %v6241
        %v6243 = vlaneseq
        %v6244 = vshrl.u32 %v6243, 7
        %v6245 = vsub.s32 %v5602, %v6244
        %v6246 = vrot.slane %v5059, %v6245
        %v6247 = vlaneseq
        %v6248 = vshrl.u32 %v6247, 7
        %v6249 = vsub.s32 %v5602, %v6248
        %v6250 = vrot.slane %v5062, %v6249
        %v6251 = vlaneseq
        %v6252 = vshrl.u32 %v6251, 7
        %v6253 = vsub.s32 %v5602, %v6252
        %v6254 = vrot.slane %v5065, %v6253
        %v6255 = vlaneseq
        %v6256 = vshrl.u32 %v6255, 7
        %v6257 = vsub.s32 %v5602, %v6256
        %v6258 = vrot.slane %v5068, %v6257
        %v6259 = vlaneseq
        %v6260 = vshrl.u32 %v6259, 7
        %v6261 = vsub.s32 %v5602, %v6260
        %v6262 = vrot.slane %v5071, %v6261
        %v6263 = vlaneseq
        %v6264 = vshrl.u32 %v6263, 7
        %v6265 = vsub.s32 %v5602, %v6264
        %v6266 = vrot.slane %v5074, %v6265
        %v6267 = vlaneseq
        %v6268 = vshrl.u32 %v6267, 7
        %v6269 = vsub.s32 %v5602, %v6268
        %v6270 = vrot.slane %v5077, %v6269
        %v6271 = vlaneseq
        %v6272 = vshrl.u32 %v6271, 7
        %v6273 = vsub.s32 %v5602, %v6272
        %v6274 = vrot.slane %v5080, %v6273
        %v6275 = vlaneseq
        %v6276 = vshrl.u32 %v6275, 7
        %v6277 = vsub.s32 %v5602, %v6276
        %v6278 = vrot.slane %v5083, %v6277
        %v6279 = vlaneseq
        %v6280 = vshrl.u32 %v6279, 7
        %v6281 = vsub.s32 %v5602, %v6280
        %v6282 = vrot.slane %v5086, %v6281
        %v6283 = vlaneseq
        %v6284 = vshrl.u32 %v6283, 7
        %v6285 = vsub.s32 %v5602, %v6284
        %v6286 = vrot.slane %v5089, %v6285
        %v6287 = vlaneseq
        %v6288 = vshrl.u32 %v6287, 7
        %v6289 = vsub.s32 %v5602, %v6288
        %v6290 = vrot.slane %v5092, %v6289
        %v6291 = vlaneseq
        %v6292 = vshrl.u32 %v6291, 7
        %v6293 = vsub.s32 %v5602, %v6292
        %v6294 = vrot.slane %v5095, %v6293
        %v6295 = vlaneseq
        %v6296 = vshrl.u32 %v6295, 7
        %v6297 = vsub.s32 %v5602, %v6296
        %v6298 = vrot.slane %v5098, %v6297
        %v6299 = vlaneseq
        %v6300 = vshrl.u32 %v6299, 7
        %v6301 = vsub.s32 %v5602, %v6300
        %v6302 = vrot.slane %v5101, %v6301
        %v6303 = vlaneseq
        %v6304 = vshrl.u32 %v6303, 7
        %v6305 = vsub.s32 %v5602, %v6304
        %v6306 = vrot.slane %v5104, %v6305
        %v6307 = vlaneseq
        %v6308 = vshrl.u32 %v6307, 7
        %v6309 = vsub.s32 %v5602, %v6308
        %v6310 = vrot.slane %v5107, %v6309
        %v6311 = vlaneseq
        %v6312 = vshrl.u32 %v6311, 7
        %v6313 = vsub.s32 %v5602, %v6312
        %v6314 = vrot.slane %v5110, %v6313
        %v6315 = vlaneseq
        %v6316 = vshrl.u32 %v6315, 7
        %v6317 = vsub.s32 %v5602, %v6316
        %v6318 = vrot.slane %v5113, %v6317
        %v6319 = vlaneseq
        %v6320 = vshrl.u32 %v6319, 7
        %v6321 = vsub.s32 %v5602, %v6320
        %v6322 = vrot.slane %v5116, %v6321
        %v6323 = vlaneseq
        %v6324 = vshrl.u32 %v6323, 7
        %v6325 = vsub.s32 %v5602, %v6324
        %v6326 = vrot.slane %v5119, %v6325
        %v6327 = vlaneseq
        %v6328 = vshrl.u32 %v6327, 7
        %v6329 = vsub.s32 %v5602, %v6328
        %v6330 = vrot.slane %v5122, %v6329
        %v6331 = vlaneseq
        %v6332 = vshrl.u32 %v6331, 7
        %v6333 = vsub.s32 %v5602, %v6332
        %v6334 = vrot.slane %v5125, %v6333
        %v6335 = vlaneseq
        %v6336 = vshrl.u32 %v6335, 7
        %v6337 = vsub.s32 %v5602, %v6336
        %v6338 = vrot.slane %v5128, %v6337
        %v6339 = vlaneseq
        %v6340 = vshrl.u32 %v6339, 7
        %v6341 = vsub.s32 %v5602, %v6340
        %v6342 = vrot.slane %v5131, %v6341
        %v6343 = vlaneseq
        %v6344 = vshrl.u32 %v6343, 7
        %v6345 = vsub.s32 %v5602, %v6344
        %v6346 = vrot.slane %v5134, %v6345
        %v6347 = vlaneseq
        %v6348 = vshrl.u32 %v6347, 7
        %v6349 = vsub.s32 %v5602, %v6348
        %v6350 = vrot.slane %v5137, %v6349
        %v6351 = vlaneseq
        %v6352 = vshrl.u32 %v6351, 7
        %v6353 = vsub.s32 %v5602, %v6352
        %v6354 = vrot.slane %v5140, %v6353
        %v6355 = vlaneseq
        %v6356 = vshrl.u32 %v6355, 7
        %v6357 = vsub.s32 %v5602, %v6356
        %v6358 = vrot.slane %v5143, %v6357
        %v6359 = vlaneseq
        %v6360 = vshrl.u32 %v6359, 7
        %v6361 = vsub.s32 %v5602, %v6360
        %v6362 = vrot.slane %v5146, %v6361
        %v6363 = vlaneseq
        %v6364 = vshrl.u32 %v6363, 7
        %v6365 = vsub.s32 %v5602, %v6364
        %v6366 = vrot.slane %v5149, %v6365
        %v6367 = vlaneseq
        %v6368 = vshrl.u32 %v6367, 7
        %v6369 = vsub.s32 %v5602, %v6368
        %v6370 = vrot.slane %v5152, %v6369
        %v6371 = vlaneseq
        %v6372 = vshrl.u32 %v6371, 7
        %v6373 = vsub.s32 %v5602, %v6372
        %v6374 = vrot.slane %v5155, %v6373
        %v6375 = vlaneseq
        %v6376 = vshrl.u32 %v6375, 7
        %v6377 = vsub.s32 %v5602, %v6376
        %v6378 = vrot.slane %v5158, %v6377
        %v6379 = vlaneseq
        %v6380 = vshrl.u32 %v6379, 7
        %v6381 = vsub.s32 %v5602, %v6380
        %v6382 = vrot.slane %v5161, %v6381
        %v6383 = vlaneseq
        %v6384 = vshrl.u32 %v6383, 7
        %v6385 = vsub.s32 %v5602, %v6384
        %v6386 = vrot.slane %v5164, %v6385
        %v6387 = vlaneseq
        %v6388 = vshrl.u32 %v6387, 7
        %v6389 = vsub.s32 %v5602, %v6388
        %v6390 = vrot.slane %v5167, %v6389
        %v6391 = vlaneseq
        %v6392 = vshrl.u32 %v6391, 7
        %v6393 = vsub.s32 %v5602, %v6392
        %v6394 = vrot.slane %v5170, %v6393
        %v6395 = vlaneseq
        %v6396 = vshrl.u32 %v6395, 7
        %v6397 = vsub.s32 %v5602, %v6396
        %v6398 = vrot.slane %v5173, %v6397
        %v6399 = vlaneseq
        %v6400 = vshrl.u32 %v6399, 7
        %v6401 = vsub.s32 %v5602, %v6400
        %v6402 = vrot.slane %v5176, %v6401
        %v6403 = vlaneseq
        %v6404 = vshrl.u32 %v6403, 7
        %v6405 = vsub.s32 %v5602, %v6404
        %v6406 = vrot.slane %v5179, %v6405
        %v6407 = vlaneseq
        %v6408 = vshrl.u32 %v6407, 7
        %v6409 = vsub.s32 %v5602, %v6408
        %v6410 = vrot.slane %v5182, %v6409
        %v6411 = vlaneseq
        %v6412 = vshrl.u32 %v6411, 7
        %v6413 = vsub.s32 %v5602, %v6412
        %v6414 = vrot.slane %v5185, %v6413
        %v6415 = vlaneseq
        %v6416 = vshrl.u32 %v6415, 7
        %v6417 = vsub.s32 %v5602, %v6416
        %v6418 = vrot.slane %v5188, %v6417
        %v6419 = vlaneseq
        %v6420 = vshrl.u32 %v6419, 7
        %v6421 = vsub.s32 %v5602, %v6420
        %v6422 = vrot.slane %v5191, %v6421
        %v6423 = vlaneseq
        %v6424 = vshrl.u32 %v6423, 7
        %v6425 = vsub.s32 %v5602, %v6424
        %v6426 = vrot.slane %v5194, %v6425
        %v6427 = vlaneseq
        %v6428 = vshrl.u32 %v6427, 7
        %v6429 = vsub.s32 %v5602, %v6428
        %v6430 = vrot.slane %v5197, %v6429
        %v6431 = vlaneseq
        %v6432 = vshrl.u32 %v6431, 7
        %v6433 = vsub.s32 %v5602, %v6432
        %v6434 = vrot.slane %v5200, %v6433
        %v6435 = vlaneseq
        %v6436 = vshrl.u32 %v6435, 7
        %v6437 = vsub.s32 %v5602, %v6436
        %v6438 = vrot.slane %v5203, %v6437
        %v6439 = vlaneseq
        %v6440 = vshrl.u32 %v6439, 7
        %v6441 = vsub.s32 %v5602, %v6440
        %v6442 = vrot.slane %v5206, %v6441
        %v6443 = vlaneseq
        %v6444 = vshrl.u32 %v6443, 7
        %v6445 = vsub.s32 %v5602, %v6444
        %v6446 = vrot.slane %v5209, %v6445
        %v6447 = vlaneseq
        %v6448 = vshrl.u32 %v6447, 7
        %v6449 = vsub.s32 %v5602, %v6448
        %v6450 = vrot.slane %v5212, %v6449
        %v6451 = vlaneseq
        %v6452 = vshrl.u32 %v6451, 7
        %v6453 = vsub.s32 %v5602, %v6452
        %v6454 = vrot.slane %v5215, %v6453
        %v6455 = vlaneseq
        %v6456 = vshrl.u32 %v6455, 7
        %v6457 = vsub.s32 %v5602, %v6456
        %v6458 = vrot.slane %v5218, %v6457
        %v6459 = vlaneseq
        %v6460 = vshrl.u32 %v6459, 7
        %v6461 = vsub.s32 %v5602, %v6460
        %v6462 = vrot.slane %v5221, %v6461
        %v6463 = vlaneseq
        %v6464 = vshrl.u32 %v6463, 7
        %v6465 = vsub.s32 %v5602, %v6464
        %v6466 = vrot.slane %v5224, %v6465
        %v6467 = vlaneseq
        %v6468 = vshrl.u32 %v6467, 7
        %v6469 = vsub.s32 %v5602, %v6468
        %v6470 = vrot.slane %v5227, %v6469
        %v6471 = vlaneseq
        %v6472 = vshrl.u32 %v6471, 7
        %v6473 = vsub.s32 %v5602, %v6472
        %v6474 = vrot.slane %v5230, %v6473
        %v6475 = vlaneseq
        %v6476 = vshrl.u32 %v6475, 7
        %v6477 = vsub.s32 %v5602, %v6476
        %v6478 = vrot.slane %v5233, %v6477
        %v6479 = vlaneseq
        %v6480 = vshrl.u32 %v6479, 7
        %v6481 = vsub.s32 %v5602, %v6480
        %v6482 = vrot.slane %v5236, %v6481
        %v6483 = vlaneseq
        %v6484 = vshrl.u32 %v6483, 7
        %v6485 = vsub.s32 %v5602, %v6484
        %v6486 = vrot.slane %v5239, %v6485
        %v6487 = vlaneseq
        %v6488 = vshrl.u32 %v6487, 7
        %v6489 = vsub.s32 %v5602, %v6488
        %v6490 = vrot.slane %v5242, %v6489
        %v6491 = vlaneseq
        %v6492 = vshrl.u32 %v6491, 7
        %v6493 = vsub.s32 %v5602, %v6492
        %v6494 = vrot.slane %v5245, %v6493
        %v6495 = vlaneseq
        %v6496 = vshrl.u32 %v6495, 7
        %v6497 = vsub.s32 %v5602, %v6496
        %v6498 = vrot.slane %v5248, %v6497
        %v6499 = vlaneseq
        %v6500 = vshrl.u32 %v6499, 7
        %v6501 = vsub.s32 %v5602, %v6500
        %v6502 = vrot.slane %v5251, %v6501
        %v6503 = vlaneseq
        %v6504 = vshrl.u32 %v6503, 7
        %v6505 = vsub.s32 %v5602, %v6504
        %v6506 = vrot.slane %v5254, %v6505
        %v6507 = vlaneseq
        %v6508 = vshrl.u32 %v6507, 7
        %v6509 = vsub.s32 %v5602, %v6508
        %v6510 = vrot.slane %v5257, %v6509
        %v6511 = vlaneseq
        %v6512 = vshrl.u32 %v6511, 7
        %v6513 = vsub.s32 %v5602, %v6512
        %v6514 = vrot.slane %v5260, %v6513
        %v6515 = vlaneseq
        %v6516 = vshrl.u32 %v6515, 7
        %v6517 = vsub.s32 %v5602, %v6516
        %v6518 = vrot.slane %v5263, %v6517
        %v6519 = vlaneseq
        %v6520 = vshrl.u32 %v6519, 7
        %v6521 = vsub.s32 %v5602, %v6520
        %v6522 = vrot.slane %v5266, %v6521
        %v6523 = vlaneseq
        %v6524 = vshrl.u32 %v6523, 7
        %v6525 = vsub.s32 %v5602, %v6524
        %v6526 = vrot.slane %v5269, %v6525
        %v6527 = vlaneseq
        %v6528 = vshrl.u32 %v6527, 7
        %v6529 = vsub.s32 %v5602, %v6528
        %v6530 = vrot.slane %v5272, %v6529
        %v6531 = vlaneseq
        %v6532 = vshrl.u32 %v6531, 7
        %v6533 = vsub.s32 %v5602, %v6532
        %v6534 = vrot.slane %v5275, %v6533
        %v6535 = vlaneseq
        %v6536 = vshrl.u32 %v6535, 7
        %v6537 = vsub.s32 %v5602, %v6536
        %v6538 = vrot.slane %v5278, %v6537
        %v6539 = vlaneseq
        %v6540 = vshrl.u32 %v6539, 7
        %v6541 = vsub.s32 %v5602, %v6540
        %v6542 = vrot.slane %v5281, %v6541
        %v6543 = vlaneseq
        %v6544 = vshrl.u32 %v6543, 7
        %v6545 = vsub.s32 %v5602, %v6544
        %v6546 = vrot.slane %v5284, %v6545
        %v6547 = vlaneseq
        %v6548 = vshrl.u32 %v6547, 7
        %v6549 = vsub.s32 %v5602, %v6548
        %v6550 = vrot.slane %v5287, %v6549
        %v6551 = vlaneseq
        %v6552 = vshrl.u32 %v6551, 7
        %v6553 = vsub.s32 %v5602, %v6552
        %v6554 = vrot.slane %v5290, %v6553
        %v6555 = vlaneseq
        %v6556 = vshrl.u32 %v6555, 7
        %v6557 = vsub.s32 %v5602, %v6556
        %v6558 = vrot.slane %v5293, %v6557
        %v6559 = vlaneseq
        %v6560 = vshrl.u32 %v6559, 7
        %v6561 = vsub.s32 %v5602, %v6560
        %v6562 = vrot.slane %v5296, %v6561
        %v6563 = vlaneseq
        %v6564 = vshrl.u32 %v6563, 7
        %v6565 = vsub.s32 %v5602, %v6564
        %v6566 = vrot.slane %v5299, %v6565
        %v6567 = vlaneseq
        %v6568 = vshrl.u32 %v6567, 7
        %v6569 = vsub.s32 %v5602, %v6568
        %v6570 = vrot.slane %v5302, %v6569
        %v6571 = vlaneseq
        %v6572 = vshrl.u32 %v6571, 7
        %v6573 = vsub.s32 %v5602, %v6572
        %v6574 = vrot.slane %v5305, %v6573
        %v6575 = vlaneseq
        %v6576 = vshrl.u32 %v6575, 7
        %v6577 = vsub.s32 %v5602, %v6576
        %v6578 = vrot.slane %v5308, %v6577
        %v6579 = vlaneseq
        %v6580 = vshrl.u32 %v6579, 7
        %v6581 = vsub.s32 %v5602, %v6580
        %v6582 = vrot.slane %v5311, %v6581
        %v6583 = vlaneseq
        %v6584 = vshrl.u32 %v6583, 7
        %v6585 = vsub.s32 %v5602, %v6584
        %v6586 = vrot.slane %v5314, %v6585
        %v6587 = vlaneseq
        %v6588 = vshrl.u32 %v6587, 7
        %v6589 = vsub.s32 %v5602, %v6588
        %v6590 = vrot.slane %v5317, %v6589
        %v6591 = vlaneseq
        %v6592 = vshrl.u32 %v6591, 7
        %v6593 = vsub.s32 %v5602, %v6592
        %v6594 = vrot.slane %v5320, %v6593
        %v6595 = vlaneseq
        %v6596 = vshrl.u32 %v6595, 7
        %v6597 = vsub.s32 %v5602, %v6596
        %v6598 = vrot.slane %v5323, %v6597
        %v6599 = vlaneseq
        %v6600 = vshrl.u32 %v6599, 7
        %v6601 = vsub.s32 %v5602, %v6600
        %v6602 = vrot.slane %v5326, %v6601
        %v6603 = vlaneseq
        %v6604 = vshrl.u32 %v6603, 7
        %v6605 = vsub.s32 %v5602, %v6604
        %v6606 = vrot.slane %v5329, %v6605
        %v6607 = vlaneseq
        %v6608 = vshrl.u32 %v6607, 7
        %v6609 = vsub.s32 %v5602, %v6608
        %v6610 = vrot.slane %v5332, %v6609
        %v6611 = vlaneseq
        %v6612 = vshrl.u32 %v6611, 7
        %v6613 = vsub.s32 %v5602, %v6612
        %v6614 = vrot.slane %v5335, %v6613
        %v6615 = vlaneseq
        %v6616 = vshrl.u32 %v6615, 7
        %v6617 = vsub.s32 %v5602, %v6616
        %v6618 = vrot.slane %v5338, %v6617
        %v6619 = vlaneseq
        %v6620 = vshrl.u32 %v6619, 7
        %v6621 = vsub.s32 %v5602, %v6620
        %v6622 = vrot.slane %v5341, %v6621
        %v6623 = vlaneseq
        %v6624 = vshrl.u32 %v6623, 7
        %v6625 = vsub.s32 %v5602, %v6624
        %v6626 = vrot.slane %v5344, %v6625
        %vm6627 = vcmask 1041409
        %v6628 = vsel %vm6627, %v5610, %v5606
        %vm6629 = vcmask 1042434
        %v6630 = vsel %vm6629, %v5614, %v6628
        %vm6631 = vcmask 1043459
        %v6632 = vsel %vm6631, %v5618, %v6630
        %vm6633 = vcmask 1044484
        %v6634 = vsel %vm6633, %v5622, %v6632
        %vm6635 = vcmask 1045509
        %v6636 = vsel %vm6635, %v5626, %v6634
        %vm6637 = vcmask 1046534
        %v6638 = vsel %vm6637, %v5630, %v6636
        %vm6639 = vcmask 1047559
        %v6640 = vsel %vm6639, %v5634, %v6638
        %v6641 = vsel %vm6627, %v5642, %v5638
        %v6642 = vsel %vm6629, %v5646, %v6641
        %v6643 = vsel %vm6631, %v5650, %v6642
        %v6644 = vsel %vm6633, %v5654, %v6643
        %v6645 = vsel %vm6635, %v5658, %v6644
        %v6646 = vsel %vm6637, %v5662, %v6645
        %v6647 = vsel %vm6639, %v5666, %v6646
        %v6648 = vsel %vm6627, %v5674, %v5670
        %v6649 = vsel %vm6629, %v5678, %v6648
        %v6650 = vsel %vm6631, %v5682, %v6649
        %v6651 = vsel %vm6633, %v5686, %v6650
        %v6652 = vsel %vm6635, %v5690, %v6651
        %v6653 = vsel %vm6637, %v5694, %v6652
        %v6654 = vsel %vm6639, %v5698, %v6653
        %v6655 = vsel %vm6627, %v5706, %v5702
        %v6656 = vsel %vm6629, %v5710, %v6655
        %v6657 = vsel %vm6631, %v5714, %v6656
        %v6658 = vsel %vm6633, %v5718, %v6657
        %v6659 = vsel %vm6635, %v5722, %v6658
        %v6660 = vsel %vm6637, %v5726, %v6659
        %v6661 = vsel %vm6639, %v5730, %v6660
        %v6662 = vsel %vm6627, %v5738, %v5734
        %v6663 = vsel %vm6629, %v5742, %v6662
        %v6664 = vsel %vm6631, %v5746, %v6663
        %v6665 = vsel %vm6633, %v5750, %v6664
        %v6666 = vsel %vm6635, %v5754, %v6665
        %v6667 = vsel %vm6637, %v5758, %v6666
        %v6668 = vsel %vm6639, %v5762, %v6667
        %v6669 = vsel %vm6627, %v5770, %v5766
        %v6670 = vsel %vm6629, %v5774, %v6669
        %v6671 = vsel %vm6631, %v5778, %v6670
        %v6672 = vsel %vm6633, %v5782, %v6671
        %v6673 = vsel %vm6635, %v5786, %v6672
        %v6674 = vsel %vm6637, %v5790, %v6673
        %v6675 = vsel %vm6639, %v5794, %v6674
        %v6676 = vsel %vm6627, %v5802, %v5798
        %v6677 = vsel %vm6629, %v5806, %v6676
        %v6678 = vsel %vm6631, %v5810, %v6677
        %v6679 = vsel %vm6633, %v5814, %v6678
        %v6680 = vsel %vm6635, %v5818, %v6679
        %v6681 = vsel %vm6637, %v5822, %v6680
        %v6682 = vsel %vm6639, %v5826, %v6681
        %v6683 = vsel %vm6627, %v5834, %v5830
        %v6684 = vsel %vm6629, %v5838, %v6683
        %v6685 = vsel %vm6631, %v5842, %v6684
        %v6686 = vsel %vm6633, %v5846, %v6685
        %v6687 = vsel %vm6635, %v5850, %v6686
        %v6688 = vsel %vm6637, %v5854, %v6687
        %v6689 = vsel %vm6639, %v5858, %v6688
        %v6690 = vsel %vm6627, %v5866, %v5862
        %v6691 = vsel %vm6629, %v5870, %v6690
        %v6692 = vsel %vm6631, %v5874, %v6691
        %v6693 = vsel %vm6633, %v5878, %v6692
        %v6694 = vsel %vm6635, %v5882, %v6693
        %v6695 = vsel %vm6637, %v5886, %v6694
        %v6696 = vsel %vm6639, %v5890, %v6695
        %v6697 = vsel %vm6627, %v5898, %v5894
        %v6698 = vsel %vm6629, %v5902, %v6697
        %v6699 = vsel %vm6631, %v5906, %v6698
        %v6700 = vsel %vm6633, %v5910, %v6699
        %v6701 = vsel %vm6635, %v5914, %v6700
        %v6702 = vsel %vm6637, %v5918, %v6701
        %v6703 = vsel %vm6639, %v5922, %v6702
        %v6704 = vsel %vm6627, %v5930, %v5926
        %v6705 = vsel %vm6629, %v5934, %v6704
        %v6706 = vsel %vm6631, %v5938, %v6705
        %v6707 = vsel %vm6633, %v5942, %v6706
        %v6708 = vsel %vm6635, %v5946, %v6707
        %v6709 = vsel %vm6637, %v5950, %v6708
        %v6710 = vsel %vm6639, %v5954, %v6709
        %v6711 = vsel %vm6627, %v5962, %v5958
        %v6712 = vsel %vm6629, %v5966, %v6711
        %v6713 = vsel %vm6631, %v5970, %v6712
        %v6714 = vsel %vm6633, %v5974, %v6713
        %v6715 = vsel %vm6635, %v5978, %v6714
        %v6716 = vsel %vm6637, %v5982, %v6715
        %v6717 = vsel %vm6639, %v5986, %v6716
        %v6718 = vsel %vm6627, %v5994, %v5990
        %v6719 = vsel %vm6629, %v5998, %v6718
        %v6720 = vsel %vm6631, %v6002, %v6719
        %v6721 = vsel %vm6633, %v6006, %v6720
        %v6722 = vsel %vm6635, %v6010, %v6721
        %v6723 = vsel %vm6637, %v6014, %v6722
        %v6724 = vsel %vm6639, %v6018, %v6723
        %v6725 = vsel %vm6627, %v6026, %v6022
        %v6726 = vsel %vm6629, %v6030, %v6725
        %v6727 = vsel %vm6631, %v6034, %v6726
        %v6728 = vsel %vm6633, %v6038, %v6727
        %v6729 = vsel %vm6635, %v6042, %v6728
        %v6730 = vsel %vm6637, %v6046, %v6729
        %v6731 = vsel %vm6639, %v6050, %v6730
        %v6732 = vsel %vm6627, %v6058, %v6054
        %v6733 = vsel %vm6629, %v6062, %v6732
        %v6734 = vsel %vm6631, %v6066, %v6733
        %v6735 = vsel %vm6633, %v6070, %v6734
        %v6736 = vsel %vm6635, %v6074, %v6735
        %v6737 = vsel %vm6637, %v6078, %v6736
        %v6738 = vsel %vm6639, %v6082, %v6737
        %v6739 = vsel %vm6627, %v6090, %v6086
        %v6740 = vsel %vm6629, %v6094, %v6739
        %v6741 = vsel %vm6631, %v6098, %v6740
        %v6742 = vsel %vm6633, %v6102, %v6741
        %v6743 = vsel %vm6635, %v6106, %v6742
        %v6744 = vsel %vm6637, %v6110, %v6743
        %v6745 = vsel %vm6639, %v6114, %v6744
        %v6746 = vsel %vm6627, %v6122, %v6118
        %v6747 = vsel %vm6629, %v6126, %v6746
        %v6748 = vsel %vm6631, %v6130, %v6747
        %v6749 = vsel %vm6633, %v6134, %v6748
        %v6750 = vsel %vm6635, %v6138, %v6749
        %v6751 = vsel %vm6637, %v6142, %v6750
        %v6752 = vsel %vm6639, %v6146, %v6751
        %v6753 = vsel %vm6627, %v6154, %v6150
        %v6754 = vsel %vm6629, %v6158, %v6753
        %v6755 = vsel %vm6631, %v6162, %v6754
        %v6756 = vsel %vm6633, %v6166, %v6755
        %v6757 = vsel %vm6635, %v6170, %v6756
        %v6758 = vsel %vm6637, %v6174, %v6757
        %v6759 = vsel %vm6639, %v6178, %v6758
        %v6760 = vsel %vm6627, %v6186, %v6182
        %v6761 = vsel %vm6629, %v6190, %v6760
        %v6762 = vsel %vm6631, %v6194, %v6761
        %v6763 = vsel %vm6633, %v6198, %v6762
        %v6764 = vsel %vm6635, %v6202, %v6763
        %v6765 = vsel %vm6637, %v6206, %v6764
        %v6766 = vsel %vm6639, %v6210, %v6765
        %v6767 = vsel %vm6627, %v6218, %v6214
        %v6768 = vsel %vm6629, %v6222, %v6767
        %v6769 = vsel %vm6631, %v6226, %v6768
        %v6770 = vsel %vm6633, %v6230, %v6769
        %v6771 = vsel %vm6635, %v6234, %v6770
        %v6772 = vsel %vm6637, %v6238, %v6771
        %v6773 = vsel %vm6639, %v6242, %v6772
        %v6774 = vsel %vm6627, %v6250, %v6246
        %v6775 = vsel %vm6629, %v6254, %v6774
        %v6776 = vsel %vm6631, %v6258, %v6775
        %v6777 = vsel %vm6633, %v6262, %v6776
        %v6778 = vsel %vm6635, %v6266, %v6777
        %v6779 = vsel %vm6637, %v6270, %v6778
        %v6780 = vsel %vm6639, %v6274, %v6779
        %v6781 = vsel %vm6627, %v6282, %v6278
        %v6782 = vsel %vm6629, %v6286, %v6781
        %v6783 = vsel %vm6631, %v6290, %v6782
        %v6784 = vsel %vm6633, %v6294, %v6783
        %v6785 = vsel %vm6635, %v6298, %v6784
        %v6786 = vsel %vm6637, %v6302, %v6785
        %v6787 = vsel %vm6639, %v6306, %v6786
        %v6788 = vsel %vm6627, %v6314, %v6310
        %v6789 = vsel %vm6629, %v6318, %v6788
        %v6790 = vsel %vm6631, %v6322, %v6789
        %v6791 = vsel %vm6633, %v6326, %v6790
        %v6792 = vsel %vm6635, %v6330, %v6791
        %v6793 = vsel %vm6637, %v6334, %v6792
        %v6794 = vsel %vm6639, %v6338, %v6793
        %v6795 = vsel %vm6627, %v6346, %v6342
        %v6796 = vsel %vm6629, %v6350, %v6795
        %v6797 = vsel %vm6631, %v6354, %v6796
        %v6798 = vsel %vm6633, %v6358, %v6797
        %v6799 = vsel %vm6635, %v6362, %v6798
        %v6800 = vsel %vm6637, %v6366, %v6799
        %v6801 = vsel %vm6639, %v6370, %v6800
        %v6802 = vsel %vm6627, %v6378, %v6374
        %v6803 = vsel %vm6629, %v6382, %v6802
        %v6804 = vsel %vm6631, %v6386, %v6803
        %v6805 = vsel %vm6633, %v6390, %v6804
        %v6806 = vsel %vm6635, %v6394, %v6805
        %v6807 = vsel %vm6637, %v6398, %v6806
        %v6808 = vsel %vm6639, %v6402, %v6807
        %v6809 = vsel %vm6627, %v6410, %v6406
        %v6810 = vsel %vm6629, %v6414, %v6809
        %v6811 = vsel %vm6631, %v6418, %v6810
        %v6812 = vsel %vm6633, %v6422, %v6811
        %v6813 = vsel %vm6635, %v6426, %v6812
        %v6814 = vsel %vm6637, %v6430, %v6813
        %v6815 = vsel %vm6639, %v6434, %v6814
        %v6816 = vsel %vm6627, %v6442, %v6438
        %v6817 = vsel %vm6629, %v6446, %v6816
        %v6818 = vsel %vm6631, %v6450, %v6817
        %v6819 = vsel %vm6633, %v6454, %v6818
        %v6820 = vsel %vm6635, %v6458, %v6819
        %v6821 = vsel %vm6637, %v6462, %v6820
        %v6822 = vsel %vm6639, %v6466, %v6821
        %v6823 = vsel %vm6627, %v6474, %v6470
        %v6824 = vsel %vm6629, %v6478, %v6823
        %v6825 = vsel %vm6631, %v6482, %v6824
        %v6826 = vsel %vm6633, %v6486, %v6825
        %v6827 = vsel %vm6635, %v6490, %v6826
        %v6828 = vsel %vm6637, %v6494, %v6827
        %v6829 = vsel %vm6639, %v6498, %v6828
        %v6830 = vsel %vm6627, %v6506, %v6502
        %v6831 = vsel %vm6629, %v6510, %v6830
        %v6832 = vsel %vm6631, %v6514, %v6831
        %v6833 = vsel %vm6633, %v6518, %v6832
        %v6834 = vsel %vm6635, %v6522, %v6833
        %v6835 = vsel %vm6637, %v6526, %v6834
        %v6836 = vsel %vm6639, %v6530, %v6835
        %v6837 = vsel %vm6627, %v6538, %v6534
        %v6838 = vsel %vm6629, %v6542, %v6837
        %v6839 = vsel %vm6631, %v6546, %v6838
        %v6840 = vsel %vm6633, %v6550, %v6839
        %v6841 = vsel %vm6635, %v6554, %v6840
        %v6842 = vsel %vm6637, %v6558, %v6841
        %v6843 = vsel %vm6639, %v6562, %v6842
        %v6844 = vsel %vm6627, %v6570, %v6566
        %v6845 = vsel %vm6629, %v6574, %v6844
        %v6846 = vsel %vm6631, %v6578, %v6845
        %v6847 = vsel %vm6633, %v6582, %v6846
        %v6848 = vsel %vm6635, %v6586, %v6847
        %v6849 = vsel %vm6637, %v6590, %v6848
        %v6850 = vsel %vm6639, %v6594, %v6849
        %v6851 = vsel %vm6627, %v6602, %v6598
        %v6852 = vsel %vm6629, %v6606, %v6851
        %v6853 = vsel %vm6631, %v6610, %v6852
        %v6854 = vsel %vm6633, %v6614, %v6853
        %v6855 = vsel %vm6635, %v6618, %v6854
        %v6856 = vsel %vm6637, %v6622, %v6855
        %v6857 = vsel %vm6639, %v6626, %v6856
        %6890 = vxpose.xlu0.b32.start [1/16] %v6640, 128
        %6891 = vxpose.xlu0.b32.cont [2/16] %v6647, 128
        %6892 = vxpose.xlu0.b32.cont [3/16] %v6654, 128
        %6893 = vxpose.xlu0.b32.cont [4/16] %v6661, 128
        %6894 = vxpose.xlu0.b32.cont [5/16] %v6668, 128
        %6895 = vxpose.xlu0.b32.cont [6/16] %v6675, 128
        %6896 = vxpose.xlu0.b32.cont [7/16] %v6682, 128
        %6897 = vxpose.xlu0.b32.cont [8/16] %v6689, 128
        %6898 = vxpose.xlu0.b32.cont [9/16] %v6696, 128
        %6899 = vxpose.xlu0.b32.cont [10/16] %v6703, 128
        %6900 = vxpose.xlu0.b32.cont [11/16] %v6710, 128
        %6901 = vxpose.xlu0.b32.cont [12/16] %v6717, 128
        %6902 = vxpose.xlu0.b32.cont [13/16] %v6724, 128
        %6903 = vxpose.xlu0.b32.cont [14/16] %v6731, 128
        %6904 = vxpose.xlu0.b32.cont [15/16] %v6738, 128
        %6905 = vxpose.xlu0.b32.end [16/16] %v6745, 128
        %v6906 = vpop.trf.xlu0
        %v6907 = vpop.trf.xlu0
        %v6908 = vpop.trf.xlu0
        %v6909 = vpop.trf.xlu0
        %v6910 = vpop.trf.xlu0
        %v6911 = vpop.trf.xlu0
        %v6912 = vpop.trf.xlu0
        %v6913 = vpop.trf.xlu0
        %v6914 = vpop.trf.xlu0
        %v6915 = vpop.trf.xlu0
        %v6916 = vpop.trf.xlu0
        %v6917 = vpop.trf.xlu0
        %v6918 = vpop.trf.xlu0
        %v6919 = vpop.trf.xlu0
        %v6920 = vpop.trf.xlu0
        %v6921 = vpop.trf.xlu0
        %6922 = vxpose.xlu0.b32.start [1/16] %v6752, 128
        %6923 = vxpose.xlu0.b32.cont [2/16] %v6759, 128
        %6924 = vxpose.xlu0.b32.cont [3/16] %v6766, 128
        %6925 = vxpose.xlu0.b32.cont [4/16] %v6773, 128
        %6926 = vxpose.xlu0.b32.cont [5/16] %v6780, 128
        %6927 = vxpose.xlu0.b32.cont [6/16] %v6787, 128
        %6928 = vxpose.xlu0.b32.cont [7/16] %v6794, 128
        %6929 = vxpose.xlu0.b32.cont [8/16] %v6801, 128
        %6930 = vxpose.xlu0.b32.cont [9/16] %v6808, 128
        %6931 = vxpose.xlu0.b32.cont [10/16] %v6815, 128
        %6932 = vxpose.xlu0.b32.cont [11/16] %v6822, 128
        %6933 = vxpose.xlu0.b32.cont [12/16] %v6829, 128
        %6934 = vxpose.xlu0.b32.cont [13/16] %v6836, 128
        %6935 = vxpose.xlu0.b32.cont [14/16] %v6843, 128
        %6936 = vxpose.xlu0.b32.cont [15/16] %v6850, 128
        %6937 = vxpose.xlu0.b32.end [16/16] %v6857, 128
        %v6938 = vpop.trf.xlu0
        %v6939 = vpop.trf.xlu0
        %v6940 = vpop.trf.xlu0
        %v6941 = vpop.trf.xlu0
        %v6942 = vpop.trf.xlu0
        %v6943 = vpop.trf.xlu0
        %v6944 = vpop.trf.xlu0
        %v6945 = vpop.trf.xlu0
        %v6946 = vpop.trf.xlu0
        %v6947 = vpop.trf.xlu0
        %v6948 = vpop.trf.xlu0
        %v6949 = vpop.trf.xlu0
        %v6950 = vpop.trf.xlu0
        %v6951 = vpop.trf.xlu0
        %v6952 = vpop.trf.xlu0
        %v6953 = vpop.trf.xlu0
        %6954 = vst [vmem:[%s1336] sm:$0xff] %v6906
        %6955 = vst [vmem:[%s1336 + $0x8] sm:$0xff] %v6938
        %s6956 = sand.u32 %s180, 1
        %s6957 = scalar_lea.sflag [#allocation4], %s6956
        %s6958 = sand.u32 %s180, 1
        %s6959 = smul.addr %s6958, 16
        %s6960 = scalar_lea.vmem [#allocation3], %s6959
        // Predicated region
        $region83: #{tpu_custom_call.1} parent=77 // pred_check
          %p6961 = pneg %p190
        $region84: #{tpu_custom_call.1} parent=77 // pred_check_branch
          %6963 = sbr.rel (%p6961) target = $region86
        $region85: #{tpu_custom_call.1} parent=77 // pred_region
          %s6964 = smul.u32 2, %s25
          %s6966 = ssub.s32 256, 256
          %6967 = vsyncadd %s6957, %s6966
          %s6968 = smul.addr %s24, 4
          %s6969 = sadd.s32 %s6964, %s6968
          %s6970 = smul.addr %s6969, 128
          %s6971 = scalar_lea.hbm %s6, %s6970
          %s6973 = sshll.u32 %s6960, 4
          %s6974 = int_to_ptr.vmem [resolvable:$true] %s6973
          %6976 = dma.vmem_to_hbm [thread:$0]  %s6974, 256, %s6971, %s6957
        $region86: #{tpu_custom_call.1} parent=77 // pred_fallthru
          _
      $region78: #{tpu_custom_call.1} parent=5 // pred_fallthru
        _
      %p6977 = scmp.le.s32.totalorder 2, %s15
      // Predicated region
      $region87: #{tpu_custom_call.1} parent=5 // pred_check
        %p6978 = pneg %p6977
      $region88: #{tpu_custom_call.1} parent=5 // pred_check_branch
        %6980 = sbr.rel (%p6978) target = $region90
      $region89: #{tpu_custom_call.1} parent=5 // pred_region
        %s6981 = ssub.s32 %s15, 2
        // Predicated region
        $region91: #{tpu_custom_call.1} parent=89 // pred_check
          %p6982 = pneg %p196
        $region92: #{tpu_custom_call.1} parent=89 // pred_check_branch
          %6984 = sbr.rel (%p6982) target = $region94
        $region93: #{tpu_custom_call.1} parent=89 // pred_region
          %s6985 = sand.u32 %s181, 1
          %s6986 = scalar_lea.sflag [#allocation4], %s6985
          %s6987 = sand.u32 %s181, 1
          %s6988 = smul.addr %s6987, 16
          %s6989 = scalar_lea.vmem [#allocation3], %s6988
          %6990 = dma.done %s6986, 256
        $region94: #{tpu_custom_call.1} parent=89 // pred_fallthru
          _
      $region90: #{tpu_custom_call.1} parent=5 // pred_fallthru
        _
    $region6: #{tpu_custom_call.1} parent=1 // loop_footer
      %s19 = sadd.s32 1, %s15
    $region7: #{tpu_custom_call.1} parent=1 // loop_footer_branch
      %14 = sbr.rel target = $region3
    $region8: #{tpu_custom_call.1} parent=1 // loop_exit
      _
    %6991 = vsyncpa [#allocation4], 1
    %s6992 = scalar_lea.sflag [#allocation4], 1
    %6993 = vsyncpa %s6992, 1

</llo_original>
